<compile_context>
chip_gen: v6e
topology: v6e:2x2x1
jax: 0.10.0
libtpu: 0.0.40
codegen_flags: <defaults>
</compile_context>

<pallas_src>
import functools

import jax
import jax.numpy as jnp
from jax.experimental import pallas as pl
from jax.experimental.pallas import tpu as pltpu

REF_ENC_FILTERS = [32, 32, 64, 64, 128, 128]


def _round_up(x, m):
    return (x + m - 1) // m * m


# ----------------------------------------------------------------------------
# Conv2d(3x3, stride 2, pad 1) + ReLU as one fused channel*tap MXU contraction
# per (batch, spatial tile).  bf16 operands, f32 accumulate, bf16 store.
# ----------------------------------------------------------------------------
def _conv_mm_relu_kernel(w_ref, b_ref, x_ref, o_ref):
    # w_ref: [Cout, CKp] bf16   b_ref: [Cout, 1] f32
    # x_ref: [1, CKp, TS] bf16  o_ref: [1, Cout, TS] bf16
    acc = jnp.dot(w_ref[...], x_ref[0], preferred_element_type=jnp.float32)
    o_ref[0] = jnp.maximum(acc + b_ref[...], 0.0).astype(jnp.bfloat16)


def conv2d_s2_relu(x, w, b):
    """x: [N, Cin, H, W] bf16; w: [Cout, Cin, 3, 3]; b: [Cout].  Stride 2, pad 1.
    Returns bf16 [N, Cout, Ho, Wo]."""
    N, Cin, H, W = x.shape
    Cout = w.shape[0]
    Ho = (H - 1) // 2 + 1
    Wo = (W - 1) // 2 + 1

    # Wrapper-side im2col in bf16 (tiny tensors here; bf16 halves its traffic).
    # TODO(synk): build the patches in-kernel from halo'd BlockSpec tiles to
    # remove this ~2.25x intermediate entirely for very long spectrograms.
    xp = jnp.pad(x, ((0, 0), (0, 0), (1, 1), (1, 1)))
    taps = []
    for kh in range(3):
        for kw in range(3):
            taps.append(jax.lax.slice(
                xp,
                (0, 0, kh, kw),
                (N, Cin, kh + 2 * Ho - 1, kw + 2 * Wo - 1),
                (1, 1, 2, 2)))
    cols = jnp.stack(taps, axis=2).reshape(N, Cin * 9, Ho * Wo)

    CK = Cin * 9
    CKp = _round_up(CK, 16)                    # bf16 sublane-friendly depth
    S = Ho * Wo
    s_tile_cap = 2048 if CK <= 288 else 1024   # bigger lane tiles on cheap-CK layers
    TS = min(_round_up(S, 128), s_tile_cap)    # lane-dense spatial tile
    Sp = _round_up(S, TS)

    cols = jnp.pad(cols, ((0, 0), (0, CKp - CK), (0, Sp - S))).astype(jnp.bfloat16)
    w2 = jnp.pad(w.reshape(Cout, CK), ((0, 0), (0, CKp - CK))).astype(jnp.bfloat16)
    b2 = b.reshape(Cout, 1).astype(jnp.float32)

    out = pl.pallas_call(
        _conv_mm_relu_kernel,
        out_shape=jax.ShapeDtypeStruct((N, Cout, Sp), jnp.bfloat16),
        grid_spec=pltpu.PrefetchScalarGridSpec(
            num_scalar_prefetch=0,
            grid=(N, Sp // TS),
            in_specs=[
                pl.BlockSpec((Cout, CKp), lambda n, s: (0, 0)),   # resident weights
                pl.BlockSpec((Cout, 1), lambda n, s: (0, 0)),     # resident bias
                pl.BlockSpec((1, CKp, TS), lambda n, s: (n, 0, s)),
            ],
            out_specs=pl.BlockSpec((1, Cout, TS), lambda n, s: (n, 0, s)),
        ),
        compiler_params=pltpu.CompilerParams(
            dimension_semantics=("parallel", "parallel")),
    )(w2, b2, cols)

    return out[:, :, :S].reshape(N, Cout, Ho, Wo)


# ----------------------------------------------------------------------------
# Fused GRU (hidden carried in VMEM scratch across time-chunks) + final proj.
# Input projection hoisted out of the per-step recurrence.
# ----------------------------------------------------------------------------
def _gru_proj_kernel(x_ref, wih_ref, whh_ref, bih_ref, bhh_ref,
                     wp_ref, bp_ref, o_ref, h_ref, *, hidden, t_chunk, t_total):
    c = pl.program_id(0)
    H = hidden
    Nb = h_ref.shape[0]

    @pl.when(c == 0)
    def _():
        h_ref[...] = jnp.zeros_like(h_ref)

    # Hoisted input projection: one matmul for the whole time chunk.
    x2 = x_ref[...].astype(jnp.float32)                      # [Tc*N, I]
    xg_all = (jnp.dot(x2, wih_ref[...], preferred_element_type=jnp.float32)
              + bih_ref[...])                                # [Tc*N, 3H]

    h = h_ref[...]                                           # [N, H] f32
    for i in range(t_chunk):                                 # static unroll
        xg = xg_all[i * Nb:(i + 1) * Nb, :]
        hg = (jnp.dot(h, whh_ref[...], preferred_element_type=jnp.float32)
              + bhh_ref[...])
        r = jax.nn.sigmoid(xg[:, 0:H] + hg[:, 0:H])
        z = jax.nn.sigmoid(xg[:, H:2 * H] + hg[:, H:2 * H])
        n = jnp.tanh(xg[:, 2 * H:3 * H] + r * hg[:, 2 * H:3 * H])
        h_new = (1.0 - z) * n + z * h
        valid = (c * t_chunk + i) < t_total                  # mask zero-padded steps
        h = jnp.where(valid, h_new, h)
    h_ref[...] = h

    @pl.when(c == pl.num_programs(0) - 1)
    def _():
        o_ref[...] = (jnp.dot(h, wp_ref[...],
                              preferred_element_type=jnp.float32) + bp_ref[...])


def gru_final_proj(seq, wih, whh, bih, bhh, wp, bp, *, t_chunk=8):
    """seq: [T, N, I] time-major (bf16 ok).  Returns proj(final GRU hidden): [N, G]."""
    T, N, I = seq.shape
    H = whh.shape[1]
    G = wp.shape[0]
    Tp = _round_up(T, t_chunk)
    seq2d = jnp.pad(seq, ((0, Tp - T), (0, 0), (0, 0))).reshape(Tp * N, I)

    kern = functools.partial(_gru_proj_kernel, hidden=H, t_chunk=t_chunk, t_total=T)
    return pl.pallas_call(
        kern,
        out_shape=jax.ShapeDtypeStruct((N, G), jnp.float32),
        grid_spec=pltpu.PrefetchScalarGridSpec(
            num_scalar_prefetch=0,
            grid=(Tp // t_chunk,),
            in_specs=[
                pl.BlockSpec((t_chunk * N, I), lambda c: (c, 0)),  # time-chunk inputs
                pl.BlockSpec((I, 3 * H), lambda c: (0, 0)),        # W_ih^T (resident)
                pl.BlockSpec((H, 3 * H), lambda c: (0, 0)),        # W_hh^T (resident)
                pl.BlockSpec((1, 3 * H), lambda c: (0, 0)),        # b_ih
                pl.BlockSpec((1, 3 * H), lambda c: (0, 0)),        # b_hh
                pl.BlockSpec((H, G), lambda c: (0, 0)),            # proj W^T
                pl.BlockSpec((1, G), lambda c: (0, 0)),            # proj b
            ],
            out_specs=pl.BlockSpec((N, G), lambda c: (0, 0)),
            scratch_shapes=[pltpu.VMEM((N, H), jnp.float32)],
        ),
        compiler_params=pltpu.CompilerParams(
            dimension_semantics=("arbitrary",)),
    )(seq2d,
      jnp.transpose(wih).astype(jnp.float32),
      jnp.transpose(whh).astype(jnp.float32),
      bih.reshape(1, 3 * H).astype(jnp.float32),
      bhh.reshape(1, 3 * H).astype(jnp.float32),
      jnp.transpose(wp).astype(jnp.float32),
      bp.reshape(1, G).astype(jnp.float32))


# ----------------------------------------------------------------------------
# Full forward pass.
# ----------------------------------------------------------------------------
def reference_encoder_forward(params, inputs):
    """inputs: [N, Ty, spec_channels] -> [N, gin_channels] (f32)."""
    N, Ty, spec = inputs.shape
    out = inputs.reshape(N, 1, Ty, spec).astype(jnp.bfloat16)
    for w, b in params["convs"]:
        out = conv2d_s2_relu(out, w, b)
    # out: [N, 128, T', C'] -> time-major [T', N, 128*C'] (channel-major flatten,
    # matching torch's transpose(1, 2).view(N, T, -1)).
    # TODO(synk): have the last conv emit time-major output via out_specs to
    # drop this (small) XLA transpose.
    Np, C, Tp_, Cp = out.shape
    seq = jnp.transpose(out, (2, 0, 1, 3)).reshape(Tp_, Np, C * Cp)
    wih, whh, bih, bhh = params["gru"]
    wp, bp = params["proj"]
    return gru_final_proj(seq, wih, whh, bih, bhh, wp, bp)


# ----------------------------------------------------------------------------
# Pure-JAX reference with matching dtypes (bf16 conv operands, f32 GRU).
# ----------------------------------------------------------------------------
def reference_encoder_ref(params, inputs):
    hp = jax.lax.Precision.HIGHEST
    x = inputs.reshape(inputs.shape[0], 1, inputs.shape[1],
                       inputs.shape[2]).astype(jnp.bfloat16)
    for w, b in params["convs"]:
        y = jax.lax.conv_general_dilated(
            x, w.astype(jnp.bfloat16), window_strides=(2, 2),
            padding=((1, 1), (1, 1)),
            dimension_numbers=("NCHW", "OIHW", "NCHW"),
            preferred_element_type=jnp.float32)
        x = jnp.maximum(y + b.reshape(1, -1, 1, 1), 0.0).astype(jnp.bfloat16)
    N, C, T, Cp = x.shape
    seq = jnp.transpose(x, (0, 2, 1, 3)).reshape(N, T, C * Cp).astype(jnp.float32)
    wih, whh, bih, bhh = params["gru"]
    H = whh.shape[1]
    h = jnp.zeros((N, H), jnp.float32)
    for t in range(T):
        xg = jnp.dot(seq[:, t], wih.T, precision=hp) + bih
        hg = jnp.dot(h, whh.T, precision=hp) + bhh
        r = jax.nn.sigmoid(xg[:, :H] + hg[:, :H])
        z = jax.nn.sigmoid(xg[:, H:2 * H] + hg[:, H:2 * H])
        n = jnp.tanh(xg[:, 2 * H:] + r * hg[:, 2 * H:])
        h = (1.0 - z) * n + z * h
    wp, bp = params["proj"]
    return jnp.dot(h, wp.T, precision=hp) + bp


# ----------------------------------------------------------------------------
# Deterministic synthetic parameter init (shapes follow the module __init__).
# ----------------------------------------------------------------------------
def init_params(key, spec_channels, gin_channels):
    filters = [1] + REF_ENC_FILTERS
    keys = iter(jax.random.split(key, 4 * len(REF_ENC_FILTERS) + 8))

    def nrm(shape, std=0.1):
        return std * jax.random.normal(next(keys), shape, jnp.float32)

    # weight_norm only reparameterizes; initialize effective weights directly.
    convs = [(nrm((filters[i + 1], filters[i], 3, 3)), nrm((filters[i + 1],)))
             for i in range(len(REF_ENC_FILTERS))]

    out_ch = spec_channels
    for _ in REF_ENC_FILTERS:
        out_ch = (out_ch - 3 + 2 * 1) // 2 + 1
    H = 256 // 2
    I = REF_ENC_FILTERS[-1] * out_ch
    gru = (nrm((3 * H, I), 0.05), nrm((3 * H, H), 0.05),
           nrm((3 * H,), 0.05), nrm((3 * H,), 0.05))
    proj = (nrm((gin_channels, H)), nrm((gin_channels,)))
    return {"convs": convs, "gru": gru, "proj": proj}


if __name__ == "__main__":
    spec_channels = 64     # n_mels * r
    gin_channels = 32
    N, Ty = 2, 128         # 6 stride-2 convs -> T' = 2, C' = 1, GRU input = 128

    key = jax.random.PRNGKey(0)
    pkey, xkey = jax.random.split(key)
    params = init_params(pkey, spec_channels, gin_channels)
    inputs = jax.random.normal(xkey, (N, Ty, spec_channels), jnp.float32)

    fwd = jax.jit(reference_encoder_forward)
    y = jax.block_until_ready(fwd(params, inputs))

    assert y.shape == (N, gin_channels), y.shape
    assert bool(jnp.all(jnp.isfinite(y)))

    y_ref = jax.block_until_ready(reference_encoder_ref(params, inputs))
    err = float(jnp.max(jnp.abs(y - y_ref)))
    # bf16 conv operands on both sides; residual diff is accumulation-order only.
    assert err < 1e-2, f"max abs err vs dtype-matched JAX reference: {err}"

    print("KERNEL_OK")
</pallas_src>

<mosaic_0001>
module attributes {stable_mosaic.version = 11 : i64} {
  func.func @_conv_mm_relu_kernel(%arg0: i32, %arg1: i32, %arg2: memref<32x16xbf16, #tpu.memory_space<vmem>>, %arg3: memref<32x1xf32, #tpu.memory_space<vmem>>, %arg4: memref<1x16x2048xbf16, #tpu.memory_space<vmem>>, %arg5: memref<1x32x2048xbf16, #tpu.memory_space<vmem>>) attributes {dimension_semantics = [#tpu.dimension_semantics<parallel>, #tpu.dimension_semantics<parallel>], iteration_bounds = array<i64: 2, 1>, scalar_prefetch = 0 : i64, scratch_operands = 0 : i64, tpu.core_type = #tpu.core_type<tc>, window_params = [{pipeline_mode = #tpu.pipeline_mode<synchronous>, transform_indices = @transform_0, window_bounds = array<i64: 32, 16>}, {pipeline_mode = #tpu.pipeline_mode<synchronous>, transform_indices = @transform_1, window_bounds = array<i64: 32, 1>}, {transform_indices = @transform_2, window_bounds = array<i64: 1, 16, 2048>}, {transform_indices = @transform_3, window_bounds = array<i64: 1, 32, 2048>}]} {
    %c0 = arith.constant 0 : index
    %c0_0 = arith.constant 0 : index
    %0 = vector.load %arg2[%c0, %c0_0] : memref<32x16xbf16, #tpu.memory_space<vmem>>, vector<32x16xbf16>
    %c0_1 = arith.constant 0 : index
    %c0_2 = arith.constant 0 : index
    %c0_3 = arith.constant 0 : index
    %1 = vector.load %arg4[%c0_1, %c0_2, %c0_3] : memref<1x16x2048xbf16, #tpu.memory_space<vmem>>, vector<1x16x2048xbf16>
    %2 = vector.shape_cast %1 : vector<1x16x2048xbf16> to vector<16x2048xbf16>
    %cst = arith.constant dense<0.000000e+00> : vector<32x2048xf32>
    %3 = tpu.matmul %0, %2, %cst {dimension_numbers = #tpu.dot_dimension_numbers<[1], [0], [0], [1], [0, 0, 1, 1], [], []>} : vector<32x16xbf16>, vector<16x2048xbf16>, vector<32x2048xf32> -> vector<32x2048xf32>
    %c0_4 = arith.constant 0 : index
    %c0_5 = arith.constant 0 : index
    %4 = vector.load %arg3[%c0_4, %c0_5] : memref<32x1xf32, #tpu.memory_space<vmem>>, vector<32x1xf32>
    %5 = vector.broadcast %4 : vector<32x1xf32> to vector<32x2048xf32>
    %6 = arith.addf %3, %5 : vector<32x2048xf32>
    %cst_6 = arith.constant 0.000000e+00 : f32
    %7 = vector.broadcast %cst_6 : f32 to vector<32x2048xf32>
    %8 = arith.maximumf %6, %7 : vector<32x2048xf32>
    %9 = arith.truncf %8 : vector<32x2048xf32> to vector<32x2048xbf16>
    %c0_7 = arith.constant 0 : index
    %c0_8 = arith.constant 0 : index
    %c0_9 = arith.constant 0 : index
    %10 = vector.load %arg5[%c0_7, %c0_8, %c0_9] : memref<1x32x2048xbf16, #tpu.memory_space<vmem>>, vector<1x32x2048xbf16>
    %11 = vector.shape_cast %10 : vector<1x32x2048xbf16> to vector<32x2048xbf16>
    %12 = vector.shape_cast %9 : vector<32x2048xbf16> to vector<1x32x2048xbf16>
    tpu.vector_store %arg5[%c0_7, %c0_8, %c0_9], %12 {strides = array<i32>} : memref<1x32x2048xbf16, #tpu.memory_space<vmem>>, vector<1x32x2048xbf16>,
    return
  }
  func.func @transform_0(%arg0: i32, %arg1: i32) -> (i32, i32) {
    %c0_i32 = arith.constant 0 : i32
    %c0_i32_0 = arith.constant 0 : i32
    %c0_i32_1 = arith.constant 0 : i32
    return %c0_i32, %c0_i32_0 : i32, i32
  }
  func.func @transform_1(%arg0: i32, %arg1: i32) -> (i32, i32) {
    %c0_i32 = arith.constant 0 : i32
    %c0_i32_0 = arith.constant 0 : i32
    %c0_i32_1 = arith.constant 0 : i32
    return %c0_i32, %c0_i32_0 : i32, i32
  }
  func.func @transform_2(%arg0: i32, %arg1: i32) -> (i32, i32, i32) {
    %c0_i32 = arith.constant 0 : i32
    %c0_i32_0 = arith.constant 0 : i32
    return %arg0, %c0_i32, %arg1 : i32, i32, i32
  }
  func.func @transform_3(%arg0: i32, %arg1: i32) -> (i32, i32, i32) {
    %c0_i32 = arith.constant 0 : i32
    %c0_i32_0 = arith.constant 0 : i32
    return %arg0, %c0_i32, %arg1 : i32, i32, i32
  }
}

module attributes {stable_mosaic.version = 11 : i64} {
  func.func @_conv_mm_relu_kernel(%arg0: i32, %arg1: i32, %arg2: memref<32x288xbf16, #tpu.memory_space<vmem>>, %arg3: memref<32x1xf32, #tpu.memory_space<vmem>>, %arg4: memref<1x288x512xbf16, #tpu.memory_space<vmem>>, %arg5: memref<1x32x512xbf16, #tpu.memory_space<vmem>>) attributes {dimension_semantics = [#tpu.dimension_semantics<parallel>, #tpu.dimension_semantics<parallel>], iteration_bounds = array<i64: 2, 1>, scalar_prefetch = 0 : i64, scratch_operands = 0 : i64, tpu.core_type = #tpu.core_type<tc>, window_params = [{pipeline_mode = #tpu.pipeline_mode<synchronous>, transform_indices = @transform_0, window_bounds = array<i64: 32, 288>}, {pipeline_mode = #tpu.pipeline_mode<synchronous>, transform_indices = @transform_1, window_bounds = array<i64: 32, 1>}, {transform_indices = @transform_2, window_bounds = array<i64: 1, 288, 512>}, {transform_indices = @transform_3, window_bounds = array<i64: 1, 32, 512>}]} {
    %c0 = arith.constant 0 : index
    %c0_0 = arith.constant 0 : index
    %0 = vector.load %arg2[%c0, %c0_0] : memref<32x288xbf16, #tpu.memory_space<vmem>>, vector<32x288xbf16>
    %c0_1 = arith.constant 0 : index
    %c0_2 = arith.constant 0 : index
    %c0_3 = arith.constant 0 : index
    %1 = vector.load %arg4[%c0_1, %c0_2, %c0_3] : memref<1x288x512xbf16, #tpu.memory_space<vmem>>, vector<1x288x512xbf16>
    %2 = vector.shape_cast %1 : vector<1x288x512xbf16> to vector<288x512xbf16>
    %cst = arith.constant dense<0.000000e+00> : vector<32x512xf32>
    %3 = tpu.matmul %0, %2, %cst {dimension_numbers = #tpu.dot_dimension_numbers<[1], [0], [0], [1], [0, 0, 1, 1], [], []>} : vector<32x288xbf16>, vector<288x512xbf16>, vector<32x512xf32> -> vector<32x512xf32>
    %c0_4 = arith.constant 0 : index
    %c0_5 = arith.constant 0 : index
    %4 = vector.load %arg3[%c0_4, %c0_5] : memref<32x1xf32, #tpu.memory_space<vmem>>, vector<32x1xf32>
    %5 = vector.broadcast %4 : vector<32x1xf32> to vector<32x512xf32>
    %6 = arith.addf %3, %5 : vector<32x512xf32>
    %cst_6 = arith.constant 0.000000e+00 : f32
    %7 = vector.broadcast %cst_6 : f32 to vector<32x512xf32>
    %8 = arith.maximumf %6, %7 : vector<32x512xf32>
    %9 = arith.truncf %8 : vector<32x512xf32> to vector<32x512xbf16>
    %c0_7 = arith.constant 0 : index
    %c0_8 = arith.constant 0 : index
    %c0_9 = arith.constant 0 : index
    %10 = vector.load %arg5[%c0_7, %c0_8, %c0_9] : memref<1x32x512xbf16, #tpu.memory_space<vmem>>, vector<1x32x512xbf16>
    %11 = vector.shape_cast %10 : vector<1x32x512xbf16> to vector<32x512xbf16>
    %12 = vector.shape_cast %9 : vector<32x512xbf16> to vector<1x32x512xbf16>
    tpu.vector_store %arg5[%c0_7, %c0_8, %c0_9], %12 {strides = array<i32>} : memref<1x32x512xbf16, #tpu.memory_space<vmem>>, vector<1x32x512xbf16>,
    return
  }
  func.func @transform_0(%arg0: i32, %arg1: i32) -> (i32, i32) {
    %c0_i32 = arith.constant 0 : i32
    %c0_i32_0 = arith.constant 0 : i32
    %c0_i32_1 = arith.constant 0 : i32
    return %c0_i32, %c0_i32_0 : i32, i32
  }
  func.func @transform_1(%arg0: i32, %arg1: i32) -> (i32, i32) {
    %c0_i32 = arith.constant 0 : i32
    %c0_i32_0 = arith.constant 0 : i32
    %c0_i32_1 = arith.constant 0 : i32
    return %c0_i32, %c0_i32_0 : i32, i32
  }
  func.func @transform_2(%arg0: i32, %arg1: i32) -> (i32, i32, i32) {
    %c0_i32 = arith.constant 0 : i32
    %c0_i32_0 = arith.constant 0 : i32
    return %arg0, %c0_i32, %arg1 : i32, i32, i32
  }
  func.func @transform_3(%arg0: i32, %arg1: i32) -> (i32, i32, i32) {
    %c0_i32 = arith.constant 0 : i32
    %c0_i32_0 = arith.constant 0 : i32
    return %arg0, %c0_i32, %arg1 : i32, i32, i32
  }
}

module attributes {stable_mosaic.version = 11 : i64} {
  func.func @_conv_mm_relu_kernel(%arg0: i32, %arg1: i32, %arg2: memref<64x288xbf16, #tpu.memory_space<vmem>>, %arg3: memref<64x1xf32, #tpu.memory_space<vmem>>, %arg4: memref<1x288x128xbf16, #tpu.memory_space<vmem>>, %arg5: memref<1x64x128xbf16, #tpu.memory_space<vmem>>) attributes {dimension_semantics = [#tpu.dimension_semantics<parallel>, #tpu.dimension_semantics<parallel>], iteration_bounds = array<i64: 2, 1>, scalar_prefetch = 0 : i64, scratch_operands = 0 : i64, tpu.core_type = #tpu.core_type<tc>, window_params = [{pipeline_mode = #tpu.pipeline_mode<synchronous>, transform_indices = @transform_0, window_bounds = array<i64: 64, 288>}, {pipeline_mode = #tpu.pipeline_mode<synchronous>, transform_indices = @transform_1, window_bounds = array<i64: 64, 1>}, {transform_indices = @transform_2, window_bounds = array<i64: 1, 288, 128>}, {transform_indices = @transform_3, window_bounds = array<i64: 1, 64, 128>}]} {
    %c0 = arith.constant 0 : index
    %c0_0 = arith.constant 0 : index
    %0 = vector.load %arg2[%c0, %c0_0] : memref<64x288xbf16, #tpu.memory_space<vmem>>, vector<64x288xbf16>
    %c0_1 = arith.constant 0 : index
    %c0_2 = arith.constant 0 : index
    %c0_3 = arith.constant 0 : index
    %1 = vector.load %arg4[%c0_1, %c0_2, %c0_3] : memref<1x288x128xbf16, #tpu.memory_space<vmem>>, vector<1x288x128xbf16>
    %2 = vector.shape_cast %1 : vector<1x288x128xbf16> to vector<288x128xbf16>
    %cst = arith.constant dense<0.000000e+00> : vector<64x128xf32>
    %3 = tpu.matmul %0, %2, %cst {dimension_numbers = #tpu.dot_dimension_numbers<[1], [0], [0], [1], [0, 0, 1, 1], [], []>} : vector<64x288xbf16>, vector<288x128xbf16>, vector<64x128xf32> -> vector<64x128xf32>
    %c0_4 = arith.constant 0 : index
    %c0_5 = arith.constant 0 : index
    %4 = vector.load %arg3[%c0_4, %c0_5] : memref<64x1xf32, #tpu.memory_space<vmem>>, vector<64x1xf32>
    %5 = vector.broadcast %4 : vector<64x1xf32> to vector<64x128xf32>
    %6 = arith.addf %3, %5 : vector<64x128xf32>
    %cst_6 = arith.constant 0.000000e+00 : f32
    %7 = vector.broadcast %cst_6 : f32 to vector<64x128xf32>
    %8 = arith.maximumf %6, %7 : vector<64x128xf32>
    %9 = arith.truncf %8 : vector<64x128xf32> to vector<64x128xbf16>
    %c0_7 = arith.constant 0 : index
    %c0_8 = arith.constant 0 : index
    %c0_9 = arith.constant 0 : index
    %10 = vector.load %arg5[%c0_7, %c0_8, %c0_9] : memref<1x64x128xbf16, #tpu.memory_space<vmem>>, vector<1x64x128xbf16>
    %11 = vector.shape_cast %10 : vector<1x64x128xbf16> to vector<64x128xbf16>
    %12 = vector.shape_cast %9 : vector<64x128xbf16> to vector<1x64x128xbf16>
    tpu.vector_store %arg5[%c0_7, %c0_8, %c0_9], %12 {strides = array<i32>} : memref<1x64x128xbf16, #tpu.memory_space<vmem>>, vector<1x64x128xbf16>,
    return
  }
  func.func @transform_0(%arg0: i32, %arg1: i32) -> (i32, i32) {
    %c0_i32 = arith.constant 0 : i32
    %c0_i32_0 = arith.constant 0 : i32
    %c0_i32_1 = arith.constant 0 : i32
    return %c0_i32, %c0_i32_0 : i32, i32
  }
  func.func @transform_1(%arg0: i32, %arg1: i32) -> (i32, i32) {
    %c0_i32 = arith.constant 0 : i32
    %c0_i32_0 = arith.constant 0 : i32
    %c0_i32_1 = arith.constant 0 : i32
    return %c0_i32, %c0_i32_0 : i32, i32
  }
  func.func @transform_2(%arg0: i32, %arg1: i32) -> (i32, i32, i32) {
    %c0_i32 = arith.constant 0 : i32
    %c0_i32_0 = arith.constant 0 : i32
    return %arg0, %c0_i32, %arg1 : i32, i32, i32
  }
  func.func @transform_3(%arg0: i32, %arg1: i32) -> (i32, i32, i32) {
    %c0_i32 = arith.constant 0 : i32
    %c0_i32_0 = arith.constant 0 : i32
    return %arg0, %c0_i32, %arg1 : i32, i32, i32
  }
}

module attributes {stable_mosaic.version = 11 : i64} {
  func.func @_conv_mm_relu_kernel(%arg0: i32, %arg1: i32, %arg2: memref<64x576xbf16, #tpu.memory_space<vmem>>, %arg3: memref<64x1xf32, #tpu.memory_space<vmem>>, %arg4: memref<1x576x128xbf16, #tpu.memory_space<vmem>>, %arg5: memref<1x64x128xbf16, #tpu.memory_space<vmem>>) attributes {dimension_semantics = [#tpu.dimension_semantics<parallel>, #tpu.dimension_semantics<parallel>], iteration_bounds = array<i64: 2, 1>, scalar_prefetch = 0 : i64, scratch_operands = 0 : i64, tpu.core_type = #tpu.core_type<tc>, window_params = [{pipeline_mode = #tpu.pipeline_mode<synchronous>, transform_indices = @transform_0, window_bounds = array<i64: 64, 576>}, {pipeline_mode = #tpu.pipeline_mode<synchronous>, transform_indices = @transform_1, window_bounds = array<i64: 64, 1>}, {transform_indices = @transform_2, window_bounds = array<i64: 1, 576, 128>}, {transform_indices = @transform_3, window_bounds = array<i64: 1, 64, 128>}]} {
    %c0 = arith.constant 0 : index
    %c0_0 = arith.constant 0 : index
    %0 = vector.load %arg2[%c0, %c0_0] : memref<64x576xbf16, #tpu.memory_space<vmem>>, vector<64x576xbf16>
    %c0_1 = arith.constant 0 : index
    %c0_2 = arith.constant 0 : index
    %c0_3 = arith.constant 0 : index
    %1 = vector.load %arg4[%c0_1, %c0_2, %c0_3] : memref<1x576x128xbf16, #tpu.memory_space<vmem>>, vector<1x576x128xbf16>
    %2 = vector.shape_cast %1 : vector<1x576x128xbf16> to vector<576x128xbf16>
    %cst = arith.constant dense<0.000000e+00> : vector<64x128xf32>
    %3 = tpu.matmul %0, %2, %cst {dimension_numbers = #tpu.dot_dimension_numbers<[1], [0], [0], [1], [0, 0, 1, 1], [], []>} : vector<64x576xbf16>, vector<576x128xbf16>, vector<64x128xf32> -> vector<64x128xf32>
    %c0_4 = arith.constant 0 : index
    %c0_5 = arith.constant 0 : index
    %4 = vector.load %arg3[%c0_4, %c0_5] : memref<64x1xf32, #tpu.memory_space<vmem>>, vector<64x1xf32>
    %5 = vector.broadcast %4 : vector<64x1xf32> to vector<64x128xf32>
    %6 = arith.addf %3, %5 : vector<64x128xf32>
    %cst_6 = arith.constant 0.000000e+00 : f32
    %7 = vector.broadcast %cst_6 : f32 to vector<64x128xf32>
    %8 = arith.maximumf %6, %7 : vector<64x128xf32>
    %9 = arith.truncf %8 : vector<64x128xf32> to vector<64x128xbf16>
    %c0_7 = arith.constant 0 : index
    %c0_8 = arith.constant 0 : index
    %c0_9 = arith.constant 0 : index
    %10 = vector.load %arg5[%c0_7, %c0_8, %c0_9] : memref<1x64x128xbf16, #tpu.memory_space<vmem>>, vector<1x64x128xbf16>
    %11 = vector.shape_cast %10 : vector<1x64x128xbf16> to vector<64x128xbf16>
    %12 = vector.shape_cast %9 : vector<64x128xbf16> to vector<1x64x128xbf16>
    tpu.vector_store %arg5[%c0_7, %c0_8, %c0_9], %12 {strides = array<i32>} : memref<1x64x128xbf16, #tpu.memory_space<vmem>>, vector<1x64x128xbf16>,
    return
  }
  func.func @transform_0(%arg0: i32, %arg1: i32) -> (i32, i32) {
    %c0_i32 = arith.constant 0 : i32
    %c0_i32_0 = arith.constant 0 : i32
    %c0_i32_1 = arith.constant 0 : i32
    return %c0_i32, %c0_i32_0 : i32, i32
  }
  func.func @transform_1(%arg0: i32, %arg1: i32) -> (i32, i32) {
    %c0_i32 = arith.constant 0 : i32
    %c0_i32_0 = arith.constant 0 : i32
    %c0_i32_1 = arith.constant 0 : i32
    return %c0_i32, %c0_i32_0 : i32, i32
  }
  func.func @transform_2(%arg0: i32, %arg1: i32) -> (i32, i32, i32) {
    %c0_i32 = arith.constant 0 : i32
    %c0_i32_0 = arith.constant 0 : i32
    return %arg0, %c0_i32, %arg1 : i32, i32, i32
  }
  func.func @transform_3(%arg0: i32, %arg1: i32) -> (i32, i32, i32) {
    %c0_i32 = arith.constant 0 : i32
    %c0_i32_0 = arith.constant 0 : i32
    return %arg0, %c0_i32, %arg1 : i32, i32, i32
  }
}

module attributes {stable_mosaic.version = 11 : i64} {
  func.func @_conv_mm_relu_kernel(%arg0: i32, %arg1: i32, %arg2: memref<128x576xbf16, #tpu.memory_space<vmem>>, %arg3: memref<128x1xf32, #tpu.memory_space<vmem>>, %arg4: memref<1x576x128xbf16, #tpu.memory_space<vmem>>, %arg5: memref<1x128x128xbf16, #tpu.memory_space<vmem>>) attributes {dimension_semantics = [#tpu.dimension_semantics<parallel>, #tpu.dimension_semantics<parallel>], iteration_bounds = array<i64: 2, 1>, scalar_prefetch = 0 : i64, scratch_operands = 0 : i64, tpu.core_type = #tpu.core_type<tc>, window_params = [{pipeline_mode = #tpu.pipeline_mode<synchronous>, transform_indices = @transform_0, window_bounds = array<i64: 128, 576>}, {pipeline_mode = #tpu.pipeline_mode<synchronous>, transform_indices = @transform_1, window_bounds = array<i64: 128, 1>}, {transform_indices = @transform_2, window_bounds = array<i64: 1, 576, 128>}, {transform_indices = @transform_3, window_bounds = array<i64: 1, 128, 128>}]} {
    %c0 = arith.constant 0 : index
    %c0_0 = arith.constant 0 : index
    %0 = vector.load %arg2[%c0, %c0_0] : memref<128x576xbf16, #tpu.memory_space<vmem>>, vector<128x576xbf16>
    %c0_1 = arith.constant 0 : index
    %c0_2 = arith.constant 0 : index
    %c0_3 = arith.constant 0 : index
    %1 = vector.load %arg4[%c0_1, %c0_2, %c0_3] : memref<1x576x128xbf16, #tpu.memory_space<vmem>>, vector<1x576x128xbf16>
    %2 = vector.shape_cast %1 : vector<1x576x128xbf16> to vector<576x128xbf16>
    %cst = arith.constant dense<0.000000e+00> : vector<128x128xf32>
    %3 = tpu.matmul %0, %2, %cst {dimension_numbers = #tpu.dot_dimension_numbers<[1], [0], [0], [1], [0, 0, 1, 1], [], []>} : vector<128x576xbf16>, vector<576x128xbf16>, vector<128x128xf32> -> vector<128x128xf32>
    %c0_4 = arith.constant 0 : index
    %c0_5 = arith.constant 0 : index
    %4 = vector.load %arg3[%c0_4, %c0_5] : memref<128x1xf32, #tpu.memory_space<vmem>>, vector<128x1xf32>
    %5 = vector.broadcast %4 : vector<128x1xf32> to vector<128x128xf32>
    %6 = arith.addf %3, %5 : vector<128x128xf32>
    %cst_6 = arith.constant 0.000000e+00 : f32
    %7 = vector.broadcast %cst_6 : f32 to vector<128x128xf32>
    %8 = arith.maximumf %6, %7 : vector<128x128xf32>
    %9 = arith.truncf %8 : vector<128x128xf32> to vector<128x128xbf16>
    %c0_7 = arith.constant 0 : index
    %c0_8 = arith.constant 0 : index
    %c0_9 = arith.constant 0 : index
    %10 = vector.load %arg5[%c0_7, %c0_8, %c0_9] : memref<1x128x128xbf16, #tpu.memory_space<vmem>>, vector<1x128x128xbf16>
    %11 = vector.shape_cast %10 : vector<1x128x128xbf16> to vector<128x128xbf16>
    %12 = vector.shape_cast %9 : vector<128x128xbf16> to vector<1x128x128xbf16>
    tpu.vector_store %arg5[%c0_7, %c0_8, %c0_9], %12 {strides = array<i32>} : memref<1x128x128xbf16, #tpu.memory_space<vmem>>, vector<1x128x128xbf16>,
    return
  }
  func.func @transform_0(%arg0: i32, %arg1: i32) -> (i32, i32) {
    %c0_i32 = arith.constant 0 : i32
    %c0_i32_0 = arith.constant 0 : i32
    %c0_i32_1 = arith.constant 0 : i32
    return %c0_i32, %c0_i32_0 : i32, i32
  }
  func.func @transform_1(%arg0: i32, %arg1: i32) -> (i32, i32) {
    %c0_i32 = arith.constant 0 : i32
    %c0_i32_0 = arith.constant 0 : i32
    %c0_i32_1 = arith.constant 0 : i32
    return %c0_i32, %c0_i32_0 : i32, i32
  }
  func.func @transform_2(%arg0: i32, %arg1: i32) -> (i32, i32, i32) {
    %c0_i32 = arith.constant 0 : i32
    %c0_i32_0 = arith.constant 0 : i32
    return %arg0, %c0_i32, %arg1 : i32, i32, i32
  }
  func.func @transform_3(%arg0: i32, %arg1: i32) -> (i32, i32, i32) {
    %c0_i32 = arith.constant 0 : i32
    %c0_i32_0 = arith.constant 0 : i32
    return %arg0, %c0_i32, %arg1 : i32, i32, i32
  }
}

module attributes {stable_mosaic.version = 11 : i64} {
  func.func @_conv_mm_relu_kernel(%arg0: i32, %arg1: i32, %arg2: memref<128x1152xbf16, #tpu.memory_space<vmem>>, %arg3: memref<128x1xf32, #tpu.memory_space<vmem>>, %arg4: memref<1x1152x128xbf16, #tpu.memory_space<vmem>>, %arg5: memref<1x128x128xbf16, #tpu.memory_space<vmem>>) attributes {dimension_semantics = [#tpu.dimension_semantics<parallel>, #tpu.dimension_semantics<parallel>], iteration_bounds = array<i64: 2, 1>, scalar_prefetch = 0 : i64, scratch_operands = 0 : i64, tpu.core_type = #tpu.core_type<tc>, window_params = [{pipeline_mode = #tpu.pipeline_mode<synchronous>, transform_indices = @transform_0, window_bounds = array<i64: 128, 1152>}, {pipeline_mode = #tpu.pipeline_mode<synchronous>, transform_indices = @transform_1, window_bounds = array<i64: 128, 1>}, {transform_indices = @transform_2, window_bounds = array<i64: 1, 1152, 128>}, {transform_indices = @transform_3, window_bounds = array<i64: 1, 128, 128>}]} {
    %c0 = arith.constant 0 : index
    %c0_0 = arith.constant 0 : index
    %0 = vector.load %arg2[%c0, %c0_0] : memref<128x1152xbf16, #tpu.memory_space<vmem>>, vector<128x1152xbf16>
    %c0_1 = arith.constant 0 : index
    %c0_2 = arith.constant 0 : index
    %c0_3 = arith.constant 0 : index
    %1 = vector.load %arg4[%c0_1, %c0_2, %c0_3] : memref<1x1152x128xbf16, #tpu.memory_space<vmem>>, vector<1x1152x128xbf16>
    %2 = vector.shape_cast %1 : vector<1x1152x128xbf16> to vector<1152x128xbf16>
    %cst = arith.constant dense<0.000000e+00> : vector<128x128xf32>
    %3 = tpu.matmul %0, %2, %cst {dimension_numbers = #tpu.dot_dimension_numbers<[1], [0], [0], [1], [0, 0, 1, 1], [], []>} : vector<128x1152xbf16>, vector<1152x128xbf16>, vector<128x128xf32> -> vector<128x128xf32>
    %c0_4 = arith.constant 0 : index
    %c0_5 = arith.constant 0 : index
    %4 = vector.load %arg3[%c0_4, %c0_5] : memref<128x1xf32, #tpu.memory_space<vmem>>, vector<128x1xf32>
    %5 = vector.broadcast %4 : vector<128x1xf32> to vector<128x128xf32>
    %6 = arith.addf %3, %5 : vector<128x128xf32>
    %cst_6 = arith.constant 0.000000e+00 : f32
    %7 = vector.broadcast %cst_6 : f32 to vector<128x128xf32>
    %8 = arith.maximumf %6, %7 : vector<128x128xf32>
    %9 = arith.truncf %8 : vector<128x128xf32> to vector<128x128xbf16>
    %c0_7 = arith.constant 0 : index
    %c0_8 = arith.constant 0 : index
    %c0_9 = arith.constant 0 : index
    %10 = vector.load %arg5[%c0_7, %c0_8, %c0_9] : memref<1x128x128xbf16, #tpu.memory_space<vmem>>, vector<1x128x128xbf16>
    %11 = vector.shape_cast %10 : vector<1x128x128xbf16> to vector<128x128xbf16>
    %12 = vector.shape_cast %9 : vector<128x128xbf16> to vector<1x128x128xbf16>
    tpu.vector_store %arg5[%c0_7, %c0_8, %c0_9], %12 {strides = array<i32>} : memref<1x128x128xbf16, #tpu.memory_space<vmem>>, vector<1x128x128xbf16>,
    return
  }
  func.func @transform_0(%arg0: i32, %arg1: i32) -> (i32, i32) {
    %c0_i32 = arith.constant 0 : i32
    %c0_i32_0 = arith.constant 0 : i32
    %c0_i32_1 = arith.constant 0 : i32
    return %c0_i32, %c0_i32_0 : i32, i32
  }
  func.func @transform_1(%arg0: i32, %arg1: i32) -> (i32, i32) {
    %c0_i32 = arith.constant 0 : i32
    %c0_i32_0 = arith.constant 0 : i32
    %c0_i32_1 = arith.constant 0 : i32
    return %c0_i32, %c0_i32_0 : i32, i32
  }
  func.func @transform_2(%arg0: i32, %arg1: i32) -> (i32, i32, i32) {
    %c0_i32 = arith.constant 0 : i32
    %c0_i32_0 = arith.constant 0 : i32
    return %arg0, %c0_i32, %arg1 : i32, i32, i32
  }
  func.func @transform_3(%arg0: i32, %arg1: i32) -> (i32, i32, i32) {
    %c0_i32 = arith.constant 0 : i32
    %c0_i32_0 = arith.constant 0 : i32
    return %arg0, %c0_i32, %arg1 : i32, i32, i32
  }
}

module attributes {stable_mosaic.version = 11 : i64} {
  func.func @_gru_proj_kernel(%arg0: i32, %arg1: memref<16x128xbf16, #tpu.memory_space<vmem>>, %arg2: memref<128x384xf32, #tpu.memory_space<vmem>>, %arg3: memref<128x384xf32, #tpu.memory_space<vmem>>, %arg4: memref<1x384xf32, #tpu.memory_space<vmem>>, %arg5: memref<1x384xf32, #tpu.memory_space<vmem>>, %arg6: memref<128x32xf32, #tpu.memory_space<vmem>>, %arg7: memref<1x32xf32, #tpu.memory_space<vmem>>, %arg8: memref<2x32xf32, #tpu.memory_space<vmem>>, %arg9: memref<2x128xf32, #tpu.memory_space<vmem>>) attributes {dimension_semantics = [#tpu.dimension_semantics<arbitrary>], iteration_bounds = array<i64: 1>, scalar_prefetch = 0 : i64, scratch_operands = 1 : i64, tpu.core_type = #tpu.core_type<tc>, window_params = [{transform_indices = @transform_0, window_bounds = array<i64: 16, 128>}, {pipeline_mode = #tpu.pipeline_mode<synchronous>, transform_indices = @transform_1, window_bounds = array<i64: 128, 384>}, {pipeline_mode = #tpu.pipeline_mode<synchronous>, transform_indices = @transform_2, window_bounds = array<i64: 128, 384>}, {pipeline_mode = #tpu.pipeline_mode<synchronous>, transform_indices = @transform_3, window_bounds = array<i64: 1, 384>}, {pipeline_mode = #tpu.pipeline_mode<synchronous>, transform_indices = @transform_4, window_bounds = array<i64: 1, 384>}, {pipeline_mode = #tpu.pipeline_mode<synchronous>, transform_indices = @transform_5, window_bounds = array<i64: 128, 32>}, {pipeline_mode = #tpu.pipeline_mode<synchronous>, transform_indices = @transform_6, window_bounds = array<i64: 1, 32>}, {pipeline_mode = #tpu.pipeline_mode<synchronous>, transform_indices = @transform_7, window_bounds = array<i64: 2, 32>}]} {
    %c0_i32 = arith.constant 0 : i32
    %0 = arith.cmpi eq, %arg0, %c0_i32 : i32
    %1 = arith.extui %0 : i1 to i32
    %c0_i32_0 = arith.constant 0 : i32
    %2 = arith.cmpi ne, %1, %c0_i32_0 : i32
    scf.if %2 {
      %cst_92 = arith.constant 0.000000e+00 : f32
      %303 = vector.broadcast %cst_92 : f32 to vector<2x128xf32>
      %c0_93 = arith.constant 0 : index
      %c0_94 = arith.constant 0 : index
      %304 = vector.load %arg9[%c0_93, %c0_94] : memref<2x128xf32, #tpu.memory_space<vmem>>, vector<2x128xf32>
      tpu.vector_store %arg9[%c0_93, %c0_94], %303 {strides = array<i32>} : memref<2x128xf32, #tpu.memory_space<vmem>>, vector<2x128xf32>,
    } else {
    }
    %c0 = arith.constant 0 : index
    %c0_1 = arith.constant 0 : index
    %3 = vector.load %arg1[%c0, %c0_1] : memref<16x128xbf16, #tpu.memory_space<vmem>>, vector<16x128xbf16>
    %4 = arith.extf %3 : vector<16x128xbf16> to vector<16x128xf32>
    %c0_2 = arith.constant 0 : index
    %c0_3 = arith.constant 0 : index
    %5 = vector.load %arg2[%c0_2, %c0_3] : memref<128x384xf32, #tpu.memory_space<vmem>>, vector<128x384xf32>
    %cst = arith.constant dense<0.000000e+00> : vector<16x384xf32>
    %6 = tpu.matmul %4, %5, %cst {dimension_numbers = #tpu.dot_dimension_numbers<[1], [0], [0], [1], [0, 0, 1, 1], [], []>} : vector<16x128xf32>, vector<128x384xf32>, vector<16x384xf32> -> vector<16x384xf32>
    %c0_4 = arith.constant 0 : index
    %c0_5 = arith.constant 0 : index
    %7 = vector.load %arg4[%c0_4, %c0_5] : memref<1x384xf32, #tpu.memory_space<vmem>>, vector<1x384xf32>
    %8 = vector.broadcast %7 : vector<1x384xf32> to vector<16x384xf32>
    %9 = arith.addf %6, %8 : vector<16x384xf32>
    %c0_6 = arith.constant 0 : index
    %c0_7 = arith.constant 0 : index
    %10 = vector.load %arg9[%c0_6, %c0_7] : memref<2x128xf32, #tpu.memory_space<vmem>>, vector<2x128xf32>
    %11 = vector.extract_strided_slice %9 {offsets = [0, 0], sizes = [2, 384], strides = [1, 1]} : vector<16x384xf32> to vector<2x384xf32>
    %c0_8 = arith.constant 0 : index
    %c0_9 = arith.constant 0 : index
    %12 = vector.load %arg3[%c0_8, %c0_9] : memref<128x384xf32, #tpu.memory_space<vmem>>, vector<128x384xf32>
    %cst_10 = arith.constant dense<0.000000e+00> : vector<2x384xf32>
    %13 = tpu.matmul %10, %12, %cst_10 {dimension_numbers = #tpu.dot_dimension_numbers<[1], [0], [0], [1], [0, 0, 1, 1], [], []>} : vector<2x128xf32>, vector<128x384xf32>, vector<2x384xf32> -> vector<2x384xf32>
    %c0_11 = arith.constant 0 : index
    %c0_12 = arith.constant 0 : index
    %14 = vector.load %arg5[%c0_11, %c0_12] : memref<1x384xf32, #tpu.memory_space<vmem>>, vector<1x384xf32>
    %15 = vector.broadcast %14 : vector<1x384xf32> to vector<2x384xf32>
    %16 = arith.addf %13, %15 : vector<2x384xf32>
    %17 = vector.extract_strided_slice %11 {offsets = [0, 0], sizes = [2, 128], strides = [1, 1]} : vector<2x384xf32> to vector<2x128xf32>
    %18 = vector.extract_strided_slice %16 {offsets = [0, 0], sizes = [2, 128], strides = [1, 1]} : vector<2x384xf32> to vector<2x128xf32>
    %19 = arith.addf %17, %18 : vector<2x128xf32>
    %20 = arith.negf %19 : vector<2x128xf32>
    %21 = math.exp %20 : vector<2x128xf32>
    %cst_13 = arith.constant 1.000000e+00 : f32
    %22 = vector.broadcast %cst_13 : f32 to vector<2x128xf32>
    %23 = arith.addf %22, %21 : vector<2x128xf32>
    %24 = arith.divf %22, %23 : vector<2x128xf32>
    %25 = vector.extract_strided_slice %11 {offsets = [0, 128], sizes = [2, 128], strides = [1, 1]} : vector<2x384xf32> to vector<2x128xf32>
    %26 = vector.extract_strided_slice %16 {offsets = [0, 128], sizes = [2, 128], strides = [1, 1]} : vector<2x384xf32> to vector<2x128xf32>
    %27 = arith.addf %25, %26 : vector<2x128xf32>
    %28 = arith.negf %27 : vector<2x128xf32>
    %29 = math.exp %28 : vector<2x128xf32>
    %cst_14 = arith.constant 1.000000e+00 : f32
    %30 = vector.broadcast %cst_14 : f32 to vector<2x128xf32>
    %31 = arith.addf %30, %29 : vector<2x128xf32>
    %32 = arith.divf %30, %31 : vector<2x128xf32>
    %33 = vector.extract_strided_slice %11 {offsets = [0, 256], sizes = [2, 128], strides = [1, 1]} : vector<2x384xf32> to vector<2x128xf32>
    %34 = vector.extract_strided_slice %16 {offsets = [0, 256], sizes = [2, 128], strides = [1, 1]} : vector<2x384xf32> to vector<2x128xf32>
    %35 = arith.mulf %24, %34 : vector<2x128xf32>
    %36 = arith.addf %33, %35 : vector<2x128xf32>
    %37 = math.tanh %36 : vector<2x128xf32>
    %cst_15 = arith.constant 1.000000e+00 : f32
    %38 = vector.broadcast %cst_15 : f32 to vector<2x128xf32>
    %39 = arith.subf %38, %32 : vector<2x128xf32>
    %40 = arith.mulf %39, %37 : vector<2x128xf32>
    %41 = arith.mulf %32, %10 : vector<2x128xf32>
    %42 = arith.addf %40, %41 : vector<2x128xf32>
    %c8_i32 = arith.constant 8 : i32
    %43 = arith.muli %arg0, %c8_i32 : i32
    %c0_i32_16 = arith.constant 0 : i32
    %44 = arith.addi %43, %c0_i32_16 : i32
    %c2_i32 = arith.constant 2 : i32
    %45 = arith.cmpi slt, %44, %c2_i32 : i32
    %46 = arith.select %45, %42, %10 : vector<2x128xf32>
    %47 = vector.extract_strided_slice %9 {offsets = [2, 0], sizes = [2, 384], strides = [1, 1]} : vector<16x384xf32> to vector<2x384xf32>
    %c0_17 = arith.constant 0 : index
    %c0_18 = arith.constant 0 : index
    %48 = vector.load %arg3[%c0_17, %c0_18] : memref<128x384xf32, #tpu.memory_space<vmem>>, vector<128x384xf32>
    %cst_19 = arith.constant dense<0.000000e+00> : vector<2x384xf32>
    %49 = tpu.matmul %46, %48, %cst_19 {dimension_numbers = #tpu.dot_dimension_numbers<[1], [0], [0], [1], [0, 0, 1, 1], [], []>} : vector<2x128xf32>, vector<128x384xf32>, vector<2x384xf32> -> vector<2x384xf32>
    %c0_20 = arith.constant 0 : index
    %c0_21 = arith.constant 0 : index
    %50 = vector.load %arg5[%c0_20, %c0_21] : memref<1x384xf32, #tpu.memory_space<vmem>>, vector<1x384xf32>
    %51 = vector.broadcast %50 : vector<1x384xf32> to vector<2x384xf32>
    %52 = arith.addf %49, %51 : vector<2x384xf32>
    %53 = vector.extract_strided_slice %47 {offsets = [0, 0], sizes = [2, 128], strides = [1, 1]} : vector<2x384xf32> to vector<2x128xf32>
    %54 = vector.extract_strided_slice %52 {offsets = [0, 0], sizes = [2, 128], strides = [1, 1]} : vector<2x384xf32> to vector<2x128xf32>
    %55 = arith.addf %53, %54 : vector<2x128xf32>
    %56 = arith.negf %55 : vector<2x128xf32>
    %57 = math.exp %56 : vector<2x128xf32>
    %cst_22 = arith.constant 1.000000e+00 : f32
    %58 = vector.broadcast %cst_22 : f32 to vector<2x128xf32>
    %59 = arith.addf %58, %57 : vector<2x128xf32>
    %60 = arith.divf %58, %59 : vector<2x128xf32>
    %61 = vector.extract_strided_slice %47 {offsets = [0, 128], sizes = [2, 128], strides = [1, 1]} : vector<2x384xf32> to vector<2x128xf32>
    %62 = vector.extract_strided_slice %52 {offsets = [0, 128], sizes = [2, 128], strides = [1, 1]} : vector<2x384xf32> to vector<2x128xf32>
    %63 = arith.addf %61, %62 : vector<2x128xf32>
    %64 = arith.negf %63 : vector<2x128xf32>
    %65 = math.exp %64 : vector<2x128xf32>
    %cst_23 = arith.constant 1.000000e+00 : f32
    %66 = vector.broadcast %cst_23 : f32 to vector<2x128xf32>
    %67 = arith.addf %66, %65 : vector<2x128xf32>
    %68 = arith.divf %66, %67 : vector<2x128xf32>
    %69 = vector.extract_strided_slice %47 {offsets = [0, 256], sizes = [2, 128], strides = [1, 1]} : vector<2x384xf32> to vector<2x128xf32>
    %70 = vector.extract_strided_slice %52 {offsets = [0, 256], sizes = [2, 128], strides = [1, 1]} : vector<2x384xf32> to vector<2x128xf32>
    %71 = arith.mulf %60, %70 : vector<2x128xf32>
    %72 = arith.addf %69, %71 : vector<2x128xf32>
    %73 = math.tanh %72 : vector<2x128xf32>
    %cst_24 = arith.constant 1.000000e+00 : f32
    %74 = vector.broadcast %cst_24 : f32 to vector<2x128xf32>
    %75 = arith.subf %74, %68 : vector<2x128xf32>
    %76 = arith.mulf %75, %73 : vector<2x128xf32>
    %77 = arith.mulf %68, %46 : vector<2x128xf32>
    %78 = arith.addf %76, %77 : vector<2x128xf32>
    %c8_i32_25 = arith.constant 8 : i32
    %79 = arith.muli %arg0, %c8_i32_25 : i32
    %c1_i32 = arith.constant 1 : i32
    %80 = arith.addi %79, %c1_i32 : i32
    %c2_i32_26 = arith.constant 2 : i32
    %81 = arith.cmpi slt, %80, %c2_i32_26 : i32
    %82 = arith.select %81, %78, %46 : vector<2x128xf32>
    %83 = vector.extract_strided_slice %9 {offsets = [4, 0], sizes = [2, 384], strides = [1, 1]} : vector<16x384xf32> to vector<2x384xf32>
    %c0_27 = arith.constant 0 : index
    %c0_28 = arith.constant 0 : index
    %84 = vector.load %arg3[%c0_27, %c0_28] : memref<128x384xf32, #tpu.memory_space<vmem>>, vector<128x384xf32>
    %cst_29 = arith.constant dense<0.000000e+00> : vector<2x384xf32>
    %85 = tpu.matmul %82, %84, %cst_29 {dimension_numbers = #tpu.dot_dimension_numbers<[1], [0], [0], [1], [0, 0, 1, 1], [], []>} : vector<2x128xf32>, vector<128x384xf32>, vector<2x384xf32> -> vector<2x384xf32>
    %c0_30 = arith.constant 0 : index
    %c0_31 = arith.constant 0 : index
    %86 = vector.load %arg5[%c0_30, %c0_31] : memref<1x384xf32, #tpu.memory_space<vmem>>, vector<1x384xf32>
    %87 = vector.broadcast %86 : vector<1x384xf32> to vector<2x384xf32>
    %88 = arith.addf %85, %87 : vector<2x384xf32>
    %89 = vector.extract_strided_slice %83 {offsets = [0, 0], sizes = [2, 128], strides = [1, 1]} : vector<2x384xf32> to vector<2x128xf32>
    %90 = vector.extract_strided_slice %88 {offsets = [0, 0], sizes = [2, 128], strides = [1, 1]} : vector<2x384xf32> to vector<2x128xf32>
    %91 = arith.addf %89, %90 : vector<2x128xf32>
    %92 = arith.negf %91 : vector<2x128xf32>
    %93 = math.exp %92 : vector<2x128xf32>
    %cst_32 = arith.constant 1.000000e+00 : f32
    %94 = vector.broadcast %cst_32 : f32 to vector<2x128xf32>
    %95 = arith.addf %94, %93 : vector<2x128xf32>
    %96 = arith.divf %94, %95 : vector<2x128xf32>
    %97 = vector.extract_strided_slice %83 {offsets = [0, 128], sizes = [2, 128], strides = [1, 1]} : vector<2x384xf32> to vector<2x128xf32>
    %98 = vector.extract_strided_slice %88 {offsets = [0, 128], sizes = [2, 128], strides = [1, 1]} : vector<2x384xf32> to vector<2x128xf32>
    %99 = arith.addf %97, %98 : vector<2x128xf32>
    %100 = arith.negf %99 : vector<2x128xf32>
    %101 = math.exp %100 : vector<2x128xf32>
    %cst_33 = arith.constant 1.000000e+00 : f32
    %102 = vector.broadcast %cst_33 : f32 to vector<2x128xf32>
    %103 = arith.addf %102, %101 : vector<2x128xf32>
    %104 = arith.divf %102, %103 : vector<2x128xf32>
    %105 = vector.extract_strided_slice %83 {offsets = [0, 256], sizes = [2, 128], strides = [1, 1]} : vector<2x384xf32> to vector<2x128xf32>
    %106 = vector.extract_strided_slice %88 {offsets = [0, 256], sizes = [2, 128], strides = [1, 1]} : vector<2x384xf32> to vector<2x128xf32>
    %107 = arith.mulf %96, %106 : vector<2x128xf32>
    %108 = arith.addf %105, %107 : vector<2x128xf32>
    %109 = math.tanh %108 : vector<2x128xf32>
    %cst_34 = arith.constant 1.000000e+00 : f32
    %110 = vector.broadcast %cst_34 : f32 to vector<2x128xf32>
    %111 = arith.subf %110, %104 : vector<2x128xf32>
    %112 = arith.mulf %111, %109 : vector<2x128xf32>
    %113 = arith.mulf %104, %82 : vector<2x128xf32>
    %114 = arith.addf %112, %113 : vector<2x128xf32>
    %c8_i32_35 = arith.constant 8 : i32
    %115 = arith.muli %arg0, %c8_i32_35 : i32
    %c2_i32_36 = arith.constant 2 : i32
    %116 = arith.addi %115, %c2_i32_36 : i32
    %c2_i32_37 = arith.constant 2 : i32
    %117 = arith.cmpi slt, %116, %c2_i32_37 : i32
    %118 = arith.select %117, %114, %82 : vector<2x128xf32>
    %119 = vector.extract_strided_slice %9 {offsets = [6, 0], sizes = [2, 384], strides = [1, 1]} : vector<16x384xf32> to vector<2x384xf32>
    %c0_38 = arith.constant 0 : index
    %c0_39 = arith.constant 0 : index
    %120 = vector.load %arg3[%c0_38, %c0_39] : memref<128x384xf32, #tpu.memory_space<vmem>>, vector<128x384xf32>
    %cst_40 = arith.constant dense<0.000000e+00> : vector<2x384xf32>
    %121 = tpu.matmul %118, %120, %cst_40 {dimension_numbers = #tpu.dot_dimension_numbers<[1], [0], [0], [1], [0, 0, 1, 1], [], []>} : vector<2x128xf32>, vector<128x384xf32>, vector<2x384xf32> -> vector<2x384xf32>
    %c0_41 = arith.constant 0 : index
    %c0_42 = arith.constant 0 : index
    %122 = vector.load %arg5[%c0_41, %c0_42] : memref<1x384xf32, #tpu.memory_space<vmem>>, vector<1x384xf32>
    %123 = vector.broadcast %122 : vector<1x384xf32> to vector<2x384xf32>
    %124 = arith.addf %121, %123 : vector<2x384xf32>
    %125 = vector.extract_strided_slice %119 {offsets = [0, 0], sizes = [2, 128], strides = [1, 1]} : vector<2x384xf32> to vector<2x128xf32>
    %126 = vector.extract_strided_slice %124 {offsets = [0, 0], sizes = [2, 128], strides = [1, 1]} : vector<2x384xf32> to vector<2x128xf32>
    %127 = arith.addf %125, %126 : vector<2x128xf32>
    %128 = arith.negf %127 : vector<2x128xf32>
    %129 = math.exp %128 : vector<2x128xf32>
    %cst_43 = arith.constant 1.000000e+00 : f32
    %130 = vector.broadcast %cst_43 : f32 to vector<2x128xf32>
    %131 = arith.addf %130, %129 : vector<2x128xf32>
    %132 = arith.divf %130, %131 : vector<2x128xf32>
    %133 = vector.extract_strided_slice %119 {offsets = [0, 128], sizes = [2, 128], strides = [1, 1]} : vector<2x384xf32> to vector<2x128xf32>
    %134 = vector.extract_strided_slice %124 {offsets = [0, 128], sizes = [2, 128], strides = [1, 1]} : vector<2x384xf32> to vector<2x128xf32>
    %135 = arith.addf %133, %134 : vector<2x128xf32>
    %136 = arith.negf %135 : vector<2x128xf32>
    %137 = math.exp %136 : vector<2x128xf32>
    %cst_44 = arith.constant 1.000000e+00 : f32
    %138 = vector.broadcast %cst_44 : f32 to vector<2x128xf32>
    %139 = arith.addf %138, %137 : vector<2x128xf32>
    %140 = arith.divf %138, %139 : vector<2x128xf32>
    %141 = vector.extract_strided_slice %119 {offsets = [0, 256], sizes = [2, 128], strides = [1, 1]} : vector<2x384xf32> to vector<2x128xf32>
    %142 = vector.extract_strided_slice %124 {offsets = [0, 256], sizes = [2, 128], strides = [1, 1]} : vector<2x384xf32> to vector<2x128xf32>
    %143 = arith.mulf %132, %142 : vector<2x128xf32>
    %144 = arith.addf %141, %143 : vector<2x128xf32>
    %145 = math.tanh %144 : vector<2x128xf32>
    %cst_45 = arith.constant 1.000000e+00 : f32
    %146 = vector.broadcast %cst_45 : f32 to vector<2x128xf32>
    %147 = arith.subf %146, %140 : vector<2x128xf32>
    %148 = arith.mulf %147, %145 : vector<2x128xf32>
    %149 = arith.mulf %140, %118 : vector<2x128xf32>
    %150 = arith.addf %148, %149 : vector<2x128xf32>
    %c8_i32_46 = arith.constant 8 : i32
    %151 = arith.muli %arg0, %c8_i32_46 : i32
    %c3_i32 = arith.constant 3 : i32
    %152 = arith.addi %151, %c3_i32 : i32
    %c2_i32_47 = arith.constant 2 : i32
    %153 = arith.cmpi slt, %152, %c2_i32_47 : i32
    %154 = arith.select %153, %150, %118 : vector<2x128xf32>
    %155 = vector.extract_strided_slice %9 {offsets = [8, 0], sizes = [2, 384], strides = [1, 1]} : vector<16x384xf32> to vector<2x384xf32>
    %c0_48 = arith.constant 0 : index
    %c0_49 = arith.constant 0 : index
    %156 = vector.load %arg3[%c0_48, %c0_49] : memref<128x384xf32, #tpu.memory_space<vmem>>, vector<128x384xf32>
    %cst_50 = arith.constant dense<0.000000e+00> : vector<2x384xf32>
    %157 = tpu.matmul %154, %156, %cst_50 {dimension_numbers = #tpu.dot_dimension_numbers<[1], [0], [0], [1], [0, 0, 1, 1], [], []>} : vector<2x128xf32>, vector<128x384xf32>, vector<2x384xf32> -> vector<2x384xf32>
    %c0_51 = arith.constant 0 : index
    %c0_52 = arith.constant 0 : index
    %158 = vector.load %arg5[%c0_51, %c0_52] : memref<1x384xf32, #tpu.memory_space<vmem>>, vector<1x384xf32>
    %159 = vector.broadcast %158 : vector<1x384xf32> to vector<2x384xf32>
    %160 = arith.addf %157, %159 : vector<2x384xf32>
    %161 = vector.extract_strided_slice %155 {offsets = [0, 0], sizes = [2, 128], strides = [1, 1]} : vector<2x384xf32> to vector<2x128xf32>
    %162 = vector.extract_strided_slice %160 {offsets = [0, 0], sizes = [2, 128], strides = [1, 1]} : vector<2x384xf32> to vector<2x128xf32>
    %163 = arith.addf %161, %162 : vector<2x128xf32>
    %164 = arith.negf %163 : vector<2x128xf32>
    %165 = math.exp %164 : vector<2x128xf32>
    %cst_53 = arith.constant 1.000000e+00 : f32
    %166 = vector.broadcast %cst_53 : f32 to vector<2x128xf32>
    %167 = arith.addf %166, %165 : vector<2x128xf32>
    %168 = arith.divf %166, %167 : vector<2x128xf32>
    %169 = vector.extract_strided_slice %155 {offsets = [0, 128], sizes = [2, 128], strides = [1, 1]} : vector<2x384xf32> to vector<2x128xf32>
    %170 = vector.extract_strided_slice %160 {offsets = [0, 128], sizes = [2, 128], strides = [1, 1]} : vector<2x384xf32> to vector<2x128xf32>
    %171 = arith.addf %169, %170 : vector<2x128xf32>
    %172 = arith.negf %171 : vector<2x128xf32>
    %173 = math.exp %172 : vector<2x128xf32>
    %cst_54 = arith.constant 1.000000e+00 : f32
    %174 = vector.broadcast %cst_54 : f32 to vector<2x128xf32>
    %175 = arith.addf %174, %173 : vector<2x128xf32>
    %176 = arith.divf %174, %175 : vector<2x128xf32>
    %177 = vector.extract_strided_slice %155 {offsets = [0, 256], sizes = [2, 128], strides = [1, 1]} : vector<2x384xf32> to vector<2x128xf32>
    %178 = vector.extract_strided_slice %160 {offsets = [0, 256], sizes = [2, 128], strides = [1, 1]} : vector<2x384xf32> to vector<2x128xf32>
    %179 = arith.mulf %168, %178 : vector<2x128xf32>
    %180 = arith.addf %177, %179 : vector<2x128xf32>
    %181 = math.tanh %180 : vector<2x128xf32>
    %cst_55 = arith.constant 1.000000e+00 : f32
    %182 = vector.broadcast %cst_55 : f32 to vector<2x128xf32>
    %183 = arith.subf %182, %176 : vector<2x128xf32>
    %184 = arith.mulf %183, %181 : vector<2x128xf32>
    %185 = arith.mulf %176, %154 : vector<2x128xf32>
    %186 = arith.addf %184, %185 : vector<2x128xf32>
    %c8_i32_56 = arith.constant 8 : i32
    %187 = arith.muli %arg0, %c8_i32_56 : i32
    %c4_i32 = arith.constant 4 : i32
    %188 = arith.addi %187, %c4_i32 : i32
    %c2_i32_57 = arith.constant 2 : i32
    %189 = arith.cmpi slt, %188, %c2_i32_57 : i32
    %190 = arith.select %189, %186, %154 : vector<2x128xf32>
    %191 = vector.extract_strided_slice %9 {offsets = [10, 0], sizes = [2, 384], strides = [1, 1]} : vector<16x384xf32> to vector<2x384xf32>
    %c0_58 = arith.constant 0 : index
    %c0_59 = arith.constant 0 : index
    %192 = vector.load %arg3[%c0_58, %c0_59] : memref<128x384xf32, #tpu.memory_space<vmem>>, vector<128x384xf32>
    %cst_60 = arith.constant dense<0.000000e+00> : vector<2x384xf32>
    %193 = tpu.matmul %190, %192, %cst_60 {dimension_numbers = #tpu.dot_dimension_numbers<[1], [0], [0], [1], [0, 0, 1, 1], [], []>} : vector<2x128xf32>, vector<128x384xf32>, vector<2x384xf32> -> vector<2x384xf32>
    %c0_61 = arith.constant 0 : index
    %c0_62 = arith.constant 0 : index
    %194 = vector.load %arg5[%c0_61, %c0_62] : memref<1x384xf32, #tpu.memory_space<vmem>>, vector<1x384xf32>
    %195 = vector.broadcast %194 : vector<1x384xf32> to vector<2x384xf32>
    %196 = arith.addf %193, %195 : vector<2x384xf32>
    %197 = vector.extract_strided_slice %191 {offsets = [0, 0], sizes = [2, 128], strides = [1, 1]} : vector<2x384xf32> to vector<2x128xf32>
    %198 = vector.extract_strided_slice %196 {offsets = [0, 0], sizes = [2, 128], strides = [1, 1]} : vector<2x384xf32> to vector<2x128xf32>
    %199 = arith.addf %197, %198 : vector<2x128xf32>
    %200 = arith.negf %199 : vector<2x128xf32>
    %201 = math.exp %200 : vector<2x128xf32>
    %cst_63 = arith.constant 1.000000e+00 : f32
    %202 = vector.broadcast %cst_63 : f32 to vector<2x128xf32>
    %203 = arith.addf %202, %201 : vector<2x128xf32>
    %204 = arith.divf %202, %203 : vector<2x128xf32>
    %205 = vector.extract_strided_slice %191 {offsets = [0, 128], sizes = [2, 128], strides = [1, 1]} : vector<2x384xf32> to vector<2x128xf32>
    %206 = vector.extract_strided_slice %196 {offsets = [0, 128], sizes = [2, 128], strides = [1, 1]} : vector<2x384xf32> to vector<2x128xf32>
    %207 = arith.addf %205, %206 : vector<2x128xf32>
    %208 = arith.negf %207 : vector<2x128xf32>
    %209 = math.exp %208 : vector<2x128xf32>
    %cst_64 = arith.constant 1.000000e+00 : f32
    %210 = vector.broadcast %cst_64 : f32 to vector<2x128xf32>
    %211 = arith.addf %210, %209 : vector<2x128xf32>
    %212 = arith.divf %210, %211 : vector<2x128xf32>
    %213 = vector.extract_strided_slice %191 {offsets = [0, 256], sizes = [2, 128], strides = [1, 1]} : vector<2x384xf32> to vector<2x128xf32>
    %214 = vector.extract_strided_slice %196 {offsets = [0, 256], sizes = [2, 128], strides = [1, 1]} : vector<2x384xf32> to vector<2x128xf32>
    %215 = arith.mulf %204, %214 : vector<2x128xf32>
    %216 = arith.addf %213, %215 : vector<2x128xf32>
    %217 = math.tanh %216 : vector<2x128xf32>
    %cst_65 = arith.constant 1.000000e+00 : f32
    %218 = vector.broadcast %cst_65 : f32 to vector<2x128xf32>
    %219 = arith.subf %218, %212 : vector<2x128xf32>
    %220 = arith.mulf %219, %217 : vector<2x128xf32>
    %221 = arith.mulf %212, %190 : vector<2x128xf32>
    %222 = arith.addf %220, %221 : vector<2x128xf32>
    %c8_i32_66 = arith.constant 8 : i32
    %223 = arith.muli %arg0, %c8_i32_66 : i32
    %c5_i32 = arith.constant 5 : i32
    %224 = arith.addi %223, %c5_i32 : i32
    %c2_i32_67 = arith.constant 2 : i32
    %225 = arith.cmpi slt, %224, %c2_i32_67 : i32
    %226 = arith.select %225, %222, %190 : vector<2x128xf32>
    %227 = vector.extract_strided_slice %9 {offsets = [12, 0], sizes = [2, 384], strides = [1, 1]} : vector<16x384xf32> to vector<2x384xf32>
    %c0_68 = arith.constant 0 : index
    %c0_69 = arith.constant 0 : index
    %228 = vector.load %arg3[%c0_68, %c0_69] : memref<128x384xf32, #tpu.memory_space<vmem>>, vector<128x384xf32>
    %cst_70 = arith.constant dense<0.000000e+00> : vector<2x384xf32>
    %229 = tpu.matmul %226, %228, %cst_70 {dimension_numbers = #tpu.dot_dimension_numbers<[1], [0], [0], [1], [0, 0, 1, 1], [], []>} : vector<2x128xf32>, vector<128x384xf32>, vector<2x384xf32> -> vector<2x384xf32>
    %c0_71 = arith.constant 0 : index
    %c0_72 = arith.constant 0 : index
    %230 = vector.load %arg5[%c0_71, %c0_72] : memref<1x384xf32, #tpu.memory_space<vmem>>, vector<1x384xf32>
    %231 = vector.broadcast %230 : vector<1x384xf32> to vector<2x384xf32>
    %232 = arith.addf %229, %231 : vector<2x384xf32>
    %233 = vector.extract_strided_slice %227 {offsets = [0, 0], sizes = [2, 128], strides = [1, 1]} : vector<2x384xf32> to vector<2x128xf32>
    %234 = vector.extract_strided_slice %232 {offsets = [0, 0], sizes = [2, 128], strides = [1, 1]} : vector<2x384xf32> to vector<2x128xf32>
    %235 = arith.addf %233, %234 : vector<2x128xf32>
    %236 = arith.negf %235 : vector<2x128xf32>
    %237 = math.exp %236 : vector<2x128xf32>
    %cst_73 = arith.constant 1.000000e+00 : f32
    %238 = vector.broadcast %cst_73 : f32 to vector<2x128xf32>
    %239 = arith.addf %238, %237 : vector<2x128xf32>
    %240 = arith.divf %238, %239 : vector<2x128xf32>
    %241 = vector.extract_strided_slice %227 {offsets = [0, 128], sizes = [2, 128], strides = [1, 1]} : vector<2x384xf32> to vector<2x128xf32>
    %242 = vector.extract_strided_slice %232 {offsets = [0, 128], sizes = [2, 128], strides = [1, 1]} : vector<2x384xf32> to vector<2x128xf32>
    %243 = arith.addf %241, %242 : vector<2x128xf32>
    %244 = arith.negf %243 : vector<2x128xf32>
    %245 = math.exp %244 : vector<2x128xf32>
    %cst_74 = arith.constant 1.000000e+00 : f32
    %246 = vector.broadcast %cst_74 : f32 to vector<2x128xf32>
    %247 = arith.addf %246, %245 : vector<2x128xf32>
    %248 = arith.divf %246, %247 : vector<2x128xf32>
    %249 = vector.extract_strided_slice %227 {offsets = [0, 256], sizes = [2, 128], strides = [1, 1]} : vector<2x384xf32> to vector<2x128xf32>
    %250 = vector.extract_strided_slice %232 {offsets = [0, 256], sizes = [2, 128], strides = [1, 1]} : vector<2x384xf32> to vector<2x128xf32>
    %251 = arith.mulf %240, %250 : vector<2x128xf32>
    %252 = arith.addf %249, %251 : vector<2x128xf32>
    %253 = math.tanh %252 : vector<2x128xf32>
    %cst_75 = arith.constant 1.000000e+00 : f32
    %254 = vector.broadcast %cst_75 : f32 to vector<2x128xf32>
    %255 = arith.subf %254, %248 : vector<2x128xf32>
    %256 = arith.mulf %255, %253 : vector<2x128xf32>
    %257 = arith.mulf %248, %226 : vector<2x128xf32>
    %258 = arith.addf %256, %257 : vector<2x128xf32>
    %c8_i32_76 = arith.constant 8 : i32
    %259 = arith.muli %arg0, %c8_i32_76 : i32
    %c6_i32 = arith.constant 6 : i32
    %260 = arith.addi %259, %c6_i32 : i32
    %c2_i32_77 = arith.constant 2 : i32
    %261 = arith.cmpi slt, %260, %c2_i32_77 : i32
    %262 = arith.select %261, %258, %226 : vector<2x128xf32>
    %263 = vector.extract_strided_slice %9 {offsets = [14, 0], sizes = [2, 384], strides = [1, 1]} : vector<16x384xf32> to vector<2x384xf32>
    %c0_78 = arith.constant 0 : index
    %c0_79 = arith.constant 0 : index
    %264 = vector.load %arg3[%c0_78, %c0_79] : memref<128x384xf32, #tpu.memory_space<vmem>>, vector<128x384xf32>
    %cst_80 = arith.constant dense<0.000000e+00> : vector<2x384xf32>
    %265 = tpu.matmul %262, %264, %cst_80 {dimension_numbers = #tpu.dot_dimension_numbers<[1], [0], [0], [1], [0, 0, 1, 1], [], []>} : vector<2x128xf32>, vector<128x384xf32>, vector<2x384xf32> -> vector<2x384xf32>
    %c0_81 = arith.constant 0 : index
    %c0_82 = arith.constant 0 : index
    %266 = vector.load %arg5[%c0_81, %c0_82] : memref<1x384xf32, #tpu.memory_space<vmem>>, vector<1x384xf32>
    %267 = vector.broadcast %266 : vector<1x384xf32> to vector<2x384xf32>
    %268 = arith.addf %265, %267 : vector<2x384xf32>
    %269 = vector.extract_strided_slice %263 {offsets = [0, 0], sizes = [2, 128], strides = [1, 1]} : vector<2x384xf32> to vector<2x128xf32>
    %270 = vector.extract_strided_slice %268 {offsets = [0, 0], sizes = [2, 128], strides = [1, 1]} : vector<2x384xf32> to vector<2x128xf32>
    %271 = arith.addf %269, %270 : vector<2x128xf32>
    %272 = arith.negf %271 : vector<2x128xf32>
    %273 = math.exp %272 : vector<2x128xf32>
    %cst_83 = arith.constant 1.000000e+00 : f32
    %274 = vector.broadcast %cst_83 : f32 to vector<2x128xf32>
    %275 = arith.addf %274, %273 : vector<2x128xf32>
    %276 = arith.divf %274, %275 : vector<2x128xf32>
    %277 = vector.extract_strided_slice %263 {offsets = [0, 128], sizes = [2, 128], strides = [1, 1]} : vector<2x384xf32> to vector<2x128xf32>
    %278 = vector.extract_strided_slice %268 {offsets = [0, 128], sizes = [2, 128], strides = [1, 1]} : vector<2x384xf32> to vector<2x128xf32>
    %279 = arith.addf %277, %278 : vector<2x128xf32>
    %280 = arith.negf %279 : vector<2x128xf32>
    %281 = math.exp %280 : vector<2x128xf32>
    %cst_84 = arith.constant 1.000000e+00 : f32
    %282 = vector.broadcast %cst_84 : f32 to vector<2x128xf32>
    %283 = arith.addf %282, %281 : vector<2x128xf32>
    %284 = arith.divf %282, %283 : vector<2x128xf32>
    %285 = vector.extract_strided_slice %263 {offsets = [0, 256], sizes = [2, 128], strides = [1, 1]} : vector<2x384xf32> to vector<2x128xf32>
    %286 = vector.extract_strided_slice %268 {offsets = [0, 256], sizes = [2, 128], strides = [1, 1]} : vector<2x384xf32> to vector<2x128xf32>
    %287 = arith.mulf %276, %286 : vector<2x128xf32>
    %288 = arith.addf %285, %287 : vector<2x128xf32>
    %289 = math.tanh %288 : vector<2x128xf32>
    %cst_85 = arith.constant 1.000000e+00 : f32
    %290 = vector.broadcast %cst_85 : f32 to vector<2x128xf32>
    %291 = arith.subf %290, %284 : vector<2x128xf32>
    %292 = arith.mulf %291, %289 : vector<2x128xf32>
    %293 = arith.mulf %284, %262 : vector<2x128xf32>
    %294 = arith.addf %292, %293 : vector<2x128xf32>
    %c8_i32_86 = arith.constant 8 : i32
    %295 = arith.muli %arg0, %c8_i32_86 : i32
    %c7_i32 = arith.constant 7 : i32
    %296 = arith.addi %295, %c7_i32 : i32
    %c2_i32_87 = arith.constant 2 : i32
    %297 = arith.cmpi slt, %296, %c2_i32_87 : i32
    %298 = arith.select %297, %294, %262 : vector<2x128xf32>
    %c0_88 = arith.constant 0 : index
    %c0_89 = arith.constant 0 : index
    %299 = vector.load %arg9[%c0_88, %c0_89] : memref<2x128xf32, #tpu.memory_space<vmem>>, vector<2x128xf32>
    tpu.vector_store %arg9[%c0_88, %c0_89], %298 {strides = array<i32>} : memref<2x128xf32, #tpu.memory_space<vmem>>, vector<2x128xf32>,
    %c0_i32_90 = arith.constant 0 : i32
    %300 = arith.cmpi eq, %arg0, %c0_i32_90 : i32
    %301 = arith.extui %300 : i1 to i32
    %c0_i32_91 = arith.constant 0 : i32
    %302 = arith.cmpi ne, %301, %c0_i32_91 : i32
    scf.if %302 {
      %c0_92 = arith.constant 0 : index
      %c0_93 = arith.constant 0 : index
      %303 = vector.load %arg6[%c0_92, %c0_93] : memref<128x32xf32, #tpu.memory_space<vmem>>, vector<128x32xf32>
      %cst_94 = arith.constant dense<0.000000e+00> : vector<2x32xf32>
      %304 = tpu.matmul %298, %303, %cst_94 {dimension_numbers = #tpu.dot_dimension_numbers<[1], [0], [0], [1], [0, 0, 1, 1], [], []>} : vector<2x128xf32>, vector<128x32xf32>, vector<2x32xf32> -> vector<2x32xf32>
      %c0_95 = arith.constant 0 : index
      %c0_96 = arith.constant 0 : index
      %305 = vector.load %arg7[%c0_95, %c0_96] : memref<1x32xf32, #tpu.memory_space<vmem>>, vector<1x32xf32>
      %306 = vector.broadcast %305 : vector<1x32xf32> to vector<2x32xf32>
      %307 = arith.addf %304, %306 : vector<2x32xf32>
      %c0_97 = arith.constant 0 : index
      %c0_98 = arith.constant 0 : index
      %308 = vector.load %arg8[%c0_97, %c0_98] : memref<2x32xf32, #tpu.memory_space<vmem>>, vector<2x32xf32>
      tpu.vector_store %arg8[%c0_97, %c0_98], %307 {strides = array<i32>} : memref<2x32xf32, #tpu.memory_space<vmem>>, vector<2x32xf32>,
    } else {
    }
    return
  }
  func.func @transform_0(%arg0: i32) -> (i32, i32) {
    %c0_i32 = arith.constant 0 : i32
    %c0_i32_0 = arith.constant 0 : i32
    return %arg0, %c0_i32 : i32, i32
  }
  func.func @transform_1(%arg0: i32) -> (i32, i32) {
    %c0_i32 = arith.constant 0 : i32
    %c0_i32_0 = arith.constant 0 : i32
    %c0_i32_1 = arith.constant 0 : i32
    return %c0_i32, %c0_i32_0 : i32, i32
  }
  func.func @transform_2(%arg0: i32) -> (i32, i32) {
    %c0_i32 = arith.constant 0 : i32
    %c0_i32_0 = arith.constant 0 : i32
    %c0_i32_1 = arith.constant 0 : i32
    return %c0_i32, %c0_i32_0 : i32, i32
  }
  func.func @transform_3(%arg0: i32) -> (i32, i32) {
    %c0_i32 = arith.constant 0 : i32
    %c0_i32_0 = arith.constant 0 : i32
    %c0_i32_1 = arith.constant 0 : i32
    return %c0_i32, %c0_i32_0 : i32, i32
  }
  func.func @transform_4(%arg0: i32) -> (i32, i32) {
    %c0_i32 = arith.constant 0 : i32
    %c0_i32_0 = arith.constant 0 : i32
    %c0_i32_1 = arith.constant 0 : i32
    return %c0_i32, %c0_i32_0 : i32, i32
  }
  func.func @transform_5(%arg0: i32) -> (i32, i32) {
    %c0_i32 = arith.constant 0 : i32
    %c0_i32_0 = arith.constant 0 : i32
    %c0_i32_1 = arith.constant 0 : i32
    return %c0_i32, %c0_i32_0 : i32, i32
  }
  func.func @transform_6(%arg0: i32) -> (i32, i32) {
    %c0_i32 = arith.constant 0 : i32
    %c0_i32_0 = arith.constant 0 : i32
    %c0_i32_1 = arith.constant 0 : i32
    return %c0_i32, %c0_i32_0 : i32, i32
  }
  func.func @transform_7(%arg0: i32) -> (i32, i32) {
    %c0_i32 = arith.constant 0 : i32
    %c0_i32_0 = arith.constant 0 : i32
    %c0_i32_1 = arith.constant 0 : i32
    return %c0_i32, %c0_i32_0 : i32, i32
  }
}

</mosaic_0001>

<llo_original>
// kernel: reference_encoder_forward.7
$region0: #{reference_encoder_forward.7}
  #allocation0 [shape = 'u32[]', space=smem, size = 0x4, offset = 0x4, fixed_abs, tag = 'smem constant byte address 0x4 - core index']
  #allocation1 [shape = 'u32[144,128]{1,0:T(1,128)}', space=vmem, size = 0x12000, scoped, tag = 'internal scratch']
  %s0 = inlined_call_operand.vmem [shape: bf16[32,16], index: 0, kind: input, shape index: {}]
  %s1 = inlined_call_operand.vmem [shape: f32[32,1], index: 1, kind: input, shape index: {}]
  %s2 = inlined_call_operand.vmem [shape: bf16[2,16,2048], index: 2, kind: input, shape index: {}]
  %s3 = inlined_call_operand.vmem [shape: bf16[2,32,2048], index: 3, kind: output, shape index: {}]
  %s4 = sld [smem:[#allocation0]]
  $region45: #{reference_encoder_forward.7} parent=0
    _
  %s6 = ssub.s32 1, %s4
  %s7 = scalar_select 0, %s6, %s4
  loop: start=0, step=1, limit=4
  $region2: #{reference_encoder_forward.7} parent=0 // loop_pre_header
    _
  $region3: #{reference_encoder_forward.7} parent=0 // loop_header
    %s9 = sphi 0, %s13
    %p10 = scmp.ge.s32.totalorder %s9, 4
    %s16 = sphi 0, %s28
    %s17 = sphi 0, %s24
    %s18 = sphi 0, %s16
    %s19 = sphi 0, %s17
    %s20 = sphi 0, %s18
    %s21 = sphi 0, %s19
    %s29 = sphi 0, %s29
    %s31 = sphi 0, %s29
    %s32 = sphi 0, %s31
    %s46 = sphi 0, %s32
    %s50 = sphi 0, %s50
    %s52 = sphi 0, %s50
    %s53 = sphi 0, %s52
    %s67 = sphi 0, %s53
    %s75 = sphi 0, %s77
    %s78 = sphi 0, %s75
    %s79 = sphi 0, %s78
    %s95 = sphi 0, %s79
    %s103 = sphi 0, %s105
    %s106 = sphi 0, %s103
    %s107 = sphi 0, %s106
    %s123 = sphi 0, %s107
  $region4: #{reference_encoder_forward.7} parent=0 // loop_header_branch
    %12 = sbr.rel (%p10) target = $region8
  $region5: #{reference_encoder_forward.7} parent=0 // loop_body
    %s14 = ssub.s32 %s9, 1
    %s15 = ssub.s32 %s9, 2
    %s22 = sadd.s32 1, %s17
    %p23 = scmp.ge.s32.totalorder %s22, 1
    %s24 = scalar_select %p23, 0, %s22
    %s25 = sadd.s32 1, %s16
    %s26 = scalar_select %p23, %s25, %s16
    %p27 = scmp.ge.s32.totalorder %s26, 2
    %s28 = scalar_select %p27, 0, %s26
    %s30 = sadd.s32 %s29, 1
    %p33 = scmp.eq.s32.totalorder %s9, 1
    %p34 = scmp.ne.s32.totalorder %s29, %s31
    %p35 = scmp.eq.s32.totalorder %s9, 0
    %p36 = por %p34, %p35
    %p37 = scmp.ne.s32.totalorder %s29, %s31
    %p38 = scmp.eq.s32.totalorder %s14, 1
    %p39 = por %p37, %p38
    %p40 = scmp.ne.s32.totalorder %s31, %s32
    %p41 = scmp.eq.s32.totalorder %s14, 0
    %p42 = por %p40, %p41
    %p43 = scmp.ne.s32.totalorder %s31, %s32
    %p44 = scmp.eq.s32.totalorder %s15, 1
    %p45 = por %p43, %p44
    %p47 = scmp.ne.s32.totalorder %s32, %s46
    %p48 = scmp.eq.s32.totalorder %s15, 0
    %p49 = por %p47, %p48
    %s51 = sadd.s32 %s50, 1
    %p54 = scmp.eq.s32.totalorder %s9, 1
    %p55 = scmp.ne.s32.totalorder %s50, %s52
    %p56 = scmp.eq.s32.totalorder %s9, 0
    %p57 = por %p55, %p56
    %p58 = scmp.ne.s32.totalorder %s50, %s52
    %p59 = scmp.eq.s32.totalorder %s14, 1
    %p60 = por %p58, %p59
    %p61 = scmp.ne.s32.totalorder %s52, %s53
    %p62 = scmp.eq.s32.totalorder %s14, 0
    %p63 = por %p61, %p62
    %p64 = scmp.ne.s32.totalorder %s52, %s53
    %p65 = scmp.eq.s32.totalorder %s15, 1
    %p66 = por %p64, %p65
    %p68 = scmp.ne.s32.totalorder %s53, %s67
    %p69 = scmp.eq.s32.totalorder %s15, 0
    %p70 = por %p68, %p69
    %s71 = ssub.s32 %s16, %s28
    %s72 = ssub.s32 %s17, %s24
    %s73 = sor.u32 %s71, %s72
    %p74 = scmp.eq.s32.totalorder %s73, 0
    %s76 = sadd.s32 %s75, 1
    %s77 = scalar_select %p74, %s75, %s76
    %p80 = pneg %p74
    %p81 = scmp.eq.s32.totalorder %s9, 1
    %p82 = por %p80, %p81
    %p83 = scmp.ne.s32.totalorder %s75, %s78
    %p84 = scmp.eq.s32.totalorder %s9, 0
    %p85 = por %p83, %p84
    %p86 = scmp.ne.s32.totalorder %s75, %s78
    %p87 = scmp.eq.s32.totalorder %s14, 1
    %p88 = por %p86, %p87
    %p89 = scmp.ne.s32.totalorder %s78, %s79
    %p90 = scmp.eq.s32.totalorder %s14, 0
    %p91 = por %p89, %p90
    %p92 = scmp.ne.s32.totalorder %s78, %s79
    %p93 = scmp.eq.s32.totalorder %s15, 1
    %p94 = por %p92, %p93
    %p96 = scmp.ne.s32.totalorder %s79, %s95
    %p97 = scmp.eq.s32.totalorder %s15, 0
    %p98 = por %p96, %p97
    %s99 = ssub.s32 %s16, %s28
    %s100 = ssub.s32 %s17, %s24
    %s101 = sor.u32 %s99, %s100
    %p102 = scmp.eq.s32.totalorder %s101, 0
    %s104 = sadd.s32 %s103, 1
    %s105 = scalar_select %p102, %s103, %s104
    %p108 = pneg %p102
    %p109 = scmp.eq.s32.totalorder %s9, 1
    %p110 = por %p108, %p109
    %p111 = scmp.ne.s32.totalorder %s103, %s106
    %p112 = scmp.eq.s32.totalorder %s9, 0
    %p113 = por %p111, %p112
    %p114 = scmp.ne.s32.totalorder %s103, %s106
    %p115 = scmp.eq.s32.totalorder %s14, 1
    %p116 = por %p114, %p115
    %p117 = scmp.ne.s32.totalorder %s106, %s107
    %p118 = scmp.eq.s32.totalorder %s14, 0
    %p119 = por %p117, %p118
    %p120 = scmp.ne.s32.totalorder %s106, %s107
    %p121 = scmp.eq.s32.totalorder %s15, 1
    %p122 = por %p120, %p121
    %p124 = scmp.ne.s32.totalorder %s107, %s123
    %p125 = scmp.eq.s32.totalorder %s15, 0
    %p126 = por %p124, %p125
    %p127 = scmp.le.s32.totalorder 1, %s9
    %p128 = scmp.lt.s32.totalorder %s9, 3
    %p129 = pnand %p127, %p128
    %p130 = pneg %p129
    // Predicated region
    $region9: #{reference_encoder_forward.7} parent=5 // pred_check
      _
    $region10: #{reference_encoder_forward.7} parent=5 // pred_check_branch
      %132 = sbr.rel (%p129) target = $region12
    $region11: #{reference_encoder_forward.7} parent=5 // pred_region
      %s133 = ssub.s32 %s9, 1
      // Predicated region
      $region13: #{reference_encoder_forward.7} parent=11 // pred_check
        %p134 = pneg %p42
      $region14: #{reference_encoder_forward.7} parent=11 // pred_check_branch
        %136 = sbr.rel (%p134) target = $region16
      $region15: #{reference_encoder_forward.7} parent=11 // pred_region
        _
      $region16: #{reference_encoder_forward.7} parent=11 // pred_fallthru
        _
      // Predicated region
      $region17: #{reference_encoder_forward.7} parent=11 // pred_check
        %p137 = pneg %p63
      $region18: #{reference_encoder_forward.7} parent=11 // pred_check_branch
        %139 = sbr.rel (%p137) target = $region20
      $region19: #{reference_encoder_forward.7} parent=11 // pred_region
        _
      $region20: #{reference_encoder_forward.7} parent=11 // pred_fallthru
        _
    $region12: #{reference_encoder_forward.7} parent=5 // pred_fallthru
      _
    %p140 = scmp.lt.s32.totalorder %s9, 2
    // Predicated region
    $region21: #{reference_encoder_forward.7} parent=5 // pred_check
      %p141 = pneg %p140
    $region22: #{reference_encoder_forward.7} parent=5 // pred_check_branch
      %143 = sbr.rel (%p141) target = $region24
    $region23: #{reference_encoder_forward.7} parent=5 // pred_region
      // Predicated region
      $region25: #{reference_encoder_forward.7} parent=23 // pred_check
        %p144 = pneg %p85
      $region26: #{reference_encoder_forward.7} parent=23 // pred_check_branch
        %146 = sbr.rel (%p144) target = $region28
      $region27: #{reference_encoder_forward.7} parent=23 // pred_region
        %s147 = smul.u32 16, %s17
        %p148 = scmp.lt.s32.totalorder %s16, 1
        %s149 = scalar_select %p148, %s16, 1
        %p150 = scmp.lt.s32.totalorder %s147, 15
        %s151 = scalar_select %p150, %s147, 15
        %s152 = smul.addr %s149, 32
        %s153 = sadd.s32 %s151, %s152
        %s154 = smul.addr %s153, 4
        %s155 = scalar_lea.vmem %s2, %s154
        %s156 = smul.u32 16, %s17
      $region28: #{reference_encoder_forward.7} parent=23 // pred_fallthru
        _
    $region24: #{reference_encoder_forward.7} parent=5 // pred_fallthru
      _
    %p157 = scmp.le.s32.totalorder 1, %s9
    %p158 = scmp.lt.s32.totalorder %s9, 3
    %p159 = pnand %p157, %p158
    %p160 = pneg %p159
    // Predicated region
    $region29: #{reference_encoder_forward.7} parent=5 // pred_check
      _
    $region30: #{reference_encoder_forward.7} parent=5 // pred_check_branch
      %162 = sbr.rel (%p159) target = $region32
    $region31: #{reference_encoder_forward.7} parent=5 // pred_region
      %s163 = ssub.s32 %s9, 1
      %p164 = pneg %p42
      %p165 = pneg %p39
      %p166 = pneg %p63
      %p167 = pneg %p60
      %s168 = smul.u32 16, %s19
      %p169 = scmp.lt.s32.totalorder %s18, 1
      %s170 = scalar_select %p169, %s18, 1
      %p171 = scmp.lt.s32.totalorder %s168, 15
      %s172 = scalar_select %p171, %s168, 15
      %s173 = smul.addr %s170, 32
      %s174 = sadd.s32 %s172, %s173
      %s175 = smul.addr %s174, 4
      %s176 = scalar_lea.vmem %s2, %s175
      %p177 = pneg %p91
      %p178 = pneg %p88
      %p179 = pneg %p119
      %p180 = pneg %p116
      %s181 = smul.u32 16, %s19
      %p182 = scmp.lt.s32.totalorder %s18, 1
      %s183 = scalar_select %p182, %s18, 1
      %p184 = scmp.lt.s32.totalorder %s181, 15
      %s185 = scalar_select %p184, %s181, 15
      %s186 = smul.addr %s183, 64
      %s187 = sadd.s32 %s185, %s186
      %s188 = smul.addr %s187, 4
      %s189 = scalar_lea.vmem %s3, %s188
      %s190 = smul.u32 16, %s19
      %p191 = scmp.lt.s32.totalorder %s18, 1
      %s192 = scalar_select %p191, %s18, 1
      %p193 = scmp.lt.s32.totalorder %s190, 15
      %s194 = scalar_select %p193, %s190, 15
      %s195 = smul.addr %s192, 32
      %s196 = sadd.s32 %s194, %s195
      %s197 = smul.addr %s196, 4
      %s198 = scalar_lea.vmem %s2, %s197
      %s199 = smul.u32 16, %s19
      %s200 = smul.u32 16, %s19
      %p201 = scmp.lt.s32.totalorder %s18, 1
      %s202 = scalar_select %p201, %s18, 1
      %p203 = scmp.lt.s32.totalorder %s200, 15
      %s204 = scalar_select %p203, %s200, 15
      %s205 = smul.addr %s202, 64
      %s206 = sadd.s32 %s204, %s205
      %s207 = smul.addr %s206, 4
      %s208 = scalar_lea.vmem %s3, %s207
      %s209 = smul.u32 16, %s19
      %v211 = vld [vmem:[%s0] sm:$0xf]
      %v212 = vld [vmem:[%s0 + $0x4] sm:$0xf]
      %v213 = vld [vmem:[%s0 + $0x8] sm:$0xf]
      %v214 = vld [vmem:[%s0 + $0xc] sm:$0xf]
      %v215 = vld [vmem:[%s198] sm:$0xff]
      %v216 = vld [vmem:[%s198 + $0x8] sm:$0xff]
      %v217 = vld [vmem:[%s198 + $0x10] sm:$0xff]
      %v218 = vld [vmem:[%s198 + $0x18] sm:$0xff]
      %v219 = vld [vmem:[%s198 + $0x20] sm:$0xff]
      %v220 = vld [vmem:[%s198 + $0x28] sm:$0xff]
      %v221 = vld [vmem:[%s198 + $0x30] sm:$0xff]
      %v222 = vld [vmem:[%s198 + $0x38] sm:$0xff]
      %v223 = vld [vmem:[%s198 + $0x40] sm:$0xff]
      %v224 = vld [vmem:[%s198 + $0x48] sm:$0xff]
      %v225 = vld [vmem:[%s198 + $0x50] sm:$0xff]
      %v226 = vld [vmem:[%s198 + $0x58] sm:$0xff]
      %v227 = vld [vmem:[%s198 + $0x60] sm:$0xff]
      %v228 = vld [vmem:[%s198 + $0x68] sm:$0xff]
      %v229 = vld [vmem:[%s198 + $0x70] sm:$0xff]
      %v230 = vld [vmem:[%s198 + $0x78] sm:$0xff]
      %v231 = vld [vmem:[%s1] sm:$0xff]
      %v232 = vld [vmem:[%s1 + $0x8] sm:$0xff]
      %v233 = vld [vmem:[%s1 + $0x10] sm:$0xff]
      %v234 = vld [vmem:[%s1 + $0x18] sm:$0xff]
      %236 = vset.pattern.permute.xlu0 0
      %237 = vperm.xlu0 %236, %v231
      %v238 = vpop.permute.xlu0 %237
      %241 = vset.pattern.permute.xlu0 0
      %242 = vperm.xlu0 %241, %v232
      %v243 = vpop.permute.xlu0 %242
      %246 = vset.pattern.permute.xlu0 0
      %247 = vperm.xlu0 %246, %v233
      %v248 = vpop.permute.xlu0 %247
      %251 = vset.pattern.permute.xlu0 0
      %252 = vperm.xlu0 %251, %v234
      %v253 = vpop.permute.xlu0 %252
      %v259 = vunpack.c.l.b16 %v211
      %v260 = vunpack.c.l.b16 %v212
      %v261 = vunpack.c.l.b16 %v213
      %v262 = vunpack.c.l.b16 %v214
      %v263 = vpack.c.b16 %v260, %v259
      %v264 = vpack.c.b16 %v262, %v261
      %v281 = vunpack.c.l.b16 %v215
      %v282 = vunpack.c.h.b16 %v215
      %v283 = vunpack.c.l.b16 %v216
      %v284 = vunpack.c.h.b16 %v216
      %v285 = vunpack.c.l.b16 %v217
      %v286 = vunpack.c.h.b16 %v217
      %v287 = vunpack.c.l.b16 %v218
      %v288 = vunpack.c.h.b16 %v218
      %v289 = vunpack.c.l.b16 %v219
      %v290 = vunpack.c.h.b16 %v219
      %v291 = vunpack.c.l.b16 %v220
      %v292 = vunpack.c.h.b16 %v220
      %v293 = vunpack.c.l.b16 %v221
      %v294 = vunpack.c.h.b16 %v221
      %v295 = vunpack.c.l.b16 %v222
      %v296 = vunpack.c.h.b16 %v222
      %v297 = vunpack.c.l.b16 %v223
      %v298 = vunpack.c.h.b16 %v223
      %v299 = vunpack.c.l.b16 %v224
      %v300 = vunpack.c.h.b16 %v224
      %v301 = vunpack.c.l.b16 %v225
      %v302 = vunpack.c.h.b16 %v225
      %v303 = vunpack.c.l.b16 %v226
      %v304 = vunpack.c.h.b16 %v226
      %v305 = vunpack.c.l.b16 %v227
      %v306 = vunpack.c.h.b16 %v227
      %v307 = vunpack.c.l.b16 %v228
      %v308 = vunpack.c.h.b16 %v228
      %v309 = vunpack.c.l.b16 %v229
      %v310 = vunpack.c.h.b16 %v229
      %v311 = vunpack.c.l.b16 %v230
      %v312 = vunpack.c.h.b16 %v230
      %v313 = vpack.c.b16 %v297, %v281
      %v314 = vpack.c.b16 %v298, %v282
      %v315 = vpack.c.b16 %v299, %v283
      %v316 = vpack.c.b16 %v300, %v284
      %v317 = vpack.c.b16 %v301, %v285
      %v318 = vpack.c.b16 %v302, %v286
      %v319 = vpack.c.b16 %v303, %v287
      %v320 = vpack.c.b16 %v304, %v288
      %v321 = vpack.c.b16 %v305, %v289
      %v322 = vpack.c.b16 %v306, %v290
      %v323 = vpack.c.b16 %v307, %v291
      %v324 = vpack.c.b16 %v308, %v292
      %v325 = vpack.c.b16 %v309, %v293
      %v326 = vpack.c.b16 %v310, %v294
      %v327 = vpack.c.b16 %v311, %v295
      %v328 = vpack.c.b16 %v312, %v296
      %vm345 = vcmask 130048
      %v347 = vsel %vm345, %v263, 0
      %v350 = vsel %vm345, %v264, 0
      %352 = vmatprep.subr.bf16.mxu0 0
      %353 = vmatpush1.bf16.msra.mxu0 0
      %354 = vmatprep.subr.bf16.mxu0 0
      %355 = vmatpush1.bf16.msra.mxu0 0
      %356 = vmatprep.subr.bf16.mxu0 0
      %357 = vmatpush1.bf16.msra.mxu0 0
      %358 = vmatprep.subr.bf16.mxu0 0
      %359 = vmatpush1.bf16.msra.mxu0 0
      %360 = vmatprep.subr.bf16.mxu0 0
      %361 = vmatpush1.bf16.msra.mxu0 0
      %362 = vmatprep.subr.bf16.mxu0 0
      %363 = vmatpush1.bf16.msra.mxu0 0
      %364 = vmatprep.subr.bf16.mxu0 0
      %365 = vmatpush1.bf16.msra.mxu0 0
      %366 = vmatprep.subr.bf16.mxu0 %v314
      %367 = vmatpush1.bf16.msra.mxu0 %v313
      %368 = vmatprep.subr.bf16.mxu0 0
      %369 = vmatpush2.bf16.msra.mxu0 0
      %370 = vmatprep.subr.bf16.mxu0 0
      %371 = vmatpush2.bf16.msra.mxu0 0
      %372 = vmatprep.subr.bf16.mxu0 0
      %373 = vmatpush2.bf16.msra.mxu0 0
      %374 = vmatprep.subr.bf16.mxu0 0
      %375 = vmatpush2.bf16.msra.mxu0 0
      %376 = vmatprep.subr.bf16.mxu0 0
      %377 = vmatpush2.bf16.msra.mxu0 0
      %378 = vmatprep.subr.bf16.mxu0 0
      %379 = vmatpush2.bf16.msra.mxu0 0
      %380 = vmatprep.subr.bf16.mxu0 0
      %381 = vmatpush2.bf16.msra.mxu0 0
      %382 = vmatprep.subr.bf16.mxu0 0
      %383 = vmatpush2.bf16.msra.mxu0 0
      %384 = vmatprep.mubr.bf16.mxu0 0
      %385 = vmatmul.mubr.bf16.gmra.mxu0 %v347
      %v386 = vpop.f32.mrf.mxu0
      %v387 = vadd.f32 %v238, %v386
      %v388 = vpop.f32.mrf.mxu0
      %v389 = vadd.f32 %v238, %v388
      %v390 = vpop.f32.mrf.mxu0
      %v391 = vadd.f32 %v243, %v390
      %v392 = vpop.f32.mrf.mxu0
      %v393 = vadd.f32 %v243, %v392
      %394 = vmatprep.mubr.bf16.mxu0 0
      %395 = vmatmul.mubr.bf16.gmra.mxu0 %v350
      %v396 = vpop.f32.mrf.mxu0
      %v397 = vadd.f32 %v248, %v396
      %v398 = vpop.f32.mrf.mxu0
      %v399 = vadd.f32 %v248, %v398
      %v400 = vpop.f32.mrf.mxu0
      %v401 = vadd.f32 %v253, %v400
      %v402 = vpop.f32.mrf.mxu0
      %v403 = vadd.f32 %v253, %v402
      %404 = vdwg.mxu0
      %405 = vmatprep.subr.bf16.mxu0 0
      %406 = vmatpush1.bf16.msra.mxu0 0
      %407 = vmatprep.subr.bf16.mxu0 0
      %408 = vmatpush1.bf16.msra.mxu0 0
      %409 = vmatprep.subr.bf16.mxu0 0
      %410 = vmatpush1.bf16.msra.mxu0 0
      %411 = vmatprep.subr.bf16.mxu0 0
      %412 = vmatpush1.bf16.msra.mxu0 0
      %413 = vmatprep.subr.bf16.mxu0 0
      %414 = vmatpush1.bf16.msra.mxu0 0
      %415 = vmatprep.subr.bf16.mxu0 0
      %416 = vmatpush1.bf16.msra.mxu0 0
      %417 = vmatprep.subr.bf16.mxu0 0
      %418 = vmatpush1.bf16.msra.mxu0 0
      %419 = vmatprep.subr.bf16.mxu0 %v316
      %420 = vmatpush1.bf16.msra.mxu0 %v315
      %421 = vmatprep.subr.bf16.mxu0 0
      %422 = vmatpush2.bf16.msra.mxu0 0
      %423 = vmatprep.subr.bf16.mxu0 0
      %424 = vmatpush2.bf16.msra.mxu0 0
      %425 = vmatprep.subr.bf16.mxu0 0
      %426 = vmatpush2.bf16.msra.mxu0 0
      %427 = vmatprep.subr.bf16.mxu0 0
      %428 = vmatpush2.bf16.msra.mxu0 0
      %429 = vmatprep.subr.bf16.mxu0 0
      %430 = vmatpush2.bf16.msra.mxu0 0
      %431 = vmatprep.subr.bf16.mxu0 0
      %432 = vmatpush2.bf16.msra.mxu0 0
      %433 = vmatprep.subr.bf16.mxu0 0
      %434 = vmatpush2.bf16.msra.mxu0 0
      %435 = vmatprep.subr.bf16.mxu0 0
      %436 = vmatpush2.bf16.msra.mxu0 0
      %437 = vmatprep.mubr.bf16.mxu0 0
      %438 = vmatmul.mubr.bf16.gmra.mxu0 %v347
      %v439 = vpop.f32.mrf.mxu0
      %v440 = vadd.f32 %v238, %v439
      %v441 = vpop.f32.mrf.mxu0
      %v442 = vadd.f32 %v238, %v441
      %v443 = vpop.f32.mrf.mxu0
      %v444 = vadd.f32 %v243, %v443
      %v445 = vpop.f32.mrf.mxu0
      %v446 = vadd.f32 %v243, %v445
      %447 = vmatprep.mubr.bf16.mxu0 0
      %448 = vmatmul.mubr.bf16.gmra.mxu0 %v350
      %v449 = vpop.f32.mrf.mxu0
      %v450 = vadd.f32 %v248, %v449
      %v451 = vpop.f32.mrf.mxu0
      %v452 = vadd.f32 %v248, %v451
      %v453 = vpop.f32.mrf.mxu0
      %v454 = vadd.f32 %v253, %v453
      %v455 = vpop.f32.mrf.mxu0
      %v456 = vadd.f32 %v253, %v455
      %457 = vdwg.mxu0
      %458 = vmatprep.subr.bf16.mxu0 0
      %459 = vmatpush1.bf16.msra.mxu0 0
      %460 = vmatprep.subr.bf16.mxu0 0
      %461 = vmatpush1.bf16.msra.mxu0 0
      %462 = vmatprep.subr.bf16.mxu0 0
      %463 = vmatpush1.bf16.msra.mxu0 0
      %464 = vmatprep.subr.bf16.mxu0 0
      %465 = vmatpush1.bf16.msra.mxu0 0
      %466 = vmatprep.subr.bf16.mxu0 0
      %467 = vmatpush1.bf16.msra.mxu0 0
      %468 = vmatprep.subr.bf16.mxu0 0
      %469 = vmatpush1.bf16.msra.mxu0 0
      %470 = vmatprep.subr.bf16.mxu0 0
      %471 = vmatpush1.bf16.msra.mxu0 0
      %472 = vmatprep.subr.bf16.mxu0 %v318
      %473 = vmatpush1.bf16.msra.mxu0 %v317
      %474 = vmatprep.subr.bf16.mxu0 0
      %475 = vmatpush2.bf16.msra.mxu0 0
      %476 = vmatprep.subr.bf16.mxu0 0
      %477 = vmatpush2.bf16.msra.mxu0 0
      %478 = vmatprep.subr.bf16.mxu0 0
      %479 = vmatpush2.bf16.msra.mxu0 0
      %480 = vmatprep.subr.bf16.mxu0 0
      %481 = vmatpush2.bf16.msra.mxu0 0
      %482 = vmatprep.subr.bf16.mxu0 0
      %483 = vmatpush2.bf16.msra.mxu0 0
      %484 = vmatprep.subr.bf16.mxu0 0
      %485 = vmatpush2.bf16.msra.mxu0 0
      %486 = vmatprep.subr.bf16.mxu0 0
      %487 = vmatpush2.bf16.msra.mxu0 0
      %488 = vmatprep.subr.bf16.mxu0 0
      %489 = vmatpush2.bf16.msra.mxu0 0
      %490 = vmatprep.mubr.bf16.mxu0 0
      %491 = vmatmul.mubr.bf16.gmra.mxu0 %v347
      %v492 = vpop.f32.mrf.mxu0
      %v493 = vadd.f32 %v238, %v492
      %v494 = vpop.f32.mrf.mxu0
      %v495 = vadd.f32 %v238, %v494
      %v496 = vpop.f32.mrf.mxu0
      %v497 = vadd.f32 %v243, %v496
      %v498 = vpop.f32.mrf.mxu0
      %v499 = vadd.f32 %v243, %v498
      %500 = vmatprep.mubr.bf16.mxu0 0
      %501 = vmatmul.mubr.bf16.gmra.mxu0 %v350
      %v502 = vpop.f32.mrf.mxu0
      %v503 = vadd.f32 %v248, %v502
      %v504 = vpop.f32.mrf.mxu0
      %v505 = vadd.f32 %v248, %v504
      %v506 = vpop.f32.mrf.mxu0
      %v507 = vadd.f32 %v253, %v506
      %v508 = vpop.f32.mrf.mxu0
      %v509 = vadd.f32 %v253, %v508
      %510 = vdwg.mxu0
      %511 = vmatprep.subr.bf16.mxu0 0
      %512 = vmatpush1.bf16.msra.mxu0 0
      %513 = vmatprep.subr.bf16.mxu0 0
      %514 = vmatpush1.bf16.msra.mxu0 0
      %515 = vmatprep.subr.bf16.mxu0 0
      %516 = vmatpush1.bf16.msra.mxu0 0
      %517 = vmatprep.subr.bf16.mxu0 0
      %518 = vmatpush1.bf16.msra.mxu0 0
      %519 = vmatprep.subr.bf16.mxu0 0
      %520 = vmatpush1.bf16.msra.mxu0 0
      %521 = vmatprep.subr.bf16.mxu0 0
      %522 = vmatpush1.bf16.msra.mxu0 0
      %523 = vmatprep.subr.bf16.mxu0 0
      %524 = vmatpush1.bf16.msra.mxu0 0
      %525 = vmatprep.subr.bf16.mxu0 %v320
      %526 = vmatpush1.bf16.msra.mxu0 %v319
      %527 = vmatprep.subr.bf16.mxu0 0
      %528 = vmatpush2.bf16.msra.mxu0 0
      %529 = vmatprep.subr.bf16.mxu0 0
      %530 = vmatpush2.bf16.msra.mxu0 0
      %531 = vmatprep.subr.bf16.mxu0 0
      %532 = vmatpush2.bf16.msra.mxu0 0
      %533 = vmatprep.subr.bf16.mxu0 0
      %534 = vmatpush2.bf16.msra.mxu0 0
      %535 = vmatprep.subr.bf16.mxu0 0
      %536 = vmatpush2.bf16.msra.mxu0 0
      %537 = vmatprep.subr.bf16.mxu0 0
      %538 = vmatpush2.bf16.msra.mxu0 0
      %539 = vmatprep.subr.bf16.mxu0 0
      %540 = vmatpush2.bf16.msra.mxu0 0
      %541 = vmatprep.subr.bf16.mxu0 0
      %542 = vmatpush2.bf16.msra.mxu0 0
      %543 = vmatprep.mubr.bf16.mxu0 0
      %544 = vmatmul.mubr.bf16.gmra.mxu0 %v347
      %v545 = vpop.f32.mrf.mxu0
      %v546 = vadd.f32 %v238, %v545
      %v547 = vpop.f32.mrf.mxu0
      %v548 = vadd.f32 %v238, %v547
      %v549 = vpop.f32.mrf.mxu0
      %v550 = vadd.f32 %v243, %v549
      %v551 = vpop.f32.mrf.mxu0
      %v552 = vadd.f32 %v243, %v551
      %553 = vmatprep.mubr.bf16.mxu0 0
      %554 = vmatmul.mubr.bf16.gmra.mxu0 %v350
      %v555 = vpop.f32.mrf.mxu0
      %v556 = vadd.f32 %v248, %v555
      %v557 = vpop.f32.mrf.mxu0
      %v558 = vadd.f32 %v248, %v557
      %v559 = vpop.f32.mrf.mxu0
      %v560 = vadd.f32 %v253, %v559
      %v561 = vpop.f32.mrf.mxu0
      %v562 = vadd.f32 %v253, %v561
      %563 = vdwg.mxu0
      %564 = vmatprep.subr.bf16.mxu0 0
      %565 = vmatpush1.bf16.msra.mxu0 0
      %566 = vmatprep.subr.bf16.mxu0 0
      %567 = vmatpush1.bf16.msra.mxu0 0
      %568 = vmatprep.subr.bf16.mxu0 0
      %569 = vmatpush1.bf16.msra.mxu0 0
      %570 = vmatprep.subr.bf16.mxu0 0
      %571 = vmatpush1.bf16.msra.mxu0 0
      %572 = vmatprep.subr.bf16.mxu0 0
      %573 = vmatpush1.bf16.msra.mxu0 0
      %574 = vmatprep.subr.bf16.mxu0 0
      %575 = vmatpush1.bf16.msra.mxu0 0
      %576 = vmatprep.subr.bf16.mxu0 0
      %577 = vmatpush1.bf16.msra.mxu0 0
      %578 = vmatprep.subr.bf16.mxu0 %v322
      %579 = vmatpush1.bf16.msra.mxu0 %v321
      %580 = vmatprep.subr.bf16.mxu0 0
      %581 = vmatpush2.bf16.msra.mxu0 0
      %582 = vmatprep.subr.bf16.mxu0 0
      %583 = vmatpush2.bf16.msra.mxu0 0
      %584 = vmatprep.subr.bf16.mxu0 0
      %585 = vmatpush2.bf16.msra.mxu0 0
      %586 = vmatprep.subr.bf16.mxu0 0
      %587 = vmatpush2.bf16.msra.mxu0 0
      %588 = vmatprep.subr.bf16.mxu0 0
      %589 = vmatpush2.bf16.msra.mxu0 0
      %590 = vmatprep.subr.bf16.mxu0 0
      %591 = vmatpush2.bf16.msra.mxu0 0
      %592 = vmatprep.subr.bf16.mxu0 0
      %593 = vmatpush2.bf16.msra.mxu0 0
      %594 = vmatprep.subr.bf16.mxu0 0
      %595 = vmatpush2.bf16.msra.mxu0 0
      %596 = vmatprep.mubr.bf16.mxu0 0
      %597 = vmatmul.mubr.bf16.gmra.mxu0 %v347
      %v598 = vpop.f32.mrf.mxu0
      %v599 = vadd.f32 %v238, %v598
      %v600 = vpop.f32.mrf.mxu0
      %v601 = vadd.f32 %v238, %v600
      %v602 = vpop.f32.mrf.mxu0
      %v603 = vadd.f32 %v243, %v602
      %v604 = vpop.f32.mrf.mxu0
      %v605 = vadd.f32 %v243, %v604
      %606 = vmatprep.mubr.bf16.mxu0 0
      %607 = vmatmul.mubr.bf16.gmra.mxu0 %v350
      %v608 = vpop.f32.mrf.mxu0
      %v609 = vadd.f32 %v248, %v608
      %v610 = vpop.f32.mrf.mxu0
      %v611 = vadd.f32 %v248, %v610
      %v612 = vpop.f32.mrf.mxu0
      %v613 = vadd.f32 %v253, %v612
      %v614 = vpop.f32.mrf.mxu0
      %v615 = vadd.f32 %v253, %v614
      %616 = vdwg.mxu0
      %617 = vmatprep.subr.bf16.mxu0 0
      %618 = vmatpush1.bf16.msra.mxu0 0
      %619 = vmatprep.subr.bf16.mxu0 0
      %620 = vmatpush1.bf16.msra.mxu0 0
      %621 = vmatprep.subr.bf16.mxu0 0
      %622 = vmatpush1.bf16.msra.mxu0 0
      %623 = vmatprep.subr.bf16.mxu0 0
      %624 = vmatpush1.bf16.msra.mxu0 0
      %625 = vmatprep.subr.bf16.mxu0 0
      %626 = vmatpush1.bf16.msra.mxu0 0
      %627 = vmatprep.subr.bf16.mxu0 0
      %628 = vmatpush1.bf16.msra.mxu0 0
      %629 = vmatprep.subr.bf16.mxu0 0
      %630 = vmatpush1.bf16.msra.mxu0 0
      %631 = vmatprep.subr.bf16.mxu0 %v324
      %632 = vmatpush1.bf16.msra.mxu0 %v323
      %633 = vmatprep.subr.bf16.mxu0 0
      %634 = vmatpush2.bf16.msra.mxu0 0
      %635 = vmatprep.subr.bf16.mxu0 0
      %636 = vmatpush2.bf16.msra.mxu0 0
      %637 = vmatprep.subr.bf16.mxu0 0
      %638 = vmatpush2.bf16.msra.mxu0 0
      %639 = vmatprep.subr.bf16.mxu0 0
      %640 = vmatpush2.bf16.msra.mxu0 0
      %641 = vmatprep.subr.bf16.mxu0 0
      %642 = vmatpush2.bf16.msra.mxu0 0
      %643 = vmatprep.subr.bf16.mxu0 0
      %644 = vmatpush2.bf16.msra.mxu0 0
      %645 = vmatprep.subr.bf16.mxu0 0
      %646 = vmatpush2.bf16.msra.mxu0 0
      %647 = vmatprep.subr.bf16.mxu0 0
      %648 = vmatpush2.bf16.msra.mxu0 0
      %649 = vmatprep.mubr.bf16.mxu0 0
      %650 = vmatmul.mubr.bf16.gmra.mxu0 %v347
      %v651 = vpop.f32.mrf.mxu0
      %v652 = vadd.f32 %v238, %v651
      %v653 = vpop.f32.mrf.mxu0
      %v654 = vadd.f32 %v238, %v653
      %v655 = vpop.f32.mrf.mxu0
      %v656 = vadd.f32 %v243, %v655
      %v657 = vpop.f32.mrf.mxu0
      %v658 = vadd.f32 %v243, %v657
      %659 = vmatprep.mubr.bf16.mxu0 0
      %660 = vmatmul.mubr.bf16.gmra.mxu0 %v350
      %v661 = vpop.f32.mrf.mxu0
      %v662 = vadd.f32 %v248, %v661
      %v663 = vpop.f32.mrf.mxu0
      %v664 = vadd.f32 %v248, %v663
      %v665 = vpop.f32.mrf.mxu0
      %v666 = vadd.f32 %v253, %v665
      %v667 = vpop.f32.mrf.mxu0
      %v668 = vadd.f32 %v253, %v667
      %669 = vdwg.mxu0
      %670 = vmatprep.subr.bf16.mxu0 0
      %671 = vmatpush1.bf16.msra.mxu0 0
      %672 = vmatprep.subr.bf16.mxu0 0
      %673 = vmatpush1.bf16.msra.mxu0 0
      %674 = vmatprep.subr.bf16.mxu0 0
      %675 = vmatpush1.bf16.msra.mxu0 0
      %676 = vmatprep.subr.bf16.mxu0 0
      %677 = vmatpush1.bf16.msra.mxu0 0
      %678 = vmatprep.subr.bf16.mxu0 0
      %679 = vmatpush1.bf16.msra.mxu0 0
      %680 = vmatprep.subr.bf16.mxu0 0
      %681 = vmatpush1.bf16.msra.mxu0 0
      %682 = vmatprep.subr.bf16.mxu0 0
      %683 = vmatpush1.bf16.msra.mxu0 0
      %684 = vmatprep.subr.bf16.mxu0 %v326
      %685 = vmatpush1.bf16.msra.mxu0 %v325
      %686 = vmatprep.subr.bf16.mxu0 0
      %687 = vmatpush2.bf16.msra.mxu0 0
      %688 = vmatprep.subr.bf16.mxu0 0
      %689 = vmatpush2.bf16.msra.mxu0 0
      %690 = vmatprep.subr.bf16.mxu0 0
      %691 = vmatpush2.bf16.msra.mxu0 0
      %692 = vmatprep.subr.bf16.mxu0 0
      %693 = vmatpush2.bf16.msra.mxu0 0
      %694 = vmatprep.subr.bf16.mxu0 0
      %695 = vmatpush2.bf16.msra.mxu0 0
      %696 = vmatprep.subr.bf16.mxu0 0
      %697 = vmatpush2.bf16.msra.mxu0 0
      %698 = vmatprep.subr.bf16.mxu0 0
      %699 = vmatpush2.bf16.msra.mxu0 0
      %700 = vmatprep.subr.bf16.mxu0 0
      %701 = vmatpush2.bf16.msra.mxu0 0
      %702 = vmatprep.mubr.bf16.mxu0 0
      %703 = vmatmul.mubr.bf16.gmra.mxu0 %v347
      %v704 = vpop.f32.mrf.mxu0
      %v705 = vadd.f32 %v238, %v704
      %v706 = vpop.f32.mrf.mxu0
      %v707 = vadd.f32 %v238, %v706
      %v708 = vpop.f32.mrf.mxu0
      %v709 = vadd.f32 %v243, %v708
      %v710 = vpop.f32.mrf.mxu0
      %v711 = vadd.f32 %v243, %v710
      %712 = vmatprep.mubr.bf16.mxu0 0
      %713 = vmatmul.mubr.bf16.gmra.mxu0 %v350
      %v714 = vpop.f32.mrf.mxu0
      %v715 = vadd.f32 %v248, %v714
      %v716 = vpop.f32.mrf.mxu0
      %v717 = vadd.f32 %v248, %v716
      %v718 = vpop.f32.mrf.mxu0
      %v719 = vadd.f32 %v253, %v718
      %v720 = vpop.f32.mrf.mxu0
      %v721 = vadd.f32 %v253, %v720
      %722 = vdwg.mxu0
      %723 = vmatprep.subr.bf16.mxu0 0
      %724 = vmatpush1.bf16.msra.mxu0 0
      %725 = vmatprep.subr.bf16.mxu0 0
      %726 = vmatpush1.bf16.msra.mxu0 0
      %727 = vmatprep.subr.bf16.mxu0 0
      %728 = vmatpush1.bf16.msra.mxu0 0
      %729 = vmatprep.subr.bf16.mxu0 0
      %730 = vmatpush1.bf16.msra.mxu0 0
      %731 = vmatprep.subr.bf16.mxu0 0
      %732 = vmatpush1.bf16.msra.mxu0 0
      %733 = vmatprep.subr.bf16.mxu0 0
      %734 = vmatpush1.bf16.msra.mxu0 0
      %735 = vmatprep.subr.bf16.mxu0 0
      %736 = vmatpush1.bf16.msra.mxu0 0
      %737 = vmatprep.subr.bf16.mxu0 %v328
      %738 = vmatpush1.bf16.msra.mxu0 %v327
      %739 = vmatprep.subr.bf16.mxu0 0
      %740 = vmatpush2.bf16.msra.mxu0 0
      %741 = vmatprep.subr.bf16.mxu0 0
      %742 = vmatpush2.bf16.msra.mxu0 0
      %743 = vmatprep.subr.bf16.mxu0 0
      %744 = vmatpush2.bf16.msra.mxu0 0
      %745 = vmatprep.subr.bf16.mxu0 0
      %746 = vmatpush2.bf16.msra.mxu0 0
      %747 = vmatprep.subr.bf16.mxu0 0
      %748 = vmatpush2.bf16.msra.mxu0 0
      %749 = vmatprep.subr.bf16.mxu0 0
      %750 = vmatpush2.bf16.msra.mxu0 0
      %751 = vmatprep.subr.bf16.mxu0 0
      %752 = vmatpush2.bf16.msra.mxu0 0
      %753 = vmatprep.subr.bf16.mxu0 0
      %754 = vmatpush2.bf16.msra.mxu0 0
      %755 = vmatprep.mubr.bf16.mxu0 0
      %756 = vmatmul.mubr.bf16.gmra.mxu0 %v347
      %v757 = vpop.f32.mrf.mxu0
      %v758 = vadd.f32 %v238, %v757
      %v759 = vpop.f32.mrf.mxu0
      %v760 = vadd.f32 %v238, %v759
      %v761 = vpop.f32.mrf.mxu0
      %v762 = vadd.f32 %v243, %v761
      %v763 = vpop.f32.mrf.mxu0
      %v764 = vadd.f32 %v243, %v763
      %765 = vmatprep.mubr.bf16.mxu0 0
      %766 = vmatmul.mubr.bf16.gmra.mxu0 %v350
      %v767 = vpop.f32.mrf.mxu0
      %v768 = vadd.f32 %v248, %v767
      %v769 = vpop.f32.mrf.mxu0
      %v770 = vadd.f32 %v248, %v769
      %v771 = vpop.f32.mrf.mxu0
      %v772 = vadd.f32 %v253, %v771
      %v773 = vpop.f32.mrf.mxu0
      %v774 = vadd.f32 %v253, %v773
      %775 = vdwg.mxu0
      %v776 = vmax.f32 %v387, 0.0
      %v777 = vmax.f32 %v389, 0.0
      %v778 = vmax.f32 %v440, 0.0
      %v779 = vmax.f32 %v442, 0.0
      %v780 = vmax.f32 %v493, 0.0
      %v781 = vmax.f32 %v495, 0.0
      %v782 = vmax.f32 %v546, 0.0
      %v783 = vmax.f32 %v548, 0.0
      %v784 = vmax.f32 %v599, 0.0
      %v785 = vmax.f32 %v601, 0.0
      %v786 = vmax.f32 %v652, 0.0
      %v787 = vmax.f32 %v654, 0.0
      %v788 = vmax.f32 %v705, 0.0
      %v789 = vmax.f32 %v707, 0.0
      %v790 = vmax.f32 %v758, 0.0
      %v791 = vmax.f32 %v760, 0.0
      %v792 = vmax.f32 %v391, 0.0
      %v793 = vmax.f32 %v393, 0.0
      %v794 = vmax.f32 %v444, 0.0
      %v795 = vmax.f32 %v446, 0.0
      %v796 = vmax.f32 %v497, 0.0
      %v797 = vmax.f32 %v499, 0.0
      %v798 = vmax.f32 %v550, 0.0
      %v799 = vmax.f32 %v552, 0.0
      %v800 = vmax.f32 %v603, 0.0
      %v801 = vmax.f32 %v605, 0.0
      %v802 = vmax.f32 %v656, 0.0
      %v803 = vmax.f32 %v658, 0.0
      %v804 = vmax.f32 %v709, 0.0
      %v805 = vmax.f32 %v711, 0.0
      %v806 = vmax.f32 %v762, 0.0
      %v807 = vmax.f32 %v764, 0.0
      %v808 = vmax.f32 %v397, 0.0
      %v809 = vmax.f32 %v399, 0.0
      %v810 = vmax.f32 %v450, 0.0
      %v811 = vmax.f32 %v452, 0.0
      %v812 = vmax.f32 %v503, 0.0
      %v813 = vmax.f32 %v505, 0.0
      %v814 = vmax.f32 %v556, 0.0
      %v815 = vmax.f32 %v558, 0.0
      %v816 = vmax.f32 %v609, 0.0
      %v817 = vmax.f32 %v611, 0.0
      %v818 = vmax.f32 %v662, 0.0
      %v819 = vmax.f32 %v664, 0.0
      %v820 = vmax.f32 %v715, 0.0
      %v821 = vmax.f32 %v717, 0.0
      %v822 = vmax.f32 %v768, 0.0
      %v823 = vmax.f32 %v770, 0.0
      %v824 = vmax.f32 %v401, 0.0
      %v825 = vmax.f32 %v403, 0.0
      %v826 = vmax.f32 %v454, 0.0
      %v827 = vmax.f32 %v456, 0.0
      %v828 = vmax.f32 %v507, 0.0
      %v829 = vmax.f32 %v509, 0.0
      %v830 = vmax.f32 %v560, 0.0
      %v831 = vmax.f32 %v562, 0.0
      %v832 = vmax.f32 %v613, 0.0
      %v833 = vmax.f32 %v615, 0.0
      %v834 = vmax.f32 %v666, 0.0
      %v835 = vmax.f32 %v668, 0.0
      %v836 = vmax.f32 %v719, 0.0
      %v837 = vmax.f32 %v721, 0.0
      %v838 = vmax.f32 %v772, 0.0
      %v839 = vmax.f32 %v774, 0.0
      %v840 = vpack.c.bf16 %v792, %v776
      %v841 = vpack.c.bf16 %v793, %v777
      %v842 = vpack.c.bf16 %v794, %v778
      %v843 = vpack.c.bf16 %v795, %v779
      %v844 = vpack.c.bf16 %v796, %v780
      %v845 = vpack.c.bf16 %v797, %v781
      %v846 = vpack.c.bf16 %v798, %v782
      %v847 = vpack.c.bf16 %v799, %v783
      %v848 = vpack.c.bf16 %v800, %v784
      %v849 = vpack.c.bf16 %v801, %v785
      %v850 = vpack.c.bf16 %v802, %v786
      %v851 = vpack.c.bf16 %v803, %v787
      %v852 = vpack.c.bf16 %v804, %v788
      %v853 = vpack.c.bf16 %v805, %v789
      %v854 = vpack.c.bf16 %v806, %v790
      %v855 = vpack.c.bf16 %v807, %v791
      %v856 = vpack.c.bf16 %v824, %v808
      %v857 = vpack.c.bf16 %v825, %v809
      %v858 = vpack.c.bf16 %v826, %v810
      %v859 = vpack.c.bf16 %v827, %v811
      %v860 = vpack.c.bf16 %v828, %v812
      %v861 = vpack.c.bf16 %v829, %v813
      %v862 = vpack.c.bf16 %v830, %v814
      %v863 = vpack.c.bf16 %v831, %v815
      %v864 = vpack.c.bf16 %v832, %v816
      %v865 = vpack.c.bf16 %v833, %v817
      %v866 = vpack.c.bf16 %v834, %v818
      %v867 = vpack.c.bf16 %v835, %v819
      %v868 = vpack.c.bf16 %v836, %v820
      %v869 = vpack.c.bf16 %v837, %v821
      %v870 = vpack.c.bf16 %v838, %v822
      %v871 = vpack.c.bf16 %v839, %v823
      %v904 = vunpack.c.l.b16 %v840
      %v905 = vunpack.c.l.b16 %v841
      %v906 = vunpack.c.l.b16 %v842
      %v907 = vunpack.c.l.b16 %v843
      %v908 = vunpack.c.l.b16 %v844
      %v909 = vunpack.c.l.b16 %v845
      %v910 = vunpack.c.l.b16 %v846
      %v911 = vunpack.c.l.b16 %v847
      %v912 = vunpack.c.l.b16 %v848
      %v913 = vunpack.c.l.b16 %v849
      %v914 = vunpack.c.l.b16 %v850
      %v915 = vunpack.c.l.b16 %v851
      %v916 = vunpack.c.l.b16 %v852
      %v917 = vunpack.c.l.b16 %v853
      %v918 = vunpack.c.l.b16 %v854
      %v919 = vunpack.c.l.b16 %v855
      %v920 = vunpack.c.h.b16 %v840
      %v921 = vunpack.c.h.b16 %v841
      %v922 = vunpack.c.h.b16 %v842
      %v923 = vunpack.c.h.b16 %v843
      %v924 = vunpack.c.h.b16 %v844
      %v925 = vunpack.c.h.b16 %v845
      %v926 = vunpack.c.h.b16 %v846
      %v927 = vunpack.c.h.b16 %v847
      %v928 = vunpack.c.h.b16 %v848
      %v929 = vunpack.c.h.b16 %v849
      %v930 = vunpack.c.h.b16 %v850
      %v931 = vunpack.c.h.b16 %v851
      %v932 = vunpack.c.h.b16 %v852
      %v933 = vunpack.c.h.b16 %v853
      %v934 = vunpack.c.h.b16 %v854
      %v935 = vunpack.c.h.b16 %v855
      %v936 = vunpack.c.l.b16 %v856
      %v937 = vunpack.c.l.b16 %v857
      %v938 = vunpack.c.l.b16 %v858
      %v939 = vunpack.c.l.b16 %v859
      %v940 = vunpack.c.l.b16 %v860
      %v941 = vunpack.c.l.b16 %v861
      %v942 = vunpack.c.l.b16 %v862
      %v943 = vunpack.c.l.b16 %v863
      %v944 = vunpack.c.l.b16 %v864
      %v945 = vunpack.c.l.b16 %v865
      %v946 = vunpack.c.l.b16 %v866
      %v947 = vunpack.c.l.b16 %v867
      %v948 = vunpack.c.l.b16 %v868
      %v949 = vunpack.c.l.b16 %v869
      %v950 = vunpack.c.l.b16 %v870
      %v951 = vunpack.c.l.b16 %v871
      %v952 = vunpack.c.h.b16 %v856
      %v953 = vunpack.c.h.b16 %v857
      %v954 = vunpack.c.h.b16 %v858
      %v955 = vunpack.c.h.b16 %v859
      %v956 = vunpack.c.h.b16 %v860
      %v957 = vunpack.c.h.b16 %v861
      %v958 = vunpack.c.h.b16 %v862
      %v959 = vunpack.c.h.b16 %v863
      %v960 = vunpack.c.h.b16 %v864
      %v961 = vunpack.c.h.b16 %v865
      %v962 = vunpack.c.h.b16 %v866
      %v963 = vunpack.c.h.b16 %v867
      %v964 = vunpack.c.h.b16 %v868
      %v965 = vunpack.c.h.b16 %v869
      %v966 = vunpack.c.h.b16 %v870
      %v967 = vunpack.c.h.b16 %v871
      %v968 = vpack.c.b16 %v905, %v904
      %v969 = vpack.c.b16 %v907, %v906
      %v970 = vpack.c.b16 %v909, %v908
      %v971 = vpack.c.b16 %v911, %v910
      %v972 = vpack.c.b16 %v913, %v912
      %v973 = vpack.c.b16 %v915, %v914
      %v974 = vpack.c.b16 %v917, %v916
      %v975 = vpack.c.b16 %v919, %v918
      %v976 = vpack.c.b16 %v921, %v920
      %v977 = vpack.c.b16 %v923, %v922
      %v978 = vpack.c.b16 %v925, %v924
      %v979 = vpack.c.b16 %v927, %v926
      %v980 = vpack.c.b16 %v929, %v928
      %v981 = vpack.c.b16 %v931, %v930
      %v982 = vpack.c.b16 %v933, %v932
      %v983 = vpack.c.b16 %v935, %v934
      %v984 = vpack.c.b16 %v937, %v936
      %v985 = vpack.c.b16 %v939, %v938
      %v986 = vpack.c.b16 %v941, %v940
      %v987 = vpack.c.b16 %v943, %v942
      %v988 = vpack.c.b16 %v945, %v944
      %v989 = vpack.c.b16 %v947, %v946
      %v990 = vpack.c.b16 %v949, %v948
      %v991 = vpack.c.b16 %v951, %v950
      %v992 = vpack.c.b16 %v953, %v952
      %v993 = vpack.c.b16 %v955, %v954
      %v994 = vpack.c.b16 %v957, %v956
      %v995 = vpack.c.b16 %v959, %v958
      %v996 = vpack.c.b16 %v961, %v960
      %v997 = vpack.c.b16 %v963, %v962
      %v998 = vpack.c.b16 %v965, %v964
      %v999 = vpack.c.b16 %v967, %v966
      %1032 = vst [vmem:[%s208] sm:$0xff] %v968
      %1033 = vst [vmem:[%s208 + $0x8] sm:$0xff] %v969
      %1034 = vst [vmem:[%s208 + $0x10] sm:$0xff] %v970
      %1035 = vst [vmem:[%s208 + $0x18] sm:$0xff] %v971
      %1036 = vst [vmem:[%s208 + $0x20] sm:$0xff] %v972
      %1037 = vst [vmem:[%s208 + $0x28] sm:$0xff] %v973
      %1038 = vst [vmem:[%s208 + $0x30] sm:$0xff] %v974
      %1039 = vst [vmem:[%s208 + $0x38] sm:$0xff] %v975
      %1040 = vst [vmem:[%s208 + $0x40] sm:$0xff] %v976
      %1041 = vst [vmem:[%s208 + $0x48] sm:$0xff] %v977
      %1042 = vst [vmem:[%s208 + $0x50] sm:$0xff] %v978
      %1043 = vst [vmem:[%s208 + $0x58] sm:$0xff] %v979
      %1044 = vst [vmem:[%s208 + $0x60] sm:$0xff] %v980
      %1045 = vst [vmem:[%s208 + $0x68] sm:$0xff] %v981
      %1046 = vst [vmem:[%s208 + $0x70] sm:$0xff] %v982
      %1047 = vst [vmem:[%s208 + $0x78] sm:$0xff] %v983
      %1048 = vst [vmem:[%s208 + $0x80] sm:$0xff] %v984
      %1049 = vst [vmem:[%s208 + $0x88] sm:$0xff] %v985
      %1050 = vst [vmem:[%s208 + $0x90] sm:$0xff] %v986
      %1051 = vst [vmem:[%s208 + $0x98] sm:$0xff] %v987
      %1052 = vst [vmem:[%s208 + $0xa0] sm:$0xff] %v988
      %1053 = vst [vmem:[%s208 + $0xa8] sm:$0xff] %v989
      %1054 = vst [vmem:[%s208 + $0xb0] sm:$0xff] %v990
      %1055 = vst [vmem:[%s208 + $0xb8] sm:$0xff] %v991
      %1056 = vst [vmem:[%s208 + $0xc0] sm:$0xff] %v992
      %1057 = vst [vmem:[%s208 + $0xc8] sm:$0xff] %v993
      %1058 = vst [vmem:[%s208 + $0xd0] sm:$0xff] %v994
      %1059 = vst [vmem:[%s208 + $0xd8] sm:$0xff] %v995
      %1060 = vst [vmem:[%s208 + $0xe0] sm:$0xff] %v996
      %1061 = vst [vmem:[%s208 + $0xe8] sm:$0xff] %v997
      %1062 = vst [vmem:[%s208 + $0xf0] sm:$0xff] %v998
      %1063 = vst [vmem:[%s208 + $0xf8] sm:$0xff] %v999
      %s1064 = smul.u32 16, %s19
      %p1065 = scmp.lt.s32.totalorder %s18, 1
      %s1066 = scalar_select %p1065, %s18, 1
      %p1067 = scmp.lt.s32.totalorder %s1064, 15
      %s1068 = scalar_select %p1067, %s1064, 15
      %s1069 = smul.addr %s1066, 64
      %s1070 = sadd.s32 %s1068, %s1069
      %s1071 = smul.addr %s1070, 4
      %s1072 = scalar_lea.vmem %s3, %s1071
      // Predicated region
      $region33: #{reference_encoder_forward.7} parent=31 // pred_check
        %p1073 = pneg %p116
      $region34: #{reference_encoder_forward.7} parent=31 // pred_check_branch
        %1075 = sbr.rel (%p1073) target = $region36
      $region35: #{reference_encoder_forward.7} parent=31 // pred_region
        %s1076 = smul.u32 16, %s19
      $region36: #{reference_encoder_forward.7} parent=31 // pred_fallthru
        _
    $region32: #{reference_encoder_forward.7} parent=5 // pred_fallthru
      _
    %p1077 = scmp.le.s32.totalorder 2, %s9
    // Predicated region
    $region37: #{reference_encoder_forward.7} parent=5 // pred_check
      %p1078 = pneg %p1077
    $region38: #{reference_encoder_forward.7} parent=5 // pred_check_branch
      %1080 = sbr.rel (%p1078) target = $region40
    $region39: #{reference_encoder_forward.7} parent=5 // pred_region
      %s1081 = ssub.s32 %s9, 2
      // Predicated region
      $region41: #{reference_encoder_forward.7} parent=39 // pred_check
        %p1082 = pneg %p122
      $region42: #{reference_encoder_forward.7} parent=39 // pred_check_branch
        %1084 = sbr.rel (%p1082) target = $region44
      $region43: #{reference_encoder_forward.7} parent=39 // pred_region
        %s1085 = smul.u32 16, %s21
        %p1086 = scmp.lt.s32.totalorder %s20, 1
        %s1087 = scalar_select %p1086, %s20, 1
        %p1088 = scmp.lt.s32.totalorder %s1085, 15
        %s1089 = scalar_select %p1088, %s1085, 15
        %s1090 = smul.addr %s1087, 64
        %s1091 = sadd.s32 %s1089, %s1090
        %s1092 = smul.addr %s1091, 4
        %s1093 = scalar_lea.vmem %s3, %s1092
      $region44: #{reference_encoder_forward.7} parent=39 // pred_fallthru
        _
    $region40: #{reference_encoder_forward.7} parent=5 // pred_fallthru
      _
  $region6: #{reference_encoder_forward.7} parent=0 // loop_footer
    %s13 = sadd.s32 1, %s9
  $region7: #{reference_encoder_forward.7} parent=0 // loop_footer_branch
    %8 = sbr.rel target = $region3
  $region8: #{reference_encoder_forward.7} parent=0 // loop_exit
    _

// kernel: reference_encoder_forward.8
$region0: #{reference_encoder_forward.8}
  #allocation0 [shape = 'u32[]', space=smem, size = 0x4, offset = 0x4, fixed_abs, tag = 'smem constant byte address 0x4 - core index']
  #allocation1 [shape = 'u32[144,128]{1,0:T(1,128)}', space=vmem, size = 0x12000, scoped, tag = 'internal scratch']
  %s0 = inlined_call_operand.vmem [shape: bf16[32,288], index: 0, kind: input, shape index: {}]
  %s1 = inlined_call_operand.vmem [shape: f32[32,1], index: 1, kind: input, shape index: {}]
  %s2 = inlined_call_operand.vmem [shape: bf16[2,288,512], index: 2, kind: input, shape index: {}]
  %s3 = inlined_call_operand.vmem [shape: bf16[2,32,512], index: 3, kind: output, shape index: {}]
  %s4 = sld [smem:[#allocation0]]
  $region45: #{reference_encoder_forward.8} parent=0
    _
  %s6 = ssub.s32 1, %s4
  %s7 = scalar_select 0, %s6, %s4
  loop: start=0, step=1, limit=4
  $region2: #{reference_encoder_forward.8} parent=0 // loop_pre_header
    _
  $region3: #{reference_encoder_forward.8} parent=0 // loop_header
    %s9 = sphi 0, %s13
    %p10 = scmp.ge.s32.totalorder %s9, 4
    %s16 = sphi 0, %s28
    %s17 = sphi 0, %s24
    %s18 = sphi 0, %s16
    %s19 = sphi 0, %s17
    %s20 = sphi 0, %s18
    %s21 = sphi 0, %s19
    %s29 = sphi 0, %s29
    %s31 = sphi 0, %s29
    %s32 = sphi 0, %s31
    %s46 = sphi 0, %s32
    %s50 = sphi 0, %s50
    %s52 = sphi 0, %s50
    %s53 = sphi 0, %s52
    %s67 = sphi 0, %s53
    %s75 = sphi 0, %s77
    %s78 = sphi 0, %s75
    %s79 = sphi 0, %s78
    %s95 = sphi 0, %s79
    %s103 = sphi 0, %s105
    %s106 = sphi 0, %s103
    %s107 = sphi 0, %s106
    %s123 = sphi 0, %s107
  $region4: #{reference_encoder_forward.8} parent=0 // loop_header_branch
    %12 = sbr.rel (%p10) target = $region8
  $region5: #{reference_encoder_forward.8} parent=0 // loop_body
    %s14 = ssub.s32 %s9, 1
    %s15 = ssub.s32 %s9, 2
    %s22 = sadd.s32 1, %s17
    %p23 = scmp.ge.s32.totalorder %s22, 1
    %s24 = scalar_select %p23, 0, %s22
    %s25 = sadd.s32 1, %s16
    %s26 = scalar_select %p23, %s25, %s16
    %p27 = scmp.ge.s32.totalorder %s26, 2
    %s28 = scalar_select %p27, 0, %s26
    %s30 = sadd.s32 %s29, 1
    %p33 = scmp.eq.s32.totalorder %s9, 1
    %p34 = scmp.ne.s32.totalorder %s29, %s31
    %p35 = scmp.eq.s32.totalorder %s9, 0
    %p36 = por %p34, %p35
    %p37 = scmp.ne.s32.totalorder %s29, %s31
    %p38 = scmp.eq.s32.totalorder %s14, 1
    %p39 = por %p37, %p38
    %p40 = scmp.ne.s32.totalorder %s31, %s32
    %p41 = scmp.eq.s32.totalorder %s14, 0
    %p42 = por %p40, %p41
    %p43 = scmp.ne.s32.totalorder %s31, %s32
    %p44 = scmp.eq.s32.totalorder %s15, 1
    %p45 = por %p43, %p44
    %p47 = scmp.ne.s32.totalorder %s32, %s46
    %p48 = scmp.eq.s32.totalorder %s15, 0
    %p49 = por %p47, %p48
    %s51 = sadd.s32 %s50, 1
    %p54 = scmp.eq.s32.totalorder %s9, 1
    %p55 = scmp.ne.s32.totalorder %s50, %s52
    %p56 = scmp.eq.s32.totalorder %s9, 0
    %p57 = por %p55, %p56
    %p58 = scmp.ne.s32.totalorder %s50, %s52
    %p59 = scmp.eq.s32.totalorder %s14, 1
    %p60 = por %p58, %p59
    %p61 = scmp.ne.s32.totalorder %s52, %s53
    %p62 = scmp.eq.s32.totalorder %s14, 0
    %p63 = por %p61, %p62
    %p64 = scmp.ne.s32.totalorder %s52, %s53
    %p65 = scmp.eq.s32.totalorder %s15, 1
    %p66 = por %p64, %p65
    %p68 = scmp.ne.s32.totalorder %s53, %s67
    %p69 = scmp.eq.s32.totalorder %s15, 0
    %p70 = por %p68, %p69
    %s71 = ssub.s32 %s16, %s28
    %s72 = ssub.s32 %s17, %s24
    %s73 = sor.u32 %s71, %s72
    %p74 = scmp.eq.s32.totalorder %s73, 0
    %s76 = sadd.s32 %s75, 1
    %s77 = scalar_select %p74, %s75, %s76
    %p80 = pneg %p74
    %p81 = scmp.eq.s32.totalorder %s9, 1
    %p82 = por %p80, %p81
    %p83 = scmp.ne.s32.totalorder %s75, %s78
    %p84 = scmp.eq.s32.totalorder %s9, 0
    %p85 = por %p83, %p84
    %p86 = scmp.ne.s32.totalorder %s75, %s78
    %p87 = scmp.eq.s32.totalorder %s14, 1
    %p88 = por %p86, %p87
    %p89 = scmp.ne.s32.totalorder %s78, %s79
    %p90 = scmp.eq.s32.totalorder %s14, 0
    %p91 = por %p89, %p90
    %p92 = scmp.ne.s32.totalorder %s78, %s79
    %p93 = scmp.eq.s32.totalorder %s15, 1
    %p94 = por %p92, %p93
    %p96 = scmp.ne.s32.totalorder %s79, %s95
    %p97 = scmp.eq.s32.totalorder %s15, 0
    %p98 = por %p96, %p97
    %s99 = ssub.s32 %s16, %s28
    %s100 = ssub.s32 %s17, %s24
    %s101 = sor.u32 %s99, %s100
    %p102 = scmp.eq.s32.totalorder %s101, 0
    %s104 = sadd.s32 %s103, 1
    %s105 = scalar_select %p102, %s103, %s104
    %p108 = pneg %p102
    %p109 = scmp.eq.s32.totalorder %s9, 1
    %p110 = por %p108, %p109
    %p111 = scmp.ne.s32.totalorder %s103, %s106
    %p112 = scmp.eq.s32.totalorder %s9, 0
    %p113 = por %p111, %p112
    %p114 = scmp.ne.s32.totalorder %s103, %s106
    %p115 = scmp.eq.s32.totalorder %s14, 1
    %p116 = por %p114, %p115
    %p117 = scmp.ne.s32.totalorder %s106, %s107
    %p118 = scmp.eq.s32.totalorder %s14, 0
    %p119 = por %p117, %p118
    %p120 = scmp.ne.s32.totalorder %s106, %s107
    %p121 = scmp.eq.s32.totalorder %s15, 1
    %p122 = por %p120, %p121
    %p124 = scmp.ne.s32.totalorder %s107, %s123
    %p125 = scmp.eq.s32.totalorder %s15, 0
    %p126 = por %p124, %p125
    %p127 = scmp.le.s32.totalorder 1, %s9
    %p128 = scmp.lt.s32.totalorder %s9, 3
    %p129 = pnand %p127, %p128
    %p130 = pneg %p129
    // Predicated region
    $region9: #{reference_encoder_forward.8} parent=5 // pred_check
      _
    $region10: #{reference_encoder_forward.8} parent=5 // pred_check_branch
      %132 = sbr.rel (%p129) target = $region12
    $region11: #{reference_encoder_forward.8} parent=5 // pred_region
      %s133 = ssub.s32 %s9, 1
      // Predicated region
      $region13: #{reference_encoder_forward.8} parent=11 // pred_check
        %p134 = pneg %p42
      $region14: #{reference_encoder_forward.8} parent=11 // pred_check_branch
        %136 = sbr.rel (%p134) target = $region16
      $region15: #{reference_encoder_forward.8} parent=11 // pred_region
        _
      $region16: #{reference_encoder_forward.8} parent=11 // pred_fallthru
        _
      // Predicated region
      $region17: #{reference_encoder_forward.8} parent=11 // pred_check
        %p137 = pneg %p63
      $region18: #{reference_encoder_forward.8} parent=11 // pred_check_branch
        %139 = sbr.rel (%p137) target = $region20
      $region19: #{reference_encoder_forward.8} parent=11 // pred_region
        _
      $region20: #{reference_encoder_forward.8} parent=11 // pred_fallthru
        _
    $region12: #{reference_encoder_forward.8} parent=5 // pred_fallthru
      _
    %p140 = scmp.lt.s32.totalorder %s9, 2
    // Predicated region
    $region21: #{reference_encoder_forward.8} parent=5 // pred_check
      %p141 = pneg %p140
    $region22: #{reference_encoder_forward.8} parent=5 // pred_check_branch
      %143 = sbr.rel (%p141) target = $region24
    $region23: #{reference_encoder_forward.8} parent=5 // pred_region
      // Predicated region
      $region25: #{reference_encoder_forward.8} parent=23 // pred_check
        %p144 = pneg %p85
      $region26: #{reference_encoder_forward.8} parent=23 // pred_check_branch
        %146 = sbr.rel (%p144) target = $region28
      $region27: #{reference_encoder_forward.8} parent=23 // pred_region
        %s147 = smul.u32 4, %s17
        %p148 = scmp.lt.s32.totalorder %s16, 1
        %s149 = scalar_select %p148, %s16, 1
        %p150 = scmp.lt.s32.totalorder %s147, 3
        %s151 = scalar_select %p150, %s147, 3
        %s152 = smul.addr %s149, 144
        %s153 = sadd.s32 %s151, %s152
        %s154 = smul.addr %s153, 4
        %s155 = scalar_lea.vmem %s2, %s154
        %s156 = smul.u32 4, %s17
      $region28: #{reference_encoder_forward.8} parent=23 // pred_fallthru
        _
    $region24: #{reference_encoder_forward.8} parent=5 // pred_fallthru
      _
    %p157 = scmp.le.s32.totalorder 1, %s9
    %p158 = scmp.lt.s32.totalorder %s9, 3
    %p159 = pnand %p157, %p158
    %p160 = pneg %p159
    // Predicated region
    $region29: #{reference_encoder_forward.8} parent=5 // pred_check
      _
    $region30: #{reference_encoder_forward.8} parent=5 // pred_check_branch
      %162 = sbr.rel (%p159) target = $region32
    $region31: #{reference_encoder_forward.8} parent=5 // pred_region
      %s163 = ssub.s32 %s9, 1
      %p164 = pneg %p42
      %p165 = pneg %p39
      %p166 = pneg %p63
      %p167 = pneg %p60
      %s168 = smul.u32 4, %s19
      %p169 = scmp.lt.s32.totalorder %s18, 1
      %s170 = scalar_select %p169, %s18, 1
      %p171 = scmp.lt.s32.totalorder %s168, 3
      %s172 = scalar_select %p171, %s168, 3
      %s173 = smul.addr %s170, 144
      %s174 = sadd.s32 %s172, %s173
      %s175 = smul.addr %s174, 4
      %s176 = scalar_lea.vmem %s2, %s175
      %p177 = pneg %p91
      %p178 = pneg %p88
      %p179 = pneg %p119
      %p180 = pneg %p116
      %s181 = smul.u32 4, %s19
      %p182 = scmp.lt.s32.totalorder %s18, 1
      %s183 = scalar_select %p182, %s18, 1
      %p184 = scmp.lt.s32.totalorder %s181, 3
      %s185 = scalar_select %p184, %s181, 3
      %s186 = smul.addr %s183, 16
      %s187 = sadd.s32 %s185, %s186
      %s188 = smul.addr %s187, 4
      %s189 = scalar_lea.vmem %s3, %s188
      %s190 = smul.u32 4, %s19
      %p191 = scmp.lt.s32.totalorder %s18, 1
      %s192 = scalar_select %p191, %s18, 1
      %p193 = scmp.lt.s32.totalorder %s190, 3
      %s194 = scalar_select %p193, %s190, 3
      %s195 = smul.addr %s192, 144
      %s196 = sadd.s32 %s194, %s195
      %s197 = smul.addr %s196, 4
      %s198 = scalar_lea.vmem %s2, %s197
      %s199 = smul.u32 4, %s19
      %s200 = smul.u32 4, %s19
      %p201 = scmp.lt.s32.totalorder %s18, 1
      %s202 = scalar_select %p201, %s18, 1
      %p203 = scmp.lt.s32.totalorder %s200, 3
      %s204 = scalar_select %p203, %s200, 3
      %s205 = smul.addr %s202, 16
      %s206 = sadd.s32 %s204, %s205
      %s207 = smul.addr %s206, 4
      %s208 = scalar_lea.vmem %s3, %s207
      %s209 = smul.u32 4, %s19
      %v211 = vld [vmem:[%s0] sm:$0xff]
      %v212 = vld [vmem:[%s0 + $0x8] sm:$0xf]
      %v213 = vld [vmem:[%s0 + $0xc] sm:$0xff]
      %v214 = vld [vmem:[%s0 + $0x14] sm:$0xf]
      %v215 = vld [vmem:[%s0 + $0x18] sm:$0xff]
      %v216 = vld [vmem:[%s0 + $0x20] sm:$0xf]
      %v217 = vld [vmem:[%s0 + $0x24] sm:$0xff]
      %v218 = vld [vmem:[%s0 + $0x2c] sm:$0xf]
      %v219 = vld [vmem:[%s198] sm:$0xff]
      %v220 = vld [vmem:[%s198 + $0x8] sm:$0xff]
      %v221 = vld [vmem:[%s198 + $0x10] sm:$0xff]
      %v222 = vld [vmem:[%s198 + $0x18] sm:$0xff]
      %v223 = vld [vmem:[%s198 + $0x20] sm:$0xff]
      %v224 = vld [vmem:[%s198 + $0x28] sm:$0xff]
      %v225 = vld [vmem:[%s198 + $0x30] sm:$0xff]
      %v226 = vld [vmem:[%s198 + $0x38] sm:$0xff]
      %v227 = vld [vmem:[%s198 + $0x40] sm:$0xff]
      %v228 = vld [vmem:[%s198 + $0x48] sm:$0xff]
      %v229 = vld [vmem:[%s198 + $0x50] sm:$0xff]
      %v230 = vld [vmem:[%s198 + $0x58] sm:$0xff]
      %v231 = vld [vmem:[%s198 + $0x60] sm:$0xff]
      %v232 = vld [vmem:[%s198 + $0x68] sm:$0xff]
      %v233 = vld [vmem:[%s198 + $0x70] sm:$0xff]
      %v234 = vld [vmem:[%s198 + $0x78] sm:$0xff]
      %v235 = vld [vmem:[%s198 + $0x80] sm:$0xff]
      %v236 = vld [vmem:[%s198 + $0x88] sm:$0xff]
      %v237 = vld [vmem:[%s198 + $0x90] sm:$0xff]
      %v238 = vld [vmem:[%s198 + $0x98] sm:$0xff]
      %v239 = vld [vmem:[%s198 + $0xa0] sm:$0xff]
      %v240 = vld [vmem:[%s198 + $0xa8] sm:$0xff]
      %v241 = vld [vmem:[%s198 + $0xb0] sm:$0xff]
      %v242 = vld [vmem:[%s198 + $0xb8] sm:$0xff]
      %v243 = vld [vmem:[%s198 + $0xc0] sm:$0xff]
      %v244 = vld [vmem:[%s198 + $0xc8] sm:$0xff]
      %v245 = vld [vmem:[%s198 + $0xd0] sm:$0xff]
      %v246 = vld [vmem:[%s198 + $0xd8] sm:$0xff]
      %v247 = vld [vmem:[%s198 + $0xe0] sm:$0xff]
      %v248 = vld [vmem:[%s198 + $0xe8] sm:$0xff]
      %v249 = vld [vmem:[%s198 + $0xf0] sm:$0xff]
      %v250 = vld [vmem:[%s198 + $0xf8] sm:$0xff]
      %v251 = vld [vmem:[%s198 + $0x100] sm:$0xff]
      %v252 = vld [vmem:[%s198 + $0x108] sm:$0xff]
      %v253 = vld [vmem:[%s198 + $0x110] sm:$0xff]
      %v254 = vld [vmem:[%s198 + $0x118] sm:$0xff]
      %v255 = vld [vmem:[%s198 + $0x120] sm:$0xff]
      %v256 = vld [vmem:[%s198 + $0x128] sm:$0xff]
      %v257 = vld [vmem:[%s198 + $0x130] sm:$0xff]
      %v258 = vld [vmem:[%s198 + $0x138] sm:$0xff]
      %v259 = vld [vmem:[%s198 + $0x140] sm:$0xff]
      %v260 = vld [vmem:[%s198 + $0x148] sm:$0xff]
      %v261 = vld [vmem:[%s198 + $0x150] sm:$0xff]
      %v262 = vld [vmem:[%s198 + $0x158] sm:$0xff]
      %v263 = vld [vmem:[%s198 + $0x160] sm:$0xff]
      %v264 = vld [vmem:[%s198 + $0x168] sm:$0xff]
      %v265 = vld [vmem:[%s198 + $0x170] sm:$0xff]
      %v266 = vld [vmem:[%s198 + $0x178] sm:$0xff]
      %v267 = vld [vmem:[%s198 + $0x180] sm:$0xff]
      %v268 = vld [vmem:[%s198 + $0x188] sm:$0xff]
      %v269 = vld [vmem:[%s198 + $0x190] sm:$0xff]
      %v270 = vld [vmem:[%s198 + $0x198] sm:$0xff]
      %v271 = vld [vmem:[%s198 + $0x1a0] sm:$0xff]
      %v272 = vld [vmem:[%s198 + $0x1a8] sm:$0xff]
      %v273 = vld [vmem:[%s198 + $0x1b0] sm:$0xff]
      %v274 = vld [vmem:[%s198 + $0x1b8] sm:$0xff]
      %v275 = vld [vmem:[%s198 + $0x1c0] sm:$0xff]
      %v276 = vld [vmem:[%s198 + $0x1c8] sm:$0xff]
      %v277 = vld [vmem:[%s198 + $0x1d0] sm:$0xff]
      %v278 = vld [vmem:[%s198 + $0x1d8] sm:$0xff]
      %v279 = vld [vmem:[%s198 + $0x1e0] sm:$0xff]
      %v280 = vld [vmem:[%s198 + $0x1e8] sm:$0xff]
      %v281 = vld [vmem:[%s198 + $0x1f0] sm:$0xff]
      %v282 = vld [vmem:[%s198 + $0x1f8] sm:$0xff]
      %v283 = vld [vmem:[%s198 + $0x200] sm:$0xff]
      %v284 = vld [vmem:[%s198 + $0x208] sm:$0xff]
      %v285 = vld [vmem:[%s198 + $0x210] sm:$0xff]
      %v286 = vld [vmem:[%s198 + $0x218] sm:$0xff]
      %v287 = vld [vmem:[%s198 + $0x220] sm:$0xff]
      %v288 = vld [vmem:[%s198 + $0x228] sm:$0xff]
      %v289 = vld [vmem:[%s198 + $0x230] sm:$0xff]
      %v290 = vld [vmem:[%s198 + $0x238] sm:$0xff]
      %v291 = vld [vmem:[%s1] sm:$0xff]
      %v292 = vld [vmem:[%s1 + $0x8] sm:$0xff]
      %v293 = vld [vmem:[%s1 + $0x10] sm:$0xff]
      %v294 = vld [vmem:[%s1 + $0x18] sm:$0xff]
      %296 = vset.pattern.permute.xlu0 0
      %297 = vperm.xlu0 %296, %v291
      %v298 = vpop.permute.xlu0 %297
      %301 = vset.pattern.permute.xlu0 0
      %302 = vperm.xlu0 %301, %v292
      %v303 = vpop.permute.xlu0 %302
      %306 = vset.pattern.permute.xlu0 0
      %307 = vperm.xlu0 %306, %v293
      %v308 = vpop.permute.xlu0 %307
      %311 = vset.pattern.permute.xlu0 0
      %312 = vperm.xlu0 %311, %v294
      %v313 = vpop.permute.xlu0 %312
      %v323 = vunpack.c.l.b16 %v211
      %v324 = vunpack.c.h.b16 %v211
      %v325 = vunpack.c.l.b16 %v212
      %v326 = vunpack.c.l.b16 %v213
      %v327 = vunpack.c.h.b16 %v213
      %v328 = vunpack.c.l.b16 %v214
      %v329 = vunpack.c.l.b16 %v215
      %v330 = vunpack.c.h.b16 %v215
      %v331 = vunpack.c.l.b16 %v216
      %v332 = vunpack.c.l.b16 %v217
      %v333 = vunpack.c.h.b16 %v217
      %v334 = vunpack.c.l.b16 %v218
      %v335 = vpack.c.b16 %v326, %v323
      %v336 = vpack.c.b16 %v327, %v324
      %v337 = vpack.c.b16 %v328, %v325
      %v338 = vpack.c.b16 %v332, %v329
      %v339 = vpack.c.b16 %v333, %v330
      %v340 = vpack.c.b16 %v334, %v331
      %v417 = vunpack.c.l.b16 %v219
      %v418 = vunpack.c.h.b16 %v219
      %v419 = vunpack.c.l.b16 %v220
      %v420 = vunpack.c.h.b16 %v220
      %v421 = vunpack.c.l.b16 %v221
      %v422 = vunpack.c.h.b16 %v221
      %v423 = vunpack.c.l.b16 %v222
      %v424 = vunpack.c.h.b16 %v222
      %v425 = vunpack.c.l.b16 %v223
      %v426 = vunpack.c.h.b16 %v223
      %v427 = vunpack.c.l.b16 %v224
      %v428 = vunpack.c.h.b16 %v224
      %v429 = vunpack.c.l.b16 %v225
      %v430 = vunpack.c.h.b16 %v225
      %v431 = vunpack.c.l.b16 %v226
      %v432 = vunpack.c.h.b16 %v226
      %v433 = vunpack.c.l.b16 %v227
      %v434 = vunpack.c.h.b16 %v227
      %v435 = vunpack.c.l.b16 %v228
      %v436 = vunpack.c.h.b16 %v228
      %v437 = vunpack.c.l.b16 %v229
      %v438 = vunpack.c.h.b16 %v229
      %v439 = vunpack.c.l.b16 %v230
      %v440 = vunpack.c.h.b16 %v230
      %v441 = vunpack.c.l.b16 %v231
      %v442 = vunpack.c.h.b16 %v231
      %v443 = vunpack.c.l.b16 %v232
      %v444 = vunpack.c.h.b16 %v232
      %v445 = vunpack.c.l.b16 %v233
      %v446 = vunpack.c.h.b16 %v233
      %v447 = vunpack.c.l.b16 %v234
      %v448 = vunpack.c.h.b16 %v234
      %v449 = vunpack.c.l.b16 %v235
      %v450 = vunpack.c.h.b16 %v235
      %v451 = vunpack.c.l.b16 %v236
      %v452 = vunpack.c.h.b16 %v236
      %v453 = vunpack.c.l.b16 %v237
      %v454 = vunpack.c.h.b16 %v237
      %v455 = vunpack.c.l.b16 %v238
      %v456 = vunpack.c.h.b16 %v238
      %v457 = vunpack.c.l.b16 %v239
      %v458 = vunpack.c.h.b16 %v239
      %v459 = vunpack.c.l.b16 %v240
      %v460 = vunpack.c.h.b16 %v240
      %v461 = vunpack.c.l.b16 %v241
      %v462 = vunpack.c.h.b16 %v241
      %v463 = vunpack.c.l.b16 %v242
      %v464 = vunpack.c.h.b16 %v242
      %v465 = vunpack.c.l.b16 %v243
      %v466 = vunpack.c.h.b16 %v243
      %v467 = vunpack.c.l.b16 %v244
      %v468 = vunpack.c.h.b16 %v244
      %v469 = vunpack.c.l.b16 %v245
      %v470 = vunpack.c.h.b16 %v245
      %v471 = vunpack.c.l.b16 %v246
      %v472 = vunpack.c.h.b16 %v246
      %v473 = vunpack.c.l.b16 %v247
      %v474 = vunpack.c.h.b16 %v247
      %v475 = vunpack.c.l.b16 %v248
      %v476 = vunpack.c.h.b16 %v248
      %v477 = vunpack.c.l.b16 %v249
      %v478 = vunpack.c.h.b16 %v249
      %v479 = vunpack.c.l.b16 %v250
      %v480 = vunpack.c.h.b16 %v250
      %v481 = vunpack.c.l.b16 %v251
      %v482 = vunpack.c.h.b16 %v251
      %v483 = vunpack.c.l.b16 %v252
      %v484 = vunpack.c.h.b16 %v252
      %v485 = vunpack.c.l.b16 %v253
      %v486 = vunpack.c.h.b16 %v253
      %v487 = vunpack.c.l.b16 %v254
      %v488 = vunpack.c.h.b16 %v254
      %v489 = vunpack.c.l.b16 %v255
      %v490 = vunpack.c.h.b16 %v255
      %v491 = vunpack.c.l.b16 %v256
      %v492 = vunpack.c.h.b16 %v256
      %v493 = vunpack.c.l.b16 %v257
      %v494 = vunpack.c.h.b16 %v257
      %v495 = vunpack.c.l.b16 %v258
      %v496 = vunpack.c.h.b16 %v258
      %v497 = vunpack.c.l.b16 %v259
      %v498 = vunpack.c.h.b16 %v259
      %v499 = vunpack.c.l.b16 %v260
      %v500 = vunpack.c.h.b16 %v260
      %v501 = vunpack.c.l.b16 %v261
      %v502 = vunpack.c.h.b16 %v261
      %v503 = vunpack.c.l.b16 %v262
      %v504 = vunpack.c.h.b16 %v262
      %v505 = vunpack.c.l.b16 %v263
      %v506 = vunpack.c.h.b16 %v263
      %v507 = vunpack.c.l.b16 %v264
      %v508 = vunpack.c.h.b16 %v264
      %v509 = vunpack.c.l.b16 %v265
      %v510 = vunpack.c.h.b16 %v265
      %v511 = vunpack.c.l.b16 %v266
      %v512 = vunpack.c.h.b16 %v266
      %v513 = vunpack.c.l.b16 %v267
      %v514 = vunpack.c.h.b16 %v267
      %v515 = vunpack.c.l.b16 %v268
      %v516 = vunpack.c.h.b16 %v268
      %v517 = vunpack.c.l.b16 %v269
      %v518 = vunpack.c.h.b16 %v269
      %v519 = vunpack.c.l.b16 %v270
      %v520 = vunpack.c.h.b16 %v270
      %v521 = vunpack.c.l.b16 %v271
      %v522 = vunpack.c.h.b16 %v271
      %v523 = vunpack.c.l.b16 %v272
      %v524 = vunpack.c.h.b16 %v272
      %v525 = vunpack.c.l.b16 %v273
      %v526 = vunpack.c.h.b16 %v273
      %v527 = vunpack.c.l.b16 %v274
      %v528 = vunpack.c.h.b16 %v274
      %v529 = vunpack.c.l.b16 %v275
      %v530 = vunpack.c.h.b16 %v275
      %v531 = vunpack.c.l.b16 %v276
      %v532 = vunpack.c.h.b16 %v276
      %v533 = vunpack.c.l.b16 %v277
      %v534 = vunpack.c.h.b16 %v277
      %v535 = vunpack.c.l.b16 %v278
      %v536 = vunpack.c.h.b16 %v278
      %v537 = vunpack.c.l.b16 %v279
      %v538 = vunpack.c.h.b16 %v279
      %v539 = vunpack.c.l.b16 %v280
      %v540 = vunpack.c.h.b16 %v280
      %v541 = vunpack.c.l.b16 %v281
      %v542 = vunpack.c.h.b16 %v281
      %v543 = vunpack.c.l.b16 %v282
      %v544 = vunpack.c.h.b16 %v282
      %v545 = vunpack.c.l.b16 %v283
      %v546 = vunpack.c.h.b16 %v283
      %v547 = vunpack.c.l.b16 %v284
      %v548 = vunpack.c.h.b16 %v284
      %v549 = vunpack.c.l.b16 %v285
      %v550 = vunpack.c.h.b16 %v285
      %v551 = vunpack.c.l.b16 %v286
      %v552 = vunpack.c.h.b16 %v286
      %v553 = vunpack.c.l.b16 %v287
      %v554 = vunpack.c.h.b16 %v287
      %v555 = vunpack.c.l.b16 %v288
      %v556 = vunpack.c.h.b16 %v288
      %v557 = vunpack.c.l.b16 %v289
      %v558 = vunpack.c.h.b16 %v289
      %v559 = vunpack.c.l.b16 %v290
      %v560 = vunpack.c.h.b16 %v290
      %v561 = vpack.c.b16 %v421, %v417
      %v562 = vpack.c.b16 %v422, %v418
      %v563 = vpack.c.b16 %v423, %v419
      %v564 = vpack.c.b16 %v424, %v420
      %v565 = vpack.c.b16 %v429, %v425
      %v566 = vpack.c.b16 %v430, %v426
      %v567 = vpack.c.b16 %v431, %v427
      %v568 = vpack.c.b16 %v432, %v428
      %v569 = vpack.c.b16 %v437, %v433
      %v570 = vpack.c.b16 %v438, %v434
      %v571 = vpack.c.b16 %v439, %v435
      %v572 = vpack.c.b16 %v440, %v436
      %v573 = vpack.c.b16 %v445, %v441
      %v574 = vpack.c.b16 %v446, %v442
      %v575 = vpack.c.b16 %v447, %v443
      %v576 = vpack.c.b16 %v448, %v444
      %v577 = vpack.c.b16 %v453, %v449
      %v578 = vpack.c.b16 %v454, %v450
      %v579 = vpack.c.b16 %v455, %v451
      %v580 = vpack.c.b16 %v456, %v452
      %v581 = vpack.c.b16 %v461, %v457
      %v582 = vpack.c.b16 %v462, %v458
      %v583 = vpack.c.b16 %v463, %v459
      %v584 = vpack.c.b16 %v464, %v460
      %v585 = vpack.c.b16 %v469, %v465
      %v586 = vpack.c.b16 %v470, %v466
      %v587 = vpack.c.b16 %v471, %v467
      %v588 = vpack.c.b16 %v472, %v468
      %v589 = vpack.c.b16 %v477, %v473
      %v590 = vpack.c.b16 %v478, %v474
      %v591 = vpack.c.b16 %v479, %v475
      %v592 = vpack.c.b16 %v480, %v476
      %v593 = vpack.c.b16 %v485, %v481
      %v594 = vpack.c.b16 %v486, %v482
      %v595 = vpack.c.b16 %v487, %v483
      %v596 = vpack.c.b16 %v488, %v484
      %v597 = vpack.c.b16 %v493, %v489
      %v598 = vpack.c.b16 %v494, %v490
      %v599 = vpack.c.b16 %v495, %v491
      %v600 = vpack.c.b16 %v496, %v492
      %v601 = vpack.c.b16 %v501, %v497
      %v602 = vpack.c.b16 %v502, %v498
      %v603 = vpack.c.b16 %v503, %v499
      %v604 = vpack.c.b16 %v504, %v500
      %v605 = vpack.c.b16 %v509, %v505
      %v606 = vpack.c.b16 %v510, %v506
      %v607 = vpack.c.b16 %v511, %v507
      %v608 = vpack.c.b16 %v512, %v508
      %v609 = vpack.c.b16 %v517, %v513
      %v610 = vpack.c.b16 %v518, %v514
      %v611 = vpack.c.b16 %v519, %v515
      %v612 = vpack.c.b16 %v520, %v516
      %v613 = vpack.c.b16 %v525, %v521
      %v614 = vpack.c.b16 %v526, %v522
      %v615 = vpack.c.b16 %v527, %v523
      %v616 = vpack.c.b16 %v528, %v524
      %v617 = vpack.c.b16 %v533, %v529
      %v618 = vpack.c.b16 %v534, %v530
      %v619 = vpack.c.b16 %v535, %v531
      %v620 = vpack.c.b16 %v536, %v532
      %v621 = vpack.c.b16 %v541, %v537
      %v622 = vpack.c.b16 %v542, %v538
      %v623 = vpack.c.b16 %v543, %v539
      %v624 = vpack.c.b16 %v544, %v540
      %v625 = vpack.c.b16 %v549, %v545
      %v626 = vpack.c.b16 %v550, %v546
      %v627 = vpack.c.b16 %v551, %v547
      %v628 = vpack.c.b16 %v552, %v548
      %v629 = vpack.c.b16 %v557, %v553
      %v630 = vpack.c.b16 %v558, %v554
      %v631 = vpack.c.b16 %v559, %v555
      %v632 = vpack.c.b16 %v560, %v556
      %vm705 = vcmask 261120
      %v707 = vsel %vm705, %v337, 0
      %v710 = vsel %vm705, %v340, 0
      %712 = vmatprep.subr.bf16.mxu0 %v590
      %713 = vmatpush1.bf16.msra.mxu0 %v589
      %714 = vmatprep.subr.bf16.mxu0 %v586
      %715 = vmatpush1.bf16.msra.mxu0 %v585
      %716 = vmatprep.subr.bf16.mxu0 %v582
      %717 = vmatpush1.bf16.msra.mxu0 %v581
      %718 = vmatprep.subr.bf16.mxu0 %v578
      %719 = vmatpush1.bf16.msra.mxu0 %v577
      %720 = vmatprep.subr.bf16.mxu0 %v574
      %721 = vmatpush1.bf16.msra.mxu0 %v573
      %722 = vmatprep.subr.bf16.mxu0 %v570
      %723 = vmatpush1.bf16.msra.mxu0 %v569
      %724 = vmatprep.subr.bf16.mxu0 %v566
      %725 = vmatpush1.bf16.msra.mxu0 %v565
      %726 = vmatprep.subr.bf16.mxu0 %v562
      %727 = vmatpush1.bf16.msra.mxu0 %v561
      %728 = vmatprep.subr.bf16.mxu0 %v622
      %729 = vmatpush2.bf16.msra.mxu0 %v621
      %730 = vmatprep.subr.bf16.mxu0 %v618
      %731 = vmatpush2.bf16.msra.mxu0 %v617
      %732 = vmatprep.subr.bf16.mxu0 %v614
      %733 = vmatpush2.bf16.msra.mxu0 %v613
      %734 = vmatprep.subr.bf16.mxu0 %v610
      %735 = vmatpush2.bf16.msra.mxu0 %v609
      %736 = vmatprep.subr.bf16.mxu0 %v606
      %737 = vmatpush2.bf16.msra.mxu0 %v605
      %738 = vmatprep.subr.bf16.mxu0 %v602
      %739 = vmatpush2.bf16.msra.mxu0 %v601
      %740 = vmatprep.subr.bf16.mxu0 %v598
      %741 = vmatpush2.bf16.msra.mxu0 %v597
      %742 = vmatprep.subr.bf16.mxu0 %v594
      %743 = vmatpush2.bf16.msra.mxu0 %v593
      %744 = vmatprep.mubr.bf16.mxu0 %v336
      %745 = vmatmul.mubr.bf16.gmra.mxu0 %v335
      %v746 = vpop.f32.mrf.mxu0
      %v747 = vadd.f32 %v298, %v746
      %v748 = vpop.f32.mrf.mxu0
      %v749 = vadd.f32 %v298, %v748
      %v750 = vpop.f32.mrf.mxu0
      %v751 = vadd.f32 %v303, %v750
      %v752 = vpop.f32.mrf.mxu0
      %v753 = vadd.f32 %v303, %v752
      %754 = vmatprep.mubr.bf16.mxu0 %v339
      %755 = vmatmul.mubr.bf16.gmra.mxu0 %v338
      %v756 = vpop.f32.mrf.mxu0
      %v757 = vadd.f32 %v308, %v756
      %v758 = vpop.f32.mrf.mxu0
      %v759 = vadd.f32 %v308, %v758
      %v760 = vpop.f32.mrf.mxu0
      %v761 = vadd.f32 %v313, %v760
      %v762 = vpop.f32.mrf.mxu0
      %v763 = vadd.f32 %v313, %v762
      %764 = vdwg.mxu0
      %765 = vmatprep.subr.bf16.mxu0 0
      %766 = vmatpush1.bf16.msra.mxu0 0
      %767 = vmatprep.subr.bf16.mxu0 0
      %768 = vmatpush1.bf16.msra.mxu0 0
      %769 = vmatprep.subr.bf16.mxu0 0
      %770 = vmatpush1.bf16.msra.mxu0 0
      %771 = vmatprep.subr.bf16.mxu0 0
      %772 = vmatpush1.bf16.msra.mxu0 0
      %773 = vmatprep.subr.bf16.mxu0 0
      %774 = vmatpush1.bf16.msra.mxu0 0
      %775 = vmatprep.subr.bf16.mxu0 0
      %776 = vmatpush1.bf16.msra.mxu0 0
      %777 = vmatprep.subr.bf16.mxu0 %v630
      %778 = vmatpush1.bf16.msra.mxu0 %v629
      %779 = vmatprep.subr.bf16.mxu0 %v626
      %780 = vmatpush1.bf16.msra.mxu0 %v625
      %781 = vmatprep.subr.bf16.mxu0 0
      %782 = vmatpush2.bf16.msra.mxu0 0
      %783 = vmatprep.subr.bf16.mxu0 0
      %784 = vmatpush2.bf16.msra.mxu0 0
      %785 = vmatprep.subr.bf16.mxu0 0
      %786 = vmatpush2.bf16.msra.mxu0 0
      %787 = vmatprep.subr.bf16.mxu0 0
      %788 = vmatpush2.bf16.msra.mxu0 0
      %789 = vmatprep.subr.bf16.mxu0 0
      %790 = vmatpush2.bf16.msra.mxu0 0
      %791 = vmatprep.subr.bf16.mxu0 0
      %792 = vmatpush2.bf16.msra.mxu0 0
      %793 = vmatprep.subr.bf16.mxu0 0
      %794 = vmatpush2.bf16.msra.mxu0 0
      %795 = vmatprep.subr.bf16.mxu0 0
      %796 = vmatpush2.bf16.msra.mxu0 0
      %797 = vmatprep.mubr.bf16.mxu0 0
      %798 = vmatmul.mubr.bf16.gmra.mxu0 %v707
      %v799 = vpop.f32.mrf.mxu0
      %v800 = vadd.f32 %v747, %v799
      %v801 = vpop.f32.mrf.mxu0
      %v802 = vadd.f32 %v749, %v801
      %v803 = vpop.f32.mrf.mxu0
      %v804 = vadd.f32 %v751, %v803
      %v805 = vpop.f32.mrf.mxu0
      %v806 = vadd.f32 %v753, %v805
      %807 = vmatprep.mubr.bf16.mxu0 0
      %808 = vmatmul.mubr.bf16.gmra.mxu0 %v710
      %v809 = vpop.f32.mrf.mxu0
      %v810 = vadd.f32 %v757, %v809
      %v811 = vpop.f32.mrf.mxu0
      %v812 = vadd.f32 %v759, %v811
      %v813 = vpop.f32.mrf.mxu0
      %v814 = vadd.f32 %v761, %v813
      %v815 = vpop.f32.mrf.mxu0
      %v816 = vadd.f32 %v763, %v815
      %817 = vdwg.mxu0
      %818 = vmatprep.subr.bf16.mxu0 %v592
      %819 = vmatpush1.bf16.msra.mxu0 %v591
      %820 = vmatprep.subr.bf16.mxu0 %v588
      %821 = vmatpush1.bf16.msra.mxu0 %v587
      %822 = vmatprep.subr.bf16.mxu0 %v584
      %823 = vmatpush1.bf16.msra.mxu0 %v583
      %824 = vmatprep.subr.bf16.mxu0 %v580
      %825 = vmatpush1.bf16.msra.mxu0 %v579
      %826 = vmatprep.subr.bf16.mxu0 %v576
      %827 = vmatpush1.bf16.msra.mxu0 %v575
      %828 = vmatprep.subr.bf16.mxu0 %v572
      %829 = vmatpush1.bf16.msra.mxu0 %v571
      %830 = vmatprep.subr.bf16.mxu0 %v568
      %831 = vmatpush1.bf16.msra.mxu0 %v567
      %832 = vmatprep.subr.bf16.mxu0 %v564
      %833 = vmatpush1.bf16.msra.mxu0 %v563
      %834 = vmatprep.subr.bf16.mxu0 %v624
      %835 = vmatpush2.bf16.msra.mxu0 %v623
      %836 = vmatprep.subr.bf16.mxu0 %v620
      %837 = vmatpush2.bf16.msra.mxu0 %v619
      %838 = vmatprep.subr.bf16.mxu0 %v616
      %839 = vmatpush2.bf16.msra.mxu0 %v615
      %840 = vmatprep.subr.bf16.mxu0 %v612
      %841 = vmatpush2.bf16.msra.mxu0 %v611
      %842 = vmatprep.subr.bf16.mxu0 %v608
      %843 = vmatpush2.bf16.msra.mxu0 %v607
      %844 = vmatprep.subr.bf16.mxu0 %v604
      %845 = vmatpush2.bf16.msra.mxu0 %v603
      %846 = vmatprep.subr.bf16.mxu0 %v600
      %847 = vmatpush2.bf16.msra.mxu0 %v599
      %848 = vmatprep.subr.bf16.mxu0 %v596
      %849 = vmatpush2.bf16.msra.mxu0 %v595
      %850 = vmatprep.mubr.bf16.mxu0 %v336
      %851 = vmatmul.mubr.bf16.gmra.mxu0 %v335
      %v852 = vpop.f32.mrf.mxu0
      %v853 = vadd.f32 %v298, %v852
      %v854 = vpop.f32.mrf.mxu0
      %v855 = vadd.f32 %v298, %v854
      %v856 = vpop.f32.mrf.mxu0
      %v857 = vadd.f32 %v303, %v856
      %v858 = vpop.f32.mrf.mxu0
      %v859 = vadd.f32 %v303, %v858
      %860 = vmatprep.mubr.bf16.mxu0 %v339
      %861 = vmatmul.mubr.bf16.gmra.mxu0 %v338
      %v862 = vpop.f32.mrf.mxu0
      %v863 = vadd.f32 %v308, %v862
      %v864 = vpop.f32.mrf.mxu0
      %v865 = vadd.f32 %v308, %v864
      %v866 = vpop.f32.mrf.mxu0
      %v867 = vadd.f32 %v313, %v866
      %v868 = vpop.f32.mrf.mxu0
      %v869 = vadd.f32 %v313, %v868
      %870 = vdwg.mxu0
      %871 = vmatprep.subr.bf16.mxu0 0
      %872 = vmatpush1.bf16.msra.mxu0 0
      %873 = vmatprep.subr.bf16.mxu0 0
      %874 = vmatpush1.bf16.msra.mxu0 0
      %875 = vmatprep.subr.bf16.mxu0 0
      %876 = vmatpush1.bf16.msra.mxu0 0
      %877 = vmatprep.subr.bf16.mxu0 0
      %878 = vmatpush1.bf16.msra.mxu0 0
      %879 = vmatprep.subr.bf16.mxu0 0
      %880 = vmatpush1.bf16.msra.mxu0 0
      %881 = vmatprep.subr.bf16.mxu0 0
      %882 = vmatpush1.bf16.msra.mxu0 0
      %883 = vmatprep.subr.bf16.mxu0 %v632
      %884 = vmatpush1.bf16.msra.mxu0 %v631
      %885 = vmatprep.subr.bf16.mxu0 %v628
      %886 = vmatpush1.bf16.msra.mxu0 %v627
      %887 = vmatprep.subr.bf16.mxu0 0
      %888 = vmatpush2.bf16.msra.mxu0 0
      %889 = vmatprep.subr.bf16.mxu0 0
      %890 = vmatpush2.bf16.msra.mxu0 0
      %891 = vmatprep.subr.bf16.mxu0 0
      %892 = vmatpush2.bf16.msra.mxu0 0
      %893 = vmatprep.subr.bf16.mxu0 0
      %894 = vmatpush2.bf16.msra.mxu0 0
      %895 = vmatprep.subr.bf16.mxu0 0
      %896 = vmatpush2.bf16.msra.mxu0 0
      %897 = vmatprep.subr.bf16.mxu0 0
      %898 = vmatpush2.bf16.msra.mxu0 0
      %899 = vmatprep.subr.bf16.mxu0 0
      %900 = vmatpush2.bf16.msra.mxu0 0
      %901 = vmatprep.subr.bf16.mxu0 0
      %902 = vmatpush2.bf16.msra.mxu0 0
      %903 = vmatprep.mubr.bf16.mxu0 0
      %904 = vmatmul.mubr.bf16.gmra.mxu0 %v707
      %v905 = vpop.f32.mrf.mxu0
      %v906 = vadd.f32 %v853, %v905
      %v907 = vpop.f32.mrf.mxu0
      %v908 = vadd.f32 %v855, %v907
      %v909 = vpop.f32.mrf.mxu0
      %v910 = vadd.f32 %v857, %v909
      %v911 = vpop.f32.mrf.mxu0
      %v912 = vadd.f32 %v859, %v911
      %913 = vmatprep.mubr.bf16.mxu0 0
      %914 = vmatmul.mubr.bf16.gmra.mxu0 %v710
      %v915 = vpop.f32.mrf.mxu0
      %v916 = vadd.f32 %v863, %v915
      %v917 = vpop.f32.mrf.mxu0
      %v918 = vadd.f32 %v865, %v917
      %v919 = vpop.f32.mrf.mxu0
      %v920 = vadd.f32 %v867, %v919
      %v921 = vpop.f32.mrf.mxu0
      %v922 = vadd.f32 %v869, %v921
      %923 = vdwg.mxu0
      %v924 = vmax.f32 %v800, 0.0
      %v925 = vmax.f32 %v802, 0.0
      %v926 = vmax.f32 %v906, 0.0
      %v927 = vmax.f32 %v908, 0.0
      %v928 = vmax.f32 %v804, 0.0
      %v929 = vmax.f32 %v806, 0.0
      %v930 = vmax.f32 %v910, 0.0
      %v931 = vmax.f32 %v912, 0.0
      %v932 = vmax.f32 %v810, 0.0
      %v933 = vmax.f32 %v812, 0.0
      %v934 = vmax.f32 %v916, 0.0
      %v935 = vmax.f32 %v918, 0.0
      %v936 = vmax.f32 %v814, 0.0
      %v937 = vmax.f32 %v816, 0.0
      %v938 = vmax.f32 %v920, 0.0
      %v939 = vmax.f32 %v922, 0.0
      %v940 = vpack.c.bf16 %v928, %v924
      %v941 = vpack.c.bf16 %v929, %v925
      %v942 = vpack.c.bf16 %v930, %v926
      %v943 = vpack.c.bf16 %v931, %v927
      %v944 = vpack.c.bf16 %v936, %v932
      %v945 = vpack.c.bf16 %v937, %v933
      %v946 = vpack.c.bf16 %v938, %v934
      %v947 = vpack.c.bf16 %v939, %v935
      %v956 = vunpack.c.l.b16 %v940
      %v957 = vunpack.c.l.b16 %v941
      %v958 = vunpack.c.l.b16 %v942
      %v959 = vunpack.c.l.b16 %v943
      %v960 = vunpack.c.h.b16 %v940
      %v961 = vunpack.c.h.b16 %v941
      %v962 = vunpack.c.h.b16 %v942
      %v963 = vunpack.c.h.b16 %v943
      %v964 = vunpack.c.l.b16 %v944
      %v965 = vunpack.c.l.b16 %v945
      %v966 = vunpack.c.l.b16 %v946
      %v967 = vunpack.c.l.b16 %v947
      %v968 = vunpack.c.h.b16 %v944
      %v969 = vunpack.c.h.b16 %v945
      %v970 = vunpack.c.h.b16 %v946
      %v971 = vunpack.c.h.b16 %v947
      %v972 = vpack.c.b16 %v957, %v956
      %v973 = vpack.c.b16 %v959, %v958
      %v974 = vpack.c.b16 %v961, %v960
      %v975 = vpack.c.b16 %v963, %v962
      %v976 = vpack.c.b16 %v965, %v964
      %v977 = vpack.c.b16 %v967, %v966
      %v978 = vpack.c.b16 %v969, %v968
      %v979 = vpack.c.b16 %v971, %v970
      %988 = vst [vmem:[%s208] sm:$0xff] %v972
      %989 = vst [vmem:[%s208 + $0x8] sm:$0xff] %v973
      %990 = vst [vmem:[%s208 + $0x10] sm:$0xff] %v974
      %991 = vst [vmem:[%s208 + $0x18] sm:$0xff] %v975
      %992 = vst [vmem:[%s208 + $0x20] sm:$0xff] %v976
      %993 = vst [vmem:[%s208 + $0x28] sm:$0xff] %v977
      %994 = vst [vmem:[%s208 + $0x30] sm:$0xff] %v978
      %995 = vst [vmem:[%s208 + $0x38] sm:$0xff] %v979
      %s996 = smul.u32 4, %s19
      %p997 = scmp.lt.s32.totalorder %s18, 1
      %s998 = scalar_select %p997, %s18, 1
      %p999 = scmp.lt.s32.totalorder %s996, 3
      %s1000 = scalar_select %p999, %s996, 3
      %s1001 = smul.addr %s998, 16
      %s1002 = sadd.s32 %s1000, %s1001
      %s1003 = smul.addr %s1002, 4
      %s1004 = scalar_lea.vmem %s3, %s1003
      // Predicated region
      $region33: #{reference_encoder_forward.8} parent=31 // pred_check
        %p1005 = pneg %p116
      $region34: #{reference_encoder_forward.8} parent=31 // pred_check_branch
        %1007 = sbr.rel (%p1005) target = $region36
      $region35: #{reference_encoder_forward.8} parent=31 // pred_region
        %s1008 = smul.u32 4, %s19
      $region36: #{reference_encoder_forward.8} parent=31 // pred_fallthru
        _
    $region32: #{reference_encoder_forward.8} parent=5 // pred_fallthru
      _
    %p1009 = scmp.le.s32.totalorder 2, %s9
    // Predicated region
    $region37: #{reference_encoder_forward.8} parent=5 // pred_check
      %p1010 = pneg %p1009
    $region38: #{reference_encoder_forward.8} parent=5 // pred_check_branch
      %1012 = sbr.rel (%p1010) target = $region40
    $region39: #{reference_encoder_forward.8} parent=5 // pred_region
      %s1013 = ssub.s32 %s9, 2
      // Predicated region
      $region41: #{reference_encoder_forward.8} parent=39 // pred_check
        %p1014 = pneg %p122
      $region42: #{reference_encoder_forward.8} parent=39 // pred_check_branch
        %1016 = sbr.rel (%p1014) target = $region44
      $region43: #{reference_encoder_forward.8} parent=39 // pred_region
        %s1017 = smul.u32 4, %s21
        %p1018 = scmp.lt.s32.totalorder %s20, 1
        %s1019 = scalar_select %p1018, %s20, 1
        %p1020 = scmp.lt.s32.totalorder %s1017, 3
        %s1021 = scalar_select %p1020, %s1017, 3
        %s1022 = smul.addr %s1019, 16
        %s1023 = sadd.s32 %s1021, %s1022
        %s1024 = smul.addr %s1023, 4
        %s1025 = scalar_lea.vmem %s3, %s1024
      $region44: #{reference_encoder_forward.8} parent=39 // pred_fallthru
        _
    $region40: #{reference_encoder_forward.8} parent=5 // pred_fallthru
      _
  $region6: #{reference_encoder_forward.8} parent=0 // loop_footer
    %s13 = sadd.s32 1, %s9
  $region7: #{reference_encoder_forward.8} parent=0 // loop_footer_branch
    %8 = sbr.rel target = $region3
  $region8: #{reference_encoder_forward.8} parent=0 // loop_exit
    _

// kernel: reference_encoder_forward.9
$region0: #{reference_encoder_forward.9}
  #allocation0 [shape = 'u32[]', space=smem, size = 0x4, offset = 0x4, fixed_abs, tag = 'smem constant byte address 0x4 - core index']
  #allocation1 [shape = 'u32[144,128]{1,0:T(1,128)}', space=vmem, size = 0x12000, scoped, tag = 'internal scratch']
  %s0 = inlined_call_operand.vmem [shape: bf16[64,288], index: 0, kind: input, shape index: {}]
  %s1 = inlined_call_operand.vmem [shape: f32[64,1], index: 1, kind: input, shape index: {}]
  %s2 = inlined_call_operand.vmem [shape: bf16[2,288,128], index: 2, kind: input, shape index: {}]
  %s3 = inlined_call_operand.vmem [shape: bf16[2,64,128], index: 3, kind: output, shape index: {}]
  %s4 = sld [smem:[#allocation0]]
  $region45: #{reference_encoder_forward.9} parent=0
    _
  %s6 = ssub.s32 1, %s4
  %s7 = scalar_select 0, %s6, %s4
  loop: start=0, step=1, limit=4
  $region2: #{reference_encoder_forward.9} parent=0 // loop_pre_header
    _
  $region3: #{reference_encoder_forward.9} parent=0 // loop_header
    %s9 = sphi 0, %s13
    %p10 = scmp.ge.s32.totalorder %s9, 4
    %s16 = sphi 0, %s28
    %s17 = sphi 0, %s24
    %s18 = sphi 0, %s16
    %s19 = sphi 0, %s17
    %s20 = sphi 0, %s18
    %s21 = sphi 0, %s19
    %s29 = sphi 0, %s29
    %s31 = sphi 0, %s29
    %s32 = sphi 0, %s31
    %s46 = sphi 0, %s32
    %s50 = sphi 0, %s50
    %s52 = sphi 0, %s50
    %s53 = sphi 0, %s52
    %s67 = sphi 0, %s53
    %s75 = sphi 0, %s77
    %s78 = sphi 0, %s75
    %s79 = sphi 0, %s78
    %s95 = sphi 0, %s79
    %s103 = sphi 0, %s105
    %s106 = sphi 0, %s103
    %s107 = sphi 0, %s106
    %s123 = sphi 0, %s107
  $region4: #{reference_encoder_forward.9} parent=0 // loop_header_branch
    %12 = sbr.rel (%p10) target = $region8
  $region5: #{reference_encoder_forward.9} parent=0 // loop_body
    %s14 = ssub.s32 %s9, 1
    %s15 = ssub.s32 %s9, 2
    %s22 = sadd.s32 1, %s17
    %p23 = scmp.ge.s32.totalorder %s22, 1
    %s24 = scalar_select %p23, 0, %s22
    %s25 = sadd.s32 1, %s16
    %s26 = scalar_select %p23, %s25, %s16
    %p27 = scmp.ge.s32.totalorder %s26, 2
    %s28 = scalar_select %p27, 0, %s26
    %s30 = sadd.s32 %s29, 1
    %p33 = scmp.eq.s32.totalorder %s9, 1
    %p34 = scmp.ne.s32.totalorder %s29, %s31
    %p35 = scmp.eq.s32.totalorder %s9, 0
    %p36 = por %p34, %p35
    %p37 = scmp.ne.s32.totalorder %s29, %s31
    %p38 = scmp.eq.s32.totalorder %s14, 1
    %p39 = por %p37, %p38
    %p40 = scmp.ne.s32.totalorder %s31, %s32
    %p41 = scmp.eq.s32.totalorder %s14, 0
    %p42 = por %p40, %p41
    %p43 = scmp.ne.s32.totalorder %s31, %s32
    %p44 = scmp.eq.s32.totalorder %s15, 1
    %p45 = por %p43, %p44
    %p47 = scmp.ne.s32.totalorder %s32, %s46
    %p48 = scmp.eq.s32.totalorder %s15, 0
    %p49 = por %p47, %p48
    %s51 = sadd.s32 %s50, 1
    %p54 = scmp.eq.s32.totalorder %s9, 1
    %p55 = scmp.ne.s32.totalorder %s50, %s52
    %p56 = scmp.eq.s32.totalorder %s9, 0
    %p57 = por %p55, %p56
    %p58 = scmp.ne.s32.totalorder %s50, %s52
    %p59 = scmp.eq.s32.totalorder %s14, 1
    %p60 = por %p58, %p59
    %p61 = scmp.ne.s32.totalorder %s52, %s53
    %p62 = scmp.eq.s32.totalorder %s14, 0
    %p63 = por %p61, %p62
    %p64 = scmp.ne.s32.totalorder %s52, %s53
    %p65 = scmp.eq.s32.totalorder %s15, 1
    %p66 = por %p64, %p65
    %p68 = scmp.ne.s32.totalorder %s53, %s67
    %p69 = scmp.eq.s32.totalorder %s15, 0
    %p70 = por %p68, %p69
    %s71 = ssub.s32 %s16, %s28
    %s72 = ssub.s32 %s17, %s24
    %s73 = sor.u32 %s71, %s72
    %p74 = scmp.eq.s32.totalorder %s73, 0
    %s76 = sadd.s32 %s75, 1
    %s77 = scalar_select %p74, %s75, %s76
    %p80 = pneg %p74
    %p81 = scmp.eq.s32.totalorder %s9, 1
    %p82 = por %p80, %p81
    %p83 = scmp.ne.s32.totalorder %s75, %s78
    %p84 = scmp.eq.s32.totalorder %s9, 0
    %p85 = por %p83, %p84
    %p86 = scmp.ne.s32.totalorder %s75, %s78
    %p87 = scmp.eq.s32.totalorder %s14, 1
    %p88 = por %p86, %p87
    %p89 = scmp.ne.s32.totalorder %s78, %s79
    %p90 = scmp.eq.s32.totalorder %s14, 0
    %p91 = por %p89, %p90
    %p92 = scmp.ne.s32.totalorder %s78, %s79
    %p93 = scmp.eq.s32.totalorder %s15, 1
    %p94 = por %p92, %p93
    %p96 = scmp.ne.s32.totalorder %s79, %s95
    %p97 = scmp.eq.s32.totalorder %s15, 0
    %p98 = por %p96, %p97
    %s99 = ssub.s32 %s16, %s28
    %s100 = ssub.s32 %s17, %s24
    %s101 = sor.u32 %s99, %s100
    %p102 = scmp.eq.s32.totalorder %s101, 0
    %s104 = sadd.s32 %s103, 1
    %s105 = scalar_select %p102, %s103, %s104
    %p108 = pneg %p102
    %p109 = scmp.eq.s32.totalorder %s9, 1
    %p110 = por %p108, %p109
    %p111 = scmp.ne.s32.totalorder %s103, %s106
    %p112 = scmp.eq.s32.totalorder %s9, 0
    %p113 = por %p111, %p112
    %p114 = scmp.ne.s32.totalorder %s103, %s106
    %p115 = scmp.eq.s32.totalorder %s14, 1
    %p116 = por %p114, %p115
    %p117 = scmp.ne.s32.totalorder %s106, %s107
    %p118 = scmp.eq.s32.totalorder %s14, 0
    %p119 = por %p117, %p118
    %p120 = scmp.ne.s32.totalorder %s106, %s107
    %p121 = scmp.eq.s32.totalorder %s15, 1
    %p122 = por %p120, %p121
    %p124 = scmp.ne.s32.totalorder %s107, %s123
    %p125 = scmp.eq.s32.totalorder %s15, 0
    %p126 = por %p124, %p125
    %p127 = scmp.le.s32.totalorder 1, %s9
    %p128 = scmp.lt.s32.totalorder %s9, 3
    %p129 = pnand %p127, %p128
    %p130 = pneg %p129
    // Predicated region
    $region9: #{reference_encoder_forward.9} parent=5 // pred_check
      _
    $region10: #{reference_encoder_forward.9} parent=5 // pred_check_branch
      %132 = sbr.rel (%p129) target = $region12
    $region11: #{reference_encoder_forward.9} parent=5 // pred_region
      %s133 = ssub.s32 %s9, 1
      // Predicated region
      $region13: #{reference_encoder_forward.9} parent=11 // pred_check
        %p134 = pneg %p42
      $region14: #{reference_encoder_forward.9} parent=11 // pred_check_branch
        %136 = sbr.rel (%p134) target = $region16
      $region15: #{reference_encoder_forward.9} parent=11 // pred_region
        _
      $region16: #{reference_encoder_forward.9} parent=11 // pred_fallthru
        _
      // Predicated region
      $region17: #{reference_encoder_forward.9} parent=11 // pred_check
        %p137 = pneg %p63
      $region18: #{reference_encoder_forward.9} parent=11 // pred_check_branch
        %139 = sbr.rel (%p137) target = $region20
      $region19: #{reference_encoder_forward.9} parent=11 // pred_region
        _
      $region20: #{reference_encoder_forward.9} parent=11 // pred_fallthru
        _
    $region12: #{reference_encoder_forward.9} parent=5 // pred_fallthru
      _
    %p140 = scmp.lt.s32.totalorder %s9, 2
    // Predicated region
    $region21: #{reference_encoder_forward.9} parent=5 // pred_check
      %p141 = pneg %p140
    $region22: #{reference_encoder_forward.9} parent=5 // pred_check_branch
      %143 = sbr.rel (%p141) target = $region24
    $region23: #{reference_encoder_forward.9} parent=5 // pred_region
      // Predicated region
      $region25: #{reference_encoder_forward.9} parent=23 // pred_check
        %p144 = pneg %p85
      $region26: #{reference_encoder_forward.9} parent=23 // pred_check_branch
        %146 = sbr.rel (%p144) target = $region28
      $region27: #{reference_encoder_forward.9} parent=23 // pred_region
        %p147 = scmp.lt.s32.totalorder %s16, 1
        %s148 = scalar_select %p147, %s16, 1
        %p149 = scmp.lt.s32.totalorder %s17, 0
        %s150 = scalar_select %p149, %s17, 0
        %s151 = smul.addr %s148, 36
        %s152 = sadd.s32 %s150, %s151
        %s153 = smul.addr %s152, 4
        %s154 = scalar_lea.vmem %s2, %s153
      $region28: #{reference_encoder_forward.9} parent=23 // pred_fallthru
        _
    $region24: #{reference_encoder_forward.9} parent=5 // pred_fallthru
      _
    %p155 = scmp.le.s32.totalorder 1, %s9
    %p156 = scmp.lt.s32.totalorder %s9, 3
    %p157 = pnand %p155, %p156
    %p158 = pneg %p157
    // Predicated region
    $region29: #{reference_encoder_forward.9} parent=5 // pred_check
      _
    $region30: #{reference_encoder_forward.9} parent=5 // pred_check_branch
      %160 = sbr.rel (%p157) target = $region32
    $region31: #{reference_encoder_forward.9} parent=5 // pred_region
      %s161 = ssub.s32 %s9, 1
      %p162 = pneg %p42
      %p163 = pneg %p39
      %p164 = pneg %p63
      %p165 = pneg %p60
      %p166 = scmp.lt.s32.totalorder %s18, 1
      %s167 = scalar_select %p166, %s18, 1
      %p168 = scmp.lt.s32.totalorder %s19, 0
      %s169 = scalar_select %p168, %s19, 0
      %s170 = smul.addr %s167, 36
      %s171 = sadd.s32 %s169, %s170
      %s172 = smul.addr %s171, 4
      %s173 = scalar_lea.vmem %s2, %s172
      %p174 = pneg %p91
      %p175 = pneg %p88
      %p176 = pneg %p119
      %p177 = pneg %p116
      %p178 = scmp.lt.s32.totalorder %s18, 1
      %s179 = scalar_select %p178, %s18, 1
      %p180 = scmp.lt.s32.totalorder %s19, 0
      %s181 = scalar_select %p180, %s19, 0
      %s182 = smul.addr %s179, 8
      %s183 = sadd.s32 %s181, %s182
      %s184 = smul.addr %s183, 4
      %s185 = scalar_lea.vmem %s3, %s184
      %p186 = scmp.lt.s32.totalorder %s18, 1
      %s187 = scalar_select %p186, %s18, 1
      %p188 = scmp.lt.s32.totalorder %s19, 0
      %s189 = scalar_select %p188, %s19, 0
      %s190 = smul.addr %s187, 36
      %s191 = sadd.s32 %s189, %s190
      %s192 = smul.addr %s191, 4
      %s193 = scalar_lea.vmem %s2, %s192
      %p194 = scmp.lt.s32.totalorder %s18, 1
      %s195 = scalar_select %p194, %s18, 1
      %p196 = scmp.lt.s32.totalorder %s19, 0
      %s197 = scalar_select %p196, %s19, 0
      %s198 = smul.addr %s195, 8
      %s199 = sadd.s32 %s197, %s198
      %s200 = smul.addr %s199, 4
      %s201 = scalar_lea.vmem %s3, %s200
      %v203 = vld [vmem:[%s0] sm:$0xff]
      %v204 = vld [vmem:[%s0 + $0x8] sm:$0xf]
      %v205 = vld [vmem:[%s0 + $0xc] sm:$0xff]
      %v206 = vld [vmem:[%s0 + $0x14] sm:$0xf]
      %v207 = vld [vmem:[%s0 + $0x18] sm:$0xff]
      %v208 = vld [vmem:[%s0 + $0x20] sm:$0xf]
      %v209 = vld [vmem:[%s0 + $0x24] sm:$0xff]
      %v210 = vld [vmem:[%s0 + $0x2c] sm:$0xf]
      %v211 = vld [vmem:[%s0 + $0x30] sm:$0xff]
      %v212 = vld [vmem:[%s0 + $0x38] sm:$0xf]
      %v213 = vld [vmem:[%s0 + $0x3c] sm:$0xff]
      %v214 = vld [vmem:[%s0 + $0x44] sm:$0xf]
      %v215 = vld [vmem:[%s0 + $0x48] sm:$0xff]
      %v216 = vld [vmem:[%s0 + $0x50] sm:$0xf]
      %v217 = vld [vmem:[%s0 + $0x54] sm:$0xff]
      %v218 = vld [vmem:[%s0 + $0x5c] sm:$0xf]
      %v219 = vld [vmem:[%s193] sm:$0xf]
      %v220 = vld [vmem:[%s193 + $0x4] sm:$0xf]
      %v221 = vld [vmem:[%s193 + $0x8] sm:$0xf]
      %v222 = vld [vmem:[%s193 + $0xc] sm:$0xf]
      %v223 = vld [vmem:[%s193 + $0x10] sm:$0xf]
      %v224 = vld [vmem:[%s193 + $0x14] sm:$0xf]
      %v225 = vld [vmem:[%s193 + $0x18] sm:$0xf]
      %v226 = vld [vmem:[%s193 + $0x1c] sm:$0xf]
      %v227 = vld [vmem:[%s193 + $0x20] sm:$0xf]
      %v228 = vld [vmem:[%s193 + $0x24] sm:$0xf]
      %v229 = vld [vmem:[%s193 + $0x28] sm:$0xf]
      %v230 = vld [vmem:[%s193 + $0x2c] sm:$0xf]
      %v231 = vld [vmem:[%s193 + $0x30] sm:$0xf]
      %v232 = vld [vmem:[%s193 + $0x34] sm:$0xf]
      %v233 = vld [vmem:[%s193 + $0x38] sm:$0xf]
      %v234 = vld [vmem:[%s193 + $0x3c] sm:$0xf]
      %v235 = vld [vmem:[%s193 + $0x40] sm:$0xf]
      %v236 = vld [vmem:[%s193 + $0x44] sm:$0xf]
      %v237 = vld [vmem:[%s193 + $0x48] sm:$0xf]
      %v238 = vld [vmem:[%s193 + $0x4c] sm:$0xf]
      %v239 = vld [vmem:[%s193 + $0x50] sm:$0xf]
      %v240 = vld [vmem:[%s193 + $0x54] sm:$0xf]
      %v241 = vld [vmem:[%s193 + $0x58] sm:$0xf]
      %v242 = vld [vmem:[%s193 + $0x5c] sm:$0xf]
      %v243 = vld [vmem:[%s193 + $0x60] sm:$0xf]
      %v244 = vld [vmem:[%s193 + $0x64] sm:$0xf]
      %v245 = vld [vmem:[%s193 + $0x68] sm:$0xf]
      %v246 = vld [vmem:[%s193 + $0x6c] sm:$0xf]
      %v247 = vld [vmem:[%s193 + $0x70] sm:$0xf]
      %v248 = vld [vmem:[%s193 + $0x74] sm:$0xf]
      %v249 = vld [vmem:[%s193 + $0x78] sm:$0xf]
      %v250 = vld [vmem:[%s193 + $0x7c] sm:$0xf]
      %v251 = vld [vmem:[%s193 + $0x80] sm:$0xf]
      %v252 = vld [vmem:[%s193 + $0x84] sm:$0xf]
      %v253 = vld [vmem:[%s193 + $0x88] sm:$0xf]
      %v254 = vld [vmem:[%s193 + $0x8c] sm:$0xf]
      %v255 = vld [vmem:[%s1] sm:$0xff]
      %v256 = vld [vmem:[%s1 + $0x8] sm:$0xff]
      %v257 = vld [vmem:[%s1 + $0x10] sm:$0xff]
      %v258 = vld [vmem:[%s1 + $0x18] sm:$0xff]
      %v259 = vld [vmem:[%s1 + $0x20] sm:$0xff]
      %v260 = vld [vmem:[%s1 + $0x28] sm:$0xff]
      %v261 = vld [vmem:[%s1 + $0x30] sm:$0xff]
      %v262 = vld [vmem:[%s1 + $0x38] sm:$0xff]
      %264 = vset.pattern.permute.xlu0 0
      %265 = vperm.xlu0 %264, %v255
      %v266 = vpop.permute.xlu0 %265
      %269 = vset.pattern.permute.xlu0 0
      %270 = vperm.xlu0 %269, %v256
      %v271 = vpop.permute.xlu0 %270
      %274 = vset.pattern.permute.xlu0 0
      %275 = vperm.xlu0 %274, %v257
      %v276 = vpop.permute.xlu0 %275
      %279 = vset.pattern.permute.xlu0 0
      %280 = vperm.xlu0 %279, %v258
      %v281 = vpop.permute.xlu0 %280
      %284 = vset.pattern.permute.xlu0 0
      %285 = vperm.xlu0 %284, %v259
      %v286 = vpop.permute.xlu0 %285
      %289 = vset.pattern.permute.xlu0 0
      %290 = vperm.xlu0 %289, %v260
      %v291 = vpop.permute.xlu0 %290
      %294 = vset.pattern.permute.xlu0 0
      %295 = vperm.xlu0 %294, %v261
      %v296 = vpop.permute.xlu0 %295
      %299 = vset.pattern.permute.xlu0 0
      %300 = vperm.xlu0 %299, %v262
      %v301 = vpop.permute.xlu0 %300
      %v319 = vunpack.c.l.b16 %v203
      %v320 = vunpack.c.h.b16 %v203
      %v321 = vunpack.c.l.b16 %v204
      %v322 = vunpack.c.l.b16 %v205
      %v323 = vunpack.c.h.b16 %v205
      %v324 = vunpack.c.l.b16 %v206
      %v325 = vunpack.c.l.b16 %v207
      %v326 = vunpack.c.h.b16 %v207
      %v327 = vunpack.c.l.b16 %v208
      %v328 = vunpack.c.l.b16 %v209
      %v329 = vunpack.c.h.b16 %v209
      %v330 = vunpack.c.l.b16 %v210
      %v331 = vunpack.c.l.b16 %v211
      %v332 = vunpack.c.h.b16 %v211
      %v333 = vunpack.c.l.b16 %v212
      %v334 = vunpack.c.l.b16 %v213
      %v335 = vunpack.c.h.b16 %v213
      %v336 = vunpack.c.l.b16 %v214
      %v337 = vunpack.c.l.b16 %v215
      %v338 = vunpack.c.h.b16 %v215
      %v339 = vunpack.c.l.b16 %v216
      %v340 = vunpack.c.l.b16 %v217
      %v341 = vunpack.c.h.b16 %v217
      %v342 = vunpack.c.l.b16 %v218
      %v343 = vpack.c.b16 %v322, %v319
      %v344 = vpack.c.b16 %v323, %v320
      %v345 = vpack.c.b16 %v324, %v321
      %v346 = vpack.c.b16 %v328, %v325
      %v347 = vpack.c.b16 %v329, %v326
      %v348 = vpack.c.b16 %v330, %v327
      %v349 = vpack.c.b16 %v334, %v331
      %v350 = vpack.c.b16 %v335, %v332
      %v351 = vpack.c.b16 %v336, %v333
      %v352 = vpack.c.b16 %v340, %v337
      %v353 = vpack.c.b16 %v341, %v338
      %v354 = vpack.c.b16 %v342, %v339
      %v399 = vunpack.c.l.b16 %v219
      %v400 = vunpack.c.l.b16 %v220
      %v401 = vunpack.c.l.b16 %v221
      %v402 = vunpack.c.l.b16 %v222
      %v403 = vunpack.c.l.b16 %v223
      %v404 = vunpack.c.l.b16 %v224
      %v405 = vunpack.c.l.b16 %v225
      %v406 = vunpack.c.l.b16 %v226
      %v407 = vunpack.c.l.b16 %v227
      %v408 = vunpack.c.l.b16 %v228
      %v409 = vunpack.c.l.b16 %v229
      %v410 = vunpack.c.l.b16 %v230
      %v411 = vunpack.c.l.b16 %v231
      %v412 = vunpack.c.l.b16 %v232
      %v413 = vunpack.c.l.b16 %v233
      %v414 = vunpack.c.l.b16 %v234
      %v415 = vunpack.c.l.b16 %v235
      %v416 = vunpack.c.l.b16 %v236
      %v417 = vunpack.c.l.b16 %v237
      %v418 = vunpack.c.l.b16 %v238
      %v419 = vunpack.c.l.b16 %v239
      %v420 = vunpack.c.l.b16 %v240
      %v421 = vunpack.c.l.b16 %v241
      %v422 = vunpack.c.l.b16 %v242
      %v423 = vunpack.c.l.b16 %v243
      %v424 = vunpack.c.l.b16 %v244
      %v425 = vunpack.c.l.b16 %v245
      %v426 = vunpack.c.l.b16 %v246
      %v427 = vunpack.c.l.b16 %v247
      %v428 = vunpack.c.l.b16 %v248
      %v429 = vunpack.c.l.b16 %v249
      %v430 = vunpack.c.l.b16 %v250
      %v431 = vunpack.c.l.b16 %v251
      %v432 = vunpack.c.l.b16 %v252
      %v433 = vunpack.c.l.b16 %v253
      %v434 = vunpack.c.l.b16 %v254
      %v435 = vpack.c.b16 %v400, %v399
      %v436 = vpack.c.b16 %v402, %v401
      %v437 = vpack.c.b16 %v404, %v403
      %v438 = vpack.c.b16 %v406, %v405
      %v439 = vpack.c.b16 %v408, %v407
      %v440 = vpack.c.b16 %v410, %v409
      %v441 = vpack.c.b16 %v412, %v411
      %v442 = vpack.c.b16 %v414, %v413
      %v443 = vpack.c.b16 %v416, %v415
      %v444 = vpack.c.b16 %v418, %v417
      %v445 = vpack.c.b16 %v420, %v419
      %v446 = vpack.c.b16 %v422, %v421
      %v447 = vpack.c.b16 %v424, %v423
      %v448 = vpack.c.b16 %v426, %v425
      %v449 = vpack.c.b16 %v428, %v427
      %v450 = vpack.c.b16 %v430, %v429
      %v451 = vpack.c.b16 %v432, %v431
      %v452 = vpack.c.b16 %v434, %v433
      %vm471 = vcmask 261120
      %v473 = vsel %vm471, %v345, 0
      %v476 = vsel %vm471, %v348, 0
      %v479 = vsel %vm471, %v351, 0
      %v482 = vsel %vm471, %v354, 0
      %484 = vmatprep.subr.bf16.mxu0 0
      %485 = vmatpush1.bf16.msra.mxu0 %v442
      %486 = vmatprep.subr.bf16.mxu0 0
      %487 = vmatpush1.bf16.msra.mxu0 %v441
      %488 = vmatprep.subr.bf16.mxu0 0
      %489 = vmatpush1.bf16.msra.mxu0 %v440
      %490 = vmatprep.subr.bf16.mxu0 0
      %491 = vmatpush1.bf16.msra.mxu0 %v439
      %492 = vmatprep.subr.bf16.mxu0 0
      %493 = vmatpush1.bf16.msra.mxu0 %v438
      %494 = vmatprep.subr.bf16.mxu0 0
      %495 = vmatpush1.bf16.msra.mxu0 %v437
      %496 = vmatprep.subr.bf16.mxu0 0
      %497 = vmatpush1.bf16.msra.mxu0 %v436
      %498 = vmatprep.subr.bf16.mxu0 0
      %499 = vmatpush1.bf16.msra.mxu0 %v435
      %500 = vmatprep.subr.bf16.mxu0 0
      %501 = vmatpush2.bf16.msra.mxu0 %v450
      %502 = vmatprep.subr.bf16.mxu0 0
      %503 = vmatpush2.bf16.msra.mxu0 %v449
      %504 = vmatprep.subr.bf16.mxu0 0
      %505 = vmatpush2.bf16.msra.mxu0 %v448
      %506 = vmatprep.subr.bf16.mxu0 0
      %507 = vmatpush2.bf16.msra.mxu0 %v447
      %508 = vmatprep.subr.bf16.mxu0 0
      %509 = vmatpush2.bf16.msra.mxu0 %v446
      %510 = vmatprep.subr.bf16.mxu0 0
      %511 = vmatpush2.bf16.msra.mxu0 %v445
      %512 = vmatprep.subr.bf16.mxu0 0
      %513 = vmatpush2.bf16.msra.mxu0 %v444
      %514 = vmatprep.subr.bf16.mxu0 0
      %515 = vmatpush2.bf16.msra.mxu0 %v443
      %516 = vmatprep.mubr.bf16.mxu0 %v344
      %517 = vmatmul.mubr.bf16.gmra.mxu0 %v343
      %v518 = vpop.f32.mrf.mxu0
      %v519 = vadd.f32 %v266, %v518
      %v520 = vpop.f32.mrf.mxu0
      %v521 = vpop.f32.mrf.mxu0
      %v522 = vadd.f32 %v271, %v521
      %v523 = vpop.f32.mrf.mxu0
      %524 = vmatprep.mubr.bf16.mxu0 %v347
      %525 = vmatmul.mubr.bf16.gmra.mxu0 %v346
      %v526 = vpop.f32.mrf.mxu0
      %v527 = vadd.f32 %v276, %v526
      %v528 = vpop.f32.mrf.mxu0
      %v529 = vpop.f32.mrf.mxu0
      %v530 = vadd.f32 %v281, %v529
      %v531 = vpop.f32.mrf.mxu0
      %532 = vmatprep.mubr.bf16.mxu0 %v350
      %533 = vmatmul.mubr.bf16.gmra.mxu0 %v349
      %v534 = vpop.f32.mrf.mxu0
      %v535 = vadd.f32 %v286, %v534
      %v536 = vpop.f32.mrf.mxu0
      %v537 = vpop.f32.mrf.mxu0
      %v538 = vadd.f32 %v291, %v537
      %v539 = vpop.f32.mrf.mxu0
      %540 = vmatprep.mubr.bf16.mxu0 %v353
      %541 = vmatmul.mubr.bf16.gmra.mxu0 %v352
      %v542 = vpop.f32.mrf.mxu0
      %v543 = vadd.f32 %v296, %v542
      %v544 = vpop.f32.mrf.mxu0
      %v545 = vpop.f32.mrf.mxu0
      %v546 = vadd.f32 %v301, %v545
      %v547 = vpop.f32.mrf.mxu0
      %548 = vdwg.mxu0
      %549 = vmatprep.subr.bf16.mxu0 0
      %550 = vmatpush1.bf16.msra.mxu0 0
      %551 = vmatprep.subr.bf16.mxu0 0
      %552 = vmatpush1.bf16.msra.mxu0 0
      %553 = vmatprep.subr.bf16.mxu0 0
      %554 = vmatpush1.bf16.msra.mxu0 0
      %555 = vmatprep.subr.bf16.mxu0 0
      %556 = vmatpush1.bf16.msra.mxu0 0
      %557 = vmatprep.subr.bf16.mxu0 0
      %558 = vmatpush1.bf16.msra.mxu0 0
      %559 = vmatprep.subr.bf16.mxu0 0
      %560 = vmatpush1.bf16.msra.mxu0 0
      %561 = vmatprep.subr.bf16.mxu0 0
      %562 = vmatpush1.bf16.msra.mxu0 %v452
      %563 = vmatprep.subr.bf16.mxu0 0
      %564 = vmatpush1.bf16.msra.mxu0 %v451
      %565 = vmatprep.subr.bf16.mxu0 0
      %566 = vmatpush2.bf16.msra.mxu0 0
      %567 = vmatprep.subr.bf16.mxu0 0
      %568 = vmatpush2.bf16.msra.mxu0 0
      %569 = vmatprep.subr.bf16.mxu0 0
      %570 = vmatpush2.bf16.msra.mxu0 0
      %571 = vmatprep.subr.bf16.mxu0 0
      %572 = vmatpush2.bf16.msra.mxu0 0
      %573 = vmatprep.subr.bf16.mxu0 0
      %574 = vmatpush2.bf16.msra.mxu0 0
      %575 = vmatprep.subr.bf16.mxu0 0
      %576 = vmatpush2.bf16.msra.mxu0 0
      %577 = vmatprep.subr.bf16.mxu0 0
      %578 = vmatpush2.bf16.msra.mxu0 0
      %579 = vmatprep.subr.bf16.mxu0 0
      %580 = vmatpush2.bf16.msra.mxu0 0
      %581 = vmatprep.mubr.bf16.mxu0 0
      %582 = vmatmul.mubr.bf16.gmra.mxu0 %v473
      %v583 = vpop.f32.mrf.mxu0
      %v584 = vadd.f32 %v519, %v583
      %v585 = vpop.f32.mrf.mxu0
      %v586 = vpop.f32.mrf.mxu0
      %v587 = vadd.f32 %v522, %v586
      %v588 = vpop.f32.mrf.mxu0
      %589 = vmatprep.mubr.bf16.mxu0 0
      %590 = vmatmul.mubr.bf16.gmra.mxu0 %v476
      %v591 = vpop.f32.mrf.mxu0
      %v592 = vadd.f32 %v527, %v591
      %v593 = vpop.f32.mrf.mxu0
      %v594 = vpop.f32.mrf.mxu0
      %v595 = vadd.f32 %v530, %v594
      %v596 = vpop.f32.mrf.mxu0
      %597 = vmatprep.mubr.bf16.mxu0 0
      %598 = vmatmul.mubr.bf16.gmra.mxu0 %v479
      %v599 = vpop.f32.mrf.mxu0
      %v600 = vadd.f32 %v535, %v599
      %v601 = vpop.f32.mrf.mxu0
      %v602 = vpop.f32.mrf.mxu0
      %v603 = vadd.f32 %v538, %v602
      %v604 = vpop.f32.mrf.mxu0
      %605 = vmatprep.mubr.bf16.mxu0 0
      %606 = vmatmul.mubr.bf16.gmra.mxu0 %v482
      %v607 = vpop.f32.mrf.mxu0
      %v608 = vadd.f32 %v543, %v607
      %v609 = vpop.f32.mrf.mxu0
      %v610 = vpop.f32.mrf.mxu0
      %v611 = vadd.f32 %v546, %v610
      %v612 = vpop.f32.mrf.mxu0
      %613 = vdwg.mxu0
      %v614 = vmax.f32 %v584, 0.0
      %v615 = vmax.f32 %v587, 0.0
      %v616 = vmax.f32 %v592, 0.0
      %v617 = vmax.f32 %v595, 0.0
      %v618 = vmax.f32 %v600, 0.0
      %v619 = vmax.f32 %v603, 0.0
      %v620 = vmax.f32 %v608, 0.0
      %v621 = vmax.f32 %v611, 0.0
      %v622 = vpack.c.bf16 %v615, %v614
      %v623 = vpack.c.bf16 %v617, %v616
      %v624 = vpack.c.bf16 %v619, %v618
      %v625 = vpack.c.bf16 %v621, %v620
      %v630 = vunpack.c.l.b16 %v622
      %v631 = vunpack.c.h.b16 %v622
      %v632 = vunpack.c.l.b16 %v623
      %v633 = vunpack.c.h.b16 %v623
      %v634 = vunpack.c.l.b16 %v624
      %v635 = vunpack.c.h.b16 %v624
      %v636 = vunpack.c.l.b16 %v625
      %v637 = vunpack.c.h.b16 %v625
      %v638 = vpack.c.b16 %v630, %v630
      %v639 = vpack.c.b16 %v631, %v631
      %v640 = vpack.c.b16 %v632, %v632
      %v641 = vpack.c.b16 %v633, %v633
      %v642 = vpack.c.b16 %v634, %v634
      %v643 = vpack.c.b16 %v635, %v635
      %v644 = vpack.c.b16 %v636, %v636
      %v645 = vpack.c.b16 %v637, %v637
      %654 = vst [vmem:[%s201] sm:$0xf] %v638
      %655 = vst [vmem:[%s201 + $0x4] sm:$0xf] %v639
      %656 = vst [vmem:[%s201 + $0x8] sm:$0xf] %v640
      %657 = vst [vmem:[%s201 + $0xc] sm:$0xf] %v641
      %658 = vst [vmem:[%s201 + $0x10] sm:$0xf] %v642
      %659 = vst [vmem:[%s201 + $0x14] sm:$0xf] %v643
      %660 = vst [vmem:[%s201 + $0x18] sm:$0xf] %v644
      %661 = vst [vmem:[%s201 + $0x1c] sm:$0xf] %v645
      %p662 = scmp.lt.s32.totalorder %s18, 1
      %s663 = scalar_select %p662, %s18, 1
      %p664 = scmp.lt.s32.totalorder %s19, 0
      %s665 = scalar_select %p664, %s19, 0
      %s666 = smul.addr %s663, 8
      %s667 = sadd.s32 %s665, %s666
      %s668 = smul.addr %s667, 4
      %s669 = scalar_lea.vmem %s3, %s668
      // Predicated region
      $region33: #{reference_encoder_forward.9} parent=31 // pred_check
        %p670 = pneg %p116
      $region34: #{reference_encoder_forward.9} parent=31 // pred_check_branch
        %672 = sbr.rel (%p670) target = $region36
      $region35: #{reference_encoder_forward.9} parent=31 // pred_region
        _
      $region36: #{reference_encoder_forward.9} parent=31 // pred_fallthru
        _
    $region32: #{reference_encoder_forward.9} parent=5 // pred_fallthru
      _
    %p673 = scmp.le.s32.totalorder 2, %s9
    // Predicated region
    $region37: #{reference_encoder_forward.9} parent=5 // pred_check
      %p674 = pneg %p673
    $region38: #{reference_encoder_forward.9} parent=5 // pred_check_branch
      %676 = sbr.rel (%p674) target = $region40
    $region39: #{reference_encoder_forward.9} parent=5 // pred_region
      %s677 = ssub.s32 %s9, 2
      // Predicated region
      $region41: #{reference_encoder_forward.9} parent=39 // pred_check
        %p678 = pneg %p122
      $region42: #{reference_encoder_forward.9} parent=39 // pred_check_branch
        %680 = sbr.rel (%p678) target = $region44
      $region43: #{reference_encoder_forward.9} parent=39 // pred_region
        %p681 = scmp.lt.s32.totalorder %s20, 1
        %s682 = scalar_select %p681, %s20, 1
        %p683 = scmp.lt.s32.totalorder %s21, 0
        %s684 = scalar_select %p683, %s21, 0
        %s685 = smul.addr %s682, 8
        %s686 = sadd.s32 %s684, %s685
        %s687 = smul.addr %s686, 4
        %s688 = scalar_lea.vmem %s3, %s687
      $region44: #{reference_encoder_forward.9} parent=39 // pred_fallthru
        _
    $region40: #{reference_encoder_forward.9} parent=5 // pred_fallthru
      _
  $region6: #{reference_encoder_forward.9} parent=0 // loop_footer
    %s13 = sadd.s32 1, %s9
  $region7: #{reference_encoder_forward.9} parent=0 // loop_footer_branch
    %8 = sbr.rel target = $region3
  $region8: #{reference_encoder_forward.9} parent=0 // loop_exit
    _

// kernel: reference_encoder_forward.10
$region0: #{reference_encoder_forward.10}
  #allocation0 [shape = 'u32[]', space=smem, size = 0x4, offset = 0x4, fixed_abs, tag = 'smem constant byte address 0x4 - core index']
  #allocation1 [shape = 'u32[144,128]{1,0:T(1,128)}', space=vmem, size = 0x12000, scoped, tag = 'internal scratch']
  %s0 = inlined_call_operand.vmem [shape: bf16[64,576], index: 0, kind: input, shape index: {}]
  %s1 = inlined_call_operand.vmem [shape: f32[64,1], index: 1, kind: input, shape index: {}]
  %s2 = inlined_call_operand.vmem [shape: bf16[2,576,128], index: 2, kind: input, shape index: {}]
  %s3 = inlined_call_operand.vmem [shape: bf16[2,64,128], index: 3, kind: output, shape index: {}]
  %s4 = sld [smem:[#allocation0]]
  $region45: #{reference_encoder_forward.10} parent=0
    _
  %s6 = ssub.s32 1, %s4
  %s7 = scalar_select 0, %s6, %s4
  loop: start=0, step=1, limit=4
  $region2: #{reference_encoder_forward.10} parent=0 // loop_pre_header
    _
  $region3: #{reference_encoder_forward.10} parent=0 // loop_header
    %s9 = sphi 0, %s13
    %p10 = scmp.ge.s32.totalorder %s9, 4
    %s16 = sphi 0, %s28
    %s17 = sphi 0, %s24
    %s18 = sphi 0, %s16
    %s19 = sphi 0, %s17
    %s20 = sphi 0, %s18
    %s21 = sphi 0, %s19
    %s29 = sphi 0, %s29
    %s31 = sphi 0, %s29
    %s32 = sphi 0, %s31
    %s46 = sphi 0, %s32
    %s50 = sphi 0, %s50
    %s52 = sphi 0, %s50
    %s53 = sphi 0, %s52
    %s67 = sphi 0, %s53
    %s75 = sphi 0, %s77
    %s78 = sphi 0, %s75
    %s79 = sphi 0, %s78
    %s95 = sphi 0, %s79
    %s103 = sphi 0, %s105
    %s106 = sphi 0, %s103
    %s107 = sphi 0, %s106
    %s123 = sphi 0, %s107
  $region4: #{reference_encoder_forward.10} parent=0 // loop_header_branch
    %12 = sbr.rel (%p10) target = $region8
  $region5: #{reference_encoder_forward.10} parent=0 // loop_body
    %s14 = ssub.s32 %s9, 1
    %s15 = ssub.s32 %s9, 2
    %s22 = sadd.s32 1, %s17
    %p23 = scmp.ge.s32.totalorder %s22, 1
    %s24 = scalar_select %p23, 0, %s22
    %s25 = sadd.s32 1, %s16
    %s26 = scalar_select %p23, %s25, %s16
    %p27 = scmp.ge.s32.totalorder %s26, 2
    %s28 = scalar_select %p27, 0, %s26
    %s30 = sadd.s32 %s29, 1
    %p33 = scmp.eq.s32.totalorder %s9, 1
    %p34 = scmp.ne.s32.totalorder %s29, %s31
    %p35 = scmp.eq.s32.totalorder %s9, 0
    %p36 = por %p34, %p35
    %p37 = scmp.ne.s32.totalorder %s29, %s31
    %p38 = scmp.eq.s32.totalorder %s14, 1
    %p39 = por %p37, %p38
    %p40 = scmp.ne.s32.totalorder %s31, %s32
    %p41 = scmp.eq.s32.totalorder %s14, 0
    %p42 = por %p40, %p41
    %p43 = scmp.ne.s32.totalorder %s31, %s32
    %p44 = scmp.eq.s32.totalorder %s15, 1
    %p45 = por %p43, %p44
    %p47 = scmp.ne.s32.totalorder %s32, %s46
    %p48 = scmp.eq.s32.totalorder %s15, 0
    %p49 = por %p47, %p48
    %s51 = sadd.s32 %s50, 1
    %p54 = scmp.eq.s32.totalorder %s9, 1
    %p55 = scmp.ne.s32.totalorder %s50, %s52
    %p56 = scmp.eq.s32.totalorder %s9, 0
    %p57 = por %p55, %p56
    %p58 = scmp.ne.s32.totalorder %s50, %s52
    %p59 = scmp.eq.s32.totalorder %s14, 1
    %p60 = por %p58, %p59
    %p61 = scmp.ne.s32.totalorder %s52, %s53
    %p62 = scmp.eq.s32.totalorder %s14, 0
    %p63 = por %p61, %p62
    %p64 = scmp.ne.s32.totalorder %s52, %s53
    %p65 = scmp.eq.s32.totalorder %s15, 1
    %p66 = por %p64, %p65
    %p68 = scmp.ne.s32.totalorder %s53, %s67
    %p69 = scmp.eq.s32.totalorder %s15, 0
    %p70 = por %p68, %p69
    %s71 = ssub.s32 %s16, %s28
    %s72 = ssub.s32 %s17, %s24
    %s73 = sor.u32 %s71, %s72
    %p74 = scmp.eq.s32.totalorder %s73, 0
    %s76 = sadd.s32 %s75, 1
    %s77 = scalar_select %p74, %s75, %s76
    %p80 = pneg %p74
    %p81 = scmp.eq.s32.totalorder %s9, 1
    %p82 = por %p80, %p81
    %p83 = scmp.ne.s32.totalorder %s75, %s78
    %p84 = scmp.eq.s32.totalorder %s9, 0
    %p85 = por %p83, %p84
    %p86 = scmp.ne.s32.totalorder %s75, %s78
    %p87 = scmp.eq.s32.totalorder %s14, 1
    %p88 = por %p86, %p87
    %p89 = scmp.ne.s32.totalorder %s78, %s79
    %p90 = scmp.eq.s32.totalorder %s14, 0
    %p91 = por %p89, %p90
    %p92 = scmp.ne.s32.totalorder %s78, %s79
    %p93 = scmp.eq.s32.totalorder %s15, 1
    %p94 = por %p92, %p93
    %p96 = scmp.ne.s32.totalorder %s79, %s95
    %p97 = scmp.eq.s32.totalorder %s15, 0
    %p98 = por %p96, %p97
    %s99 = ssub.s32 %s16, %s28
    %s100 = ssub.s32 %s17, %s24
    %s101 = sor.u32 %s99, %s100
    %p102 = scmp.eq.s32.totalorder %s101, 0
    %s104 = sadd.s32 %s103, 1
    %s105 = scalar_select %p102, %s103, %s104
    %p108 = pneg %p102
    %p109 = scmp.eq.s32.totalorder %s9, 1
    %p110 = por %p108, %p109
    %p111 = scmp.ne.s32.totalorder %s103, %s106
    %p112 = scmp.eq.s32.totalorder %s9, 0
    %p113 = por %p111, %p112
    %p114 = scmp.ne.s32.totalorder %s103, %s106
    %p115 = scmp.eq.s32.totalorder %s14, 1
    %p116 = por %p114, %p115
    %p117 = scmp.ne.s32.totalorder %s106, %s107
    %p118 = scmp.eq.s32.totalorder %s14, 0
    %p119 = por %p117, %p118
    %p120 = scmp.ne.s32.totalorder %s106, %s107
    %p121 = scmp.eq.s32.totalorder %s15, 1
    %p122 = por %p120, %p121
    %p124 = scmp.ne.s32.totalorder %s107, %s123
    %p125 = scmp.eq.s32.totalorder %s15, 0
    %p126 = por %p124, %p125
    %p127 = scmp.le.s32.totalorder 1, %s9
    %p128 = scmp.lt.s32.totalorder %s9, 3
    %p129 = pnand %p127, %p128
    %p130 = pneg %p129
    // Predicated region
    $region9: #{reference_encoder_forward.10} parent=5 // pred_check
      _
    $region10: #{reference_encoder_forward.10} parent=5 // pred_check_branch
      %132 = sbr.rel (%p129) target = $region12
    $region11: #{reference_encoder_forward.10} parent=5 // pred_region
      %s133 = ssub.s32 %s9, 1
      // Predicated region
      $region13: #{reference_encoder_forward.10} parent=11 // pred_check
        %p134 = pneg %p42
      $region14: #{reference_encoder_forward.10} parent=11 // pred_check_branch
        %136 = sbr.rel (%p134) target = $region16
      $region15: #{reference_encoder_forward.10} parent=11 // pred_region
        _
      $region16: #{reference_encoder_forward.10} parent=11 // pred_fallthru
        _
      // Predicated region
      $region17: #{reference_encoder_forward.10} parent=11 // pred_check
        %p137 = pneg %p63
      $region18: #{reference_encoder_forward.10} parent=11 // pred_check_branch
        %139 = sbr.rel (%p137) target = $region20
      $region19: #{reference_encoder_forward.10} parent=11 // pred_region
        _
      $region20: #{reference_encoder_forward.10} parent=11 // pred_fallthru
        _
    $region12: #{reference_encoder_forward.10} parent=5 // pred_fallthru
      _
    %p140 = scmp.lt.s32.totalorder %s9, 2
    // Predicated region
    $region21: #{reference_encoder_forward.10} parent=5 // pred_check
      %p141 = pneg %p140
    $region22: #{reference_encoder_forward.10} parent=5 // pred_check_branch
      %143 = sbr.rel (%p141) target = $region24
    $region23: #{reference_encoder_forward.10} parent=5 // pred_region
      // Predicated region
      $region25: #{reference_encoder_forward.10} parent=23 // pred_check
        %p144 = pneg %p85
      $region26: #{reference_encoder_forward.10} parent=23 // pred_check_branch
        %146 = sbr.rel (%p144) target = $region28
      $region27: #{reference_encoder_forward.10} parent=23 // pred_region
        %p147 = scmp.lt.s32.totalorder %s16, 1
        %s148 = scalar_select %p147, %s16, 1
        %p149 = scmp.lt.s32.totalorder %s17, 0
        %s150 = scalar_select %p149, %s17, 0
        %s151 = smul.addr %s148, 72
        %s152 = sadd.s32 %s150, %s151
        %s153 = smul.addr %s152, 4
        %s154 = scalar_lea.vmem %s2, %s153
      $region28: #{reference_encoder_forward.10} parent=23 // pred_fallthru
        _
    $region24: #{reference_encoder_forward.10} parent=5 // pred_fallthru
      _
    %p155 = scmp.le.s32.totalorder 1, %s9
    %p156 = scmp.lt.s32.totalorder %s9, 3
    %p157 = pnand %p155, %p156
    %p158 = pneg %p157
    // Predicated region
    $region29: #{reference_encoder_forward.10} parent=5 // pred_check
      _
    $region30: #{reference_encoder_forward.10} parent=5 // pred_check_branch
      %160 = sbr.rel (%p157) target = $region32
    $region31: #{reference_encoder_forward.10} parent=5 // pred_region
      %s161 = ssub.s32 %s9, 1
      %p162 = pneg %p42
      %p163 = pneg %p39
      %p164 = pneg %p63
      %p165 = pneg %p60
      %p166 = scmp.lt.s32.totalorder %s18, 1
      %s167 = scalar_select %p166, %s18, 1
      %p168 = scmp.lt.s32.totalorder %s19, 0
      %s169 = scalar_select %p168, %s19, 0
      %s170 = smul.addr %s167, 72
      %s171 = sadd.s32 %s169, %s170
      %s172 = smul.addr %s171, 4
      %s173 = scalar_lea.vmem %s2, %s172
      %p174 = pneg %p91
      %p175 = pneg %p88
      %p176 = pneg %p119
      %p177 = pneg %p116
      %p178 = scmp.lt.s32.totalorder %s18, 1
      %s179 = scalar_select %p178, %s18, 1
      %p180 = scmp.lt.s32.totalorder %s19, 0
      %s181 = scalar_select %p180, %s19, 0
      %s182 = smul.addr %s179, 8
      %s183 = sadd.s32 %s181, %s182
      %s184 = smul.addr %s183, 4
      %s185 = scalar_lea.vmem %s3, %s184
      %p186 = scmp.lt.s32.totalorder %s18, 1
      %s187 = scalar_select %p186, %s18, 1
      %p188 = scmp.lt.s32.totalorder %s19, 0
      %s189 = scalar_select %p188, %s19, 0
      %s190 = smul.addr %s187, 72
      %s191 = sadd.s32 %s189, %s190
      %s192 = smul.addr %s191, 4
      %s193 = scalar_lea.vmem %s2, %s192
      %p194 = scmp.lt.s32.totalorder %s18, 1
      %s195 = scalar_select %p194, %s18, 1
      %p196 = scmp.lt.s32.totalorder %s19, 0
      %s197 = scalar_select %p196, %s19, 0
      %s198 = smul.addr %s195, 8
      %s199 = sadd.s32 %s197, %s198
      %s200 = smul.addr %s199, 4
      %s201 = scalar_lea.vmem %s3, %s200
      %v203 = vld [vmem:[%s0] sm:$0xff]
      %v204 = vld [vmem:[%s0 + $0x8] sm:$0xff]
      %v205 = vld [vmem:[%s0 + $0x10] sm:$0xf]
      %v206 = vld [vmem:[%s0 + $0x14] sm:$0xff]
      %v207 = vld [vmem:[%s0 + $0x1c] sm:$0xff]
      %v208 = vld [vmem:[%s0 + $0x24] sm:$0xf]
      %v209 = vld [vmem:[%s0 + $0x28] sm:$0xff]
      %v210 = vld [vmem:[%s0 + $0x30] sm:$0xff]
      %v211 = vld [vmem:[%s0 + $0x38] sm:$0xf]
      %v212 = vld [vmem:[%s0 + $0x3c] sm:$0xff]
      %v213 = vld [vmem:[%s0 + $0x44] sm:$0xff]
      %v214 = vld [vmem:[%s0 + $0x4c] sm:$0xf]
      %v215 = vld [vmem:[%s0 + $0x50] sm:$0xff]
      %v216 = vld [vmem:[%s0 + $0x58] sm:$0xff]
      %v217 = vld [vmem:[%s0 + $0x60] sm:$0xf]
      %v218 = vld [vmem:[%s0 + $0x64] sm:$0xff]
      %v219 = vld [vmem:[%s0 + $0x6c] sm:$0xff]
      %v220 = vld [vmem:[%s0 + $0x74] sm:$0xf]
      %v221 = vld [vmem:[%s0 + $0x78] sm:$0xff]
      %v222 = vld [vmem:[%s0 + $0x80] sm:$0xff]
      %v223 = vld [vmem:[%s0 + $0x88] sm:$0xf]
      %v224 = vld [vmem:[%s0 + $0x8c] sm:$0xff]
      %v225 = vld [vmem:[%s0 + $0x94] sm:$0xff]
      %v226 = vld [vmem:[%s0 + $0x9c] sm:$0xf]
      %v227 = vld [vmem:[%s193] sm:$0xf]
      %v228 = vld [vmem:[%s193 + $0x4] sm:$0xf]
      %v229 = vld [vmem:[%s193 + $0x8] sm:$0xf]
      %v230 = vld [vmem:[%s193 + $0xc] sm:$0xf]
      %v231 = vld [vmem:[%s193 + $0x10] sm:$0xf]
      %v232 = vld [vmem:[%s193 + $0x14] sm:$0xf]
      %v233 = vld [vmem:[%s193 + $0x18] sm:$0xf]
      %v234 = vld [vmem:[%s193 + $0x1c] sm:$0xf]
      %v235 = vld [vmem:[%s193 + $0x20] sm:$0xf]
      %v236 = vld [vmem:[%s193 + $0x24] sm:$0xf]
      %v237 = vld [vmem:[%s193 + $0x28] sm:$0xf]
      %v238 = vld [vmem:[%s193 + $0x2c] sm:$0xf]
      %v239 = vld [vmem:[%s193 + $0x30] sm:$0xf]
      %v240 = vld [vmem:[%s193 + $0x34] sm:$0xf]
      %v241 = vld [vmem:[%s193 + $0x38] sm:$0xf]
      %v242 = vld [vmem:[%s193 + $0x3c] sm:$0xf]
      %v243 = vld [vmem:[%s193 + $0x40] sm:$0xf]
      %v244 = vld [vmem:[%s193 + $0x44] sm:$0xf]
      %v245 = vld [vmem:[%s193 + $0x48] sm:$0xf]
      %v246 = vld [vmem:[%s193 + $0x4c] sm:$0xf]
      %v247 = vld [vmem:[%s193 + $0x50] sm:$0xf]
      %v248 = vld [vmem:[%s193 + $0x54] sm:$0xf]
      %v249 = vld [vmem:[%s193 + $0x58] sm:$0xf]
      %v250 = vld [vmem:[%s193 + $0x5c] sm:$0xf]
      %v251 = vld [vmem:[%s193 + $0x60] sm:$0xf]
      %v252 = vld [vmem:[%s193 + $0x64] sm:$0xf]
      %v253 = vld [vmem:[%s193 + $0x68] sm:$0xf]
      %v254 = vld [vmem:[%s193 + $0x6c] sm:$0xf]
      %v255 = vld [vmem:[%s193 + $0x70] sm:$0xf]
      %v256 = vld [vmem:[%s193 + $0x74] sm:$0xf]
      %v257 = vld [vmem:[%s193 + $0x78] sm:$0xf]
      %v258 = vld [vmem:[%s193 + $0x7c] sm:$0xf]
      %v259 = vld [vmem:[%s193 + $0x80] sm:$0xf]
      %v260 = vld [vmem:[%s193 + $0x84] sm:$0xf]
      %v261 = vld [vmem:[%s193 + $0x88] sm:$0xf]
      %v262 = vld [vmem:[%s193 + $0x8c] sm:$0xf]
      %v263 = vld [vmem:[%s193 + $0x90] sm:$0xf]
      %v264 = vld [vmem:[%s193 + $0x94] sm:$0xf]
      %v265 = vld [vmem:[%s193 + $0x98] sm:$0xf]
      %v266 = vld [vmem:[%s193 + $0x9c] sm:$0xf]
      %v267 = vld [vmem:[%s193 + $0xa0] sm:$0xf]
      %v268 = vld [vmem:[%s193 + $0xa4] sm:$0xf]
      %v269 = vld [vmem:[%s193 + $0xa8] sm:$0xf]
      %v270 = vld [vmem:[%s193 + $0xac] sm:$0xf]
      %v271 = vld [vmem:[%s193 + $0xb0] sm:$0xf]
      %v272 = vld [vmem:[%s193 + $0xb4] sm:$0xf]
      %v273 = vld [vmem:[%s193 + $0xb8] sm:$0xf]
      %v274 = vld [vmem:[%s193 + $0xbc] sm:$0xf]
      %v275 = vld [vmem:[%s193 + $0xc0] sm:$0xf]
      %v276 = vld [vmem:[%s193 + $0xc4] sm:$0xf]
      %v277 = vld [vmem:[%s193 + $0xc8] sm:$0xf]
      %v278 = vld [vmem:[%s193 + $0xcc] sm:$0xf]
      %v279 = vld [vmem:[%s193 + $0xd0] sm:$0xf]
      %v280 = vld [vmem:[%s193 + $0xd4] sm:$0xf]
      %v281 = vld [vmem:[%s193 + $0xd8] sm:$0xf]
      %v282 = vld [vmem:[%s193 + $0xdc] sm:$0xf]
      %v283 = vld [vmem:[%s193 + $0xe0] sm:$0xf]
      %v284 = vld [vmem:[%s193 + $0xe4] sm:$0xf]
      %v285 = vld [vmem:[%s193 + $0xe8] sm:$0xf]
      %v286 = vld [vmem:[%s193 + $0xec] sm:$0xf]
      %v287 = vld [vmem:[%s193 + $0xf0] sm:$0xf]
      %v288 = vld [vmem:[%s193 + $0xf4] sm:$0xf]
      %v289 = vld [vmem:[%s193 + $0xf8] sm:$0xf]
      %v290 = vld [vmem:[%s193 + $0xfc] sm:$0xf]
      %v291 = vld [vmem:[%s193 + $0x100] sm:$0xf]
      %v292 = vld [vmem:[%s193 + $0x104] sm:$0xf]
      %v293 = vld [vmem:[%s193 + $0x108] sm:$0xf]
      %v294 = vld [vmem:[%s193 + $0x10c] sm:$0xf]
      %v295 = vld [vmem:[%s193 + $0x110] sm:$0xf]
      %v296 = vld [vmem:[%s193 + $0x114] sm:$0xf]
      %v297 = vld [vmem:[%s193 + $0x118] sm:$0xf]
      %v298 = vld [vmem:[%s193 + $0x11c] sm:$0xf]
      %v299 = vld [vmem:[%s1] sm:$0xff]
      %v300 = vld [vmem:[%s1 + $0x8] sm:$0xff]
      %v301 = vld [vmem:[%s1 + $0x10] sm:$0xff]
      %v302 = vld [vmem:[%s1 + $0x18] sm:$0xff]
      %v303 = vld [vmem:[%s1 + $0x20] sm:$0xff]
      %v304 = vld [vmem:[%s1 + $0x28] sm:$0xff]
      %v305 = vld [vmem:[%s1 + $0x30] sm:$0xff]
      %v306 = vld [vmem:[%s1 + $0x38] sm:$0xff]
      %308 = vset.pattern.permute.xlu0 0
      %309 = vperm.xlu0 %308, %v299
      %v310 = vpop.permute.xlu0 %309
      %313 = vset.pattern.permute.xlu0 0
      %314 = vperm.xlu0 %313, %v300
      %v315 = vpop.permute.xlu0 %314
      %318 = vset.pattern.permute.xlu0 0
      %319 = vperm.xlu0 %318, %v301
      %v320 = vpop.permute.xlu0 %319
      %323 = vset.pattern.permute.xlu0 0
      %324 = vperm.xlu0 %323, %v302
      %v325 = vpop.permute.xlu0 %324
      %328 = vset.pattern.permute.xlu0 0
      %329 = vperm.xlu0 %328, %v303
      %v330 = vpop.permute.xlu0 %329
      %333 = vset.pattern.permute.xlu0 0
      %334 = vperm.xlu0 %333, %v304
      %v335 = vpop.permute.xlu0 %334
      %338 = vset.pattern.permute.xlu0 0
      %339 = vperm.xlu0 %338, %v305
      %v340 = vpop.permute.xlu0 %339
      %343 = vset.pattern.permute.xlu0 0
      %344 = vperm.xlu0 %343, %v306
      %v345 = vpop.permute.xlu0 %344
      %v371 = vunpack.c.l.b16 %v203
      %v372 = vunpack.c.h.b16 %v203
      %v373 = vunpack.c.l.b16 %v204
      %v374 = vunpack.c.h.b16 %v204
      %v375 = vunpack.c.l.b16 %v205
      %v376 = vunpack.c.l.b16 %v206
      %v377 = vunpack.c.h.b16 %v206
      %v378 = vunpack.c.l.b16 %v207
      %v379 = vunpack.c.h.b16 %v207
      %v380 = vunpack.c.l.b16 %v208
      %v381 = vunpack.c.l.b16 %v209
      %v382 = vunpack.c.h.b16 %v209
      %v383 = vunpack.c.l.b16 %v210
      %v384 = vunpack.c.h.b16 %v210
      %v385 = vunpack.c.l.b16 %v211
      %v386 = vunpack.c.l.b16 %v212
      %v387 = vunpack.c.h.b16 %v212
      %v388 = vunpack.c.l.b16 %v213
      %v389 = vunpack.c.h.b16 %v213
      %v390 = vunpack.c.l.b16 %v214
      %v391 = vunpack.c.l.b16 %v215
      %v392 = vunpack.c.h.b16 %v215
      %v393 = vunpack.c.l.b16 %v216
      %v394 = vunpack.c.h.b16 %v216
      %v395 = vunpack.c.l.b16 %v217
      %v396 = vunpack.c.l.b16 %v218
      %v397 = vunpack.c.h.b16 %v218
      %v398 = vunpack.c.l.b16 %v219
      %v399 = vunpack.c.h.b16 %v219
      %v400 = vunpack.c.l.b16 %v220
      %v401 = vunpack.c.l.b16 %v221
      %v402 = vunpack.c.h.b16 %v221
      %v403 = vunpack.c.l.b16 %v222
      %v404 = vunpack.c.h.b16 %v222
      %v405 = vunpack.c.l.b16 %v223
      %v406 = vunpack.c.l.b16 %v224
      %v407 = vunpack.c.h.b16 %v224
      %v408 = vunpack.c.l.b16 %v225
      %v409 = vunpack.c.h.b16 %v225
      %v410 = vunpack.c.l.b16 %v226
      %v411 = vpack.c.b16 %v376, %v371
      %v412 = vpack.c.b16 %v377, %v372
      %v413 = vpack.c.b16 %v378, %v373
      %v414 = vpack.c.b16 %v379, %v374
      %v415 = vpack.c.b16 %v380, %v375
      %v416 = vpack.c.b16 %v386, %v381
      %v417 = vpack.c.b16 %v387, %v382
      %v418 = vpack.c.b16 %v388, %v383
      %v419 = vpack.c.b16 %v389, %v384
      %v420 = vpack.c.b16 %v390, %v385
      %v421 = vpack.c.b16 %v396, %v391
      %v422 = vpack.c.b16 %v397, %v392
      %v423 = vpack.c.b16 %v398, %v393
      %v424 = vpack.c.b16 %v399, %v394
      %v425 = vpack.c.b16 %v400, %v395
      %v426 = vpack.c.b16 %v406, %v401
      %v427 = vpack.c.b16 %v407, %v402
      %v428 = vpack.c.b16 %v408, %v403
      %v429 = vpack.c.b16 %v409, %v404
      %v430 = vpack.c.b16 %v410, %v405
      %v519 = vunpack.c.l.b16 %v227
      %v520 = vunpack.c.l.b16 %v228
      %v521 = vunpack.c.l.b16 %v229
      %v522 = vunpack.c.l.b16 %v230
      %v523 = vunpack.c.l.b16 %v231
      %v524 = vunpack.c.l.b16 %v232
      %v525 = vunpack.c.l.b16 %v233
      %v526 = vunpack.c.l.b16 %v234
      %v527 = vunpack.c.l.b16 %v235
      %v528 = vunpack.c.l.b16 %v236
      %v529 = vunpack.c.l.b16 %v237
      %v530 = vunpack.c.l.b16 %v238
      %v531 = vunpack.c.l.b16 %v239
      %v532 = vunpack.c.l.b16 %v240
      %v533 = vunpack.c.l.b16 %v241
      %v534 = vunpack.c.l.b16 %v242
      %v535 = vunpack.c.l.b16 %v243
      %v536 = vunpack.c.l.b16 %v244
      %v537 = vunpack.c.l.b16 %v245
      %v538 = vunpack.c.l.b16 %v246
      %v539 = vunpack.c.l.b16 %v247
      %v540 = vunpack.c.l.b16 %v248
      %v541 = vunpack.c.l.b16 %v249
      %v542 = vunpack.c.l.b16 %v250
      %v543 = vunpack.c.l.b16 %v251
      %v544 = vunpack.c.l.b16 %v252
      %v545 = vunpack.c.l.b16 %v253
      %v546 = vunpack.c.l.b16 %v254
      %v547 = vunpack.c.l.b16 %v255
      %v548 = vunpack.c.l.b16 %v256
      %v549 = vunpack.c.l.b16 %v257
      %v550 = vunpack.c.l.b16 %v258
      %v551 = vunpack.c.l.b16 %v259
      %v552 = vunpack.c.l.b16 %v260
      %v553 = vunpack.c.l.b16 %v261
      %v554 = vunpack.c.l.b16 %v262
      %v555 = vunpack.c.l.b16 %v263
      %v556 = vunpack.c.l.b16 %v264
      %v557 = vunpack.c.l.b16 %v265
      %v558 = vunpack.c.l.b16 %v266
      %v559 = vunpack.c.l.b16 %v267
      %v560 = vunpack.c.l.b16 %v268
      %v561 = vunpack.c.l.b16 %v269
      %v562 = vunpack.c.l.b16 %v270
      %v563 = vunpack.c.l.b16 %v271
      %v564 = vunpack.c.l.b16 %v272
      %v565 = vunpack.c.l.b16 %v273
      %v566 = vunpack.c.l.b16 %v274
      %v567 = vunpack.c.l.b16 %v275
      %v568 = vunpack.c.l.b16 %v276
      %v569 = vunpack.c.l.b16 %v277
      %v570 = vunpack.c.l.b16 %v278
      %v571 = vunpack.c.l.b16 %v279
      %v572 = vunpack.c.l.b16 %v280
      %v573 = vunpack.c.l.b16 %v281
      %v574 = vunpack.c.l.b16 %v282
      %v575 = vunpack.c.l.b16 %v283
      %v576 = vunpack.c.l.b16 %v284
      %v577 = vunpack.c.l.b16 %v285
      %v578 = vunpack.c.l.b16 %v286
      %v579 = vunpack.c.l.b16 %v287
      %v580 = vunpack.c.l.b16 %v288
      %v581 = vunpack.c.l.b16 %v289
      %v582 = vunpack.c.l.b16 %v290
      %v583 = vunpack.c.l.b16 %v291
      %v584 = vunpack.c.l.b16 %v292
      %v585 = vunpack.c.l.b16 %v293
      %v586 = vunpack.c.l.b16 %v294
      %v587 = vunpack.c.l.b16 %v295
      %v588 = vunpack.c.l.b16 %v296
      %v589 = vunpack.c.l.b16 %v297
      %v590 = vunpack.c.l.b16 %v298
      %v591 = vpack.c.b16 %v520, %v519
      %v592 = vpack.c.b16 %v522, %v521
      %v593 = vpack.c.b16 %v524, %v523
      %v594 = vpack.c.b16 %v526, %v525
      %v595 = vpack.c.b16 %v528, %v527
      %v596 = vpack.c.b16 %v530, %v529
      %v597 = vpack.c.b16 %v532, %v531
      %v598 = vpack.c.b16 %v534, %v533
      %v599 = vpack.c.b16 %v536, %v535
      %v600 = vpack.c.b16 %v538, %v537
      %v601 = vpack.c.b16 %v540, %v539
      %v602 = vpack.c.b16 %v542, %v541
      %v603 = vpack.c.b16 %v544, %v543
      %v604 = vpack.c.b16 %v546, %v545
      %v605 = vpack.c.b16 %v548, %v547
      %v606 = vpack.c.b16 %v550, %v549
      %v607 = vpack.c.b16 %v552, %v551
      %v608 = vpack.c.b16 %v554, %v553
      %v609 = vpack.c.b16 %v556, %v555
      %v610 = vpack.c.b16 %v558, %v557
      %v611 = vpack.c.b16 %v560, %v559
      %v612 = vpack.c.b16 %v562, %v561
      %v613 = vpack.c.b16 %v564, %v563
      %v614 = vpack.c.b16 %v566, %v565
      %v615 = vpack.c.b16 %v568, %v567
      %v616 = vpack.c.b16 %v570, %v569
      %v617 = vpack.c.b16 %v572, %v571
      %v618 = vpack.c.b16 %v574, %v573
      %v619 = vpack.c.b16 %v576, %v575
      %v620 = vpack.c.b16 %v578, %v577
      %v621 = vpack.c.b16 %v580, %v579
      %v622 = vpack.c.b16 %v582, %v581
      %v623 = vpack.c.b16 %v584, %v583
      %v624 = vpack.c.b16 %v586, %v585
      %v625 = vpack.c.b16 %v588, %v587
      %v626 = vpack.c.b16 %v590, %v589
      %vm663 = vcmask 523264
      %v665 = vsel %vm663, %v415, 0
      %v668 = vsel %vm663, %v420, 0
      %v671 = vsel %vm663, %v425, 0
      %v674 = vsel %vm663, %v430, 0
      %676 = vmatprep.subr.bf16.mxu0 0
      %677 = vmatpush1.bf16.msra.mxu0 %v598
      %678 = vmatprep.subr.bf16.mxu0 0
      %679 = vmatpush1.bf16.msra.mxu0 %v597
      %680 = vmatprep.subr.bf16.mxu0 0
      %681 = vmatpush1.bf16.msra.mxu0 %v596
      %682 = vmatprep.subr.bf16.mxu0 0
      %683 = vmatpush1.bf16.msra.mxu0 %v595
      %684 = vmatprep.subr.bf16.mxu0 0
      %685 = vmatpush1.bf16.msra.mxu0 %v594
      %686 = vmatprep.subr.bf16.mxu0 0
      %687 = vmatpush1.bf16.msra.mxu0 %v593
      %688 = vmatprep.subr.bf16.mxu0 0
      %689 = vmatpush1.bf16.msra.mxu0 %v592
      %690 = vmatprep.subr.bf16.mxu0 0
      %691 = vmatpush1.bf16.msra.mxu0 %v591
      %692 = vmatprep.subr.bf16.mxu0 0
      %693 = vmatpush2.bf16.msra.mxu0 %v606
      %694 = vmatprep.subr.bf16.mxu0 0
      %695 = vmatpush2.bf16.msra.mxu0 %v605
      %696 = vmatprep.subr.bf16.mxu0 0
      %697 = vmatpush2.bf16.msra.mxu0 %v604
      %698 = vmatprep.subr.bf16.mxu0 0
      %699 = vmatpush2.bf16.msra.mxu0 %v603
      %700 = vmatprep.subr.bf16.mxu0 0
      %701 = vmatpush2.bf16.msra.mxu0 %v602
      %702 = vmatprep.subr.bf16.mxu0 0
      %703 = vmatpush2.bf16.msra.mxu0 %v601
      %704 = vmatprep.subr.bf16.mxu0 0
      %705 = vmatpush2.bf16.msra.mxu0 %v600
      %706 = vmatprep.subr.bf16.mxu0 0
      %707 = vmatpush2.bf16.msra.mxu0 %v599
      %708 = vmatprep.mubr.bf16.mxu0 %v412
      %709 = vmatmul.mubr.bf16.gmra.mxu0 %v411
      %v710 = vpop.f32.mrf.mxu0
      %v711 = vadd.f32 %v310, %v710
      %v712 = vpop.f32.mrf.mxu0
      %v713 = vpop.f32.mrf.mxu0
      %v714 = vadd.f32 %v315, %v713
      %v715 = vpop.f32.mrf.mxu0
      %716 = vmatprep.mubr.bf16.mxu0 %v417
      %717 = vmatmul.mubr.bf16.gmra.mxu0 %v416
      %v718 = vpop.f32.mrf.mxu0
      %v719 = vadd.f32 %v320, %v718
      %v720 = vpop.f32.mrf.mxu0
      %v721 = vpop.f32.mrf.mxu0
      %v722 = vadd.f32 %v325, %v721
      %v723 = vpop.f32.mrf.mxu0
      %724 = vmatprep.mubr.bf16.mxu0 %v422
      %725 = vmatmul.mubr.bf16.gmra.mxu0 %v421
      %v726 = vpop.f32.mrf.mxu0
      %v727 = vadd.f32 %v330, %v726
      %v728 = vpop.f32.mrf.mxu0
      %v729 = vpop.f32.mrf.mxu0
      %v730 = vadd.f32 %v335, %v729
      %v731 = vpop.f32.mrf.mxu0
      %732 = vmatprep.mubr.bf16.mxu0 %v427
      %733 = vmatmul.mubr.bf16.gmra.mxu0 %v426
      %v734 = vpop.f32.mrf.mxu0
      %v735 = vadd.f32 %v340, %v734
      %v736 = vpop.f32.mrf.mxu0
      %v737 = vpop.f32.mrf.mxu0
      %v738 = vadd.f32 %v345, %v737
      %v739 = vpop.f32.mrf.mxu0
      %740 = vdwg.mxu0
      %741 = vmatprep.subr.bf16.mxu0 0
      %742 = vmatpush1.bf16.msra.mxu0 %v614
      %743 = vmatprep.subr.bf16.mxu0 0
      %744 = vmatpush1.bf16.msra.mxu0 %v613
      %745 = vmatprep.subr.bf16.mxu0 0
      %746 = vmatpush1.bf16.msra.mxu0 %v612
      %747 = vmatprep.subr.bf16.mxu0 0
      %748 = vmatpush1.bf16.msra.mxu0 %v611
      %749 = vmatprep.subr.bf16.mxu0 0
      %750 = vmatpush1.bf16.msra.mxu0 %v610
      %751 = vmatprep.subr.bf16.mxu0 0
      %752 = vmatpush1.bf16.msra.mxu0 %v609
      %753 = vmatprep.subr.bf16.mxu0 0
      %754 = vmatpush1.bf16.msra.mxu0 %v608
      %755 = vmatprep.subr.bf16.mxu0 0
      %756 = vmatpush1.bf16.msra.mxu0 %v607
      %757 = vmatprep.subr.bf16.mxu0 0
      %758 = vmatpush2.bf16.msra.mxu0 %v622
      %759 = vmatprep.subr.bf16.mxu0 0
      %760 = vmatpush2.bf16.msra.mxu0 %v621
      %761 = vmatprep.subr.bf16.mxu0 0
      %762 = vmatpush2.bf16.msra.mxu0 %v620
      %763 = vmatprep.subr.bf16.mxu0 0
      %764 = vmatpush2.bf16.msra.mxu0 %v619
      %765 = vmatprep.subr.bf16.mxu0 0
      %766 = vmatpush2.bf16.msra.mxu0 %v618
      %767 = vmatprep.subr.bf16.mxu0 0
      %768 = vmatpush2.bf16.msra.mxu0 %v617
      %769 = vmatprep.subr.bf16.mxu0 0
      %770 = vmatpush2.bf16.msra.mxu0 %v616
      %771 = vmatprep.subr.bf16.mxu0 0
      %772 = vmatpush2.bf16.msra.mxu0 %v615
      %773 = vmatprep.mubr.bf16.mxu0 %v414
      %774 = vmatmul.mubr.bf16.gmra.mxu0 %v413
      %v775 = vpop.f32.mrf.mxu0
      %v776 = vadd.f32 %v711, %v775
      %v777 = vpop.f32.mrf.mxu0
      %v778 = vpop.f32.mrf.mxu0
      %v779 = vadd.f32 %v714, %v778
      %v780 = vpop.f32.mrf.mxu0
      %781 = vmatprep.mubr.bf16.mxu0 %v419
      %782 = vmatmul.mubr.bf16.gmra.mxu0 %v418
      %v783 = vpop.f32.mrf.mxu0
      %v784 = vadd.f32 %v719, %v783
      %v785 = vpop.f32.mrf.mxu0
      %v786 = vpop.f32.mrf.mxu0
      %v787 = vadd.f32 %v722, %v786
      %v788 = vpop.f32.mrf.mxu0
      %789 = vmatprep.mubr.bf16.mxu0 %v424
      %790 = vmatmul.mubr.bf16.gmra.mxu0 %v423
      %v791 = vpop.f32.mrf.mxu0
      %v792 = vadd.f32 %v727, %v791
      %v793 = vpop.f32.mrf.mxu0
      %v794 = vpop.f32.mrf.mxu0
      %v795 = vadd.f32 %v730, %v794
      %v796 = vpop.f32.mrf.mxu0
      %797 = vmatprep.mubr.bf16.mxu0 %v429
      %798 = vmatmul.mubr.bf16.gmra.mxu0 %v428
      %v799 = vpop.f32.mrf.mxu0
      %v800 = vadd.f32 %v735, %v799
      %v801 = vpop.f32.mrf.mxu0
      %v802 = vpop.f32.mrf.mxu0
      %v803 = vadd.f32 %v738, %v802
      %v804 = vpop.f32.mrf.mxu0
      %805 = vdwg.mxu0
      %806 = vmatprep.subr.bf16.mxu0 0
      %807 = vmatpush1.bf16.msra.mxu0 0
      %808 = vmatprep.subr.bf16.mxu0 0
      %809 = vmatpush1.bf16.msra.mxu0 0
      %810 = vmatprep.subr.bf16.mxu0 0
      %811 = vmatpush1.bf16.msra.mxu0 0
      %812 = vmatprep.subr.bf16.mxu0 0
      %813 = vmatpush1.bf16.msra.mxu0 0
      %814 = vmatprep.subr.bf16.mxu0 0
      %815 = vmatpush1.bf16.msra.mxu0 %v626
      %816 = vmatprep.subr.bf16.mxu0 0
      %817 = vmatpush1.bf16.msra.mxu0 %v625
      %818 = vmatprep.subr.bf16.mxu0 0
      %819 = vmatpush1.bf16.msra.mxu0 %v624
      %820 = vmatprep.subr.bf16.mxu0 0
      %821 = vmatpush1.bf16.msra.mxu0 %v623
      %822 = vmatprep.subr.bf16.mxu0 0
      %823 = vmatpush2.bf16.msra.mxu0 0
      %824 = vmatprep.subr.bf16.mxu0 0
      %825 = vmatpush2.bf16.msra.mxu0 0
      %826 = vmatprep.subr.bf16.mxu0 0
      %827 = vmatpush2.bf16.msra.mxu0 0
      %828 = vmatprep.subr.bf16.mxu0 0
      %829 = vmatpush2.bf16.msra.mxu0 0
      %830 = vmatprep.subr.bf16.mxu0 0
      %831 = vmatpush2.bf16.msra.mxu0 0
      %832 = vmatprep.subr.bf16.mxu0 0
      %833 = vmatpush2.bf16.msra.mxu0 0
      %834 = vmatprep.subr.bf16.mxu0 0
      %835 = vmatpush2.bf16.msra.mxu0 0
      %836 = vmatprep.subr.bf16.mxu0 0
      %837 = vmatpush2.bf16.msra.mxu0 0
      %838 = vmatprep.mubr.bf16.mxu0 0
      %839 = vmatmul.mubr.bf16.gmra.mxu0 %v665
      %v840 = vpop.f32.mrf.mxu0
      %v841 = vadd.f32 %v776, %v840
      %v842 = vpop.f32.mrf.mxu0
      %v843 = vpop.f32.mrf.mxu0
      %v844 = vadd.f32 %v779, %v843
      %v845 = vpop.f32.mrf.mxu0
      %846 = vmatprep.mubr.bf16.mxu0 0
      %847 = vmatmul.mubr.bf16.gmra.mxu0 %v668
      %v848 = vpop.f32.mrf.mxu0
      %v849 = vadd.f32 %v784, %v848
      %v850 = vpop.f32.mrf.mxu0
      %v851 = vpop.f32.mrf.mxu0
      %v852 = vadd.f32 %v787, %v851
      %v853 = vpop.f32.mrf.mxu0
      %854 = vmatprep.mubr.bf16.mxu0 0
      %855 = vmatmul.mubr.bf16.gmra.mxu0 %v671
      %v856 = vpop.f32.mrf.mxu0
      %v857 = vadd.f32 %v792, %v856
      %v858 = vpop.f32.mrf.mxu0
      %v859 = vpop.f32.mrf.mxu0
      %v860 = vadd.f32 %v795, %v859
      %v861 = vpop.f32.mrf.mxu0
      %862 = vmatprep.mubr.bf16.mxu0 0
      %863 = vmatmul.mubr.bf16.gmra.mxu0 %v674
      %v864 = vpop.f32.mrf.mxu0
      %v865 = vadd.f32 %v800, %v864
      %v866 = vpop.f32.mrf.mxu0
      %v867 = vpop.f32.mrf.mxu0
      %v868 = vadd.f32 %v803, %v867
      %v869 = vpop.f32.mrf.mxu0
      %870 = vdwg.mxu0
      %v871 = vmax.f32 %v841, 0.0
      %v872 = vmax.f32 %v844, 0.0
      %v873 = vmax.f32 %v849, 0.0
      %v874 = vmax.f32 %v852, 0.0
      %v875 = vmax.f32 %v857, 0.0
      %v876 = vmax.f32 %v860, 0.0
      %v877 = vmax.f32 %v865, 0.0
      %v878 = vmax.f32 %v868, 0.0
      %v879 = vpack.c.bf16 %v872, %v871
      %v880 = vpack.c.bf16 %v874, %v873
      %v881 = vpack.c.bf16 %v876, %v875
      %v882 = vpack.c.bf16 %v878, %v877
      %v887 = vunpack.c.l.b16 %v879
      %v888 = vunpack.c.h.b16 %v879
      %v889 = vunpack.c.l.b16 %v880
      %v890 = vunpack.c.h.b16 %v880
      %v891 = vunpack.c.l.b16 %v881
      %v892 = vunpack.c.h.b16 %v881
      %v893 = vunpack.c.l.b16 %v882
      %v894 = vunpack.c.h.b16 %v882
      %v895 = vpack.c.b16 %v887, %v887
      %v896 = vpack.c.b16 %v888, %v888
      %v897 = vpack.c.b16 %v889, %v889
      %v898 = vpack.c.b16 %v890, %v890
      %v899 = vpack.c.b16 %v891, %v891
      %v900 = vpack.c.b16 %v892, %v892
      %v901 = vpack.c.b16 %v893, %v893
      %v902 = vpack.c.b16 %v894, %v894
      %911 = vst [vmem:[%s201] sm:$0xf] %v895
      %912 = vst [vmem:[%s201 + $0x4] sm:$0xf] %v896
      %913 = vst [vmem:[%s201 + $0x8] sm:$0xf] %v897
      %914 = vst [vmem:[%s201 + $0xc] sm:$0xf] %v898
      %915 = vst [vmem:[%s201 + $0x10] sm:$0xf] %v899
      %916 = vst [vmem:[%s201 + $0x14] sm:$0xf] %v900
      %917 = vst [vmem:[%s201 + $0x18] sm:$0xf] %v901
      %918 = vst [vmem:[%s201 + $0x1c] sm:$0xf] %v902
      %p919 = scmp.lt.s32.totalorder %s18, 1
      %s920 = scalar_select %p919, %s18, 1
      %p921 = scmp.lt.s32.totalorder %s19, 0
      %s922 = scalar_select %p921, %s19, 0
      %s923 = smul.addr %s920, 8
      %s924 = sadd.s32 %s922, %s923
      %s925 = smul.addr %s924, 4
      %s926 = scalar_lea.vmem %s3, %s925
      // Predicated region
      $region33: #{reference_encoder_forward.10} parent=31 // pred_check
        %p927 = pneg %p116
      $region34: #{reference_encoder_forward.10} parent=31 // pred_check_branch
        %929 = sbr.rel (%p927) target = $region36
      $region35: #{reference_encoder_forward.10} parent=31 // pred_region
        _
      $region36: #{reference_encoder_forward.10} parent=31 // pred_fallthru
        _
    $region32: #{reference_encoder_forward.10} parent=5 // pred_fallthru
      _
    %p930 = scmp.le.s32.totalorder 2, %s9
    // Predicated region
    $region37: #{reference_encoder_forward.10} parent=5 // pred_check
      %p931 = pneg %p930
    $region38: #{reference_encoder_forward.10} parent=5 // pred_check_branch
      %933 = sbr.rel (%p931) target = $region40
    $region39: #{reference_encoder_forward.10} parent=5 // pred_region
      %s934 = ssub.s32 %s9, 2
      // Predicated region
      $region41: #{reference_encoder_forward.10} parent=39 // pred_check
        %p935 = pneg %p122
      $region42: #{reference_encoder_forward.10} parent=39 // pred_check_branch
        %937 = sbr.rel (%p935) target = $region44
      $region43: #{reference_encoder_forward.10} parent=39 // pred_region
        %p938 = scmp.lt.s32.totalorder %s20, 1
        %s939 = scalar_select %p938, %s20, 1
        %p940 = scmp.lt.s32.totalorder %s21, 0
        %s941 = scalar_select %p940, %s21, 0
        %s942 = smul.addr %s939, 8
        %s943 = sadd.s32 %s941, %s942
        %s944 = smul.addr %s943, 4
        %s945 = scalar_lea.vmem %s3, %s944
      $region44: #{reference_encoder_forward.10} parent=39 // pred_fallthru
        _
    $region40: #{reference_encoder_forward.10} parent=5 // pred_fallthru
      _
  $region6: #{reference_encoder_forward.10} parent=0 // loop_footer
    %s13 = sadd.s32 1, %s9
  $region7: #{reference_encoder_forward.10} parent=0 // loop_footer_branch
    %8 = sbr.rel target = $region3
  $region8: #{reference_encoder_forward.10} parent=0 // loop_exit
    _

// kernel: reference_encoder_forward.11
$region0: #{reference_encoder_forward.11}
  #allocation0 [shape = 'u32[]', space=smem, size = 0x4, offset = 0x4, fixed_abs, tag = 'smem constant byte address 0x4 - core index']
  #allocation1 [shape = 'u32[144,128]{1,0:T(1,128)}', space=vmem, size = 0x12000, scoped, tag = 'internal scratch']
  %s0 = inlined_call_operand.vmem [shape: bf16[128,576], index: 0, kind: input, shape index: {}]
  %s1 = inlined_call_operand.vmem [shape: f32[128,1], index: 1, kind: input, shape index: {}]
  %s2 = inlined_call_operand.vmem [shape: bf16[2,576,128], index: 2, kind: input, shape index: {}]
  %s3 = inlined_call_operand.vmem [shape: bf16[2,128,128], index: 3, kind: output, shape index: {}]
  %s4 = sld [smem:[#allocation0]]
  $region45: #{reference_encoder_forward.11} parent=0
    _
  %s6 = ssub.s32 1, %s4
  %s7 = scalar_select 0, %s6, %s4
  loop: start=0, step=1, limit=4
  $region2: #{reference_encoder_forward.11} parent=0 // loop_pre_header
    _
  $region3: #{reference_encoder_forward.11} parent=0 // loop_header
    %s9 = sphi 0, %s13
    %p10 = scmp.ge.s32.totalorder %s9, 4
    %s16 = sphi 0, %s28
    %s17 = sphi 0, %s24
    %s18 = sphi 0, %s16
    %s19 = sphi 0, %s17
    %s20 = sphi 0, %s18
    %s21 = sphi 0, %s19
    %s29 = sphi 0, %s29
    %s31 = sphi 0, %s29
    %s32 = sphi 0, %s31
    %s46 = sphi 0, %s32
    %s50 = sphi 0, %s50
    %s52 = sphi 0, %s50
    %s53 = sphi 0, %s52
    %s67 = sphi 0, %s53
    %s75 = sphi 0, %s77
    %s78 = sphi 0, %s75
    %s79 = sphi 0, %s78
    %s95 = sphi 0, %s79
    %s103 = sphi 0, %s105
    %s106 = sphi 0, %s103
    %s107 = sphi 0, %s106
    %s123 = sphi 0, %s107
  $region4: #{reference_encoder_forward.11} parent=0 // loop_header_branch
    %12 = sbr.rel (%p10) target = $region8
  $region5: #{reference_encoder_forward.11} parent=0 // loop_body
    %s14 = ssub.s32 %s9, 1
    %s15 = ssub.s32 %s9, 2
    %s22 = sadd.s32 1, %s17
    %p23 = scmp.ge.s32.totalorder %s22, 1
    %s24 = scalar_select %p23, 0, %s22
    %s25 = sadd.s32 1, %s16
    %s26 = scalar_select %p23, %s25, %s16
    %p27 = scmp.ge.s32.totalorder %s26, 2
    %s28 = scalar_select %p27, 0, %s26
    %s30 = sadd.s32 %s29, 1
    %p33 = scmp.eq.s32.totalorder %s9, 1
    %p34 = scmp.ne.s32.totalorder %s29, %s31
    %p35 = scmp.eq.s32.totalorder %s9, 0
    %p36 = por %p34, %p35
    %p37 = scmp.ne.s32.totalorder %s29, %s31
    %p38 = scmp.eq.s32.totalorder %s14, 1
    %p39 = por %p37, %p38
    %p40 = scmp.ne.s32.totalorder %s31, %s32
    %p41 = scmp.eq.s32.totalorder %s14, 0
    %p42 = por %p40, %p41
    %p43 = scmp.ne.s32.totalorder %s31, %s32
    %p44 = scmp.eq.s32.totalorder %s15, 1
    %p45 = por %p43, %p44
    %p47 = scmp.ne.s32.totalorder %s32, %s46
    %p48 = scmp.eq.s32.totalorder %s15, 0
    %p49 = por %p47, %p48
    %s51 = sadd.s32 %s50, 1
    %p54 = scmp.eq.s32.totalorder %s9, 1
    %p55 = scmp.ne.s32.totalorder %s50, %s52
    %p56 = scmp.eq.s32.totalorder %s9, 0
    %p57 = por %p55, %p56
    %p58 = scmp.ne.s32.totalorder %s50, %s52
    %p59 = scmp.eq.s32.totalorder %s14, 1
    %p60 = por %p58, %p59
    %p61 = scmp.ne.s32.totalorder %s52, %s53
    %p62 = scmp.eq.s32.totalorder %s14, 0
    %p63 = por %p61, %p62
    %p64 = scmp.ne.s32.totalorder %s52, %s53
    %p65 = scmp.eq.s32.totalorder %s15, 1
    %p66 = por %p64, %p65
    %p68 = scmp.ne.s32.totalorder %s53, %s67
    %p69 = scmp.eq.s32.totalorder %s15, 0
    %p70 = por %p68, %p69
    %s71 = ssub.s32 %s16, %s28
    %s72 = ssub.s32 %s17, %s24
    %s73 = sor.u32 %s71, %s72
    %p74 = scmp.eq.s32.totalorder %s73, 0
    %s76 = sadd.s32 %s75, 1
    %s77 = scalar_select %p74, %s75, %s76
    %p80 = pneg %p74
    %p81 = scmp.eq.s32.totalorder %s9, 1
    %p82 = por %p80, %p81
    %p83 = scmp.ne.s32.totalorder %s75, %s78
    %p84 = scmp.eq.s32.totalorder %s9, 0
    %p85 = por %p83, %p84
    %p86 = scmp.ne.s32.totalorder %s75, %s78
    %p87 = scmp.eq.s32.totalorder %s14, 1
    %p88 = por %p86, %p87
    %p89 = scmp.ne.s32.totalorder %s78, %s79
    %p90 = scmp.eq.s32.totalorder %s14, 0
    %p91 = por %p89, %p90
    %p92 = scmp.ne.s32.totalorder %s78, %s79
    %p93 = scmp.eq.s32.totalorder %s15, 1
    %p94 = por %p92, %p93
    %p96 = scmp.ne.s32.totalorder %s79, %s95
    %p97 = scmp.eq.s32.totalorder %s15, 0
    %p98 = por %p96, %p97
    %s99 = ssub.s32 %s16, %s28
    %s100 = ssub.s32 %s17, %s24
    %s101 = sor.u32 %s99, %s100
    %p102 = scmp.eq.s32.totalorder %s101, 0
    %s104 = sadd.s32 %s103, 1
    %s105 = scalar_select %p102, %s103, %s104
    %p108 = pneg %p102
    %p109 = scmp.eq.s32.totalorder %s9, 1
    %p110 = por %p108, %p109
    %p111 = scmp.ne.s32.totalorder %s103, %s106
    %p112 = scmp.eq.s32.totalorder %s9, 0
    %p113 = por %p111, %p112
    %p114 = scmp.ne.s32.totalorder %s103, %s106
    %p115 = scmp.eq.s32.totalorder %s14, 1
    %p116 = por %p114, %p115
    %p117 = scmp.ne.s32.totalorder %s106, %s107
    %p118 = scmp.eq.s32.totalorder %s14, 0
    %p119 = por %p117, %p118
    %p120 = scmp.ne.s32.totalorder %s106, %s107
    %p121 = scmp.eq.s32.totalorder %s15, 1
    %p122 = por %p120, %p121
    %p124 = scmp.ne.s32.totalorder %s107, %s123
    %p125 = scmp.eq.s32.totalorder %s15, 0
    %p126 = por %p124, %p125
    %p127 = scmp.le.s32.totalorder 1, %s9
    %p128 = scmp.lt.s32.totalorder %s9, 3
    %p129 = pnand %p127, %p128
    %p130 = pneg %p129
    // Predicated region
    $region9: #{reference_encoder_forward.11} parent=5 // pred_check
      _
    $region10: #{reference_encoder_forward.11} parent=5 // pred_check_branch
      %132 = sbr.rel (%p129) target = $region12
    $region11: #{reference_encoder_forward.11} parent=5 // pred_region
      %s133 = ssub.s32 %s9, 1
      // Predicated region
      $region13: #{reference_encoder_forward.11} parent=11 // pred_check
        %p134 = pneg %p42
      $region14: #{reference_encoder_forward.11} parent=11 // pred_check_branch
        %136 = sbr.rel (%p134) target = $region16
      $region15: #{reference_encoder_forward.11} parent=11 // pred_region
        _
      $region16: #{reference_encoder_forward.11} parent=11 // pred_fallthru
        _
      // Predicated region
      $region17: #{reference_encoder_forward.11} parent=11 // pred_check
        %p137 = pneg %p63
      $region18: #{reference_encoder_forward.11} parent=11 // pred_check_branch
        %139 = sbr.rel (%p137) target = $region20
      $region19: #{reference_encoder_forward.11} parent=11 // pred_region
        _
      $region20: #{reference_encoder_forward.11} parent=11 // pred_fallthru
        _
    $region12: #{reference_encoder_forward.11} parent=5 // pred_fallthru
      _
    %p140 = scmp.lt.s32.totalorder %s9, 2
    // Predicated region
    $region21: #{reference_encoder_forward.11} parent=5 // pred_check
      %p141 = pneg %p140
    $region22: #{reference_encoder_forward.11} parent=5 // pred_check_branch
      %143 = sbr.rel (%p141) target = $region24
    $region23: #{reference_encoder_forward.11} parent=5 // pred_region
      // Predicated region
      $region25: #{reference_encoder_forward.11} parent=23 // pred_check
        %p144 = pneg %p85
      $region26: #{reference_encoder_forward.11} parent=23 // pred_check_branch
        %146 = sbr.rel (%p144) target = $region28
      $region27: #{reference_encoder_forward.11} parent=23 // pred_region
        %p147 = scmp.lt.s32.totalorder %s16, 1
        %s148 = scalar_select %p147, %s16, 1
        %p149 = scmp.lt.s32.totalorder %s17, 0
        %s150 = scalar_select %p149, %s17, 0
        %s151 = smul.addr %s148, 72
        %s152 = sadd.s32 %s150, %s151
        %s153 = smul.addr %s152, 4
        %s154 = scalar_lea.vmem %s2, %s153
      $region28: #{reference_encoder_forward.11} parent=23 // pred_fallthru
        _
    $region24: #{reference_encoder_forward.11} parent=5 // pred_fallthru
      _
    %p155 = scmp.le.s32.totalorder 1, %s9
    %p156 = scmp.lt.s32.totalorder %s9, 3
    %p157 = pnand %p155, %p156
    %p158 = pneg %p157
    // Predicated region
    $region29: #{reference_encoder_forward.11} parent=5 // pred_check
      _
    $region30: #{reference_encoder_forward.11} parent=5 // pred_check_branch
      %160 = sbr.rel (%p157) target = $region32
    $region31: #{reference_encoder_forward.11} parent=5 // pred_region
      %s161 = ssub.s32 %s9, 1
      %p162 = pneg %p42
      %p163 = pneg %p39
      %p164 = pneg %p63
      %p165 = pneg %p60
      %p166 = scmp.lt.s32.totalorder %s18, 1
      %s167 = scalar_select %p166, %s18, 1
      %p168 = scmp.lt.s32.totalorder %s19, 0
      %s169 = scalar_select %p168, %s19, 0
      %s170 = smul.addr %s167, 72
      %s171 = sadd.s32 %s169, %s170
      %s172 = smul.addr %s171, 4
      %s173 = scalar_lea.vmem %s2, %s172
      %p174 = pneg %p91
      %p175 = pneg %p88
      %p176 = pneg %p119
      %p177 = pneg %p116
      %p178 = scmp.lt.s32.totalorder %s18, 1
      %s179 = scalar_select %p178, %s18, 1
      %p180 = scmp.lt.s32.totalorder %s19, 0
      %s181 = scalar_select %p180, %s19, 0
      %s182 = smul.addr %s179, 16
      %s183 = sadd.s32 %s181, %s182
      %s184 = smul.addr %s183, 4
      %s185 = scalar_lea.vmem %s3, %s184
      %p186 = scmp.lt.s32.totalorder %s18, 1
      %s187 = scalar_select %p186, %s18, 1
      %p188 = scmp.lt.s32.totalorder %s19, 0
      %s189 = scalar_select %p188, %s19, 0
      %s190 = smul.addr %s187, 72
      %s191 = sadd.s32 %s189, %s190
      %s192 = smul.addr %s191, 4
      %s193 = scalar_lea.vmem %s2, %s192
      %p194 = scmp.lt.s32.totalorder %s18, 1
      %s195 = scalar_select %p194, %s18, 1
      %p196 = scmp.lt.s32.totalorder %s19, 0
      %s197 = scalar_select %p196, %s19, 0
      %s198 = smul.addr %s195, 16
      %s199 = sadd.s32 %s197, %s198
      %s200 = smul.addr %s199, 4
      %s201 = scalar_lea.vmem %s3, %s200
      %v203 = vld [vmem:[%s0] sm:$0xff]
      %v204 = vld [vmem:[%s0 + $0x8] sm:$0xff]
      %v205 = vld [vmem:[%s0 + $0x10] sm:$0xf]
      %v206 = vld [vmem:[%s0 + $0x14] sm:$0xff]
      %v207 = vld [vmem:[%s0 + $0x1c] sm:$0xff]
      %v208 = vld [vmem:[%s0 + $0x24] sm:$0xf]
      %v209 = vld [vmem:[%s0 + $0x28] sm:$0xff]
      %v210 = vld [vmem:[%s0 + $0x30] sm:$0xff]
      %v211 = vld [vmem:[%s0 + $0x38] sm:$0xf]
      %v212 = vld [vmem:[%s0 + $0x3c] sm:$0xff]
      %v213 = vld [vmem:[%s0 + $0x44] sm:$0xff]
      %v214 = vld [vmem:[%s0 + $0x4c] sm:$0xf]
      %v215 = vld [vmem:[%s0 + $0x50] sm:$0xff]
      %v216 = vld [vmem:[%s0 + $0x58] sm:$0xff]
      %v217 = vld [vmem:[%s0 + $0x60] sm:$0xf]
      %v218 = vld [vmem:[%s0 + $0x64] sm:$0xff]
      %v219 = vld [vmem:[%s0 + $0x6c] sm:$0xff]
      %v220 = vld [vmem:[%s0 + $0x74] sm:$0xf]
      %v221 = vld [vmem:[%s0 + $0x78] sm:$0xff]
      %v222 = vld [vmem:[%s0 + $0x80] sm:$0xff]
      %v223 = vld [vmem:[%s0 + $0x88] sm:$0xf]
      %v224 = vld [vmem:[%s0 + $0x8c] sm:$0xff]
      %v225 = vld [vmem:[%s0 + $0x94] sm:$0xff]
      %v226 = vld [vmem:[%s0 + $0x9c] sm:$0xf]
      %v227 = vld [vmem:[%s0 + $0xa0] sm:$0xff]
      %v228 = vld [vmem:[%s0 + $0xa8] sm:$0xff]
      %v229 = vld [vmem:[%s0 + $0xb0] sm:$0xf]
      %v230 = vld [vmem:[%s0 + $0xb4] sm:$0xff]
      %v231 = vld [vmem:[%s0 + $0xbc] sm:$0xff]
      %v232 = vld [vmem:[%s0 + $0xc4] sm:$0xf]
      %v233 = vld [vmem:[%s0 + $0xc8] sm:$0xff]
      %v234 = vld [vmem:[%s0 + $0xd0] sm:$0xff]
      %v235 = vld [vmem:[%s0 + $0xd8] sm:$0xf]
      %v236 = vld [vmem:[%s0 + $0xdc] sm:$0xff]
      %v237 = vld [vmem:[%s0 + $0xe4] sm:$0xff]
      %v238 = vld [vmem:[%s0 + $0xec] sm:$0xf]
      %v239 = vld [vmem:[%s0 + $0xf0] sm:$0xff]
      %v240 = vld [vmem:[%s0 + $0xf8] sm:$0xff]
      %v241 = vld [vmem:[%s0 + $0x100] sm:$0xf]
      %v242 = vld [vmem:[%s0 + $0x104] sm:$0xff]
      %v243 = vld [vmem:[%s0 + $0x10c] sm:$0xff]
      %v244 = vld [vmem:[%s0 + $0x114] sm:$0xf]
      %v245 = vld [vmem:[%s0 + $0x118] sm:$0xff]
      %v246 = vld [vmem:[%s0 + $0x120] sm:$0xff]
      %v247 = vld [vmem:[%s0 + $0x128] sm:$0xf]
      %v248 = vld [vmem:[%s0 + $0x12c] sm:$0xff]
      %v249 = vld [vmem:[%s0 + $0x134] sm:$0xff]
      %v250 = vld [vmem:[%s0 + $0x13c] sm:$0xf]
      %v251 = vld [vmem:[%s193] sm:$0xf]
      %v252 = vld [vmem:[%s193 + $0x4] sm:$0xf]
      %v253 = vld [vmem:[%s193 + $0x8] sm:$0xf]
      %v254 = vld [vmem:[%s193 + $0xc] sm:$0xf]
      %v255 = vld [vmem:[%s193 + $0x10] sm:$0xf]
      %v256 = vld [vmem:[%s193 + $0x14] sm:$0xf]
      %v257 = vld [vmem:[%s193 + $0x18] sm:$0xf]
      %v258 = vld [vmem:[%s193 + $0x1c] sm:$0xf]
      %v259 = vld [vmem:[%s193 + $0x20] sm:$0xf]
      %v260 = vld [vmem:[%s193 + $0x24] sm:$0xf]
      %v261 = vld [vmem:[%s193 + $0x28] sm:$0xf]
      %v262 = vld [vmem:[%s193 + $0x2c] sm:$0xf]
      %v263 = vld [vmem:[%s193 + $0x30] sm:$0xf]
      %v264 = vld [vmem:[%s193 + $0x34] sm:$0xf]
      %v265 = vld [vmem:[%s193 + $0x38] sm:$0xf]
      %v266 = vld [vmem:[%s193 + $0x3c] sm:$0xf]
      %v267 = vld [vmem:[%s193 + $0x40] sm:$0xf]
      %v268 = vld [vmem:[%s193 + $0x44] sm:$0xf]
      %v269 = vld [vmem:[%s193 + $0x48] sm:$0xf]
      %v270 = vld [vmem:[%s193 + $0x4c] sm:$0xf]
      %v271 = vld [vmem:[%s193 + $0x50] sm:$0xf]
      %v272 = vld [vmem:[%s193 + $0x54] sm:$0xf]
      %v273 = vld [vmem:[%s193 + $0x58] sm:$0xf]
      %v274 = vld [vmem:[%s193 + $0x5c] sm:$0xf]
      %v275 = vld [vmem:[%s193 + $0x60] sm:$0xf]
      %v276 = vld [vmem:[%s193 + $0x64] sm:$0xf]
      %v277 = vld [vmem:[%s193 + $0x68] sm:$0xf]
      %v278 = vld [vmem:[%s193 + $0x6c] sm:$0xf]
      %v279 = vld [vmem:[%s193 + $0x70] sm:$0xf]
      %v280 = vld [vmem:[%s193 + $0x74] sm:$0xf]
      %v281 = vld [vmem:[%s193 + $0x78] sm:$0xf]
      %v282 = vld [vmem:[%s193 + $0x7c] sm:$0xf]
      %v283 = vld [vmem:[%s193 + $0x80] sm:$0xf]
      %v284 = vld [vmem:[%s193 + $0x84] sm:$0xf]
      %v285 = vld [vmem:[%s193 + $0x88] sm:$0xf]
      %v286 = vld [vmem:[%s193 + $0x8c] sm:$0xf]
      %v287 = vld [vmem:[%s193 + $0x90] sm:$0xf]
      %v288 = vld [vmem:[%s193 + $0x94] sm:$0xf]
      %v289 = vld [vmem:[%s193 + $0x98] sm:$0xf]
      %v290 = vld [vmem:[%s193 + $0x9c] sm:$0xf]
      %v291 = vld [vmem:[%s193 + $0xa0] sm:$0xf]
      %v292 = vld [vmem:[%s193 + $0xa4] sm:$0xf]
      %v293 = vld [vmem:[%s193 + $0xa8] sm:$0xf]
      %v294 = vld [vmem:[%s193 + $0xac] sm:$0xf]
      %v295 = vld [vmem:[%s193 + $0xb0] sm:$0xf]
      %v296 = vld [vmem:[%s193 + $0xb4] sm:$0xf]
      %v297 = vld [vmem:[%s193 + $0xb8] sm:$0xf]
      %v298 = vld [vmem:[%s193 + $0xbc] sm:$0xf]
      %v299 = vld [vmem:[%s193 + $0xc0] sm:$0xf]
      %v300 = vld [vmem:[%s193 + $0xc4] sm:$0xf]
      %v301 = vld [vmem:[%s193 + $0xc8] sm:$0xf]
      %v302 = vld [vmem:[%s193 + $0xcc] sm:$0xf]
      %v303 = vld [vmem:[%s193 + $0xd0] sm:$0xf]
      %v304 = vld [vmem:[%s193 + $0xd4] sm:$0xf]
      %v305 = vld [vmem:[%s193 + $0xd8] sm:$0xf]
      %v306 = vld [vmem:[%s193 + $0xdc] sm:$0xf]
      %v307 = vld [vmem:[%s193 + $0xe0] sm:$0xf]
      %v308 = vld [vmem:[%s193 + $0xe4] sm:$0xf]
      %v309 = vld [vmem:[%s193 + $0xe8] sm:$0xf]
      %v310 = vld [vmem:[%s193 + $0xec] sm:$0xf]
      %v311 = vld [vmem:[%s193 + $0xf0] sm:$0xf]
      %v312 = vld [vmem:[%s193 + $0xf4] sm:$0xf]
      %v313 = vld [vmem:[%s193 + $0xf8] sm:$0xf]
      %v314 = vld [vmem:[%s193 + $0xfc] sm:$0xf]
      %v315 = vld [vmem:[%s193 + $0x100] sm:$0xf]
      %v316 = vld [vmem:[%s193 + $0x104] sm:$0xf]
      %v317 = vld [vmem:[%s193 + $0x108] sm:$0xf]
      %v318 = vld [vmem:[%s193 + $0x10c] sm:$0xf]
      %v319 = vld [vmem:[%s193 + $0x110] sm:$0xf]
      %v320 = vld [vmem:[%s193 + $0x114] sm:$0xf]
      %v321 = vld [vmem:[%s193 + $0x118] sm:$0xf]
      %v322 = vld [vmem:[%s193 + $0x11c] sm:$0xf]
      %v323 = vld [vmem:[%s1] sm:$0xff]
      %v324 = vld [vmem:[%s1 + $0x8] sm:$0xff]
      %v325 = vld [vmem:[%s1 + $0x10] sm:$0xff]
      %v326 = vld [vmem:[%s1 + $0x18] sm:$0xff]
      %v327 = vld [vmem:[%s1 + $0x20] sm:$0xff]
      %v328 = vld [vmem:[%s1 + $0x28] sm:$0xff]
      %v329 = vld [vmem:[%s1 + $0x30] sm:$0xff]
      %v330 = vld [vmem:[%s1 + $0x38] sm:$0xff]
      %v331 = vld [vmem:[%s1 + $0x40] sm:$0xff]
      %v332 = vld [vmem:[%s1 + $0x48] sm:$0xff]
      %v333 = vld [vmem:[%s1 + $0x50] sm:$0xff]
      %v334 = vld [vmem:[%s1 + $0x58] sm:$0xff]
      %v335 = vld [vmem:[%s1 + $0x60] sm:$0xff]
      %v336 = vld [vmem:[%s1 + $0x68] sm:$0xff]
      %v337 = vld [vmem:[%s1 + $0x70] sm:$0xff]
      %v338 = vld [vmem:[%s1 + $0x78] sm:$0xff]
      %340 = vset.pattern.permute.xlu0 0
      %341 = vperm.xlu0 %340, %v323
      %v342 = vpop.permute.xlu0 %341
      %345 = vset.pattern.permute.xlu0 0
      %346 = vperm.xlu0 %345, %v324
      %v347 = vpop.permute.xlu0 %346
      %350 = vset.pattern.permute.xlu0 0
      %351 = vperm.xlu0 %350, %v325
      %v352 = vpop.permute.xlu0 %351
      %355 = vset.pattern.permute.xlu0 0
      %356 = vperm.xlu0 %355, %v326
      %v357 = vpop.permute.xlu0 %356
      %360 = vset.pattern.permute.xlu0 0
      %361 = vperm.xlu0 %360, %v327
      %v362 = vpop.permute.xlu0 %361
      %365 = vset.pattern.permute.xlu0 0
      %366 = vperm.xlu0 %365, %v328
      %v367 = vpop.permute.xlu0 %366
      %370 = vset.pattern.permute.xlu0 0
      %371 = vperm.xlu0 %370, %v329
      %v372 = vpop.permute.xlu0 %371
      %375 = vset.pattern.permute.xlu0 0
      %376 = vperm.xlu0 %375, %v330
      %v377 = vpop.permute.xlu0 %376
      %380 = vset.pattern.permute.xlu0 0
      %381 = vperm.xlu0 %380, %v331
      %v382 = vpop.permute.xlu0 %381
      %385 = vset.pattern.permute.xlu0 0
      %386 = vperm.xlu0 %385, %v332
      %v387 = vpop.permute.xlu0 %386
      %390 = vset.pattern.permute.xlu0 0
      %391 = vperm.xlu0 %390, %v333
      %v392 = vpop.permute.xlu0 %391
      %395 = vset.pattern.permute.xlu0 0
      %396 = vperm.xlu0 %395, %v334
      %v397 = vpop.permute.xlu0 %396
      %400 = vset.pattern.permute.xlu0 0
      %401 = vperm.xlu0 %400, %v335
      %v402 = vpop.permute.xlu0 %401
      %405 = vset.pattern.permute.xlu0 0
      %406 = vperm.xlu0 %405, %v336
      %v407 = vpop.permute.xlu0 %406
      %410 = vset.pattern.permute.xlu0 0
      %411 = vperm.xlu0 %410, %v337
      %v412 = vpop.permute.xlu0 %411
      %415 = vset.pattern.permute.xlu0 0
      %416 = vperm.xlu0 %415, %v338
      %v417 = vpop.permute.xlu0 %416
      %v467 = vunpack.c.l.b16 %v203
      %v468 = vunpack.c.h.b16 %v203
      %v469 = vunpack.c.l.b16 %v204
      %v470 = vunpack.c.h.b16 %v204
      %v471 = vunpack.c.l.b16 %v205
      %v472 = vunpack.c.l.b16 %v206
      %v473 = vunpack.c.h.b16 %v206
      %v474 = vunpack.c.l.b16 %v207
      %v475 = vunpack.c.h.b16 %v207
      %v476 = vunpack.c.l.b16 %v208
      %v477 = vunpack.c.l.b16 %v209
      %v478 = vunpack.c.h.b16 %v209
      %v479 = vunpack.c.l.b16 %v210
      %v480 = vunpack.c.h.b16 %v210
      %v481 = vunpack.c.l.b16 %v211
      %v482 = vunpack.c.l.b16 %v212
      %v483 = vunpack.c.h.b16 %v212
      %v484 = vunpack.c.l.b16 %v213
      %v485 = vunpack.c.h.b16 %v213
      %v486 = vunpack.c.l.b16 %v214
      %v487 = vunpack.c.l.b16 %v215
      %v488 = vunpack.c.h.b16 %v215
      %v489 = vunpack.c.l.b16 %v216
      %v490 = vunpack.c.h.b16 %v216
      %v491 = vunpack.c.l.b16 %v217
      %v492 = vunpack.c.l.b16 %v218
      %v493 = vunpack.c.h.b16 %v218
      %v494 = vunpack.c.l.b16 %v219
      %v495 = vunpack.c.h.b16 %v219
      %v496 = vunpack.c.l.b16 %v220
      %v497 = vunpack.c.l.b16 %v221
      %v498 = vunpack.c.h.b16 %v221
      %v499 = vunpack.c.l.b16 %v222
      %v500 = vunpack.c.h.b16 %v222
      %v501 = vunpack.c.l.b16 %v223
      %v502 = vunpack.c.l.b16 %v224
      %v503 = vunpack.c.h.b16 %v224
      %v504 = vunpack.c.l.b16 %v225
      %v505 = vunpack.c.h.b16 %v225
      %v506 = vunpack.c.l.b16 %v226
      %v507 = vunpack.c.l.b16 %v227
      %v508 = vunpack.c.h.b16 %v227
      %v509 = vunpack.c.l.b16 %v228
      %v510 = vunpack.c.h.b16 %v228
      %v511 = vunpack.c.l.b16 %v229
      %v512 = vunpack.c.l.b16 %v230
      %v513 = vunpack.c.h.b16 %v230
      %v514 = vunpack.c.l.b16 %v231
      %v515 = vunpack.c.h.b16 %v231
      %v516 = vunpack.c.l.b16 %v232
      %v517 = vunpack.c.l.b16 %v233
      %v518 = vunpack.c.h.b16 %v233
      %v519 = vunpack.c.l.b16 %v234
      %v520 = vunpack.c.h.b16 %v234
      %v521 = vunpack.c.l.b16 %v235
      %v522 = vunpack.c.l.b16 %v236
      %v523 = vunpack.c.h.b16 %v236
      %v524 = vunpack.c.l.b16 %v237
      %v525 = vunpack.c.h.b16 %v237
      %v526 = vunpack.c.l.b16 %v238
      %v527 = vunpack.c.l.b16 %v239
      %v528 = vunpack.c.h.b16 %v239
      %v529 = vunpack.c.l.b16 %v240
      %v530 = vunpack.c.h.b16 %v240
      %v531 = vunpack.c.l.b16 %v241
      %v532 = vunpack.c.l.b16 %v242
      %v533 = vunpack.c.h.b16 %v242
      %v534 = vunpack.c.l.b16 %v243
      %v535 = vunpack.c.h.b16 %v243
      %v536 = vunpack.c.l.b16 %v244
      %v537 = vunpack.c.l.b16 %v245
      %v538 = vunpack.c.h.b16 %v245
      %v539 = vunpack.c.l.b16 %v246
      %v540 = vunpack.c.h.b16 %v246
      %v541 = vunpack.c.l.b16 %v247
      %v542 = vunpack.c.l.b16 %v248
      %v543 = vunpack.c.h.b16 %v248
      %v544 = vunpack.c.l.b16 %v249
      %v545 = vunpack.c.h.b16 %v249
      %v546 = vunpack.c.l.b16 %v250
      %v547 = vpack.c.b16 %v472, %v467
      %v548 = vpack.c.b16 %v473, %v468
      %v549 = vpack.c.b16 %v474, %v469
      %v550 = vpack.c.b16 %v475, %v470
      %v551 = vpack.c.b16 %v476, %v471
      %v552 = vpack.c.b16 %v482, %v477
      %v553 = vpack.c.b16 %v483, %v478
      %v554 = vpack.c.b16 %v484, %v479
      %v555 = vpack.c.b16 %v485, %v480
      %v556 = vpack.c.b16 %v486, %v481
      %v557 = vpack.c.b16 %v492, %v487
      %v558 = vpack.c.b16 %v493, %v488
      %v559 = vpack.c.b16 %v494, %v489
      %v560 = vpack.c.b16 %v495, %v490
      %v561 = vpack.c.b16 %v496, %v491
      %v562 = vpack.c.b16 %v502, %v497
      %v563 = vpack.c.b16 %v503, %v498
      %v564 = vpack.c.b16 %v504, %v499
      %v565 = vpack.c.b16 %v505, %v500
      %v566 = vpack.c.b16 %v506, %v501
      %v567 = vpack.c.b16 %v512, %v507
      %v568 = vpack.c.b16 %v513, %v508
      %v569 = vpack.c.b16 %v514, %v509
      %v570 = vpack.c.b16 %v515, %v510
      %v571 = vpack.c.b16 %v516, %v511
      %v572 = vpack.c.b16 %v522, %v517
      %v573 = vpack.c.b16 %v523, %v518
      %v574 = vpack.c.b16 %v524, %v519
      %v575 = vpack.c.b16 %v525, %v520
      %v576 = vpack.c.b16 %v526, %v521
      %v577 = vpack.c.b16 %v532, %v527
      %v578 = vpack.c.b16 %v533, %v528
      %v579 = vpack.c.b16 %v534, %v529
      %v580 = vpack.c.b16 %v535, %v530
      %v581 = vpack.c.b16 %v536, %v531
      %v582 = vpack.c.b16 %v542, %v537
      %v583 = vpack.c.b16 %v543, %v538
      %v584 = vpack.c.b16 %v544, %v539
      %v585 = vpack.c.b16 %v545, %v540
      %v586 = vpack.c.b16 %v546, %v541
      %v691 = vunpack.c.l.b16 %v251
      %v692 = vunpack.c.l.b16 %v252
      %v693 = vunpack.c.l.b16 %v253
      %v694 = vunpack.c.l.b16 %v254
      %v695 = vunpack.c.l.b16 %v255
      %v696 = vunpack.c.l.b16 %v256
      %v697 = vunpack.c.l.b16 %v257
      %v698 = vunpack.c.l.b16 %v258
      %v699 = vunpack.c.l.b16 %v259
      %v700 = vunpack.c.l.b16 %v260
      %v701 = vunpack.c.l.b16 %v261
      %v702 = vunpack.c.l.b16 %v262
      %v703 = vunpack.c.l.b16 %v263
      %v704 = vunpack.c.l.b16 %v264
      %v705 = vunpack.c.l.b16 %v265
      %v706 = vunpack.c.l.b16 %v266
      %v707 = vunpack.c.l.b16 %v267
      %v708 = vunpack.c.l.b16 %v268
      %v709 = vunpack.c.l.b16 %v269
      %v710 = vunpack.c.l.b16 %v270
      %v711 = vunpack.c.l.b16 %v271
      %v712 = vunpack.c.l.b16 %v272
      %v713 = vunpack.c.l.b16 %v273
      %v714 = vunpack.c.l.b16 %v274
      %v715 = vunpack.c.l.b16 %v275
      %v716 = vunpack.c.l.b16 %v276
      %v717 = vunpack.c.l.b16 %v277
      %v718 = vunpack.c.l.b16 %v278
      %v719 = vunpack.c.l.b16 %v279
      %v720 = vunpack.c.l.b16 %v280
      %v721 = vunpack.c.l.b16 %v281
      %v722 = vunpack.c.l.b16 %v282
      %v723 = vunpack.c.l.b16 %v283
      %v724 = vunpack.c.l.b16 %v284
      %v725 = vunpack.c.l.b16 %v285
      %v726 = vunpack.c.l.b16 %v286
      %v727 = vunpack.c.l.b16 %v287
      %v728 = vunpack.c.l.b16 %v288
      %v729 = vunpack.c.l.b16 %v289
      %v730 = vunpack.c.l.b16 %v290
      %v731 = vunpack.c.l.b16 %v291
      %v732 = vunpack.c.l.b16 %v292
      %v733 = vunpack.c.l.b16 %v293
      %v734 = vunpack.c.l.b16 %v294
      %v735 = vunpack.c.l.b16 %v295
      %v736 = vunpack.c.l.b16 %v296
      %v737 = vunpack.c.l.b16 %v297
      %v738 = vunpack.c.l.b16 %v298
      %v739 = vunpack.c.l.b16 %v299
      %v740 = vunpack.c.l.b16 %v300
      %v741 = vunpack.c.l.b16 %v301
      %v742 = vunpack.c.l.b16 %v302
      %v743 = vunpack.c.l.b16 %v303
      %v744 = vunpack.c.l.b16 %v304
      %v745 = vunpack.c.l.b16 %v305
      %v746 = vunpack.c.l.b16 %v306
      %v747 = vunpack.c.l.b16 %v307
      %v748 = vunpack.c.l.b16 %v308
      %v749 = vunpack.c.l.b16 %v309
      %v750 = vunpack.c.l.b16 %v310
      %v751 = vunpack.c.l.b16 %v311
      %v752 = vunpack.c.l.b16 %v312
      %v753 = vunpack.c.l.b16 %v313
      %v754 = vunpack.c.l.b16 %v314
      %v755 = vunpack.c.l.b16 %v315
      %v756 = vunpack.c.l.b16 %v316
      %v757 = vunpack.c.l.b16 %v317
      %v758 = vunpack.c.l.b16 %v318
      %v759 = vunpack.c.l.b16 %v319
      %v760 = vunpack.c.l.b16 %v320
      %v761 = vunpack.c.l.b16 %v321
      %v762 = vunpack.c.l.b16 %v322
      %v763 = vpack.c.b16 %v692, %v691
      %v764 = vpack.c.b16 %v694, %v693
      %v765 = vpack.c.b16 %v696, %v695
      %v766 = vpack.c.b16 %v698, %v697
      %v767 = vpack.c.b16 %v700, %v699
      %v768 = vpack.c.b16 %v702, %v701
      %v769 = vpack.c.b16 %v704, %v703
      %v770 = vpack.c.b16 %v706, %v705
      %v771 = vpack.c.b16 %v708, %v707
      %v772 = vpack.c.b16 %v710, %v709
      %v773 = vpack.c.b16 %v712, %v711
      %v774 = vpack.c.b16 %v714, %v713
      %v775 = vpack.c.b16 %v716, %v715
      %v776 = vpack.c.b16 %v718, %v717
      %v777 = vpack.c.b16 %v720, %v719
      %v778 = vpack.c.b16 %v722, %v721
      %v779 = vpack.c.b16 %v724, %v723
      %v780 = vpack.c.b16 %v726, %v725
      %v781 = vpack.c.b16 %v728, %v727
      %v782 = vpack.c.b16 %v730, %v729
      %v783 = vpack.c.b16 %v732, %v731
      %v784 = vpack.c.b16 %v734, %v733
      %v785 = vpack.c.b16 %v736, %v735
      %v786 = vpack.c.b16 %v738, %v737
      %v787 = vpack.c.b16 %v740, %v739
      %v788 = vpack.c.b16 %v742, %v741
      %v789 = vpack.c.b16 %v744, %v743
      %v790 = vpack.c.b16 %v746, %v745
      %v791 = vpack.c.b16 %v748, %v747
      %v792 = vpack.c.b16 %v750, %v749
      %v793 = vpack.c.b16 %v752, %v751
      %v794 = vpack.c.b16 %v754, %v753
      %v795 = vpack.c.b16 %v756, %v755
      %v796 = vpack.c.b16 %v758, %v757
      %v797 = vpack.c.b16 %v760, %v759
      %v798 = vpack.c.b16 %v762, %v761
      %vm835 = vcmask 523264
      %v837 = vsel %vm835, %v551, 0
      %v840 = vsel %vm835, %v556, 0
      %v843 = vsel %vm835, %v561, 0
      %v846 = vsel %vm835, %v566, 0
      %v849 = vsel %vm835, %v571, 0
      %v852 = vsel %vm835, %v576, 0
      %v855 = vsel %vm835, %v581, 0
      %v858 = vsel %vm835, %v586, 0
      %860 = vmatprep.subr.bf16.mxu0 0
      %861 = vmatpush1.bf16.msra.mxu0 %v770
      %862 = vmatprep.subr.bf16.mxu0 0
      %863 = vmatpush1.bf16.msra.mxu0 %v769
      %864 = vmatprep.subr.bf16.mxu0 0
      %865 = vmatpush1.bf16.msra.mxu0 %v768
      %866 = vmatprep.subr.bf16.mxu0 0
      %867 = vmatpush1.bf16.msra.mxu0 %v767
      %868 = vmatprep.subr.bf16.mxu0 0
      %869 = vmatpush1.bf16.msra.mxu0 %v766
      %870 = vmatprep.subr.bf16.mxu0 0
      %871 = vmatpush1.bf16.msra.mxu0 %v765
      %872 = vmatprep.subr.bf16.mxu0 0
      %873 = vmatpush1.bf16.msra.mxu0 %v764
      %874 = vmatprep.subr.bf16.mxu0 0
      %875 = vmatpush1.bf16.msra.mxu0 %v763
      %876 = vmatprep.subr.bf16.mxu0 0
      %877 = vmatpush2.bf16.msra.mxu0 %v778
      %878 = vmatprep.subr.bf16.mxu0 0
      %879 = vmatpush2.bf16.msra.mxu0 %v777
      %880 = vmatprep.subr.bf16.mxu0 0
      %881 = vmatpush2.bf16.msra.mxu0 %v776
      %882 = vmatprep.subr.bf16.mxu0 0
      %883 = vmatpush2.bf16.msra.mxu0 %v775
      %884 = vmatprep.subr.bf16.mxu0 0
      %885 = vmatpush2.bf16.msra.mxu0 %v774
      %886 = vmatprep.subr.bf16.mxu0 0
      %887 = vmatpush2.bf16.msra.mxu0 %v773
      %888 = vmatprep.subr.bf16.mxu0 0
      %889 = vmatpush2.bf16.msra.mxu0 %v772
      %890 = vmatprep.subr.bf16.mxu0 0
      %891 = vmatpush2.bf16.msra.mxu0 %v771
      %892 = vmatprep.mubr.bf16.mxu0 %v548
      %893 = vmatmul.mubr.bf16.gmra.mxu0 %v547
      %v894 = vpop.f32.mrf.mxu0
      %v895 = vadd.f32 %v342, %v894
      %v896 = vpop.f32.mrf.mxu0
      %v897 = vpop.f32.mrf.mxu0
      %v898 = vadd.f32 %v347, %v897
      %v899 = vpop.f32.mrf.mxu0
      %900 = vmatprep.mubr.bf16.mxu0 %v553
      %901 = vmatmul.mubr.bf16.gmra.mxu0 %v552
      %v902 = vpop.f32.mrf.mxu0
      %v903 = vadd.f32 %v352, %v902
      %v904 = vpop.f32.mrf.mxu0
      %v905 = vpop.f32.mrf.mxu0
      %v906 = vadd.f32 %v357, %v905
      %v907 = vpop.f32.mrf.mxu0
      %908 = vmatprep.mubr.bf16.mxu0 %v558
      %909 = vmatmul.mubr.bf16.gmra.mxu0 %v557
      %v910 = vpop.f32.mrf.mxu0
      %v911 = vadd.f32 %v362, %v910
      %v912 = vpop.f32.mrf.mxu0
      %v913 = vpop.f32.mrf.mxu0
      %v914 = vadd.f32 %v367, %v913
      %v915 = vpop.f32.mrf.mxu0
      %916 = vmatprep.mubr.bf16.mxu0 %v563
      %917 = vmatmul.mubr.bf16.gmra.mxu0 %v562
      %v918 = vpop.f32.mrf.mxu0
      %v919 = vadd.f32 %v372, %v918
      %v920 = vpop.f32.mrf.mxu0
      %v921 = vpop.f32.mrf.mxu0
      %v922 = vadd.f32 %v377, %v921
      %v923 = vpop.f32.mrf.mxu0
      %924 = vmatprep.mubr.bf16.mxu0 %v568
      %925 = vmatmul.mubr.bf16.gmra.mxu0 %v567
      %v926 = vpop.f32.mrf.mxu0
      %v927 = vadd.f32 %v382, %v926
      %v928 = vpop.f32.mrf.mxu0
      %v929 = vpop.f32.mrf.mxu0
      %v930 = vadd.f32 %v387, %v929
      %v931 = vpop.f32.mrf.mxu0
      %932 = vmatprep.mubr.bf16.mxu0 %v573
      %933 = vmatmul.mubr.bf16.gmra.mxu0 %v572
      %v934 = vpop.f32.mrf.mxu0
      %v935 = vadd.f32 %v392, %v934
      %v936 = vpop.f32.mrf.mxu0
      %v937 = vpop.f32.mrf.mxu0
      %v938 = vadd.f32 %v397, %v937
      %v939 = vpop.f32.mrf.mxu0
      %940 = vmatprep.mubr.bf16.mxu0 %v578
      %941 = vmatmul.mubr.bf16.gmra.mxu0 %v577
      %v942 = vpop.f32.mrf.mxu0
      %v943 = vadd.f32 %v402, %v942
      %v944 = vpop.f32.mrf.mxu0
      %v945 = vpop.f32.mrf.mxu0
      %v946 = vadd.f32 %v407, %v945
      %v947 = vpop.f32.mrf.mxu0
      %948 = vmatprep.mubr.bf16.mxu0 %v583
      %949 = vmatmul.mubr.bf16.gmra.mxu0 %v582
      %v950 = vpop.f32.mrf.mxu0
      %v951 = vadd.f32 %v412, %v950
      %v952 = vpop.f32.mrf.mxu0
      %v953 = vpop.f32.mrf.mxu0
      %v954 = vadd.f32 %v417, %v953
      %v955 = vpop.f32.mrf.mxu0
      %956 = vdwg.mxu0
      %957 = vmatprep.subr.bf16.mxu0 0
      %958 = vmatpush1.bf16.msra.mxu0 %v786
      %959 = vmatprep.subr.bf16.mxu0 0
      %960 = vmatpush1.bf16.msra.mxu0 %v785
      %961 = vmatprep.subr.bf16.mxu0 0
      %962 = vmatpush1.bf16.msra.mxu0 %v784
      %963 = vmatprep.subr.bf16.mxu0 0
      %964 = vmatpush1.bf16.msra.mxu0 %v783
      %965 = vmatprep.subr.bf16.mxu0 0
      %966 = vmatpush1.bf16.msra.mxu0 %v782
      %967 = vmatprep.subr.bf16.mxu0 0
      %968 = vmatpush1.bf16.msra.mxu0 %v781
      %969 = vmatprep.subr.bf16.mxu0 0
      %970 = vmatpush1.bf16.msra.mxu0 %v780
      %971 = vmatprep.subr.bf16.mxu0 0
      %972 = vmatpush1.bf16.msra.mxu0 %v779
      %973 = vmatprep.subr.bf16.mxu0 0
      %974 = vmatpush2.bf16.msra.mxu0 %v794
      %975 = vmatprep.subr.bf16.mxu0 0
      %976 = vmatpush2.bf16.msra.mxu0 %v793
      %977 = vmatprep.subr.bf16.mxu0 0
      %978 = vmatpush2.bf16.msra.mxu0 %v792
      %979 = vmatprep.subr.bf16.mxu0 0
      %980 = vmatpush2.bf16.msra.mxu0 %v791
      %981 = vmatprep.subr.bf16.mxu0 0
      %982 = vmatpush2.bf16.msra.mxu0 %v790
      %983 = vmatprep.subr.bf16.mxu0 0
      %984 = vmatpush2.bf16.msra.mxu0 %v789
      %985 = vmatprep.subr.bf16.mxu0 0
      %986 = vmatpush2.bf16.msra.mxu0 %v788
      %987 = vmatprep.subr.bf16.mxu0 0
      %988 = vmatpush2.bf16.msra.mxu0 %v787
      %989 = vmatprep.mubr.bf16.mxu0 %v550
      %990 = vmatmul.mubr.bf16.gmra.mxu0 %v549
      %v991 = vpop.f32.mrf.mxu0
      %v992 = vadd.f32 %v895, %v991
      %v993 = vpop.f32.mrf.mxu0
      %v994 = vpop.f32.mrf.mxu0
      %v995 = vadd.f32 %v898, %v994
      %v996 = vpop.f32.mrf.mxu0
      %997 = vmatprep.mubr.bf16.mxu0 %v555
      %998 = vmatmul.mubr.bf16.gmra.mxu0 %v554
      %v999 = vpop.f32.mrf.mxu0
      %v1000 = vadd.f32 %v903, %v999
      %v1001 = vpop.f32.mrf.mxu0
      %v1002 = vpop.f32.mrf.mxu0
      %v1003 = vadd.f32 %v906, %v1002
      %v1004 = vpop.f32.mrf.mxu0
      %1005 = vmatprep.mubr.bf16.mxu0 %v560
      %1006 = vmatmul.mubr.bf16.gmra.mxu0 %v559
      %v1007 = vpop.f32.mrf.mxu0
      %v1008 = vadd.f32 %v911, %v1007
      %v1009 = vpop.f32.mrf.mxu0
      %v1010 = vpop.f32.mrf.mxu0
      %v1011 = vadd.f32 %v914, %v1010
      %v1012 = vpop.f32.mrf.mxu0
      %1013 = vmatprep.mubr.bf16.mxu0 %v565
      %1014 = vmatmul.mubr.bf16.gmra.mxu0 %v564
      %v1015 = vpop.f32.mrf.mxu0
      %v1016 = vadd.f32 %v919, %v1015
      %v1017 = vpop.f32.mrf.mxu0
      %v1018 = vpop.f32.mrf.mxu0
      %v1019 = vadd.f32 %v922, %v1018
      %v1020 = vpop.f32.mrf.mxu0
      %1021 = vmatprep.mubr.bf16.mxu0 %v570
      %1022 = vmatmul.mubr.bf16.gmra.mxu0 %v569
      %v1023 = vpop.f32.mrf.mxu0
      %v1024 = vadd.f32 %v927, %v1023
      %v1025 = vpop.f32.mrf.mxu0
      %v1026 = vpop.f32.mrf.mxu0
      %v1027 = vadd.f32 %v930, %v1026
      %v1028 = vpop.f32.mrf.mxu0
      %1029 = vmatprep.mubr.bf16.mxu0 %v575
      %1030 = vmatmul.mubr.bf16.gmra.mxu0 %v574
      %v1031 = vpop.f32.mrf.mxu0
      %v1032 = vadd.f32 %v935, %v1031
      %v1033 = vpop.f32.mrf.mxu0
      %v1034 = vpop.f32.mrf.mxu0
      %v1035 = vadd.f32 %v938, %v1034
      %v1036 = vpop.f32.mrf.mxu0
      %1037 = vmatprep.mubr.bf16.mxu0 %v580
      %1038 = vmatmul.mubr.bf16.gmra.mxu0 %v579
      %v1039 = vpop.f32.mrf.mxu0
      %v1040 = vadd.f32 %v943, %v1039
      %v1041 = vpop.f32.mrf.mxu0
      %v1042 = vpop.f32.mrf.mxu0
      %v1043 = vadd.f32 %v946, %v1042
      %v1044 = vpop.f32.mrf.mxu0
      %1045 = vmatprep.mubr.bf16.mxu0 %v585
      %1046 = vmatmul.mubr.bf16.gmra.mxu0 %v584
      %v1047 = vpop.f32.mrf.mxu0
      %v1048 = vadd.f32 %v951, %v1047
      %v1049 = vpop.f32.mrf.mxu0
      %v1050 = vpop.f32.mrf.mxu0
      %v1051 = vadd.f32 %v954, %v1050
      %v1052 = vpop.f32.mrf.mxu0
      %1053 = vdwg.mxu0
      %1054 = vmatprep.subr.bf16.mxu0 0
      %1055 = vmatpush1.bf16.msra.mxu0 0
      %1056 = vmatprep.subr.bf16.mxu0 0
      %1057 = vmatpush1.bf16.msra.mxu0 0
      %1058 = vmatprep.subr.bf16.mxu0 0
      %1059 = vmatpush1.bf16.msra.mxu0 0
      %1060 = vmatprep.subr.bf16.mxu0 0
      %1061 = vmatpush1.bf16.msra.mxu0 0
      %1062 = vmatprep.subr.bf16.mxu0 0
      %1063 = vmatpush1.bf16.msra.mxu0 %v798
      %1064 = vmatprep.subr.bf16.mxu0 0
      %1065 = vmatpush1.bf16.msra.mxu0 %v797
      %1066 = vmatprep.subr.bf16.mxu0 0
      %1067 = vmatpush1.bf16.msra.mxu0 %v796
      %1068 = vmatprep.subr.bf16.mxu0 0
      %1069 = vmatpush1.bf16.msra.mxu0 %v795
      %1070 = vmatprep.subr.bf16.mxu0 0
      %1071 = vmatpush2.bf16.msra.mxu0 0
      %1072 = vmatprep.subr.bf16.mxu0 0
      %1073 = vmatpush2.bf16.msra.mxu0 0
      %1074 = vmatprep.subr.bf16.mxu0 0
      %1075 = vmatpush2.bf16.msra.mxu0 0
      %1076 = vmatprep.subr.bf16.mxu0 0
      %1077 = vmatpush2.bf16.msra.mxu0 0
      %1078 = vmatprep.subr.bf16.mxu0 0
      %1079 = vmatpush2.bf16.msra.mxu0 0
      %1080 = vmatprep.subr.bf16.mxu0 0
      %1081 = vmatpush2.bf16.msra.mxu0 0
      %1082 = vmatprep.subr.bf16.mxu0 0
      %1083 = vmatpush2.bf16.msra.mxu0 0
      %1084 = vmatprep.subr.bf16.mxu0 0
      %1085 = vmatpush2.bf16.msra.mxu0 0
      %1086 = vmatprep.mubr.bf16.mxu0 0
      %1087 = vmatmul.mubr.bf16.gmra.mxu0 %v837
      %v1088 = vpop.f32.mrf.mxu0
      %v1089 = vadd.f32 %v992, %v1088
      %v1090 = vpop.f32.mrf.mxu0
      %v1091 = vpop.f32.mrf.mxu0
      %v1092 = vadd.f32 %v995, %v1091
      %v1093 = vpop.f32.mrf.mxu0
      %1094 = vmatprep.mubr.bf16.mxu0 0
      %1095 = vmatmul.mubr.bf16.gmra.mxu0 %v840
      %v1096 = vpop.f32.mrf.mxu0
      %v1097 = vadd.f32 %v1000, %v1096
      %v1098 = vpop.f32.mrf.mxu0
      %v1099 = vpop.f32.mrf.mxu0
      %v1100 = vadd.f32 %v1003, %v1099
      %v1101 = vpop.f32.mrf.mxu0
      %1102 = vmatprep.mubr.bf16.mxu0 0
      %1103 = vmatmul.mubr.bf16.gmra.mxu0 %v843
      %v1104 = vpop.f32.mrf.mxu0
      %v1105 = vadd.f32 %v1008, %v1104
      %v1106 = vpop.f32.mrf.mxu0
      %v1107 = vpop.f32.mrf.mxu0
      %v1108 = vadd.f32 %v1011, %v1107
      %v1109 = vpop.f32.mrf.mxu0
      %1110 = vmatprep.mubr.bf16.mxu0 0
      %1111 = vmatmul.mubr.bf16.gmra.mxu0 %v846
      %v1112 = vpop.f32.mrf.mxu0
      %v1113 = vadd.f32 %v1016, %v1112
      %v1114 = vpop.f32.mrf.mxu0
      %v1115 = vpop.f32.mrf.mxu0
      %v1116 = vadd.f32 %v1019, %v1115
      %v1117 = vpop.f32.mrf.mxu0
      %1118 = vmatprep.mubr.bf16.mxu0 0
      %1119 = vmatmul.mubr.bf16.gmra.mxu0 %v849
      %v1120 = vpop.f32.mrf.mxu0
      %v1121 = vadd.f32 %v1024, %v1120
      %v1122 = vpop.f32.mrf.mxu0
      %v1123 = vpop.f32.mrf.mxu0
      %v1124 = vadd.f32 %v1027, %v1123
      %v1125 = vpop.f32.mrf.mxu0
      %1126 = vmatprep.mubr.bf16.mxu0 0
      %1127 = vmatmul.mubr.bf16.gmra.mxu0 %v852
      %v1128 = vpop.f32.mrf.mxu0
      %v1129 = vadd.f32 %v1032, %v1128
      %v1130 = vpop.f32.mrf.mxu0
      %v1131 = vpop.f32.mrf.mxu0
      %v1132 = vadd.f32 %v1035, %v1131
      %v1133 = vpop.f32.mrf.mxu0
      %1134 = vmatprep.mubr.bf16.mxu0 0
      %1135 = vmatmul.mubr.bf16.gmra.mxu0 %v855
      %v1136 = vpop.f32.mrf.mxu0
      %v1137 = vadd.f32 %v1040, %v1136
      %v1138 = vpop.f32.mrf.mxu0
      %v1139 = vpop.f32.mrf.mxu0
      %v1140 = vadd.f32 %v1043, %v1139
      %v1141 = vpop.f32.mrf.mxu0
      %1142 = vmatprep.mubr.bf16.mxu0 0
      %1143 = vmatmul.mubr.bf16.gmra.mxu0 %v858
      %v1144 = vpop.f32.mrf.mxu0
      %v1145 = vadd.f32 %v1048, %v1144
      %v1146 = vpop.f32.mrf.mxu0
      %v1147 = vpop.f32.mrf.mxu0
      %v1148 = vadd.f32 %v1051, %v1147
      %v1149 = vpop.f32.mrf.mxu0
      %1150 = vdwg.mxu0
      %v1151 = vmax.f32 %v1089, 0.0
      %v1152 = vmax.f32 %v1092, 0.0
      %v1153 = vmax.f32 %v1097, 0.0
      %v1154 = vmax.f32 %v1100, 0.0
      %v1155 = vmax.f32 %v1105, 0.0
      %v1156 = vmax.f32 %v1108, 0.0
      %v1157 = vmax.f32 %v1113, 0.0
      %v1158 = vmax.f32 %v1116, 0.0
      %v1159 = vmax.f32 %v1121, 0.0
      %v1160 = vmax.f32 %v1124, 0.0
      %v1161 = vmax.f32 %v1129, 0.0
      %v1162 = vmax.f32 %v1132, 0.0
      %v1163 = vmax.f32 %v1137, 0.0
      %v1164 = vmax.f32 %v1140, 0.0
      %v1165 = vmax.f32 %v1145, 0.0
      %v1166 = vmax.f32 %v1148, 0.0
      %v1167 = vpack.c.bf16 %v1152, %v1151
      %v1168 = vpack.c.bf16 %v1154, %v1153
      %v1169 = vpack.c.bf16 %v1156, %v1155
      %v1170 = vpack.c.bf16 %v1158, %v1157
      %v1171 = vpack.c.bf16 %v1160, %v1159
      %v1172 = vpack.c.bf16 %v1162, %v1161
      %v1173 = vpack.c.bf16 %v1164, %v1163
      %v1174 = vpack.c.bf16 %v1166, %v1165
      %v1183 = vunpack.c.l.b16 %v1167
      %v1184 = vunpack.c.h.b16 %v1167
      %v1185 = vunpack.c.l.b16 %v1168
      %v1186 = vunpack.c.h.b16 %v1168
      %v1187 = vunpack.c.l.b16 %v1169
      %v1188 = vunpack.c.h.b16 %v1169
      %v1189 = vunpack.c.l.b16 %v1170
      %v1190 = vunpack.c.h.b16 %v1170
      %v1191 = vunpack.c.l.b16 %v1171
      %v1192 = vunpack.c.h.b16 %v1171
      %v1193 = vunpack.c.l.b16 %v1172
      %v1194 = vunpack.c.h.b16 %v1172
      %v1195 = vunpack.c.l.b16 %v1173
      %v1196 = vunpack.c.h.b16 %v1173
      %v1197 = vunpack.c.l.b16 %v1174
      %v1198 = vunpack.c.h.b16 %v1174
      %v1199 = vpack.c.b16 %v1183, %v1183
      %v1200 = vpack.c.b16 %v1184, %v1184
      %v1201 = vpack.c.b16 %v1185, %v1185
      %v1202 = vpack.c.b16 %v1186, %v1186
      %v1203 = vpack.c.b16 %v1187, %v1187
      %v1204 = vpack.c.b16 %v1188, %v1188
      %v1205 = vpack.c.b16 %v1189, %v1189
      %v1206 = vpack.c.b16 %v1190, %v1190
      %v1207 = vpack.c.b16 %v1191, %v1191
      %v1208 = vpack.c.b16 %v1192, %v1192
      %v1209 = vpack.c.b16 %v1193, %v1193
      %v1210 = vpack.c.b16 %v1194, %v1194
      %v1211 = vpack.c.b16 %v1195, %v1195
      %v1212 = vpack.c.b16 %v1196, %v1196
      %v1213 = vpack.c.b16 %v1197, %v1197
      %v1214 = vpack.c.b16 %v1198, %v1198
      %1231 = vst [vmem:[%s201] sm:$0xf] %v1199
      %1232 = vst [vmem:[%s201 + $0x4] sm:$0xf] %v1200
      %1233 = vst [vmem:[%s201 + $0x8] sm:$0xf] %v1201
      %1234 = vst [vmem:[%s201 + $0xc] sm:$0xf] %v1202
      %1235 = vst [vmem:[%s201 + $0x10] sm:$0xf] %v1203
      %1236 = vst [vmem:[%s201 + $0x14] sm:$0xf] %v1204
      %1237 = vst [vmem:[%s201 + $0x18] sm:$0xf] %v1205
      %1238 = vst [vmem:[%s201 + $0x1c] sm:$0xf] %v1206
      %1239 = vst [vmem:[%s201 + $0x20] sm:$0xf] %v1207
      %1240 = vst [vmem:[%s201 + $0x24] sm:$0xf] %v1208
      %1241 = vst [vmem:[%s201 + $0x28] sm:$0xf] %v1209
      %1242 = vst [vmem:[%s201 + $0x2c] sm:$0xf] %v1210
      %1243 = vst [vmem:[%s201 + $0x30] sm:$0xf] %v1211
      %1244 = vst [vmem:[%s201 + $0x34] sm:$0xf] %v1212
      %1245 = vst [vmem:[%s201 + $0x38] sm:$0xf] %v1213
      %1246 = vst [vmem:[%s201 + $0x3c] sm:$0xf] %v1214
      %p1247 = scmp.lt.s32.totalorder %s18, 1
      %s1248 = scalar_select %p1247, %s18, 1
      %p1249 = scmp.lt.s32.totalorder %s19, 0
      %s1250 = scalar_select %p1249, %s19, 0
      %s1251 = smul.addr %s1248, 16
      %s1252 = sadd.s32 %s1250, %s1251
      %s1253 = smul.addr %s1252, 4
      %s1254 = scalar_lea.vmem %s3, %s1253
      // Predicated region
      $region33: #{reference_encoder_forward.11} parent=31 // pred_check
        %p1255 = pneg %p116
      $region34: #{reference_encoder_forward.11} parent=31 // pred_check_branch
        %1257 = sbr.rel (%p1255) target = $region36
      $region35: #{reference_encoder_forward.11} parent=31 // pred_region
        _
      $region36: #{reference_encoder_forward.11} parent=31 // pred_fallthru
        _
    $region32: #{reference_encoder_forward.11} parent=5 // pred_fallthru
      _
    %p1258 = scmp.le.s32.totalorder 2, %s9
    // Predicated region
    $region37: #{reference_encoder_forward.11} parent=5 // pred_check
      %p1259 = pneg %p1258
    $region38: #{reference_encoder_forward.11} parent=5 // pred_check_branch
      %1261 = sbr.rel (%p1259) target = $region40
    $region39: #{reference_encoder_forward.11} parent=5 // pred_region
      %s1262 = ssub.s32 %s9, 2
      // Predicated region
      $region41: #{reference_encoder_forward.11} parent=39 // pred_check
        %p1263 = pneg %p122
      $region42: #{reference_encoder_forward.11} parent=39 // pred_check_branch
        %1265 = sbr.rel (%p1263) target = $region44
      $region43: #{reference_encoder_forward.11} parent=39 // pred_region
        %p1266 = scmp.lt.s32.totalorder %s20, 1
        %s1267 = scalar_select %p1266, %s20, 1
        %p1268 = scmp.lt.s32.totalorder %s21, 0
        %s1269 = scalar_select %p1268, %s21, 0
        %s1270 = smul.addr %s1267, 16
        %s1271 = sadd.s32 %s1269, %s1270
        %s1272 = smul.addr %s1271, 4
        %s1273 = scalar_lea.vmem %s3, %s1272
      $region44: #{reference_encoder_forward.11} parent=39 // pred_fallthru
        _
    $region40: #{reference_encoder_forward.11} parent=5 // pred_fallthru
      _
  $region6: #{reference_encoder_forward.11} parent=0 // loop_footer
    %s13 = sadd.s32 1, %s9
  $region7: #{reference_encoder_forward.11} parent=0 // loop_footer_branch
    %8 = sbr.rel target = $region3
  $region8: #{reference_encoder_forward.11} parent=0 // loop_exit
    _

// kernel: reference_encoder_forward.12
$region0: #{reference_encoder_forward.12}
  #allocation0 [shape = 'u32[]', space=smem, size = 0x4, offset = 0x4, fixed_abs, tag = 'smem constant byte address 0x4 - core index']
  #allocation1 [shape = 'u32[144,128]{1,0:T(1,128)}', space=vmem, size = 0x12000, scoped, tag = 'internal scratch']
  %s0 = inlined_call_operand.vmem [shape: bf16[128,1152], index: 0, kind: input, shape index: {}]
  %s1 = inlined_call_operand.vmem [shape: f32[128,1], index: 1, kind: input, shape index: {}]
  %s2 = inlined_call_operand.vmem [shape: bf16[2,1152,128], index: 2, kind: input, shape index: {}]
  %s3 = inlined_call_operand.vmem [shape: bf16[2,128,128], index: 3, kind: output, shape index: {}]
  %s4 = sld [smem:[#allocation0]]
  $region45: #{reference_encoder_forward.12} parent=0
    _
  %s6 = ssub.s32 1, %s4
  %s7 = scalar_select 0, %s6, %s4
  loop: start=0, step=1, limit=4
  $region2: #{reference_encoder_forward.12} parent=0 // loop_pre_header
    _
  $region3: #{reference_encoder_forward.12} parent=0 // loop_header
    %s9 = sphi 0, %s13
    %p10 = scmp.ge.s32.totalorder %s9, 4
    %s16 = sphi 0, %s28
    %s17 = sphi 0, %s24
    %s18 = sphi 0, %s16
    %s19 = sphi 0, %s17
    %s20 = sphi 0, %s18
    %s21 = sphi 0, %s19
    %s29 = sphi 0, %s29
    %s31 = sphi 0, %s29
    %s32 = sphi 0, %s31
    %s46 = sphi 0, %s32
    %s50 = sphi 0, %s50
    %s52 = sphi 0, %s50
    %s53 = sphi 0, %s52
    %s67 = sphi 0, %s53
    %s75 = sphi 0, %s77
    %s78 = sphi 0, %s75
    %s79 = sphi 0, %s78
    %s95 = sphi 0, %s79
    %s103 = sphi 0, %s105
    %s106 = sphi 0, %s103
    %s107 = sphi 0, %s106
    %s123 = sphi 0, %s107
  $region4: #{reference_encoder_forward.12} parent=0 // loop_header_branch
    %12 = sbr.rel (%p10) target = $region8
  $region5: #{reference_encoder_forward.12} parent=0 // loop_body
    %s14 = ssub.s32 %s9, 1
    %s15 = ssub.s32 %s9, 2
    %s22 = sadd.s32 1, %s17
    %p23 = scmp.ge.s32.totalorder %s22, 1
    %s24 = scalar_select %p23, 0, %s22
    %s25 = sadd.s32 1, %s16
    %s26 = scalar_select %p23, %s25, %s16
    %p27 = scmp.ge.s32.totalorder %s26, 2
    %s28 = scalar_select %p27, 0, %s26
    %s30 = sadd.s32 %s29, 1
    %p33 = scmp.eq.s32.totalorder %s9, 1
    %p34 = scmp.ne.s32.totalorder %s29, %s31
    %p35 = scmp.eq.s32.totalorder %s9, 0
    %p36 = por %p34, %p35
    %p37 = scmp.ne.s32.totalorder %s29, %s31
    %p38 = scmp.eq.s32.totalorder %s14, 1
    %p39 = por %p37, %p38
    %p40 = scmp.ne.s32.totalorder %s31, %s32
    %p41 = scmp.eq.s32.totalorder %s14, 0
    %p42 = por %p40, %p41
    %p43 = scmp.ne.s32.totalorder %s31, %s32
    %p44 = scmp.eq.s32.totalorder %s15, 1
    %p45 = por %p43, %p44
    %p47 = scmp.ne.s32.totalorder %s32, %s46
    %p48 = scmp.eq.s32.totalorder %s15, 0
    %p49 = por %p47, %p48
    %s51 = sadd.s32 %s50, 1
    %p54 = scmp.eq.s32.totalorder %s9, 1
    %p55 = scmp.ne.s32.totalorder %s50, %s52
    %p56 = scmp.eq.s32.totalorder %s9, 0
    %p57 = por %p55, %p56
    %p58 = scmp.ne.s32.totalorder %s50, %s52
    %p59 = scmp.eq.s32.totalorder %s14, 1
    %p60 = por %p58, %p59
    %p61 = scmp.ne.s32.totalorder %s52, %s53
    %p62 = scmp.eq.s32.totalorder %s14, 0
    %p63 = por %p61, %p62
    %p64 = scmp.ne.s32.totalorder %s52, %s53
    %p65 = scmp.eq.s32.totalorder %s15, 1
    %p66 = por %p64, %p65
    %p68 = scmp.ne.s32.totalorder %s53, %s67
    %p69 = scmp.eq.s32.totalorder %s15, 0
    %p70 = por %p68, %p69
    %s71 = ssub.s32 %s16, %s28
    %s72 = ssub.s32 %s17, %s24
    %s73 = sor.u32 %s71, %s72
    %p74 = scmp.eq.s32.totalorder %s73, 0
    %s76 = sadd.s32 %s75, 1
    %s77 = scalar_select %p74, %s75, %s76
    %p80 = pneg %p74
    %p81 = scmp.eq.s32.totalorder %s9, 1
    %p82 = por %p80, %p81
    %p83 = scmp.ne.s32.totalorder %s75, %s78
    %p84 = scmp.eq.s32.totalorder %s9, 0
    %p85 = por %p83, %p84
    %p86 = scmp.ne.s32.totalorder %s75, %s78
    %p87 = scmp.eq.s32.totalorder %s14, 1
    %p88 = por %p86, %p87
    %p89 = scmp.ne.s32.totalorder %s78, %s79
    %p90 = scmp.eq.s32.totalorder %s14, 0
    %p91 = por %p89, %p90
    %p92 = scmp.ne.s32.totalorder %s78, %s79
    %p93 = scmp.eq.s32.totalorder %s15, 1
    %p94 = por %p92, %p93
    %p96 = scmp.ne.s32.totalorder %s79, %s95
    %p97 = scmp.eq.s32.totalorder %s15, 0
    %p98 = por %p96, %p97
    %s99 = ssub.s32 %s16, %s28
    %s100 = ssub.s32 %s17, %s24
    %s101 = sor.u32 %s99, %s100
    %p102 = scmp.eq.s32.totalorder %s101, 0
    %s104 = sadd.s32 %s103, 1
    %s105 = scalar_select %p102, %s103, %s104
    %p108 = pneg %p102
    %p109 = scmp.eq.s32.totalorder %s9, 1
    %p110 = por %p108, %p109
    %p111 = scmp.ne.s32.totalorder %s103, %s106
    %p112 = scmp.eq.s32.totalorder %s9, 0
    %p113 = por %p111, %p112
    %p114 = scmp.ne.s32.totalorder %s103, %s106
    %p115 = scmp.eq.s32.totalorder %s14, 1
    %p116 = por %p114, %p115
    %p117 = scmp.ne.s32.totalorder %s106, %s107
    %p118 = scmp.eq.s32.totalorder %s14, 0
    %p119 = por %p117, %p118
    %p120 = scmp.ne.s32.totalorder %s106, %s107
    %p121 = scmp.eq.s32.totalorder %s15, 1
    %p122 = por %p120, %p121
    %p124 = scmp.ne.s32.totalorder %s107, %s123
    %p125 = scmp.eq.s32.totalorder %s15, 0
    %p126 = por %p124, %p125
    %p127 = scmp.le.s32.totalorder 1, %s9
    %p128 = scmp.lt.s32.totalorder %s9, 3
    %p129 = pnand %p127, %p128
    %p130 = pneg %p129
    // Predicated region
    $region9: #{reference_encoder_forward.12} parent=5 // pred_check
      _
    $region10: #{reference_encoder_forward.12} parent=5 // pred_check_branch
      %132 = sbr.rel (%p129) target = $region12
    $region11: #{reference_encoder_forward.12} parent=5 // pred_region
      %s133 = ssub.s32 %s9, 1
      // Predicated region
      $region13: #{reference_encoder_forward.12} parent=11 // pred_check
        %p134 = pneg %p42
      $region14: #{reference_encoder_forward.12} parent=11 // pred_check_branch
        %136 = sbr.rel (%p134) target = $region16
      $region15: #{reference_encoder_forward.12} parent=11 // pred_region
        _
      $region16: #{reference_encoder_forward.12} parent=11 // pred_fallthru
        _
      // Predicated region
      $region17: #{reference_encoder_forward.12} parent=11 // pred_check
        %p137 = pneg %p63
      $region18: #{reference_encoder_forward.12} parent=11 // pred_check_branch
        %139 = sbr.rel (%p137) target = $region20
      $region19: #{reference_encoder_forward.12} parent=11 // pred_region
        _
      $region20: #{reference_encoder_forward.12} parent=11 // pred_fallthru
        _
    $region12: #{reference_encoder_forward.12} parent=5 // pred_fallthru
      _
    %p140 = scmp.lt.s32.totalorder %s9, 2
    // Predicated region
    $region21: #{reference_encoder_forward.12} parent=5 // pred_check
      %p141 = pneg %p140
    $region22: #{reference_encoder_forward.12} parent=5 // pred_check_branch
      %143 = sbr.rel (%p141) target = $region24
    $region23: #{reference_encoder_forward.12} parent=5 // pred_region
      // Predicated region
      $region25: #{reference_encoder_forward.12} parent=23 // pred_check
        %p144 = pneg %p85
      $region26: #{reference_encoder_forward.12} parent=23 // pred_check_branch
        %146 = sbr.rel (%p144) target = $region28
      $region27: #{reference_encoder_forward.12} parent=23 // pred_region
        %p147 = scmp.lt.s32.totalorder %s16, 1
        %s148 = scalar_select %p147, %s16, 1
        %p149 = scmp.lt.s32.totalorder %s17, 0
        %s150 = scalar_select %p149, %s17, 0
        %s151 = smul.addr %s148, 144
        %s152 = sadd.s32 %s150, %s151
        %s153 = smul.addr %s152, 4
        %s154 = scalar_lea.vmem %s2, %s153
      $region28: #{reference_encoder_forward.12} parent=23 // pred_fallthru
        _
    $region24: #{reference_encoder_forward.12} parent=5 // pred_fallthru
      _
    %p155 = scmp.le.s32.totalorder 1, %s9
    %p156 = scmp.lt.s32.totalorder %s9, 3
    %p157 = pnand %p155, %p156
    %p158 = pneg %p157
    // Predicated region
    $region29: #{reference_encoder_forward.12} parent=5 // pred_check
      _
    $region30: #{reference_encoder_forward.12} parent=5 // pred_check_branch
      %160 = sbr.rel (%p157) target = $region32
    $region31: #{reference_encoder_forward.12} parent=5 // pred_region
      %s161 = ssub.s32 %s9, 1
      %p162 = pneg %p42
      %p163 = pneg %p39
      %p164 = pneg %p63
      %p165 = pneg %p60
      %p166 = scmp.lt.s32.totalorder %s18, 1
      %s167 = scalar_select %p166, %s18, 1
      %p168 = scmp.lt.s32.totalorder %s19, 0
      %s169 = scalar_select %p168, %s19, 0
      %s170 = smul.addr %s167, 144
      %s171 = sadd.s32 %s169, %s170
      %s172 = smul.addr %s171, 4
      %s173 = scalar_lea.vmem %s2, %s172
      %p174 = pneg %p91
      %p175 = pneg %p88
      %p176 = pneg %p119
      %p177 = pneg %p116
      %p178 = scmp.lt.s32.totalorder %s18, 1
      %s179 = scalar_select %p178, %s18, 1
      %p180 = scmp.lt.s32.totalorder %s19, 0
      %s181 = scalar_select %p180, %s19, 0
      %s182 = smul.addr %s179, 16
      %s183 = sadd.s32 %s181, %s182
      %s184 = smul.addr %s183, 4
      %s185 = scalar_lea.vmem %s3, %s184
      %p186 = scmp.lt.s32.totalorder %s18, 1
      %s187 = scalar_select %p186, %s18, 1
      %p188 = scmp.lt.s32.totalorder %s19, 0
      %s189 = scalar_select %p188, %s19, 0
      %s190 = smul.addr %s187, 144
      %s191 = sadd.s32 %s189, %s190
      %s192 = smul.addr %s191, 4
      %s193 = scalar_lea.vmem %s2, %s192
      %p194 = scmp.lt.s32.totalorder %s18, 1
      %s195 = scalar_select %p194, %s18, 1
      %p196 = scmp.lt.s32.totalorder %s19, 0
      %s197 = scalar_select %p196, %s19, 0
      %s198 = smul.addr %s195, 16
      %s199 = sadd.s32 %s197, %s198
      %s200 = smul.addr %s199, 4
      %s201 = scalar_lea.vmem %s3, %s200
      %v203 = vld [vmem:[%s0] sm:$0xff]
      %v204 = vld [vmem:[%s0 + $0x8] sm:$0xff]
      %v205 = vld [vmem:[%s0 + $0x10] sm:$0xff]
      %v206 = vld [vmem:[%s0 + $0x18] sm:$0xff]
      %v207 = vld [vmem:[%s0 + $0x20] sm:$0xf]
      %v208 = vld [vmem:[%s0 + $0x24] sm:$0xff]
      %v209 = vld [vmem:[%s0 + $0x2c] sm:$0xff]
      %v210 = vld [vmem:[%s0 + $0x34] sm:$0xff]
      %v211 = vld [vmem:[%s0 + $0x3c] sm:$0xff]
      %v212 = vld [vmem:[%s0 + $0x44] sm:$0xf]
      %v213 = vld [vmem:[%s0 + $0x48] sm:$0xff]
      %v214 = vld [vmem:[%s0 + $0x50] sm:$0xff]
      %v215 = vld [vmem:[%s0 + $0x58] sm:$0xff]
      %v216 = vld [vmem:[%s0 + $0x60] sm:$0xff]
      %v217 = vld [vmem:[%s0 + $0x68] sm:$0xf]
      %v218 = vld [vmem:[%s0 + $0x6c] sm:$0xff]
      %v219 = vld [vmem:[%s0 + $0x74] sm:$0xff]
      %v220 = vld [vmem:[%s0 + $0x7c] sm:$0xff]
      %v221 = vld [vmem:[%s0 + $0x84] sm:$0xff]
      %v222 = vld [vmem:[%s0 + $0x8c] sm:$0xf]
      %v223 = vld [vmem:[%s0 + $0x90] sm:$0xff]
      %v224 = vld [vmem:[%s0 + $0x98] sm:$0xff]
      %v225 = vld [vmem:[%s0 + $0xa0] sm:$0xff]
      %v226 = vld [vmem:[%s0 + $0xa8] sm:$0xff]
      %v227 = vld [vmem:[%s0 + $0xb0] sm:$0xf]
      %v228 = vld [vmem:[%s0 + $0xb4] sm:$0xff]
      %v229 = vld [vmem:[%s0 + $0xbc] sm:$0xff]
      %v230 = vld [vmem:[%s0 + $0xc4] sm:$0xff]
      %v231 = vld [vmem:[%s0 + $0xcc] sm:$0xff]
      %v232 = vld [vmem:[%s0 + $0xd4] sm:$0xf]
      %v233 = vld [vmem:[%s0 + $0xd8] sm:$0xff]
      %v234 = vld [vmem:[%s0 + $0xe0] sm:$0xff]
      %v235 = vld [vmem:[%s0 + $0xe8] sm:$0xff]
      %v236 = vld [vmem:[%s0 + $0xf0] sm:$0xff]
      %v237 = vld [vmem:[%s0 + $0xf8] sm:$0xf]
      %v238 = vld [vmem:[%s0 + $0xfc] sm:$0xff]
      %v239 = vld [vmem:[%s0 + $0x104] sm:$0xff]
      %v240 = vld [vmem:[%s0 + $0x10c] sm:$0xff]
      %v241 = vld [vmem:[%s0 + $0x114] sm:$0xff]
      %v242 = vld [vmem:[%s0 + $0x11c] sm:$0xf]
      %v243 = vld [vmem:[%s0 + $0x120] sm:$0xff]
      %v244 = vld [vmem:[%s0 + $0x128] sm:$0xff]
      %v245 = vld [vmem:[%s0 + $0x130] sm:$0xff]
      %v246 = vld [vmem:[%s0 + $0x138] sm:$0xff]
      %v247 = vld [vmem:[%s0 + $0x140] sm:$0xf]
      %v248 = vld [vmem:[%s0 + $0x144] sm:$0xff]
      %v249 = vld [vmem:[%s0 + $0x14c] sm:$0xff]
      %v250 = vld [vmem:[%s0 + $0x154] sm:$0xff]
      %v251 = vld [vmem:[%s0 + $0x15c] sm:$0xff]
      %v252 = vld [vmem:[%s0 + $0x164] sm:$0xf]
      %v253 = vld [vmem:[%s0 + $0x168] sm:$0xff]
      %v254 = vld [vmem:[%s0 + $0x170] sm:$0xff]
      %v255 = vld [vmem:[%s0 + $0x178] sm:$0xff]
      %v256 = vld [vmem:[%s0 + $0x180] sm:$0xff]
      %v257 = vld [vmem:[%s0 + $0x188] sm:$0xf]
      %v258 = vld [vmem:[%s0 + $0x18c] sm:$0xff]
      %v259 = vld [vmem:[%s0 + $0x194] sm:$0xff]
      %v260 = vld [vmem:[%s0 + $0x19c] sm:$0xff]
      %v261 = vld [vmem:[%s0 + $0x1a4] sm:$0xff]
      %v262 = vld [vmem:[%s0 + $0x1ac] sm:$0xf]
      %v263 = vld [vmem:[%s0 + $0x1b0] sm:$0xff]
      %v264 = vld [vmem:[%s0 + $0x1b8] sm:$0xff]
      %v265 = vld [vmem:[%s0 + $0x1c0] sm:$0xff]
      %v266 = vld [vmem:[%s0 + $0x1c8] sm:$0xff]
      %v267 = vld [vmem:[%s0 + $0x1d0] sm:$0xf]
      %v268 = vld [vmem:[%s0 + $0x1d4] sm:$0xff]
      %v269 = vld [vmem:[%s0 + $0x1dc] sm:$0xff]
      %v270 = vld [vmem:[%s0 + $0x1e4] sm:$0xff]
      %v271 = vld [vmem:[%s0 + $0x1ec] sm:$0xff]
      %v272 = vld [vmem:[%s0 + $0x1f4] sm:$0xf]
      %v273 = vld [vmem:[%s0 + $0x1f8] sm:$0xff]
      %v274 = vld [vmem:[%s0 + $0x200] sm:$0xff]
      %v275 = vld [vmem:[%s0 + $0x208] sm:$0xff]
      %v276 = vld [vmem:[%s0 + $0x210] sm:$0xff]
      %v277 = vld [vmem:[%s0 + $0x218] sm:$0xf]
      %v278 = vld [vmem:[%s0 + $0x21c] sm:$0xff]
      %v279 = vld [vmem:[%s0 + $0x224] sm:$0xff]
      %v280 = vld [vmem:[%s0 + $0x22c] sm:$0xff]
      %v281 = vld [vmem:[%s0 + $0x234] sm:$0xff]
      %v282 = vld [vmem:[%s0 + $0x23c] sm:$0xf]
      %v283 = vld [vmem:[%s193] sm:$0xf]
      %v284 = vld [vmem:[%s193 + $0x4] sm:$0xf]
      %v285 = vld [vmem:[%s193 + $0x8] sm:$0xf]
      %v286 = vld [vmem:[%s193 + $0xc] sm:$0xf]
      %v287 = vld [vmem:[%s193 + $0x10] sm:$0xf]
      %v288 = vld [vmem:[%s193 + $0x14] sm:$0xf]
      %v289 = vld [vmem:[%s193 + $0x18] sm:$0xf]
      %v290 = vld [vmem:[%s193 + $0x1c] sm:$0xf]
      %v291 = vld [vmem:[%s193 + $0x20] sm:$0xf]
      %v292 = vld [vmem:[%s193 + $0x24] sm:$0xf]
      %v293 = vld [vmem:[%s193 + $0x28] sm:$0xf]
      %v294 = vld [vmem:[%s193 + $0x2c] sm:$0xf]
      %v295 = vld [vmem:[%s193 + $0x30] sm:$0xf]
      %v296 = vld [vmem:[%s193 + $0x34] sm:$0xf]
      %v297 = vld [vmem:[%s193 + $0x38] sm:$0xf]
      %v298 = vld [vmem:[%s193 + $0x3c] sm:$0xf]
      %v299 = vld [vmem:[%s193 + $0x40] sm:$0xf]
      %v300 = vld [vmem:[%s193 + $0x44] sm:$0xf]
      %v301 = vld [vmem:[%s193 + $0x48] sm:$0xf]
      %v302 = vld [vmem:[%s193 + $0x4c] sm:$0xf]
      %v303 = vld [vmem:[%s193 + $0x50] sm:$0xf]
      %v304 = vld [vmem:[%s193 + $0x54] sm:$0xf]
      %v305 = vld [vmem:[%s193 + $0x58] sm:$0xf]
      %v306 = vld [vmem:[%s193 + $0x5c] sm:$0xf]
      %v307 = vld [vmem:[%s193 + $0x60] sm:$0xf]
      %v308 = vld [vmem:[%s193 + $0x64] sm:$0xf]
      %v309 = vld [vmem:[%s193 + $0x68] sm:$0xf]
      %v310 = vld [vmem:[%s193 + $0x6c] sm:$0xf]
      %v311 = vld [vmem:[%s193 + $0x70] sm:$0xf]
      %v312 = vld [vmem:[%s193 + $0x74] sm:$0xf]
      %v313 = vld [vmem:[%s193 + $0x78] sm:$0xf]
      %v314 = vld [vmem:[%s193 + $0x7c] sm:$0xf]
      %v315 = vld [vmem:[%s193 + $0x80] sm:$0xf]
      %v316 = vld [vmem:[%s193 + $0x84] sm:$0xf]
      %v317 = vld [vmem:[%s193 + $0x88] sm:$0xf]
      %v318 = vld [vmem:[%s193 + $0x8c] sm:$0xf]
      %v319 = vld [vmem:[%s193 + $0x90] sm:$0xf]
      %v320 = vld [vmem:[%s193 + $0x94] sm:$0xf]
      %v321 = vld [vmem:[%s193 + $0x98] sm:$0xf]
      %v322 = vld [vmem:[%s193 + $0x9c] sm:$0xf]
      %v323 = vld [vmem:[%s193 + $0xa0] sm:$0xf]
      %v324 = vld [vmem:[%s193 + $0xa4] sm:$0xf]
      %v325 = vld [vmem:[%s193 + $0xa8] sm:$0xf]
      %v326 = vld [vmem:[%s193 + $0xac] sm:$0xf]
      %v327 = vld [vmem:[%s193 + $0xb0] sm:$0xf]
      %v328 = vld [vmem:[%s193 + $0xb4] sm:$0xf]
      %v329 = vld [vmem:[%s193 + $0xb8] sm:$0xf]
      %v330 = vld [vmem:[%s193 + $0xbc] sm:$0xf]
      %v331 = vld [vmem:[%s193 + $0xc0] sm:$0xf]
      %v332 = vld [vmem:[%s193 + $0xc4] sm:$0xf]
      %v333 = vld [vmem:[%s193 + $0xc8] sm:$0xf]
      %v334 = vld [vmem:[%s193 + $0xcc] sm:$0xf]
      %v335 = vld [vmem:[%s193 + $0xd0] sm:$0xf]
      %v336 = vld [vmem:[%s193 + $0xd4] sm:$0xf]
      %v337 = vld [vmem:[%s193 + $0xd8] sm:$0xf]
      %v338 = vld [vmem:[%s193 + $0xdc] sm:$0xf]
      %v339 = vld [vmem:[%s193 + $0xe0] sm:$0xf]
      %v340 = vld [vmem:[%s193 + $0xe4] sm:$0xf]
      %v341 = vld [vmem:[%s193 + $0xe8] sm:$0xf]
      %v342 = vld [vmem:[%s193 + $0xec] sm:$0xf]
      %v343 = vld [vmem:[%s193 + $0xf0] sm:$0xf]
      %v344 = vld [vmem:[%s193 + $0xf4] sm:$0xf]
      %v345 = vld [vmem:[%s193 + $0xf8] sm:$0xf]
      %v346 = vld [vmem:[%s193 + $0xfc] sm:$0xf]
      %v347 = vld [vmem:[%s193 + $0x100] sm:$0xf]
      %v348 = vld [vmem:[%s193 + $0x104] sm:$0xf]
      %v349 = vld [vmem:[%s193 + $0x108] sm:$0xf]
      %v350 = vld [vmem:[%s193 + $0x10c] sm:$0xf]
      %v351 = vld [vmem:[%s193 + $0x110] sm:$0xf]
      %v352 = vld [vmem:[%s193 + $0x114] sm:$0xf]
      %v353 = vld [vmem:[%s193 + $0x118] sm:$0xf]
      %v354 = vld [vmem:[%s193 + $0x11c] sm:$0xf]
      %v355 = vld [vmem:[%s193 + $0x120] sm:$0xf]
      %v356 = vld [vmem:[%s193 + $0x124] sm:$0xf]
      %v357 = vld [vmem:[%s193 + $0x128] sm:$0xf]
      %v358 = vld [vmem:[%s193 + $0x12c] sm:$0xf]
      %v359 = vld [vmem:[%s193 + $0x130] sm:$0xf]
      %v360 = vld [vmem:[%s193 + $0x134] sm:$0xf]
      %v361 = vld [vmem:[%s193 + $0x138] sm:$0xf]
      %v362 = vld [vmem:[%s193 + $0x13c] sm:$0xf]
      %v363 = vld [vmem:[%s193 + $0x140] sm:$0xf]
      %v364 = vld [vmem:[%s193 + $0x144] sm:$0xf]
      %v365 = vld [vmem:[%s193 + $0x148] sm:$0xf]
      %v366 = vld [vmem:[%s193 + $0x14c] sm:$0xf]
      %v367 = vld [vmem:[%s193 + $0x150] sm:$0xf]
      %v368 = vld [vmem:[%s193 + $0x154] sm:$0xf]
      %v369 = vld [vmem:[%s193 + $0x158] sm:$0xf]
      %v370 = vld [vmem:[%s193 + $0x15c] sm:$0xf]
      %v371 = vld [vmem:[%s193 + $0x160] sm:$0xf]
      %v372 = vld [vmem:[%s193 + $0x164] sm:$0xf]
      %v373 = vld [vmem:[%s193 + $0x168] sm:$0xf]
      %v374 = vld [vmem:[%s193 + $0x16c] sm:$0xf]
      %v375 = vld [vmem:[%s193 + $0x170] sm:$0xf]
      %v376 = vld [vmem:[%s193 + $0x174] sm:$0xf]
      %v377 = vld [vmem:[%s193 + $0x178] sm:$0xf]
      %v378 = vld [vmem:[%s193 + $0x17c] sm:$0xf]
      %v379 = vld [vmem:[%s193 + $0x180] sm:$0xf]
      %v380 = vld [vmem:[%s193 + $0x184] sm:$0xf]
      %v381 = vld [vmem:[%s193 + $0x188] sm:$0xf]
      %v382 = vld [vmem:[%s193 + $0x18c] sm:$0xf]
      %v383 = vld [vmem:[%s193 + $0x190] sm:$0xf]
      %v384 = vld [vmem:[%s193 + $0x194] sm:$0xf]
      %v385 = vld [vmem:[%s193 + $0x198] sm:$0xf]
      %v386 = vld [vmem:[%s193 + $0x19c] sm:$0xf]
      %v387 = vld [vmem:[%s193 + $0x1a0] sm:$0xf]
      %v388 = vld [vmem:[%s193 + $0x1a4] sm:$0xf]
      %v389 = vld [vmem:[%s193 + $0x1a8] sm:$0xf]
      %v390 = vld [vmem:[%s193 + $0x1ac] sm:$0xf]
      %v391 = vld [vmem:[%s193 + $0x1b0] sm:$0xf]
      %v392 = vld [vmem:[%s193 + $0x1b4] sm:$0xf]
      %v393 = vld [vmem:[%s193 + $0x1b8] sm:$0xf]
      %v394 = vld [vmem:[%s193 + $0x1bc] sm:$0xf]
      %v395 = vld [vmem:[%s193 + $0x1c0] sm:$0xf]
      %v396 = vld [vmem:[%s193 + $0x1c4] sm:$0xf]
      %v397 = vld [vmem:[%s193 + $0x1c8] sm:$0xf]
      %v398 = vld [vmem:[%s193 + $0x1cc] sm:$0xf]
      %v399 = vld [vmem:[%s193 + $0x1d0] sm:$0xf]
      %v400 = vld [vmem:[%s193 + $0x1d4] sm:$0xf]
      %v401 = vld [vmem:[%s193 + $0x1d8] sm:$0xf]
      %v402 = vld [vmem:[%s193 + $0x1dc] sm:$0xf]
      %v403 = vld [vmem:[%s193 + $0x1e0] sm:$0xf]
      %v404 = vld [vmem:[%s193 + $0x1e4] sm:$0xf]
      %v405 = vld [vmem:[%s193 + $0x1e8] sm:$0xf]
      %v406 = vld [vmem:[%s193 + $0x1ec] sm:$0xf]
      %v407 = vld [vmem:[%s193 + $0x1f0] sm:$0xf]
      %v408 = vld [vmem:[%s193 + $0x1f4] sm:$0xf]
      %v409 = vld [vmem:[%s193 + $0x1f8] sm:$0xf]
      %v410 = vld [vmem:[%s193 + $0x1fc] sm:$0xf]
      %v411 = vld [vmem:[%s193 + $0x200] sm:$0xf]
      %v412 = vld [vmem:[%s193 + $0x204] sm:$0xf]
      %v413 = vld [vmem:[%s193 + $0x208] sm:$0xf]
      %v414 = vld [vmem:[%s193 + $0x20c] sm:$0xf]
      %v415 = vld [vmem:[%s193 + $0x210] sm:$0xf]
      %v416 = vld [vmem:[%s193 + $0x214] sm:$0xf]
      %v417 = vld [vmem:[%s193 + $0x218] sm:$0xf]
      %v418 = vld [vmem:[%s193 + $0x21c] sm:$0xf]
      %v419 = vld [vmem:[%s193 + $0x220] sm:$0xf]
      %v420 = vld [vmem:[%s193 + $0x224] sm:$0xf]
      %v421 = vld [vmem:[%s193 + $0x228] sm:$0xf]
      %v422 = vld [vmem:[%s193 + $0x22c] sm:$0xf]
      %v423 = vld [vmem:[%s193 + $0x230] sm:$0xf]
      %v424 = vld [vmem:[%s193 + $0x234] sm:$0xf]
      %v425 = vld [vmem:[%s193 + $0x238] sm:$0xf]
      %v426 = vld [vmem:[%s193 + $0x23c] sm:$0xf]
      %v427 = vld [vmem:[%s1] sm:$0xff]
      %v428 = vld [vmem:[%s1 + $0x8] sm:$0xff]
      %v429 = vld [vmem:[%s1 + $0x10] sm:$0xff]
      %v430 = vld [vmem:[%s1 + $0x18] sm:$0xff]
      %v431 = vld [vmem:[%s1 + $0x20] sm:$0xff]
      %v432 = vld [vmem:[%s1 + $0x28] sm:$0xff]
      %v433 = vld [vmem:[%s1 + $0x30] sm:$0xff]
      %v434 = vld [vmem:[%s1 + $0x38] sm:$0xff]
      %v435 = vld [vmem:[%s1 + $0x40] sm:$0xff]
      %v436 = vld [vmem:[%s1 + $0x48] sm:$0xff]
      %v437 = vld [vmem:[%s1 + $0x50] sm:$0xff]
      %v438 = vld [vmem:[%s1 + $0x58] sm:$0xff]
      %v439 = vld [vmem:[%s1 + $0x60] sm:$0xff]
      %v440 = vld [vmem:[%s1 + $0x68] sm:$0xff]
      %v441 = vld [vmem:[%s1 + $0x70] sm:$0xff]
      %v442 = vld [vmem:[%s1 + $0x78] sm:$0xff]
      %444 = vset.pattern.permute.xlu0 0
      %445 = vperm.xlu0 %444, %v427
      %v446 = vpop.permute.xlu0 %445
      %449 = vset.pattern.permute.xlu0 0
      %450 = vperm.xlu0 %449, %v428
      %v451 = vpop.permute.xlu0 %450
      %454 = vset.pattern.permute.xlu0 0
      %455 = vperm.xlu0 %454, %v429
      %v456 = vpop.permute.xlu0 %455
      %459 = vset.pattern.permute.xlu0 0
      %460 = vperm.xlu0 %459, %v430
      %v461 = vpop.permute.xlu0 %460
      %464 = vset.pattern.permute.xlu0 0
      %465 = vperm.xlu0 %464, %v431
      %v466 = vpop.permute.xlu0 %465
      %469 = vset.pattern.permute.xlu0 0
      %470 = vperm.xlu0 %469, %v432
      %v471 = vpop.permute.xlu0 %470
      %474 = vset.pattern.permute.xlu0 0
      %475 = vperm.xlu0 %474, %v433
      %v476 = vpop.permute.xlu0 %475
      %479 = vset.pattern.permute.xlu0 0
      %480 = vperm.xlu0 %479, %v434
      %v481 = vpop.permute.xlu0 %480
      %484 = vset.pattern.permute.xlu0 0
      %485 = vperm.xlu0 %484, %v435
      %v486 = vpop.permute.xlu0 %485
      %489 = vset.pattern.permute.xlu0 0
      %490 = vperm.xlu0 %489, %v436
      %v491 = vpop.permute.xlu0 %490
      %494 = vset.pattern.permute.xlu0 0
      %495 = vperm.xlu0 %494, %v437
      %v496 = vpop.permute.xlu0 %495
      %499 = vset.pattern.permute.xlu0 0
      %500 = vperm.xlu0 %499, %v438
      %v501 = vpop.permute.xlu0 %500
      %504 = vset.pattern.permute.xlu0 0
      %505 = vperm.xlu0 %504, %v439
      %v506 = vpop.permute.xlu0 %505
      %509 = vset.pattern.permute.xlu0 0
      %510 = vperm.xlu0 %509, %v440
      %v511 = vpop.permute.xlu0 %510
      %514 = vset.pattern.permute.xlu0 0
      %515 = vperm.xlu0 %514, %v441
      %v516 = vpop.permute.xlu0 %515
      %519 = vset.pattern.permute.xlu0 0
      %520 = vperm.xlu0 %519, %v442
      %v521 = vpop.permute.xlu0 %520
      %v603 = vunpack.c.l.b16 %v203
      %v604 = vunpack.c.h.b16 %v203
      %v605 = vunpack.c.l.b16 %v204
      %v606 = vunpack.c.h.b16 %v204
      %v607 = vunpack.c.l.b16 %v205
      %v608 = vunpack.c.h.b16 %v205
      %v609 = vunpack.c.l.b16 %v206
      %v610 = vunpack.c.h.b16 %v206
      %v611 = vunpack.c.l.b16 %v207
      %v612 = vunpack.c.l.b16 %v208
      %v613 = vunpack.c.h.b16 %v208
      %v614 = vunpack.c.l.b16 %v209
      %v615 = vunpack.c.h.b16 %v209
      %v616 = vunpack.c.l.b16 %v210
      %v617 = vunpack.c.h.b16 %v210
      %v618 = vunpack.c.l.b16 %v211
      %v619 = vunpack.c.h.b16 %v211
      %v620 = vunpack.c.l.b16 %v212
      %v621 = vunpack.c.l.b16 %v213
      %v622 = vunpack.c.h.b16 %v213
      %v623 = vunpack.c.l.b16 %v214
      %v624 = vunpack.c.h.b16 %v214
      %v625 = vunpack.c.l.b16 %v215
      %v626 = vunpack.c.h.b16 %v215
      %v627 = vunpack.c.l.b16 %v216
      %v628 = vunpack.c.h.b16 %v216
      %v629 = vunpack.c.l.b16 %v217
      %v630 = vunpack.c.l.b16 %v218
      %v631 = vunpack.c.h.b16 %v218
      %v632 = vunpack.c.l.b16 %v219
      %v633 = vunpack.c.h.b16 %v219
      %v634 = vunpack.c.l.b16 %v220
      %v635 = vunpack.c.h.b16 %v220
      %v636 = vunpack.c.l.b16 %v221
      %v637 = vunpack.c.h.b16 %v221
      %v638 = vunpack.c.l.b16 %v222
      %v639 = vunpack.c.l.b16 %v223
      %v640 = vunpack.c.h.b16 %v223
      %v641 = vunpack.c.l.b16 %v224
      %v642 = vunpack.c.h.b16 %v224
      %v643 = vunpack.c.l.b16 %v225
      %v644 = vunpack.c.h.b16 %v225
      %v645 = vunpack.c.l.b16 %v226
      %v646 = vunpack.c.h.b16 %v226
      %v647 = vunpack.c.l.b16 %v227
      %v648 = vunpack.c.l.b16 %v228
      %v649 = vunpack.c.h.b16 %v228
      %v650 = vunpack.c.l.b16 %v229
      %v651 = vunpack.c.h.b16 %v229
      %v652 = vunpack.c.l.b16 %v230
      %v653 = vunpack.c.h.b16 %v230
      %v654 = vunpack.c.l.b16 %v231
      %v655 = vunpack.c.h.b16 %v231
      %v656 = vunpack.c.l.b16 %v232
      %v657 = vunpack.c.l.b16 %v233
      %v658 = vunpack.c.h.b16 %v233
      %v659 = vunpack.c.l.b16 %v234
      %v660 = vunpack.c.h.b16 %v234
      %v661 = vunpack.c.l.b16 %v235
      %v662 = vunpack.c.h.b16 %v235
      %v663 = vunpack.c.l.b16 %v236
      %v664 = vunpack.c.h.b16 %v236
      %v665 = vunpack.c.l.b16 %v237
      %v666 = vunpack.c.l.b16 %v238
      %v667 = vunpack.c.h.b16 %v238
      %v668 = vunpack.c.l.b16 %v239
      %v669 = vunpack.c.h.b16 %v239
      %v670 = vunpack.c.l.b16 %v240
      %v671 = vunpack.c.h.b16 %v240
      %v672 = vunpack.c.l.b16 %v241
      %v673 = vunpack.c.h.b16 %v241
      %v674 = vunpack.c.l.b16 %v242
      %v675 = vunpack.c.l.b16 %v243
      %v676 = vunpack.c.h.b16 %v243
      %v677 = vunpack.c.l.b16 %v244
      %v678 = vunpack.c.h.b16 %v244
      %v679 = vunpack.c.l.b16 %v245
      %v680 = vunpack.c.h.b16 %v245
      %v681 = vunpack.c.l.b16 %v246
      %v682 = vunpack.c.h.b16 %v246
      %v683 = vunpack.c.l.b16 %v247
      %v684 = vunpack.c.l.b16 %v248
      %v685 = vunpack.c.h.b16 %v248
      %v686 = vunpack.c.l.b16 %v249
      %v687 = vunpack.c.h.b16 %v249
      %v688 = vunpack.c.l.b16 %v250
      %v689 = vunpack.c.h.b16 %v250
      %v690 = vunpack.c.l.b16 %v251
      %v691 = vunpack.c.h.b16 %v251
      %v692 = vunpack.c.l.b16 %v252
      %v693 = vunpack.c.l.b16 %v253
      %v694 = vunpack.c.h.b16 %v253
      %v695 = vunpack.c.l.b16 %v254
      %v696 = vunpack.c.h.b16 %v254
      %v697 = vunpack.c.l.b16 %v255
      %v698 = vunpack.c.h.b16 %v255
      %v699 = vunpack.c.l.b16 %v256
      %v700 = vunpack.c.h.b16 %v256
      %v701 = vunpack.c.l.b16 %v257
      %v702 = vunpack.c.l.b16 %v258
      %v703 = vunpack.c.h.b16 %v258
      %v704 = vunpack.c.l.b16 %v259
      %v705 = vunpack.c.h.b16 %v259
      %v706 = vunpack.c.l.b16 %v260
      %v707 = vunpack.c.h.b16 %v260
      %v708 = vunpack.c.l.b16 %v261
      %v709 = vunpack.c.h.b16 %v261
      %v710 = vunpack.c.l.b16 %v262
      %v711 = vunpack.c.l.b16 %v263
      %v712 = vunpack.c.h.b16 %v263
      %v713 = vunpack.c.l.b16 %v264
      %v714 = vunpack.c.h.b16 %v264
      %v715 = vunpack.c.l.b16 %v265
      %v716 = vunpack.c.h.b16 %v265
      %v717 = vunpack.c.l.b16 %v266
      %v718 = vunpack.c.h.b16 %v266
      %v719 = vunpack.c.l.b16 %v267
      %v720 = vunpack.c.l.b16 %v268
      %v721 = vunpack.c.h.b16 %v268
      %v722 = vunpack.c.l.b16 %v269
      %v723 = vunpack.c.h.b16 %v269
      %v724 = vunpack.c.l.b16 %v270
      %v725 = vunpack.c.h.b16 %v270
      %v726 = vunpack.c.l.b16 %v271
      %v727 = vunpack.c.h.b16 %v271
      %v728 = vunpack.c.l.b16 %v272
      %v729 = vunpack.c.l.b16 %v273
      %v730 = vunpack.c.h.b16 %v273
      %v731 = vunpack.c.l.b16 %v274
      %v732 = vunpack.c.h.b16 %v274
      %v733 = vunpack.c.l.b16 %v275
      %v734 = vunpack.c.h.b16 %v275
      %v735 = vunpack.c.l.b16 %v276
      %v736 = vunpack.c.h.b16 %v276
      %v737 = vunpack.c.l.b16 %v277
      %v738 = vunpack.c.l.b16 %v278
      %v739 = vunpack.c.h.b16 %v278
      %v740 = vunpack.c.l.b16 %v279
      %v741 = vunpack.c.h.b16 %v279
      %v742 = vunpack.c.l.b16 %v280
      %v743 = vunpack.c.h.b16 %v280
      %v744 = vunpack.c.l.b16 %v281
      %v745 = vunpack.c.h.b16 %v281
      %v746 = vunpack.c.l.b16 %v282
      %v747 = vpack.c.b16 %v612, %v603
      %v748 = vpack.c.b16 %v613, %v604
      %v749 = vpack.c.b16 %v614, %v605
      %v750 = vpack.c.b16 %v615, %v606
      %v751 = vpack.c.b16 %v616, %v607
      %v752 = vpack.c.b16 %v617, %v608
      %v753 = vpack.c.b16 %v618, %v609
      %v754 = vpack.c.b16 %v619, %v610
      %v755 = vpack.c.b16 %v620, %v611
      %v756 = vpack.c.b16 %v630, %v621
      %v757 = vpack.c.b16 %v631, %v622
      %v758 = vpack.c.b16 %v632, %v623
      %v759 = vpack.c.b16 %v633, %v624
      %v760 = vpack.c.b16 %v634, %v625
      %v761 = vpack.c.b16 %v635, %v626
      %v762 = vpack.c.b16 %v636, %v627
      %v763 = vpack.c.b16 %v637, %v628
      %v764 = vpack.c.b16 %v638, %v629
      %v765 = vpack.c.b16 %v648, %v639
      %v766 = vpack.c.b16 %v649, %v640
      %v767 = vpack.c.b16 %v650, %v641
      %v768 = vpack.c.b16 %v651, %v642
      %v769 = vpack.c.b16 %v652, %v643
      %v770 = vpack.c.b16 %v653, %v644
      %v771 = vpack.c.b16 %v654, %v645
      %v772 = vpack.c.b16 %v655, %v646
      %v773 = vpack.c.b16 %v656, %v647
      %v774 = vpack.c.b16 %v666, %v657
      %v775 = vpack.c.b16 %v667, %v658
      %v776 = vpack.c.b16 %v668, %v659
      %v777 = vpack.c.b16 %v669, %v660
      %v778 = vpack.c.b16 %v670, %v661
      %v779 = vpack.c.b16 %v671, %v662
      %v780 = vpack.c.b16 %v672, %v663
      %v781 = vpack.c.b16 %v673, %v664
      %v782 = vpack.c.b16 %v674, %v665
      %v783 = vpack.c.b16 %v684, %v675
      %v784 = vpack.c.b16 %v685, %v676
      %v785 = vpack.c.b16 %v686, %v677
      %v786 = vpack.c.b16 %v687, %v678
      %v787 = vpack.c.b16 %v688, %v679
      %v788 = vpack.c.b16 %v689, %v680
      %v789 = vpack.c.b16 %v690, %v681
      %v790 = vpack.c.b16 %v691, %v682
      %v791 = vpack.c.b16 %v692, %v683
      %v792 = vpack.c.b16 %v702, %v693
      %v793 = vpack.c.b16 %v703, %v694
      %v794 = vpack.c.b16 %v704, %v695
      %v795 = vpack.c.b16 %v705, %v696
      %v796 = vpack.c.b16 %v706, %v697
      %v797 = vpack.c.b16 %v707, %v698
      %v798 = vpack.c.b16 %v708, %v699
      %v799 = vpack.c.b16 %v709, %v700
      %v800 = vpack.c.b16 %v710, %v701
      %v801 = vpack.c.b16 %v720, %v711
      %v802 = vpack.c.b16 %v721, %v712
      %v803 = vpack.c.b16 %v722, %v713
      %v804 = vpack.c.b16 %v723, %v714
      %v805 = vpack.c.b16 %v724, %v715
      %v806 = vpack.c.b16 %v725, %v716
      %v807 = vpack.c.b16 %v726, %v717
      %v808 = vpack.c.b16 %v727, %v718
      %v809 = vpack.c.b16 %v728, %v719
      %v810 = vpack.c.b16 %v738, %v729
      %v811 = vpack.c.b16 %v739, %v730
      %v812 = vpack.c.b16 %v740, %v731
      %v813 = vpack.c.b16 %v741, %v732
      %v814 = vpack.c.b16 %v742, %v733
      %v815 = vpack.c.b16 %v743, %v734
      %v816 = vpack.c.b16 %v744, %v735
      %v817 = vpack.c.b16 %v745, %v736
      %v818 = vpack.c.b16 %v746, %v737
      %v1035 = vunpack.c.l.b16 %v283
      %v1036 = vunpack.c.l.b16 %v284
      %v1037 = vunpack.c.l.b16 %v285
      %v1038 = vunpack.c.l.b16 %v286
      %v1039 = vunpack.c.l.b16 %v287
      %v1040 = vunpack.c.l.b16 %v288
      %v1041 = vunpack.c.l.b16 %v289
      %v1042 = vunpack.c.l.b16 %v290
      %v1043 = vunpack.c.l.b16 %v291
      %v1044 = vunpack.c.l.b16 %v292
      %v1045 = vunpack.c.l.b16 %v293
      %v1046 = vunpack.c.l.b16 %v294
      %v1047 = vunpack.c.l.b16 %v295
      %v1048 = vunpack.c.l.b16 %v296
      %v1049 = vunpack.c.l.b16 %v297
      %v1050 = vunpack.c.l.b16 %v298
      %v1051 = vunpack.c.l.b16 %v299
      %v1052 = vunpack.c.l.b16 %v300
      %v1053 = vunpack.c.l.b16 %v301
      %v1054 = vunpack.c.l.b16 %v302
      %v1055 = vunpack.c.l.b16 %v303
      %v1056 = vunpack.c.l.b16 %v304
      %v1057 = vunpack.c.l.b16 %v305
      %v1058 = vunpack.c.l.b16 %v306
      %v1059 = vunpack.c.l.b16 %v307
      %v1060 = vunpack.c.l.b16 %v308
      %v1061 = vunpack.c.l.b16 %v309
      %v1062 = vunpack.c.l.b16 %v310
      %v1063 = vunpack.c.l.b16 %v311
      %v1064 = vunpack.c.l.b16 %v312
      %v1065 = vunpack.c.l.b16 %v313
      %v1066 = vunpack.c.l.b16 %v314
      %v1067 = vunpack.c.l.b16 %v315
      %v1068 = vunpack.c.l.b16 %v316
      %v1069 = vunpack.c.l.b16 %v317
      %v1070 = vunpack.c.l.b16 %v318
      %v1071 = vunpack.c.l.b16 %v319
      %v1072 = vunpack.c.l.b16 %v320
      %v1073 = vunpack.c.l.b16 %v321
      %v1074 = vunpack.c.l.b16 %v322
      %v1075 = vunpack.c.l.b16 %v323
      %v1076 = vunpack.c.l.b16 %v324
      %v1077 = vunpack.c.l.b16 %v325
      %v1078 = vunpack.c.l.b16 %v326
      %v1079 = vunpack.c.l.b16 %v327
      %v1080 = vunpack.c.l.b16 %v328
      %v1081 = vunpack.c.l.b16 %v329
      %v1082 = vunpack.c.l.b16 %v330
      %v1083 = vunpack.c.l.b16 %v331
      %v1084 = vunpack.c.l.b16 %v332
      %v1085 = vunpack.c.l.b16 %v333
      %v1086 = vunpack.c.l.b16 %v334
      %v1087 = vunpack.c.l.b16 %v335
      %v1088 = vunpack.c.l.b16 %v336
      %v1089 = vunpack.c.l.b16 %v337
      %v1090 = vunpack.c.l.b16 %v338
      %v1091 = vunpack.c.l.b16 %v339
      %v1092 = vunpack.c.l.b16 %v340
      %v1093 = vunpack.c.l.b16 %v341
      %v1094 = vunpack.c.l.b16 %v342
      %v1095 = vunpack.c.l.b16 %v343
      %v1096 = vunpack.c.l.b16 %v344
      %v1097 = vunpack.c.l.b16 %v345
      %v1098 = vunpack.c.l.b16 %v346
      %v1099 = vunpack.c.l.b16 %v347
      %v1100 = vunpack.c.l.b16 %v348
      %v1101 = vunpack.c.l.b16 %v349
      %v1102 = vunpack.c.l.b16 %v350
      %v1103 = vunpack.c.l.b16 %v351
      %v1104 = vunpack.c.l.b16 %v352
      %v1105 = vunpack.c.l.b16 %v353
      %v1106 = vunpack.c.l.b16 %v354
      %v1107 = vunpack.c.l.b16 %v355
      %v1108 = vunpack.c.l.b16 %v356
      %v1109 = vunpack.c.l.b16 %v357
      %v1110 = vunpack.c.l.b16 %v358
      %v1111 = vunpack.c.l.b16 %v359
      %v1112 = vunpack.c.l.b16 %v360
      %v1113 = vunpack.c.l.b16 %v361
      %v1114 = vunpack.c.l.b16 %v362
      %v1115 = vunpack.c.l.b16 %v363
      %v1116 = vunpack.c.l.b16 %v364
      %v1117 = vunpack.c.l.b16 %v365
      %v1118 = vunpack.c.l.b16 %v366
      %v1119 = vunpack.c.l.b16 %v367
      %v1120 = vunpack.c.l.b16 %v368
      %v1121 = vunpack.c.l.b16 %v369
      %v1122 = vunpack.c.l.b16 %v370
      %v1123 = vunpack.c.l.b16 %v371
      %v1124 = vunpack.c.l.b16 %v372
      %v1125 = vunpack.c.l.b16 %v373
      %v1126 = vunpack.c.l.b16 %v374
      %v1127 = vunpack.c.l.b16 %v375
      %v1128 = vunpack.c.l.b16 %v376
      %v1129 = vunpack.c.l.b16 %v377
      %v1130 = vunpack.c.l.b16 %v378
      %v1131 = vunpack.c.l.b16 %v379
      %v1132 = vunpack.c.l.b16 %v380
      %v1133 = vunpack.c.l.b16 %v381
      %v1134 = vunpack.c.l.b16 %v382
      %v1135 = vunpack.c.l.b16 %v383
      %v1136 = vunpack.c.l.b16 %v384
      %v1137 = vunpack.c.l.b16 %v385
      %v1138 = vunpack.c.l.b16 %v386
      %v1139 = vunpack.c.l.b16 %v387
      %v1140 = vunpack.c.l.b16 %v388
      %v1141 = vunpack.c.l.b16 %v389
      %v1142 = vunpack.c.l.b16 %v390
      %v1143 = vunpack.c.l.b16 %v391
      %v1144 = vunpack.c.l.b16 %v392
      %v1145 = vunpack.c.l.b16 %v393
      %v1146 = vunpack.c.l.b16 %v394
      %v1147 = vunpack.c.l.b16 %v395
      %v1148 = vunpack.c.l.b16 %v396
      %v1149 = vunpack.c.l.b16 %v397
      %v1150 = vunpack.c.l.b16 %v398
      %v1151 = vunpack.c.l.b16 %v399
      %v1152 = vunpack.c.l.b16 %v400
      %v1153 = vunpack.c.l.b16 %v401
      %v1154 = vunpack.c.l.b16 %v402
      %v1155 = vunpack.c.l.b16 %v403
      %v1156 = vunpack.c.l.b16 %v404
      %v1157 = vunpack.c.l.b16 %v405
      %v1158 = vunpack.c.l.b16 %v406
      %v1159 = vunpack.c.l.b16 %v407
      %v1160 = vunpack.c.l.b16 %v408
      %v1161 = vunpack.c.l.b16 %v409
      %v1162 = vunpack.c.l.b16 %v410
      %v1163 = vunpack.c.l.b16 %v411
      %v1164 = vunpack.c.l.b16 %v412
      %v1165 = vunpack.c.l.b16 %v413
      %v1166 = vunpack.c.l.b16 %v414
      %v1167 = vunpack.c.l.b16 %v415
      %v1168 = vunpack.c.l.b16 %v416
      %v1169 = vunpack.c.l.b16 %v417
      %v1170 = vunpack.c.l.b16 %v418
      %v1171 = vunpack.c.l.b16 %v419
      %v1172 = vunpack.c.l.b16 %v420
      %v1173 = vunpack.c.l.b16 %v421
      %v1174 = vunpack.c.l.b16 %v422
      %v1175 = vunpack.c.l.b16 %v423
      %v1176 = vunpack.c.l.b16 %v424
      %v1177 = vunpack.c.l.b16 %v425
      %v1178 = vunpack.c.l.b16 %v426
      %v1179 = vpack.c.b16 %v1036, %v1035
      %v1180 = vpack.c.b16 %v1038, %v1037
      %v1181 = vpack.c.b16 %v1040, %v1039
      %v1182 = vpack.c.b16 %v1042, %v1041
      %v1183 = vpack.c.b16 %v1044, %v1043
      %v1184 = vpack.c.b16 %v1046, %v1045
      %v1185 = vpack.c.b16 %v1048, %v1047
      %v1186 = vpack.c.b16 %v1050, %v1049
      %v1187 = vpack.c.b16 %v1052, %v1051
      %v1188 = vpack.c.b16 %v1054, %v1053
      %v1189 = vpack.c.b16 %v1056, %v1055
      %v1190 = vpack.c.b16 %v1058, %v1057
      %v1191 = vpack.c.b16 %v1060, %v1059
      %v1192 = vpack.c.b16 %v1062, %v1061
      %v1193 = vpack.c.b16 %v1064, %v1063
      %v1194 = vpack.c.b16 %v1066, %v1065
      %v1195 = vpack.c.b16 %v1068, %v1067
      %v1196 = vpack.c.b16 %v1070, %v1069
      %v1197 = vpack.c.b16 %v1072, %v1071
      %v1198 = vpack.c.b16 %v1074, %v1073
      %v1199 = vpack.c.b16 %v1076, %v1075
      %v1200 = vpack.c.b16 %v1078, %v1077
      %v1201 = vpack.c.b16 %v1080, %v1079
      %v1202 = vpack.c.b16 %v1082, %v1081
      %v1203 = vpack.c.b16 %v1084, %v1083
      %v1204 = vpack.c.b16 %v1086, %v1085
      %v1205 = vpack.c.b16 %v1088, %v1087
      %v1206 = vpack.c.b16 %v1090, %v1089
      %v1207 = vpack.c.b16 %v1092, %v1091
      %v1208 = vpack.c.b16 %v1094, %v1093
      %v1209 = vpack.c.b16 %v1096, %v1095
      %v1210 = vpack.c.b16 %v1098, %v1097
      %v1211 = vpack.c.b16 %v1100, %v1099
      %v1212 = vpack.c.b16 %v1102, %v1101
      %v1213 = vpack.c.b16 %v1104, %v1103
      %v1214 = vpack.c.b16 %v1106, %v1105
      %v1215 = vpack.c.b16 %v1108, %v1107
      %v1216 = vpack.c.b16 %v1110, %v1109
      %v1217 = vpack.c.b16 %v1112, %v1111
      %v1218 = vpack.c.b16 %v1114, %v1113
      %v1219 = vpack.c.b16 %v1116, %v1115
      %v1220 = vpack.c.b16 %v1118, %v1117
      %v1221 = vpack.c.b16 %v1120, %v1119
      %v1222 = vpack.c.b16 %v1122, %v1121
      %v1223 = vpack.c.b16 %v1124, %v1123
      %v1224 = vpack.c.b16 %v1126, %v1125
      %v1225 = vpack.c.b16 %v1128, %v1127
      %v1226 = vpack.c.b16 %v1130, %v1129
      %v1227 = vpack.c.b16 %v1132, %v1131
      %v1228 = vpack.c.b16 %v1134, %v1133
      %v1229 = vpack.c.b16 %v1136, %v1135
      %v1230 = vpack.c.b16 %v1138, %v1137
      %v1231 = vpack.c.b16 %v1140, %v1139
      %v1232 = vpack.c.b16 %v1142, %v1141
      %v1233 = vpack.c.b16 %v1144, %v1143
      %v1234 = vpack.c.b16 %v1146, %v1145
      %v1235 = vpack.c.b16 %v1148, %v1147
      %v1236 = vpack.c.b16 %v1150, %v1149
      %v1237 = vpack.c.b16 %v1152, %v1151
      %v1238 = vpack.c.b16 %v1154, %v1153
      %v1239 = vpack.c.b16 %v1156, %v1155
      %v1240 = vpack.c.b16 %v1158, %v1157
      %v1241 = vpack.c.b16 %v1160, %v1159
      %v1242 = vpack.c.b16 %v1162, %v1161
      %v1243 = vpack.c.b16 %v1164, %v1163
      %v1244 = vpack.c.b16 %v1166, %v1165
      %v1245 = vpack.c.b16 %v1168, %v1167
      %v1246 = vpack.c.b16 %v1170, %v1169
      %v1247 = vpack.c.b16 %v1172, %v1171
      %v1248 = vpack.c.b16 %v1174, %v1173
      %v1249 = vpack.c.b16 %v1176, %v1175
      %v1250 = vpack.c.b16 %v1178, %v1177
      %1323 = vmatprep.subr.bf16.mxu0 0
      %1324 = vmatpush1.bf16.msra.mxu0 %v1186
      %1325 = vmatprep.subr.bf16.mxu0 0
      %1326 = vmatpush1.bf16.msra.mxu0 %v1185
      %1327 = vmatprep.subr.bf16.mxu0 0
      %1328 = vmatpush1.bf16.msra.mxu0 %v1184
      %1329 = vmatprep.subr.bf16.mxu0 0
      %1330 = vmatpush1.bf16.msra.mxu0 %v1183
      %1331 = vmatprep.subr.bf16.mxu0 0
      %1332 = vmatpush1.bf16.msra.mxu0 %v1182
      %1333 = vmatprep.subr.bf16.mxu0 0
      %1334 = vmatpush1.bf16.msra.mxu0 %v1181
      %1335 = vmatprep.subr.bf16.mxu0 0
      %1336 = vmatpush1.bf16.msra.mxu0 %v1180
      %1337 = vmatprep.subr.bf16.mxu0 0
      %1338 = vmatpush1.bf16.msra.mxu0 %v1179
      %1339 = vmatprep.subr.bf16.mxu0 0
      %1340 = vmatpush2.bf16.msra.mxu0 %v1194
      %1341 = vmatprep.subr.bf16.mxu0 0
      %1342 = vmatpush2.bf16.msra.mxu0 %v1193
      %1343 = vmatprep.subr.bf16.mxu0 0
      %1344 = vmatpush2.bf16.msra.mxu0 %v1192
      %1345 = vmatprep.subr.bf16.mxu0 0
      %1346 = vmatpush2.bf16.msra.mxu0 %v1191
      %1347 = vmatprep.subr.bf16.mxu0 0
      %1348 = vmatpush2.bf16.msra.mxu0 %v1190
      %1349 = vmatprep.subr.bf16.mxu0 0
      %1350 = vmatpush2.bf16.msra.mxu0 %v1189
      %1351 = vmatprep.subr.bf16.mxu0 0
      %1352 = vmatpush2.bf16.msra.mxu0 %v1188
      %1353 = vmatprep.subr.bf16.mxu0 0
      %1354 = vmatpush2.bf16.msra.mxu0 %v1187
      %1355 = vmatprep.mubr.bf16.mxu0 %v748
      %1356 = vmatmul.mubr.bf16.gmra.mxu0 %v747
      %v1357 = vpop.f32.mrf.mxu0
      %v1358 = vadd.f32 %v446, %v1357
      %v1359 = vpop.f32.mrf.mxu0
      %v1360 = vpop.f32.mrf.mxu0
      %v1361 = vadd.f32 %v451, %v1360
      %v1362 = vpop.f32.mrf.mxu0
      %1363 = vmatprep.mubr.bf16.mxu0 %v757
      %1364 = vmatmul.mubr.bf16.gmra.mxu0 %v756
      %v1365 = vpop.f32.mrf.mxu0
      %v1366 = vadd.f32 %v456, %v1365
      %v1367 = vpop.f32.mrf.mxu0
      %v1368 = vpop.f32.mrf.mxu0
      %v1369 = vadd.f32 %v461, %v1368
      %v1370 = vpop.f32.mrf.mxu0
      %1371 = vmatprep.mubr.bf16.mxu0 %v766
      %1372 = vmatmul.mubr.bf16.gmra.mxu0 %v765
      %v1373 = vpop.f32.mrf.mxu0
      %v1374 = vadd.f32 %v466, %v1373
      %v1375 = vpop.f32.mrf.mxu0
      %v1376 = vpop.f32.mrf.mxu0
      %v1377 = vadd.f32 %v471, %v1376
      %v1378 = vpop.f32.mrf.mxu0
      %1379 = vmatprep.mubr.bf16.mxu0 %v775
      %1380 = vmatmul.mubr.bf16.gmra.mxu0 %v774
      %v1381 = vpop.f32.mrf.mxu0
      %v1382 = vadd.f32 %v476, %v1381
      %v1383 = vpop.f32.mrf.mxu0
      %v1384 = vpop.f32.mrf.mxu0
      %v1385 = vadd.f32 %v481, %v1384
      %v1386 = vpop.f32.mrf.mxu0
      %1387 = vmatprep.mubr.bf16.mxu0 %v784
      %1388 = vmatmul.mubr.bf16.gmra.mxu0 %v783
      %v1389 = vpop.f32.mrf.mxu0
      %v1390 = vadd.f32 %v486, %v1389
      %v1391 = vpop.f32.mrf.mxu0
      %v1392 = vpop.f32.mrf.mxu0
      %v1393 = vadd.f32 %v491, %v1392
      %v1394 = vpop.f32.mrf.mxu0
      %1395 = vmatprep.mubr.bf16.mxu0 %v793
      %1396 = vmatmul.mubr.bf16.gmra.mxu0 %v792
      %v1397 = vpop.f32.mrf.mxu0
      %v1398 = vadd.f32 %v496, %v1397
      %v1399 = vpop.f32.mrf.mxu0
      %v1400 = vpop.f32.mrf.mxu0
      %v1401 = vadd.f32 %v501, %v1400
      %v1402 = vpop.f32.mrf.mxu0
      %1403 = vmatprep.mubr.bf16.mxu0 %v802
      %1404 = vmatmul.mubr.bf16.gmra.mxu0 %v801
      %v1405 = vpop.f32.mrf.mxu0
      %v1406 = vadd.f32 %v506, %v1405
      %v1407 = vpop.f32.mrf.mxu0
      %v1408 = vpop.f32.mrf.mxu0
      %v1409 = vadd.f32 %v511, %v1408
      %v1410 = vpop.f32.mrf.mxu0
      %1411 = vmatprep.mubr.bf16.mxu0 %v811
      %1412 = vmatmul.mubr.bf16.gmra.mxu0 %v810
      %v1413 = vpop.f32.mrf.mxu0
      %v1414 = vadd.f32 %v516, %v1413
      %v1415 = vpop.f32.mrf.mxu0
      %v1416 = vpop.f32.mrf.mxu0
      %v1417 = vadd.f32 %v521, %v1416
      %v1418 = vpop.f32.mrf.mxu0
      %1419 = vdwg.mxu0
      %1420 = vmatprep.subr.bf16.mxu0 0
      %1421 = vmatpush1.bf16.msra.mxu0 %v1202
      %1422 = vmatprep.subr.bf16.mxu0 0
      %1423 = vmatpush1.bf16.msra.mxu0 %v1201
      %1424 = vmatprep.subr.bf16.mxu0 0
      %1425 = vmatpush1.bf16.msra.mxu0 %v1200
      %1426 = vmatprep.subr.bf16.mxu0 0
      %1427 = vmatpush1.bf16.msra.mxu0 %v1199
      %1428 = vmatprep.subr.bf16.mxu0 0
      %1429 = vmatpush1.bf16.msra.mxu0 %v1198
      %1430 = vmatprep.subr.bf16.mxu0 0
      %1431 = vmatpush1.bf16.msra.mxu0 %v1197
      %1432 = vmatprep.subr.bf16.mxu0 0
      %1433 = vmatpush1.bf16.msra.mxu0 %v1196
      %1434 = vmatprep.subr.bf16.mxu0 0
      %1435 = vmatpush1.bf16.msra.mxu0 %v1195
      %1436 = vmatprep.subr.bf16.mxu0 0
      %1437 = vmatpush2.bf16.msra.mxu0 %v1210
      %1438 = vmatprep.subr.bf16.mxu0 0
      %1439 = vmatpush2.bf16.msra.mxu0 %v1209
      %1440 = vmatprep.subr.bf16.mxu0 0
      %1441 = vmatpush2.bf16.msra.mxu0 %v1208
      %1442 = vmatprep.subr.bf16.mxu0 0
      %1443 = vmatpush2.bf16.msra.mxu0 %v1207
      %1444 = vmatprep.subr.bf16.mxu0 0
      %1445 = vmatpush2.bf16.msra.mxu0 %v1206
      %1446 = vmatprep.subr.bf16.mxu0 0
      %1447 = vmatpush2.bf16.msra.mxu0 %v1205
      %1448 = vmatprep.subr.bf16.mxu0 0
      %1449 = vmatpush2.bf16.msra.mxu0 %v1204
      %1450 = vmatprep.subr.bf16.mxu0 0
      %1451 = vmatpush2.bf16.msra.mxu0 %v1203
      %1452 = vmatprep.mubr.bf16.mxu0 %v750
      %1453 = vmatmul.mubr.bf16.gmra.mxu0 %v749
      %v1454 = vpop.f32.mrf.mxu0
      %v1455 = vadd.f32 %v1358, %v1454
      %v1456 = vpop.f32.mrf.mxu0
      %v1457 = vpop.f32.mrf.mxu0
      %v1458 = vadd.f32 %v1361, %v1457
      %v1459 = vpop.f32.mrf.mxu0
      %1460 = vmatprep.mubr.bf16.mxu0 %v759
      %1461 = vmatmul.mubr.bf16.gmra.mxu0 %v758
      %v1462 = vpop.f32.mrf.mxu0
      %v1463 = vadd.f32 %v1366, %v1462
      %v1464 = vpop.f32.mrf.mxu0
      %v1465 = vpop.f32.mrf.mxu0
      %v1466 = vadd.f32 %v1369, %v1465
      %v1467 = vpop.f32.mrf.mxu0
      %1468 = vmatprep.mubr.bf16.mxu0 %v768
      %1469 = vmatmul.mubr.bf16.gmra.mxu0 %v767
      %v1470 = vpop.f32.mrf.mxu0
      %v1471 = vadd.f32 %v1374, %v1470
      %v1472 = vpop.f32.mrf.mxu0
      %v1473 = vpop.f32.mrf.mxu0
      %v1474 = vadd.f32 %v1377, %v1473
      %v1475 = vpop.f32.mrf.mxu0
      %1476 = vmatprep.mubr.bf16.mxu0 %v777
      %1477 = vmatmul.mubr.bf16.gmra.mxu0 %v776
      %v1478 = vpop.f32.mrf.mxu0
      %v1479 = vadd.f32 %v1382, %v1478
      %v1480 = vpop.f32.mrf.mxu0
      %v1481 = vpop.f32.mrf.mxu0
      %v1482 = vadd.f32 %v1385, %v1481
      %v1483 = vpop.f32.mrf.mxu0
      %1484 = vmatprep.mubr.bf16.mxu0 %v786
      %1485 = vmatmul.mubr.bf16.gmra.mxu0 %v785
      %v1486 = vpop.f32.mrf.mxu0
      %v1487 = vadd.f32 %v1390, %v1486
      %v1488 = vpop.f32.mrf.mxu0
      %v1489 = vpop.f32.mrf.mxu0
      %v1490 = vadd.f32 %v1393, %v1489
      %v1491 = vpop.f32.mrf.mxu0
      %1492 = vmatprep.mubr.bf16.mxu0 %v795
      %1493 = vmatmul.mubr.bf16.gmra.mxu0 %v794
      %v1494 = vpop.f32.mrf.mxu0
      %v1495 = vadd.f32 %v1398, %v1494
      %v1496 = vpop.f32.mrf.mxu0
      %v1497 = vpop.f32.mrf.mxu0
      %v1498 = vadd.f32 %v1401, %v1497
      %v1499 = vpop.f32.mrf.mxu0
      %1500 = vmatprep.mubr.bf16.mxu0 %v804
      %1501 = vmatmul.mubr.bf16.gmra.mxu0 %v803
      %v1502 = vpop.f32.mrf.mxu0
      %v1503 = vadd.f32 %v1406, %v1502
      %v1504 = vpop.f32.mrf.mxu0
      %v1505 = vpop.f32.mrf.mxu0
      %v1506 = vadd.f32 %v1409, %v1505
      %v1507 = vpop.f32.mrf.mxu0
      %1508 = vmatprep.mubr.bf16.mxu0 %v813
      %1509 = vmatmul.mubr.bf16.gmra.mxu0 %v812
      %v1510 = vpop.f32.mrf.mxu0
      %v1511 = vadd.f32 %v1414, %v1510
      %v1512 = vpop.f32.mrf.mxu0
      %v1513 = vpop.f32.mrf.mxu0
      %v1514 = vadd.f32 %v1417, %v1513
      %v1515 = vpop.f32.mrf.mxu0
      %1516 = vdwg.mxu0
      %1517 = vmatprep.subr.bf16.mxu0 0
      %1518 = vmatpush1.bf16.msra.mxu0 %v1218
      %1519 = vmatprep.subr.bf16.mxu0 0
      %1520 = vmatpush1.bf16.msra.mxu0 %v1217
      %1521 = vmatprep.subr.bf16.mxu0 0
      %1522 = vmatpush1.bf16.msra.mxu0 %v1216
      %1523 = vmatprep.subr.bf16.mxu0 0
      %1524 = vmatpush1.bf16.msra.mxu0 %v1215
      %1525 = vmatprep.subr.bf16.mxu0 0
      %1526 = vmatpush1.bf16.msra.mxu0 %v1214
      %1527 = vmatprep.subr.bf16.mxu0 0
      %1528 = vmatpush1.bf16.msra.mxu0 %v1213
      %1529 = vmatprep.subr.bf16.mxu0 0
      %1530 = vmatpush1.bf16.msra.mxu0 %v1212
      %1531 = vmatprep.subr.bf16.mxu0 0
      %1532 = vmatpush1.bf16.msra.mxu0 %v1211
      %1533 = vmatprep.subr.bf16.mxu0 0
      %1534 = vmatpush2.bf16.msra.mxu0 %v1226
      %1535 = vmatprep.subr.bf16.mxu0 0
      %1536 = vmatpush2.bf16.msra.mxu0 %v1225
      %1537 = vmatprep.subr.bf16.mxu0 0
      %1538 = vmatpush2.bf16.msra.mxu0 %v1224
      %1539 = vmatprep.subr.bf16.mxu0 0
      %1540 = vmatpush2.bf16.msra.mxu0 %v1223
      %1541 = vmatprep.subr.bf16.mxu0 0
      %1542 = vmatpush2.bf16.msra.mxu0 %v1222
      %1543 = vmatprep.subr.bf16.mxu0 0
      %1544 = vmatpush2.bf16.msra.mxu0 %v1221
      %1545 = vmatprep.subr.bf16.mxu0 0
      %1546 = vmatpush2.bf16.msra.mxu0 %v1220
      %1547 = vmatprep.subr.bf16.mxu0 0
      %1548 = vmatpush2.bf16.msra.mxu0 %v1219
      %1549 = vmatprep.mubr.bf16.mxu0 %v752
      %1550 = vmatmul.mubr.bf16.gmra.mxu0 %v751
      %v1551 = vpop.f32.mrf.mxu0
      %v1552 = vadd.f32 %v1455, %v1551
      %v1553 = vpop.f32.mrf.mxu0
      %v1554 = vpop.f32.mrf.mxu0
      %v1555 = vadd.f32 %v1458, %v1554
      %v1556 = vpop.f32.mrf.mxu0
      %1557 = vmatprep.mubr.bf16.mxu0 %v761
      %1558 = vmatmul.mubr.bf16.gmra.mxu0 %v760
      %v1559 = vpop.f32.mrf.mxu0
      %v1560 = vadd.f32 %v1463, %v1559
      %v1561 = vpop.f32.mrf.mxu0
      %v1562 = vpop.f32.mrf.mxu0
      %v1563 = vadd.f32 %v1466, %v1562
      %v1564 = vpop.f32.mrf.mxu0
      %1565 = vmatprep.mubr.bf16.mxu0 %v770
      %1566 = vmatmul.mubr.bf16.gmra.mxu0 %v769
      %v1567 = vpop.f32.mrf.mxu0
      %v1568 = vadd.f32 %v1471, %v1567
      %v1569 = vpop.f32.mrf.mxu0
      %v1570 = vpop.f32.mrf.mxu0
      %v1571 = vadd.f32 %v1474, %v1570
      %v1572 = vpop.f32.mrf.mxu0
      %1573 = vmatprep.mubr.bf16.mxu0 %v779
      %1574 = vmatmul.mubr.bf16.gmra.mxu0 %v778
      %v1575 = vpop.f32.mrf.mxu0
      %v1576 = vadd.f32 %v1479, %v1575
      %v1577 = vpop.f32.mrf.mxu0
      %v1578 = vpop.f32.mrf.mxu0
      %v1579 = vadd.f32 %v1482, %v1578
      %v1580 = vpop.f32.mrf.mxu0
      %1581 = vmatprep.mubr.bf16.mxu0 %v788
      %1582 = vmatmul.mubr.bf16.gmra.mxu0 %v787
      %v1583 = vpop.f32.mrf.mxu0
      %v1584 = vadd.f32 %v1487, %v1583
      %v1585 = vpop.f32.mrf.mxu0
      %v1586 = vpop.f32.mrf.mxu0
      %v1587 = vadd.f32 %v1490, %v1586
      %v1588 = vpop.f32.mrf.mxu0
      %1589 = vmatprep.mubr.bf16.mxu0 %v797
      %1590 = vmatmul.mubr.bf16.gmra.mxu0 %v796
      %v1591 = vpop.f32.mrf.mxu0
      %v1592 = vadd.f32 %v1495, %v1591
      %v1593 = vpop.f32.mrf.mxu0
      %v1594 = vpop.f32.mrf.mxu0
      %v1595 = vadd.f32 %v1498, %v1594
      %v1596 = vpop.f32.mrf.mxu0
      %1597 = vmatprep.mubr.bf16.mxu0 %v806
      %1598 = vmatmul.mubr.bf16.gmra.mxu0 %v805
      %v1599 = vpop.f32.mrf.mxu0
      %v1600 = vadd.f32 %v1503, %v1599
      %v1601 = vpop.f32.mrf.mxu0
      %v1602 = vpop.f32.mrf.mxu0
      %v1603 = vadd.f32 %v1506, %v1602
      %v1604 = vpop.f32.mrf.mxu0
      %1605 = vmatprep.mubr.bf16.mxu0 %v815
      %1606 = vmatmul.mubr.bf16.gmra.mxu0 %v814
      %v1607 = vpop.f32.mrf.mxu0
      %v1608 = vadd.f32 %v1511, %v1607
      %v1609 = vpop.f32.mrf.mxu0
      %v1610 = vpop.f32.mrf.mxu0
      %v1611 = vadd.f32 %v1514, %v1610
      %v1612 = vpop.f32.mrf.mxu0
      %1613 = vdwg.mxu0
      %1614 = vmatprep.subr.bf16.mxu0 0
      %1615 = vmatpush1.bf16.msra.mxu0 %v1234
      %1616 = vmatprep.subr.bf16.mxu0 0
      %1617 = vmatpush1.bf16.msra.mxu0 %v1233
      %1618 = vmatprep.subr.bf16.mxu0 0
      %1619 = vmatpush1.bf16.msra.mxu0 %v1232
      %1620 = vmatprep.subr.bf16.mxu0 0
      %1621 = vmatpush1.bf16.msra.mxu0 %v1231
      %1622 = vmatprep.subr.bf16.mxu0 0
      %1623 = vmatpush1.bf16.msra.mxu0 %v1230
      %1624 = vmatprep.subr.bf16.mxu0 0
      %1625 = vmatpush1.bf16.msra.mxu0 %v1229
      %1626 = vmatprep.subr.bf16.mxu0 0
      %1627 = vmatpush1.bf16.msra.mxu0 %v1228
      %1628 = vmatprep.subr.bf16.mxu0 0
      %1629 = vmatpush1.bf16.msra.mxu0 %v1227
      %1630 = vmatprep.subr.bf16.mxu0 0
      %1631 = vmatpush2.bf16.msra.mxu0 %v1242
      %1632 = vmatprep.subr.bf16.mxu0 0
      %1633 = vmatpush2.bf16.msra.mxu0 %v1241
      %1634 = vmatprep.subr.bf16.mxu0 0
      %1635 = vmatpush2.bf16.msra.mxu0 %v1240
      %1636 = vmatprep.subr.bf16.mxu0 0
      %1637 = vmatpush2.bf16.msra.mxu0 %v1239
      %1638 = vmatprep.subr.bf16.mxu0 0
      %1639 = vmatpush2.bf16.msra.mxu0 %v1238
      %1640 = vmatprep.subr.bf16.mxu0 0
      %1641 = vmatpush2.bf16.msra.mxu0 %v1237
      %1642 = vmatprep.subr.bf16.mxu0 0
      %1643 = vmatpush2.bf16.msra.mxu0 %v1236
      %1644 = vmatprep.subr.bf16.mxu0 0
      %1645 = vmatpush2.bf16.msra.mxu0 %v1235
      %1646 = vmatprep.mubr.bf16.mxu0 %v754
      %1647 = vmatmul.mubr.bf16.gmra.mxu0 %v753
      %v1648 = vpop.f32.mrf.mxu0
      %v1649 = vadd.f32 %v1552, %v1648
      %v1650 = vpop.f32.mrf.mxu0
      %v1651 = vpop.f32.mrf.mxu0
      %v1652 = vadd.f32 %v1555, %v1651
      %v1653 = vpop.f32.mrf.mxu0
      %1654 = vmatprep.mubr.bf16.mxu0 %v763
      %1655 = vmatmul.mubr.bf16.gmra.mxu0 %v762
      %v1656 = vpop.f32.mrf.mxu0
      %v1657 = vadd.f32 %v1560, %v1656
      %v1658 = vpop.f32.mrf.mxu0
      %v1659 = vpop.f32.mrf.mxu0
      %v1660 = vadd.f32 %v1563, %v1659
      %v1661 = vpop.f32.mrf.mxu0
      %1662 = vmatprep.mubr.bf16.mxu0 %v772
      %1663 = vmatmul.mubr.bf16.gmra.mxu0 %v771
      %v1664 = vpop.f32.mrf.mxu0
      %v1665 = vadd.f32 %v1568, %v1664
      %v1666 = vpop.f32.mrf.mxu0
      %v1667 = vpop.f32.mrf.mxu0
      %v1668 = vadd.f32 %v1571, %v1667
      %v1669 = vpop.f32.mrf.mxu0
      %1670 = vmatprep.mubr.bf16.mxu0 %v781
      %1671 = vmatmul.mubr.bf16.gmra.mxu0 %v780
      %v1672 = vpop.f32.mrf.mxu0
      %v1673 = vadd.f32 %v1576, %v1672
      %v1674 = vpop.f32.mrf.mxu0
      %v1675 = vpop.f32.mrf.mxu0
      %v1676 = vadd.f32 %v1579, %v1675
      %v1677 = vpop.f32.mrf.mxu0
      %1678 = vmatprep.mubr.bf16.mxu0 %v790
      %1679 = vmatmul.mubr.bf16.gmra.mxu0 %v789
      %v1680 = vpop.f32.mrf.mxu0
      %v1681 = vadd.f32 %v1584, %v1680
      %v1682 = vpop.f32.mrf.mxu0
      %v1683 = vpop.f32.mrf.mxu0
      %v1684 = vadd.f32 %v1587, %v1683
      %v1685 = vpop.f32.mrf.mxu0
      %1686 = vmatprep.mubr.bf16.mxu0 %v799
      %1687 = vmatmul.mubr.bf16.gmra.mxu0 %v798
      %v1688 = vpop.f32.mrf.mxu0
      %v1689 = vadd.f32 %v1592, %v1688
      %v1690 = vpop.f32.mrf.mxu0
      %v1691 = vpop.f32.mrf.mxu0
      %v1692 = vadd.f32 %v1595, %v1691
      %v1693 = vpop.f32.mrf.mxu0
      %1694 = vmatprep.mubr.bf16.mxu0 %v808
      %1695 = vmatmul.mubr.bf16.gmra.mxu0 %v807
      %v1696 = vpop.f32.mrf.mxu0
      %v1697 = vadd.f32 %v1600, %v1696
      %v1698 = vpop.f32.mrf.mxu0
      %v1699 = vpop.f32.mrf.mxu0
      %v1700 = vadd.f32 %v1603, %v1699
      %v1701 = vpop.f32.mrf.mxu0
      %1702 = vmatprep.mubr.bf16.mxu0 %v817
      %1703 = vmatmul.mubr.bf16.gmra.mxu0 %v816
      %v1704 = vpop.f32.mrf.mxu0
      %v1705 = vadd.f32 %v1608, %v1704
      %v1706 = vpop.f32.mrf.mxu0
      %v1707 = vpop.f32.mrf.mxu0
      %v1708 = vadd.f32 %v1611, %v1707
      %v1709 = vpop.f32.mrf.mxu0
      %1710 = vdwg.mxu0
      %1711 = vmatprep.subr.bf16.mxu0 0
      %1712 = vmatpush1.bf16.msra.mxu0 %v1250
      %1713 = vmatprep.subr.bf16.mxu0 0
      %1714 = vmatpush1.bf16.msra.mxu0 %v1249
      %1715 = vmatprep.subr.bf16.mxu0 0
      %1716 = vmatpush1.bf16.msra.mxu0 %v1248
      %1717 = vmatprep.subr.bf16.mxu0 0
      %1718 = vmatpush1.bf16.msra.mxu0 %v1247
      %1719 = vmatprep.subr.bf16.mxu0 0
      %1720 = vmatpush1.bf16.msra.mxu0 %v1246
      %1721 = vmatprep.subr.bf16.mxu0 0
      %1722 = vmatpush1.bf16.msra.mxu0 %v1245
      %1723 = vmatprep.subr.bf16.mxu0 0
      %1724 = vmatpush1.bf16.msra.mxu0 %v1244
      %1725 = vmatprep.subr.bf16.mxu0 0
      %1726 = vmatpush1.bf16.msra.mxu0 %v1243
      %1727 = vmatprep.subr.bf16.mxu0 0
      %1728 = vmatpush2.bf16.msra.mxu0 0
      %1729 = vmatprep.subr.bf16.mxu0 0
      %1730 = vmatpush2.bf16.msra.mxu0 0
      %1731 = vmatprep.subr.bf16.mxu0 0
      %1732 = vmatpush2.bf16.msra.mxu0 0
      %1733 = vmatprep.subr.bf16.mxu0 0
      %1734 = vmatpush2.bf16.msra.mxu0 0
      %1735 = vmatprep.subr.bf16.mxu0 0
      %1736 = vmatpush2.bf16.msra.mxu0 0
      %1737 = vmatprep.subr.bf16.mxu0 0
      %1738 = vmatpush2.bf16.msra.mxu0 0
      %1739 = vmatprep.subr.bf16.mxu0 0
      %1740 = vmatpush2.bf16.msra.mxu0 0
      %1741 = vmatprep.subr.bf16.mxu0 0
      %1742 = vmatpush2.bf16.msra.mxu0 0
      %1743 = vmatprep.mubr.bf16.mxu0 0
      %1744 = vmatmul.mubr.bf16.gmra.mxu0 %v755
      %v1745 = vpop.f32.mrf.mxu0
      %v1746 = vadd.f32 %v1649, %v1745
      %v1747 = vpop.f32.mrf.mxu0
      %v1748 = vpop.f32.mrf.mxu0
      %v1749 = vadd.f32 %v1652, %v1748
      %v1750 = vpop.f32.mrf.mxu0
      %1751 = vmatprep.mubr.bf16.mxu0 0
      %1752 = vmatmul.mubr.bf16.gmra.mxu0 %v764
      %v1753 = vpop.f32.mrf.mxu0
      %v1754 = vadd.f32 %v1657, %v1753
      %v1755 = vpop.f32.mrf.mxu0
      %v1756 = vpop.f32.mrf.mxu0
      %v1757 = vadd.f32 %v1660, %v1756
      %v1758 = vpop.f32.mrf.mxu0
      %1759 = vmatprep.mubr.bf16.mxu0 0
      %1760 = vmatmul.mubr.bf16.gmra.mxu0 %v773
      %v1761 = vpop.f32.mrf.mxu0
      %v1762 = vadd.f32 %v1665, %v1761
      %v1763 = vpop.f32.mrf.mxu0
      %v1764 = vpop.f32.mrf.mxu0
      %v1765 = vadd.f32 %v1668, %v1764
      %v1766 = vpop.f32.mrf.mxu0
      %1767 = vmatprep.mubr.bf16.mxu0 0
      %1768 = vmatmul.mubr.bf16.gmra.mxu0 %v782
      %v1769 = vpop.f32.mrf.mxu0
      %v1770 = vadd.f32 %v1673, %v1769
      %v1771 = vpop.f32.mrf.mxu0
      %v1772 = vpop.f32.mrf.mxu0
      %v1773 = vadd.f32 %v1676, %v1772
      %v1774 = vpop.f32.mrf.mxu0
      %1775 = vmatprep.mubr.bf16.mxu0 0
      %1776 = vmatmul.mubr.bf16.gmra.mxu0 %v791
      %v1777 = vpop.f32.mrf.mxu0
      %v1778 = vadd.f32 %v1681, %v1777
      %v1779 = vpop.f32.mrf.mxu0
      %v1780 = vpop.f32.mrf.mxu0
      %v1781 = vadd.f32 %v1684, %v1780
      %v1782 = vpop.f32.mrf.mxu0
      %1783 = vmatprep.mubr.bf16.mxu0 0
      %1784 = vmatmul.mubr.bf16.gmra.mxu0 %v800
      %v1785 = vpop.f32.mrf.mxu0
      %v1786 = vadd.f32 %v1689, %v1785
      %v1787 = vpop.f32.mrf.mxu0
      %v1788 = vpop.f32.mrf.mxu0
      %v1789 = vadd.f32 %v1692, %v1788
      %v1790 = vpop.f32.mrf.mxu0
      %1791 = vmatprep.mubr.bf16.mxu0 0
      %1792 = vmatmul.mubr.bf16.gmra.mxu0 %v809
      %v1793 = vpop.f32.mrf.mxu0
      %v1794 = vadd.f32 %v1697, %v1793
      %v1795 = vpop.f32.mrf.mxu0
      %v1796 = vpop.f32.mrf.mxu0
      %v1797 = vadd.f32 %v1700, %v1796
      %v1798 = vpop.f32.mrf.mxu0
      %1799 = vmatprep.mubr.bf16.mxu0 0
      %1800 = vmatmul.mubr.bf16.gmra.mxu0 %v818
      %v1801 = vpop.f32.mrf.mxu0
      %v1802 = vadd.f32 %v1705, %v1801
      %v1803 = vpop.f32.mrf.mxu0
      %v1804 = vpop.f32.mrf.mxu0
      %v1805 = vadd.f32 %v1708, %v1804
      %v1806 = vpop.f32.mrf.mxu0
      %1807 = vdwg.mxu0
      %v1808 = vmax.f32 %v1746, 0.0
      %v1809 = vmax.f32 %v1749, 0.0
      %v1810 = vmax.f32 %v1754, 0.0
      %v1811 = vmax.f32 %v1757, 0.0
      %v1812 = vmax.f32 %v1762, 0.0
      %v1813 = vmax.f32 %v1765, 0.0
      %v1814 = vmax.f32 %v1770, 0.0
      %v1815 = vmax.f32 %v1773, 0.0
      %v1816 = vmax.f32 %v1778, 0.0
      %v1817 = vmax.f32 %v1781, 0.0
      %v1818 = vmax.f32 %v1786, 0.0
      %v1819 = vmax.f32 %v1789, 0.0
      %v1820 = vmax.f32 %v1794, 0.0
      %v1821 = vmax.f32 %v1797, 0.0
      %v1822 = vmax.f32 %v1802, 0.0
      %v1823 = vmax.f32 %v1805, 0.0
      %v1824 = vpack.c.bf16 %v1809, %v1808
      %v1825 = vpack.c.bf16 %v1811, %v1810
      %v1826 = vpack.c.bf16 %v1813, %v1812
      %v1827 = vpack.c.bf16 %v1815, %v1814
      %v1828 = vpack.c.bf16 %v1817, %v1816
      %v1829 = vpack.c.bf16 %v1819, %v1818
      %v1830 = vpack.c.bf16 %v1821, %v1820
      %v1831 = vpack.c.bf16 %v1823, %v1822
      %v1840 = vunpack.c.l.b16 %v1824
      %v1841 = vunpack.c.h.b16 %v1824
      %v1842 = vunpack.c.l.b16 %v1825
      %v1843 = vunpack.c.h.b16 %v1825
      %v1844 = vunpack.c.l.b16 %v1826
      %v1845 = vunpack.c.h.b16 %v1826
      %v1846 = vunpack.c.l.b16 %v1827
      %v1847 = vunpack.c.h.b16 %v1827
      %v1848 = vunpack.c.l.b16 %v1828
      %v1849 = vunpack.c.h.b16 %v1828
      %v1850 = vunpack.c.l.b16 %v1829
      %v1851 = vunpack.c.h.b16 %v1829
      %v1852 = vunpack.c.l.b16 %v1830
      %v1853 = vunpack.c.h.b16 %v1830
      %v1854 = vunpack.c.l.b16 %v1831
      %v1855 = vunpack.c.h.b16 %v1831
      %v1856 = vpack.c.b16 %v1840, %v1840
      %v1857 = vpack.c.b16 %v1841, %v1841
      %v1858 = vpack.c.b16 %v1842, %v1842
      %v1859 = vpack.c.b16 %v1843, %v1843
      %v1860 = vpack.c.b16 %v1844, %v1844
      %v1861 = vpack.c.b16 %v1845, %v1845
      %v1862 = vpack.c.b16 %v1846, %v1846
      %v1863 = vpack.c.b16 %v1847, %v1847
      %v1864 = vpack.c.b16 %v1848, %v1848
      %v1865 = vpack.c.b16 %v1849, %v1849
      %v1866 = vpack.c.b16 %v1850, %v1850
      %v1867 = vpack.c.b16 %v1851, %v1851
      %v1868 = vpack.c.b16 %v1852, %v1852
      %v1869 = vpack.c.b16 %v1853, %v1853
      %v1870 = vpack.c.b16 %v1854, %v1854
      %v1871 = vpack.c.b16 %v1855, %v1855
      %1888 = vst [vmem:[%s201] sm:$0xf] %v1856
      %1889 = vst [vmem:[%s201 + $0x4] sm:$0xf] %v1857
      %1890 = vst [vmem:[%s201 + $0x8] sm:$0xf] %v1858
      %1891 = vst [vmem:[%s201 + $0xc] sm:$0xf] %v1859
      %1892 = vst [vmem:[%s201 + $0x10] sm:$0xf] %v1860
      %1893 = vst [vmem:[%s201 + $0x14] sm:$0xf] %v1861
      %1894 = vst [vmem:[%s201 + $0x18] sm:$0xf] %v1862
      %1895 = vst [vmem:[%s201 + $0x1c] sm:$0xf] %v1863
      %1896 = vst [vmem:[%s201 + $0x20] sm:$0xf] %v1864
      %1897 = vst [vmem:[%s201 + $0x24] sm:$0xf] %v1865
      %1898 = vst [vmem:[%s201 + $0x28] sm:$0xf] %v1866
      %1899 = vst [vmem:[%s201 + $0x2c] sm:$0xf] %v1867
      %1900 = vst [vmem:[%s201 + $0x30] sm:$0xf] %v1868
      %1901 = vst [vmem:[%s201 + $0x34] sm:$0xf] %v1869
      %1902 = vst [vmem:[%s201 + $0x38] sm:$0xf] %v1870
      %1903 = vst [vmem:[%s201 + $0x3c] sm:$0xf] %v1871
      %p1904 = scmp.lt.s32.totalorder %s18, 1
      %s1905 = scalar_select %p1904, %s18, 1
      %p1906 = scmp.lt.s32.totalorder %s19, 0
      %s1907 = scalar_select %p1906, %s19, 0
      %s1908 = smul.addr %s1905, 16
      %s1909 = sadd.s32 %s1907, %s1908
      %s1910 = smul.addr %s1909, 4
      %s1911 = scalar_lea.vmem %s3, %s1910
      // Predicated region
      $region33: #{reference_encoder_forward.12} parent=31 // pred_check
        %p1912 = pneg %p116
      $region34: #{reference_encoder_forward.12} parent=31 // pred_check_branch
        %1914 = sbr.rel (%p1912) target = $region36
      $region35: #{reference_encoder_forward.12} parent=31 // pred_region
        _
      $region36: #{reference_encoder_forward.12} parent=31 // pred_fallthru
        _
    $region32: #{reference_encoder_forward.12} parent=5 // pred_fallthru
      _
    %p1915 = scmp.le.s32.totalorder 2, %s9
    // Predicated region
    $region37: #{reference_encoder_forward.12} parent=5 // pred_check
      %p1916 = pneg %p1915
    $region38: #{reference_encoder_forward.12} parent=5 // pred_check_branch
      %1918 = sbr.rel (%p1916) target = $region40
    $region39: #{reference_encoder_forward.12} parent=5 // pred_region
      %s1919 = ssub.s32 %s9, 2
      // Predicated region
      $region41: #{reference_encoder_forward.12} parent=39 // pred_check
        %p1920 = pneg %p122
      $region42: #{reference_encoder_forward.12} parent=39 // pred_check_branch
        %1922 = sbr.rel (%p1920) target = $region44
      $region43: #{reference_encoder_forward.12} parent=39 // pred_region
        %p1923 = scmp.lt.s32.totalorder %s20, 1
        %s1924 = scalar_select %p1923, %s20, 1
        %p1925 = scmp.lt.s32.totalorder %s21, 0
        %s1926 = scalar_select %p1925, %s21, 0
        %s1927 = smul.addr %s1924, 16
        %s1928 = sadd.s32 %s1926, %s1927
        %s1929 = smul.addr %s1928, 4
        %s1930 = scalar_lea.vmem %s3, %s1929
      $region44: #{reference_encoder_forward.12} parent=39 // pred_fallthru
        _
    $region40: #{reference_encoder_forward.12} parent=5 // pred_fallthru
      _
  $region6: #{reference_encoder_forward.12} parent=0 // loop_footer
    %s13 = sadd.s32 1, %s9
  $region7: #{reference_encoder_forward.12} parent=0 // loop_footer_branch
    %8 = sbr.rel target = $region3
  $region8: #{reference_encoder_forward.12} parent=0 // loop_exit
    _

// kernel: reference_encoder_forward.13
$region0: #{reference_encoder_forward.13}
  #allocation0 [shape = 'u32[]', space=smem, size = 0x4, offset = 0x4, fixed_abs, tag = 'smem constant byte address 0x4 - core index']
  #allocation1 [shape = 'u32[144,128]{1,0:T(1,128)}', space=vmem, size = 0x12000, scoped, tag = 'internal scratch']
  #allocation2 [shape = 'f32[2,128]{1,0:T(2,128)}', space=vmem, size = 0x400, scoped, tag = 'scratch operand']
  %s0 = inlined_call_operand.vmem [shape: bf16[16,128], index: 0, kind: input, shape index: {}]
  %s1 = inlined_call_operand.vmem [shape: f32[128,384], index: 1, kind: input, shape index: {}]
  %s2 = inlined_call_operand.vmem [shape: f32[128,384], index: 2, kind: input, shape index: {}]
  %s3 = inlined_call_operand.vmem [shape: f32[1,384], index: 3, kind: input, shape index: {}]
  %s4 = inlined_call_operand.vmem [shape: f32[1,384], index: 4, kind: input, shape index: {}]
  %s5 = inlined_call_operand.vmem [shape: f32[128,32], index: 5, kind: input, shape index: {}]
  %s6 = inlined_call_operand.vmem [shape: f32[1,32], index: 6, kind: input, shape index: {}]
  %s7 = inlined_call_operand.hbm [shape: f32[2,32], index: 7, kind: output, shape index: {}]
  %s8 = sld [smem:[#allocation0]]
  $region46: #{reference_encoder_forward.13} parent=0
    _
  %s10 = ssub.s32 1, %s8
  %s11 = scalar_select 0, %s10, %s8
  $region1: #{reference_encoder_forward.13} parent=0
    #allocation3 [shape = 'u8[1024]{0}', space=vmem, size = 0x400, scoped, tag = 'output window, operand 0, single buffered']
    #allocation4 [shape = 's32[1]{0}', space=sflag, size = 0x4, scoped, tag = 'scoped memory for reference_encoder_forward.13']
    %12 = vsyncpa [#allocation4], 0
    // Predicated region
    $region2: #{reference_encoder_forward.13} parent=1 // pred_check
      _
    $region3: #{reference_encoder_forward.13} parent=1 // pred_check_branch
      %14 = sbr.rel (0) target = $region5
    $region4: #{reference_encoder_forward.13} parent=1 // pred_region
      _
    $region5: #{reference_encoder_forward.13} parent=1 // pred_fallthru
      _
    // Predicated region
    $region6: #{reference_encoder_forward.13} parent=1 // pred_check
      _
    $region7: #{reference_encoder_forward.13} parent=1 // pred_check_branch
      %16 = sbr.rel (0) target = $region9
    $region8: #{reference_encoder_forward.13} parent=1 // pred_region
      _
    $region9: #{reference_encoder_forward.13} parent=1 // pred_fallthru
      _
    // Predicated region
    $region10: #{reference_encoder_forward.13} parent=1 // pred_check
      _
    $region11: #{reference_encoder_forward.13} parent=1 // pred_check_branch
      %18 = sbr.rel (0) target = $region13
    $region12: #{reference_encoder_forward.13} parent=1 // pred_region
      _
    $region13: #{reference_encoder_forward.13} parent=1 // pred_fallthru
      _
    // Predicated region
    $region14: #{reference_encoder_forward.13} parent=1 // pred_check
      _
    $region15: #{reference_encoder_forward.13} parent=1 // pred_check_branch
      %20 = sbr.rel (0) target = $region17
    $region16: #{reference_encoder_forward.13} parent=1 // pred_region
      _
    $region17: #{reference_encoder_forward.13} parent=1 // pred_fallthru
      _
    // Predicated region
    $region18: #{reference_encoder_forward.13} parent=1 // pred_check
      _
    $region19: #{reference_encoder_forward.13} parent=1 // pred_check_branch
      %22 = sbr.rel (0) target = $region21
    $region20: #{reference_encoder_forward.13} parent=1 // pred_region
      _
    $region21: #{reference_encoder_forward.13} parent=1 // pred_fallthru
      _
    // Predicated region
    $region22: #{reference_encoder_forward.13} parent=1 // pred_check
      _
    $region23: #{reference_encoder_forward.13} parent=1 // pred_check_branch
      %24 = sbr.rel (0) target = $region25
    $region24: #{reference_encoder_forward.13} parent=1 // pred_region
      _
    $region25: #{reference_encoder_forward.13} parent=1 // pred_fallthru
      _
    // Predicated region
    $region26: #{reference_encoder_forward.13} parent=1 // pred_check
      _
    $region27: #{reference_encoder_forward.13} parent=1 // pred_check_branch
      %26 = sbr.rel (0) target = $region29
    $region28: #{reference_encoder_forward.13} parent=1 // pred_region
      _
    $region29: #{reference_encoder_forward.13} parent=1 // pred_fallthru
      _
    %p27 = scmp.eq.s32.totalorder 0, 0
    // Predicated region
    $region30: #{reference_encoder_forward.13} parent=1 // pred_check
      %p28 = pneg %p27
    $region31: #{reference_encoder_forward.13} parent=1 // pred_check_branch
      %30 = sbr.rel (%p28) target = $region33
    $region32: #{reference_encoder_forward.13} parent=1 // pred_region
      %31 = vst [vmem:[#allocation2] sm:$0x3] 0.0
    $region33: #{reference_encoder_forward.13} parent=1 // pred_fallthru
      _
    %v32 = vld [vmem:[%s0] sm:$0xf]
    %v33 = vld [vmem:[%s0 + $0x4] sm:$0xf]
    %v34 = vunpack.c.l.bf16 %v32
    %v35 = vunpack.c.l.bf16 %v33
    %v36 = vld [vmem:[%s1] sm:$0xff]
    %v37 = vld [vmem:[%s1 + $0x8] sm:$0xff]
    %v38 = vld [vmem:[%s1 + $0x10] sm:$0xff]
    %v39 = vld [vmem:[%s1 + $0x18] sm:$0xff]
    %v40 = vld [vmem:[%s1 + $0x20] sm:$0xff]
    %v41 = vld [vmem:[%s1 + $0x28] sm:$0xff]
    %v42 = vld [vmem:[%s1 + $0x30] sm:$0xff]
    %v43 = vld [vmem:[%s1 + $0x38] sm:$0xff]
    %v44 = vld [vmem:[%s1 + $0x40] sm:$0xff]
    %v45 = vld [vmem:[%s1 + $0x48] sm:$0xff]
    %v46 = vld [vmem:[%s1 + $0x50] sm:$0xff]
    %v47 = vld [vmem:[%s1 + $0x58] sm:$0xff]
    %v48 = vld [vmem:[%s1 + $0x60] sm:$0xff]
    %v49 = vld [vmem:[%s1 + $0x68] sm:$0xff]
    %v50 = vld [vmem:[%s1 + $0x70] sm:$0xff]
    %v51 = vld [vmem:[%s1 + $0x78] sm:$0xff]
    %v52 = vld [vmem:[%s1 + $0x80] sm:$0xff]
    %v53 = vld [vmem:[%s1 + $0x88] sm:$0xff]
    %v54 = vld [vmem:[%s1 + $0x90] sm:$0xff]
    %v55 = vld [vmem:[%s1 + $0x98] sm:$0xff]
    %v56 = vld [vmem:[%s1 + $0xa0] sm:$0xff]
    %v57 = vld [vmem:[%s1 + $0xa8] sm:$0xff]
    %v58 = vld [vmem:[%s1 + $0xb0] sm:$0xff]
    %v59 = vld [vmem:[%s1 + $0xb8] sm:$0xff]
    %v60 = vld [vmem:[%s1 + $0xc0] sm:$0xff]
    %v61 = vld [vmem:[%s1 + $0xc8] sm:$0xff]
    %v62 = vld [vmem:[%s1 + $0xd0] sm:$0xff]
    %v63 = vld [vmem:[%s1 + $0xd8] sm:$0xff]
    %v64 = vld [vmem:[%s1 + $0xe0] sm:$0xff]
    %v65 = vld [vmem:[%s1 + $0xe8] sm:$0xff]
    %v66 = vld [vmem:[%s1 + $0xf0] sm:$0xff]
    %v67 = vld [vmem:[%s1 + $0xf8] sm:$0xff]
    %v68 = vld [vmem:[%s1 + $0x100] sm:$0xff]
    %v69 = vld [vmem:[%s1 + $0x108] sm:$0xff]
    %v70 = vld [vmem:[%s1 + $0x110] sm:$0xff]
    %v71 = vld [vmem:[%s1 + $0x118] sm:$0xff]
    %v72 = vld [vmem:[%s1 + $0x120] sm:$0xff]
    %v73 = vld [vmem:[%s1 + $0x128] sm:$0xff]
    %v74 = vld [vmem:[%s1 + $0x130] sm:$0xff]
    %v75 = vld [vmem:[%s1 + $0x138] sm:$0xff]
    %v76 = vld [vmem:[%s1 + $0x140] sm:$0xff]
    %v77 = vld [vmem:[%s1 + $0x148] sm:$0xff]
    %v78 = vld [vmem:[%s1 + $0x150] sm:$0xff]
    %v79 = vld [vmem:[%s1 + $0x158] sm:$0xff]
    %v80 = vld [vmem:[%s1 + $0x160] sm:$0xff]
    %v81 = vld [vmem:[%s1 + $0x168] sm:$0xff]
    %v82 = vld [vmem:[%s1 + $0x170] sm:$0xff]
    %v83 = vld [vmem:[%s1 + $0x178] sm:$0xff]
    %v84 = vld [vmem:[%s3] sm:$0x7]
    %v86 = vlaneseq
    %v87 = vshrl.u32 %v86, 7
    %v88 = vsub.s32 0, %v87
    %v89 = vrot.slane %v84, %v88
    %v90 = vlaneseq
    %v91 = vshrl.u32 %v90, 7
    %v92 = vsub.s32 1, %v91
    %v93 = vrot.slane %v84, %v92
    %v94 = vlaneseq
    %v95 = vshrl.u32 %v94, 7
    %v96 = vsub.s32 2, %v95
    %v97 = vrot.slane %v84, %v96
    %101 = vmatprep.subr.mxu0 %v82
    %102 = vmatpush1.msra.mxu0 %v81
    %103 = vmatprep.subr.mxu0 %v79
    %104 = vmatpush1.msra.mxu0 %v78
    %105 = vmatprep.subr.mxu0 %v76
    %106 = vmatpush1.msra.mxu0 %v75
    %107 = vmatprep.subr.mxu0 %v73
    %108 = vmatpush1.msra.mxu0 %v72
    %109 = vmatprep.subr.mxu0 %v70
    %110 = vmatpush1.msra.mxu0 %v69
    %111 = vmatprep.subr.mxu0 %v67
    %112 = vmatpush1.msra.mxu0 %v66
    %113 = vmatprep.subr.mxu0 %v64
    %114 = vmatpush1.msra.mxu0 %v63
    %115 = vmatprep.subr.mxu0 %v61
    %116 = vmatpush1.msra.mxu0 %v60
    %117 = vmatprep.subr.mxu0 %v58
    %118 = vmatpush1.msra.mxu0 %v57
    %119 = vmatprep.subr.mxu0 %v55
    %120 = vmatpush1.msra.mxu0 %v54
    %121 = vmatprep.subr.mxu0 %v52
    %122 = vmatpush1.msra.mxu0 %v51
    %123 = vmatprep.subr.mxu0 %v49
    %124 = vmatpush1.msra.mxu0 %v48
    %125 = vmatprep.subr.mxu0 %v46
    %126 = vmatpush1.msra.mxu0 %v45
    %127 = vmatprep.subr.mxu0 %v43
    %128 = vmatpush1.msra.mxu0 %v42
    %129 = vmatprep.subr.mxu0 %v40
    %130 = vmatpush1.msra.mxu0 %v39
    %131 = vmatprep.subr.mxu0 %v37
    %132 = vmatpush1.msra.mxu0 %v36
    %133 = vmatprep.subr.mxu0 0.0
    %134 = vmatpush2.msra.mxu0 0.0
    %135 = vmatprep.subr.mxu0 0.0
    %136 = vmatpush2.msra.mxu0 0.0
    %137 = vmatprep.subr.mxu0 0.0
    %138 = vmatpush2.msra.mxu0 0.0
    %139 = vmatprep.subr.mxu0 0.0
    %140 = vmatpush2.msra.mxu0 0.0
    %141 = vmatprep.subr.mxu0 0.0
    %142 = vmatpush2.msra.mxu0 0.0
    %143 = vmatprep.subr.mxu0 0.0
    %144 = vmatpush2.msra.mxu0 0.0
    %145 = vmatprep.subr.mxu0 0.0
    %146 = vmatpush2.msra.mxu0 0.0
    %147 = vmatprep.subr.mxu0 0.0
    %148 = vmatpush2.msra.mxu0 0.0
    %149 = vmatprep.subr.mxu0 0.0
    %150 = vmatpush2.msra.mxu0 0.0
    %151 = vmatprep.subr.mxu0 0.0
    %152 = vmatpush2.msra.mxu0 0.0
    %153 = vmatprep.subr.mxu0 0.0
    %154 = vmatpush2.msra.mxu0 0.0
    %155 = vmatprep.subr.mxu0 0.0
    %156 = vmatpush2.msra.mxu0 0.0
    %157 = vmatprep.subr.mxu0 0.0
    %158 = vmatpush2.msra.mxu0 0.0
    %159 = vmatprep.subr.mxu0 0.0
    %160 = vmatpush2.msra.mxu0 0.0
    %161 = vmatprep.subr.mxu0 0.0
    %162 = vmatpush2.msra.mxu0 0.0
    %163 = vmatprep.subr.mxu0 0.0
    %164 = vmatpush2.msra.mxu0 0.0
    %165 = vmatprep.mubr.f32.mxu0 0.0
    %166 = vmatmul.mubr.f32.gmra.mxu0 %v34
    %v167 = vpop.f32.mrf.mxu0
    %v168 = vadd.f32 %v89, %v167
    %v169 = vpop.f32.mrf.mxu0
    %v170 = vadd.f32 %v93, %v169
    %171 = vmatprep.mubr.f32.mxu0 0.0
    %172 = vmatmul.mubr.f32.gmra.mxu0 %v35
    %v173 = vpop.f32.mrf.mxu0
    %v174 = vadd.f32 %v89, %v173
    %v175 = vpop.f32.mrf.mxu0
    %v176 = vadd.f32 %v93, %v175
    %177 = vdwg.mxu0
    %178 = vmatprep.subr.mxu0 0.0
    %179 = vmatpush1.msra.mxu0 %v83
    %180 = vmatprep.subr.mxu0 0.0
    %181 = vmatpush1.msra.mxu0 %v80
    %182 = vmatprep.subr.mxu0 0.0
    %183 = vmatpush1.msra.mxu0 %v77
    %184 = vmatprep.subr.mxu0 0.0
    %185 = vmatpush1.msra.mxu0 %v74
    %186 = vmatprep.subr.mxu0 0.0
    %187 = vmatpush1.msra.mxu0 %v71
    %188 = vmatprep.subr.mxu0 0.0
    %189 = vmatpush1.msra.mxu0 %v68
    %190 = vmatprep.subr.mxu0 0.0
    %191 = vmatpush1.msra.mxu0 %v65
    %192 = vmatprep.subr.mxu0 0.0
    %193 = vmatpush1.msra.mxu0 %v62
    %194 = vmatprep.subr.mxu0 0.0
    %195 = vmatpush1.msra.mxu0 %v59
    %196 = vmatprep.subr.mxu0 0.0
    %197 = vmatpush1.msra.mxu0 %v56
    %198 = vmatprep.subr.mxu0 0.0
    %199 = vmatpush1.msra.mxu0 %v53
    %200 = vmatprep.subr.mxu0 0.0
    %201 = vmatpush1.msra.mxu0 %v50
    %202 = vmatprep.subr.mxu0 0.0
    %203 = vmatpush1.msra.mxu0 %v47
    %204 = vmatprep.subr.mxu0 0.0
    %205 = vmatpush1.msra.mxu0 %v44
    %206 = vmatprep.subr.mxu0 0.0
    %207 = vmatpush1.msra.mxu0 %v41
    %208 = vmatprep.subr.mxu0 0.0
    %209 = vmatpush1.msra.mxu0 %v38
    %210 = vmatprep.subr.mxu0 0.0
    %211 = vmatpush2.msra.mxu0 0.0
    %212 = vmatprep.subr.mxu0 0.0
    %213 = vmatpush2.msra.mxu0 0.0
    %214 = vmatprep.subr.mxu0 0.0
    %215 = vmatpush2.msra.mxu0 0.0
    %216 = vmatprep.subr.mxu0 0.0
    %217 = vmatpush2.msra.mxu0 0.0
    %218 = vmatprep.subr.mxu0 0.0
    %219 = vmatpush2.msra.mxu0 0.0
    %220 = vmatprep.subr.mxu0 0.0
    %221 = vmatpush2.msra.mxu0 0.0
    %222 = vmatprep.subr.mxu0 0.0
    %223 = vmatpush2.msra.mxu0 0.0
    %224 = vmatprep.subr.mxu0 0.0
    %225 = vmatpush2.msra.mxu0 0.0
    %226 = vmatprep.subr.mxu0 0.0
    %227 = vmatpush2.msra.mxu0 0.0
    %228 = vmatprep.subr.mxu0 0.0
    %229 = vmatpush2.msra.mxu0 0.0
    %230 = vmatprep.subr.mxu0 0.0
    %231 = vmatpush2.msra.mxu0 0.0
    %232 = vmatprep.subr.mxu0 0.0
    %233 = vmatpush2.msra.mxu0 0.0
    %234 = vmatprep.subr.mxu0 0.0
    %235 = vmatpush2.msra.mxu0 0.0
    %236 = vmatprep.subr.mxu0 0.0
    %237 = vmatpush2.msra.mxu0 0.0
    %238 = vmatprep.subr.mxu0 0.0
    %239 = vmatpush2.msra.mxu0 0.0
    %240 = vmatprep.subr.mxu0 0.0
    %241 = vmatpush2.msra.mxu0 0.0
    %242 = vmatprep.mubr.f32.mxu0 0.0
    %243 = vmatmul.mubr.f32.gmra.mxu0 %v34
    %v244 = vpop.f32.mrf.mxu0
    %v245 = vadd.f32 %v97, %v244
    %v246 = vpop.f32.mrf.mxu0
    %247 = vmatprep.mubr.f32.mxu0 0.0
    %248 = vmatmul.mubr.f32.gmra.mxu0 %v35
    %v249 = vpop.f32.mrf.mxu0
    %v250 = vadd.f32 %v97, %v249
    %v251 = vpop.f32.mrf.mxu0
    %252 = vdwg.mxu0
    %v253 = vld [vmem:[#allocation2] sm:$0x3]
    %v254 = vld [vmem:[%s2] sm:$0xff]
    %v255 = vld [vmem:[%s2 + $0x8] sm:$0xff]
    %v256 = vld [vmem:[%s2 + $0x10] sm:$0xff]
    %v257 = vld [vmem:[%s2 + $0x18] sm:$0xff]
    %v258 = vld [vmem:[%s2 + $0x20] sm:$0xff]
    %v259 = vld [vmem:[%s2 + $0x28] sm:$0xff]
    %v260 = vld [vmem:[%s2 + $0x30] sm:$0xff]
    %v261 = vld [vmem:[%s2 + $0x38] sm:$0xff]
    %v262 = vld [vmem:[%s2 + $0x40] sm:$0xff]
    %v263 = vld [vmem:[%s2 + $0x48] sm:$0xff]
    %v264 = vld [vmem:[%s2 + $0x50] sm:$0xff]
    %v265 = vld [vmem:[%s2 + $0x58] sm:$0xff]
    %v266 = vld [vmem:[%s2 + $0x60] sm:$0xff]
    %v267 = vld [vmem:[%s2 + $0x68] sm:$0xff]
    %v268 = vld [vmem:[%s2 + $0x70] sm:$0xff]
    %v269 = vld [vmem:[%s2 + $0x78] sm:$0xff]
    %v270 = vld [vmem:[%s2 + $0x80] sm:$0xff]
    %v271 = vld [vmem:[%s2 + $0x88] sm:$0xff]
    %v272 = vld [vmem:[%s2 + $0x90] sm:$0xff]
    %v273 = vld [vmem:[%s2 + $0x98] sm:$0xff]
    %v274 = vld [vmem:[%s2 + $0xa0] sm:$0xff]
    %v275 = vld [vmem:[%s2 + $0xa8] sm:$0xff]
    %v276 = vld [vmem:[%s2 + $0xb0] sm:$0xff]
    %v277 = vld [vmem:[%s2 + $0xb8] sm:$0xff]
    %v278 = vld [vmem:[%s2 + $0xc0] sm:$0xff]
    %v279 = vld [vmem:[%s2 + $0xc8] sm:$0xff]
    %v280 = vld [vmem:[%s2 + $0xd0] sm:$0xff]
    %v281 = vld [vmem:[%s2 + $0xd8] sm:$0xff]
    %v282 = vld [vmem:[%s2 + $0xe0] sm:$0xff]
    %v283 = vld [vmem:[%s2 + $0xe8] sm:$0xff]
    %v284 = vld [vmem:[%s2 + $0xf0] sm:$0xff]
    %v285 = vld [vmem:[%s2 + $0xf8] sm:$0xff]
    %v286 = vld [vmem:[%s2 + $0x100] sm:$0xff]
    %v287 = vld [vmem:[%s2 + $0x108] sm:$0xff]
    %v288 = vld [vmem:[%s2 + $0x110] sm:$0xff]
    %v289 = vld [vmem:[%s2 + $0x118] sm:$0xff]
    %v290 = vld [vmem:[%s2 + $0x120] sm:$0xff]
    %v291 = vld [vmem:[%s2 + $0x128] sm:$0xff]
    %v292 = vld [vmem:[%s2 + $0x130] sm:$0xff]
    %v293 = vld [vmem:[%s2 + $0x138] sm:$0xff]
    %v294 = vld [vmem:[%s2 + $0x140] sm:$0xff]
    %v295 = vld [vmem:[%s2 + $0x148] sm:$0xff]
    %v296 = vld [vmem:[%s2 + $0x150] sm:$0xff]
    %v297 = vld [vmem:[%s2 + $0x158] sm:$0xff]
    %v298 = vld [vmem:[%s2 + $0x160] sm:$0xff]
    %v299 = vld [vmem:[%s2 + $0x168] sm:$0xff]
    %v300 = vld [vmem:[%s2 + $0x170] sm:$0xff]
    %v301 = vld [vmem:[%s2 + $0x178] sm:$0xff]
    %v302 = vld [vmem:[%s4] sm:$0x7]
    %v304 = vlaneseq
    %v305 = vshrl.u32 %v304, 7
    %v306 = vsub.s32 0, %v305
    %v307 = vrot.slane %v302, %v306
    %v308 = vlaneseq
    %v309 = vshrl.u32 %v308, 7
    %v310 = vsub.s32 1, %v309
    %v311 = vrot.slane %v302, %v310
    %v312 = vlaneseq
    %v313 = vshrl.u32 %v312, 7
    %v314 = vsub.s32 2, %v313
    %v315 = vrot.slane %v302, %v314
    %319 = vmatprep.subr.mxu0 %v300
    %320 = vmatpush1.msra.mxu0 %v299
    %321 = vmatprep.subr.mxu0 %v297
    %322 = vmatpush1.msra.mxu0 %v296
    %323 = vmatprep.subr.mxu0 %v294
    %324 = vmatpush1.msra.mxu0 %v293
    %325 = vmatprep.subr.mxu0 %v291
    %326 = vmatpush1.msra.mxu0 %v290
    %327 = vmatprep.subr.mxu0 %v288
    %328 = vmatpush1.msra.mxu0 %v287
    %329 = vmatprep.subr.mxu0 %v285
    %330 = vmatpush1.msra.mxu0 %v284
    %331 = vmatprep.subr.mxu0 %v282
    %332 = vmatpush1.msra.mxu0 %v281
    %333 = vmatprep.subr.mxu0 %v279
    %334 = vmatpush1.msra.mxu0 %v278
    %335 = vmatprep.subr.mxu0 %v276
    %336 = vmatpush1.msra.mxu0 %v275
    %337 = vmatprep.subr.mxu0 %v273
    %338 = vmatpush1.msra.mxu0 %v272
    %339 = vmatprep.subr.mxu0 %v270
    %340 = vmatpush1.msra.mxu0 %v269
    %341 = vmatprep.subr.mxu0 %v267
    %342 = vmatpush1.msra.mxu0 %v266
    %343 = vmatprep.subr.mxu0 %v264
    %344 = vmatpush1.msra.mxu0 %v263
    %345 = vmatprep.subr.mxu0 %v261
    %346 = vmatpush1.msra.mxu0 %v260
    %347 = vmatprep.subr.mxu0 %v258
    %348 = vmatpush1.msra.mxu0 %v257
    %349 = vmatprep.subr.mxu0 %v255
    %350 = vmatpush1.msra.mxu0 %v254
    %351 = vmatprep.subr.mxu0 0.0
    %352 = vmatpush2.msra.mxu0 0.0
    %353 = vmatprep.subr.mxu0 0.0
    %354 = vmatpush2.msra.mxu0 0.0
    %355 = vmatprep.subr.mxu0 0.0
    %356 = vmatpush2.msra.mxu0 0.0
    %357 = vmatprep.subr.mxu0 0.0
    %358 = vmatpush2.msra.mxu0 0.0
    %359 = vmatprep.subr.mxu0 0.0
    %360 = vmatpush2.msra.mxu0 0.0
    %361 = vmatprep.subr.mxu0 0.0
    %362 = vmatpush2.msra.mxu0 0.0
    %363 = vmatprep.subr.mxu0 0.0
    %364 = vmatpush2.msra.mxu0 0.0
    %365 = vmatprep.subr.mxu0 0.0
    %366 = vmatpush2.msra.mxu0 0.0
    %367 = vmatprep.subr.mxu0 0.0
    %368 = vmatpush2.msra.mxu0 0.0
    %369 = vmatprep.subr.mxu0 0.0
    %370 = vmatpush2.msra.mxu0 0.0
    %371 = vmatprep.subr.mxu0 0.0
    %372 = vmatpush2.msra.mxu0 0.0
    %373 = vmatprep.subr.mxu0 0.0
    %374 = vmatpush2.msra.mxu0 0.0
    %375 = vmatprep.subr.mxu0 0.0
    %376 = vmatpush2.msra.mxu0 0.0
    %377 = vmatprep.subr.mxu0 0.0
    %378 = vmatpush2.msra.mxu0 0.0
    %379 = vmatprep.subr.mxu0 0.0
    %380 = vmatpush2.msra.mxu0 0.0
    %381 = vmatprep.subr.mxu0 0.0
    %382 = vmatpush2.msra.mxu0 0.0
    %383 = vmatprep.mubr.f32.mxu0 0.0
    %384 = vmatmul.mubr.f32.gmra.mxu0 %v253
    %v385 = vpop.f32.mrf.mxu0
    %v386 = vadd.f32 %v307, %v385
    %v387 = vpop.f32.mrf.mxu0
    %v388 = vadd.f32 %v311, %v387
    %389 = vdwg.mxu0
    %390 = vmatprep.subr.mxu0 0.0
    %391 = vmatpush1.msra.mxu0 %v301
    %392 = vmatprep.subr.mxu0 0.0
    %393 = vmatpush1.msra.mxu0 %v298
    %394 = vmatprep.subr.mxu0 0.0
    %395 = vmatpush1.msra.mxu0 %v295
    %396 = vmatprep.subr.mxu0 0.0
    %397 = vmatpush1.msra.mxu0 %v292
    %398 = vmatprep.subr.mxu0 0.0
    %399 = vmatpush1.msra.mxu0 %v289
    %400 = vmatprep.subr.mxu0 0.0
    %401 = vmatpush1.msra.mxu0 %v286
    %402 = vmatprep.subr.mxu0 0.0
    %403 = vmatpush1.msra.mxu0 %v283
    %404 = vmatprep.subr.mxu0 0.0
    %405 = vmatpush1.msra.mxu0 %v280
    %406 = vmatprep.subr.mxu0 0.0
    %407 = vmatpush1.msra.mxu0 %v277
    %408 = vmatprep.subr.mxu0 0.0
    %409 = vmatpush1.msra.mxu0 %v274
    %410 = vmatprep.subr.mxu0 0.0
    %411 = vmatpush1.msra.mxu0 %v271
    %412 = vmatprep.subr.mxu0 0.0
    %413 = vmatpush1.msra.mxu0 %v268
    %414 = vmatprep.subr.mxu0 0.0
    %415 = vmatpush1.msra.mxu0 %v265
    %416 = vmatprep.subr.mxu0 0.0
    %417 = vmatpush1.msra.mxu0 %v262
    %418 = vmatprep.subr.mxu0 0.0
    %419 = vmatpush1.msra.mxu0 %v259
    %420 = vmatprep.subr.mxu0 0.0
    %421 = vmatpush1.msra.mxu0 %v256
    %422 = vmatprep.subr.mxu0 0.0
    %423 = vmatpush2.msra.mxu0 0.0
    %424 = vmatprep.subr.mxu0 0.0
    %425 = vmatpush2.msra.mxu0 0.0
    %426 = vmatprep.subr.mxu0 0.0
    %427 = vmatpush2.msra.mxu0 0.0
    %428 = vmatprep.subr.mxu0 0.0
    %429 = vmatpush2.msra.mxu0 0.0
    %430 = vmatprep.subr.mxu0 0.0
    %431 = vmatpush2.msra.mxu0 0.0
    %432 = vmatprep.subr.mxu0 0.0
    %433 = vmatpush2.msra.mxu0 0.0
    %434 = vmatprep.subr.mxu0 0.0
    %435 = vmatpush2.msra.mxu0 0.0
    %436 = vmatprep.subr.mxu0 0.0
    %437 = vmatpush2.msra.mxu0 0.0
    %438 = vmatprep.subr.mxu0 0.0
    %439 = vmatpush2.msra.mxu0 0.0
    %440 = vmatprep.subr.mxu0 0.0
    %441 = vmatpush2.msra.mxu0 0.0
    %442 = vmatprep.subr.mxu0 0.0
    %443 = vmatpush2.msra.mxu0 0.0
    %444 = vmatprep.subr.mxu0 0.0
    %445 = vmatpush2.msra.mxu0 0.0
    %446 = vmatprep.subr.mxu0 0.0
    %447 = vmatpush2.msra.mxu0 0.0
    %448 = vmatprep.subr.mxu0 0.0
    %449 = vmatpush2.msra.mxu0 0.0
    %450 = vmatprep.subr.mxu0 0.0
    %451 = vmatpush2.msra.mxu0 0.0
    %452 = vmatprep.subr.mxu0 0.0
    %453 = vmatpush2.msra.mxu0 0.0
    %454 = vmatprep.mubr.f32.mxu0 0.0
    %455 = vmatmul.mubr.f32.gmra.mxu0 %v253
    %v456 = vpop.f32.mrf.mxu0
    %v457 = vadd.f32 %v315, %v456
    %v458 = vpop.f32.mrf.mxu0
    %459 = vdwg.mxu0
    %v460 = vadd.f32 %v168, %v386
    %v461 = vxor.u32 %v460, 2147483648
    %v462 = vmul.f32 %v461, 1.442695
    %v463 = vpow.pop %v462
    %v464 = vadd.f32 %v463, 1.0
    %v465 = vrcp.pop %v464
    %v466 = vmul.f32 1.0, %v465
    %v467 = vadd.f32 %v170, %v388
    %v468 = vxor.u32 %v467, 2147483648
    %v469 = vmul.f32 %v468, 1.442695
    %v470 = vpow.pop %v469
    %v471 = vadd.f32 %v470, 1.0
    %v472 = vrcp.pop %v471
    %v473 = vmul.f32 1.0, %v472
    %v474 = vmul.f32 %v466, %v457
    %v475 = vadd.f32 %v245, %v474
    %v476 = vtanh.pop %v475
    %v477 = vsub.f32 1.0, %v473
    %v478 = vmul.f32 %v477, %v476
    %v479 = vmul.f32 %v473, %v253
    %v480 = vadd.f32 %v478, %v479
    %s481 = smul.u32 0, 8
    %p482 = scmp.lt.s32.totalorder %s481, 2
    %s483 = scalar_select %p482, 1, 0
    %v484 = vstv %s483
    %vm485 = vcmp.eq.s32.totalorder %v484, 1
    %v486 = vsel %vm485, %v480, %v253
    %487 = vmatprep.subr.mxu0 %v300
    %488 = vmatpush1.msra.mxu0 %v299
    %489 = vmatprep.subr.mxu0 %v297
    %490 = vmatpush1.msra.mxu0 %v296
    %491 = vmatprep.subr.mxu0 %v294
    %492 = vmatpush1.msra.mxu0 %v293
    %493 = vmatprep.subr.mxu0 %v291
    %494 = vmatpush1.msra.mxu0 %v290
    %495 = vmatprep.subr.mxu0 %v288
    %496 = vmatpush1.msra.mxu0 %v287
    %497 = vmatprep.subr.mxu0 %v285
    %498 = vmatpush1.msra.mxu0 %v284
    %499 = vmatprep.subr.mxu0 %v282
    %500 = vmatpush1.msra.mxu0 %v281
    %501 = vmatprep.subr.mxu0 %v279
    %502 = vmatpush1.msra.mxu0 %v278
    %503 = vmatprep.subr.mxu0 %v276
    %504 = vmatpush1.msra.mxu0 %v275
    %505 = vmatprep.subr.mxu0 %v273
    %506 = vmatpush1.msra.mxu0 %v272
    %507 = vmatprep.subr.mxu0 %v270
    %508 = vmatpush1.msra.mxu0 %v269
    %509 = vmatprep.subr.mxu0 %v267
    %510 = vmatpush1.msra.mxu0 %v266
    %511 = vmatprep.subr.mxu0 %v264
    %512 = vmatpush1.msra.mxu0 %v263
    %513 = vmatprep.subr.mxu0 %v261
    %514 = vmatpush1.msra.mxu0 %v260
    %515 = vmatprep.subr.mxu0 %v258
    %516 = vmatpush1.msra.mxu0 %v257
    %517 = vmatprep.subr.mxu0 %v255
    %518 = vmatpush1.msra.mxu0 %v254
    %519 = vmatprep.subr.mxu0 0.0
    %520 = vmatpush2.msra.mxu0 0.0
    %521 = vmatprep.subr.mxu0 0.0
    %522 = vmatpush2.msra.mxu0 0.0
    %523 = vmatprep.subr.mxu0 0.0
    %524 = vmatpush2.msra.mxu0 0.0
    %525 = vmatprep.subr.mxu0 0.0
    %526 = vmatpush2.msra.mxu0 0.0
    %527 = vmatprep.subr.mxu0 0.0
    %528 = vmatpush2.msra.mxu0 0.0
    %529 = vmatprep.subr.mxu0 0.0
    %530 = vmatpush2.msra.mxu0 0.0
    %531 = vmatprep.subr.mxu0 0.0
    %532 = vmatpush2.msra.mxu0 0.0
    %533 = vmatprep.subr.mxu0 0.0
    %534 = vmatpush2.msra.mxu0 0.0
    %535 = vmatprep.subr.mxu0 0.0
    %536 = vmatpush2.msra.mxu0 0.0
    %537 = vmatprep.subr.mxu0 0.0
    %538 = vmatpush2.msra.mxu0 0.0
    %539 = vmatprep.subr.mxu0 0.0
    %540 = vmatpush2.msra.mxu0 0.0
    %541 = vmatprep.subr.mxu0 0.0
    %542 = vmatpush2.msra.mxu0 0.0
    %543 = vmatprep.subr.mxu0 0.0
    %544 = vmatpush2.msra.mxu0 0.0
    %545 = vmatprep.subr.mxu0 0.0
    %546 = vmatpush2.msra.mxu0 0.0
    %547 = vmatprep.subr.mxu0 0.0
    %548 = vmatpush2.msra.mxu0 0.0
    %549 = vmatprep.subr.mxu0 0.0
    %550 = vmatpush2.msra.mxu0 0.0
    %551 = vmatprep.mubr.f32.mxu0 0.0
    %552 = vmatmul.mubr.f32.gmra.mxu0 %v486
    %v553 = vpop.f32.mrf.mxu0
    %v554 = vadd.f32 %v307, %v553
    %v555 = vpop.f32.mrf.mxu0
    %v556 = vadd.f32 %v311, %v555
    %557 = vdwg.mxu0
    %558 = vmatprep.subr.mxu0 0.0
    %559 = vmatpush1.msra.mxu0 %v301
    %560 = vmatprep.subr.mxu0 0.0
    %561 = vmatpush1.msra.mxu0 %v298
    %562 = vmatprep.subr.mxu0 0.0
    %563 = vmatpush1.msra.mxu0 %v295
    %564 = vmatprep.subr.mxu0 0.0
    %565 = vmatpush1.msra.mxu0 %v292
    %566 = vmatprep.subr.mxu0 0.0
    %567 = vmatpush1.msra.mxu0 %v289
    %568 = vmatprep.subr.mxu0 0.0
    %569 = vmatpush1.msra.mxu0 %v286
    %570 = vmatprep.subr.mxu0 0.0
    %571 = vmatpush1.msra.mxu0 %v283
    %572 = vmatprep.subr.mxu0 0.0
    %573 = vmatpush1.msra.mxu0 %v280
    %574 = vmatprep.subr.mxu0 0.0
    %575 = vmatpush1.msra.mxu0 %v277
    %576 = vmatprep.subr.mxu0 0.0
    %577 = vmatpush1.msra.mxu0 %v274
    %578 = vmatprep.subr.mxu0 0.0
    %579 = vmatpush1.msra.mxu0 %v271
    %580 = vmatprep.subr.mxu0 0.0
    %581 = vmatpush1.msra.mxu0 %v268
    %582 = vmatprep.subr.mxu0 0.0
    %583 = vmatpush1.msra.mxu0 %v265
    %584 = vmatprep.subr.mxu0 0.0
    %585 = vmatpush1.msra.mxu0 %v262
    %586 = vmatprep.subr.mxu0 0.0
    %587 = vmatpush1.msra.mxu0 %v259
    %588 = vmatprep.subr.mxu0 0.0
    %589 = vmatpush1.msra.mxu0 %v256
    %590 = vmatprep.subr.mxu0 0.0
    %591 = vmatpush2.msra.mxu0 0.0
    %592 = vmatprep.subr.mxu0 0.0
    %593 = vmatpush2.msra.mxu0 0.0
    %594 = vmatprep.subr.mxu0 0.0
    %595 = vmatpush2.msra.mxu0 0.0
    %596 = vmatprep.subr.mxu0 0.0
    %597 = vmatpush2.msra.mxu0 0.0
    %598 = vmatprep.subr.mxu0 0.0
    %599 = vmatpush2.msra.mxu0 0.0
    %600 = vmatprep.subr.mxu0 0.0
    %601 = vmatpush2.msra.mxu0 0.0
    %602 = vmatprep.subr.mxu0 0.0
    %603 = vmatpush2.msra.mxu0 0.0
    %604 = vmatprep.subr.mxu0 0.0
    %605 = vmatpush2.msra.mxu0 0.0
    %606 = vmatprep.subr.mxu0 0.0
    %607 = vmatpush2.msra.mxu0 0.0
    %608 = vmatprep.subr.mxu0 0.0
    %609 = vmatpush2.msra.mxu0 0.0
    %610 = vmatprep.subr.mxu0 0.0
    %611 = vmatpush2.msra.mxu0 0.0
    %612 = vmatprep.subr.mxu0 0.0
    %613 = vmatpush2.msra.mxu0 0.0
    %614 = vmatprep.subr.mxu0 0.0
    %615 = vmatpush2.msra.mxu0 0.0
    %616 = vmatprep.subr.mxu0 0.0
    %617 = vmatpush2.msra.mxu0 0.0
    %618 = vmatprep.subr.mxu0 0.0
    %619 = vmatpush2.msra.mxu0 0.0
    %620 = vmatprep.subr.mxu0 0.0
    %621 = vmatpush2.msra.mxu0 0.0
    %622 = vmatprep.mubr.f32.mxu0 0.0
    %623 = vmatmul.mubr.f32.gmra.mxu0 %v486
    %v624 = vpop.f32.mrf.mxu0
    %v625 = vadd.f32 %v315, %v624
    %v626 = vpop.f32.mrf.mxu0
    %627 = vdwg.mxu0
    %v629 = vrot.slane %v554, 6
    %v631 = vadd.f32 %v168, %v629
    %v632 = vxor.u32 %v631, 2147483648
    %v633 = vmul.f32 %v632, 1.442695
    %v634 = vpow.pop %v633
    %v635 = vadd.f32 %v634, 1.0
    %v636 = vrcp.pop %v635
    %v637 = vmul.f32 1.0, %v636
    %v639 = vrot.slane %v556, 6
    %v641 = vadd.f32 %v170, %v639
    %v642 = vxor.u32 %v641, 2147483648
    %v643 = vmul.f32 %v642, 1.442695
    %v644 = vpow.pop %v643
    %v645 = vadd.f32 %v644, 1.0
    %v646 = vrcp.pop %v645
    %v647 = vmul.f32 1.0, %v646
    %v649 = vrot.slane %v625, 6
    %v651 = vmul.f32 %v637, %v649
    %v652 = vadd.f32 %v245, %v651
    %v653 = vtanh.pop %v652
    %v654 = vsub.f32 1.0, %v647
    %v655 = vmul.f32 %v654, %v653
    %v657 = vrot.slane %v486, 6
    %v659 = vmul.f32 %v647, %v657
    %v660 = vadd.f32 %v655, %v659
    %s661 = sadd.s32 %s481, 1
    %p662 = scmp.lt.s32.totalorder %s661, 2
    %s663 = scalar_select %p662, 1, 0
    %v664 = vstv %s663
    %vm665 = vcmp.eq.s32.totalorder %v664, 1
    %v666 = vsel %vm665, %v660, %v657
    %v668 = vrot.slane %v666, 2
    %670 = vmatprep.subr.mxu0 %v300
    %671 = vmatpush1.msra.mxu0 %v299
    %672 = vmatprep.subr.mxu0 %v297
    %673 = vmatpush1.msra.mxu0 %v296
    %674 = vmatprep.subr.mxu0 %v294
    %675 = vmatpush1.msra.mxu0 %v293
    %676 = vmatprep.subr.mxu0 %v291
    %677 = vmatpush1.msra.mxu0 %v290
    %678 = vmatprep.subr.mxu0 %v288
    %679 = vmatpush1.msra.mxu0 %v287
    %680 = vmatprep.subr.mxu0 %v285
    %681 = vmatpush1.msra.mxu0 %v284
    %682 = vmatprep.subr.mxu0 %v282
    %683 = vmatpush1.msra.mxu0 %v281
    %684 = vmatprep.subr.mxu0 %v279
    %685 = vmatpush1.msra.mxu0 %v278
    %686 = vmatprep.subr.mxu0 %v276
    %687 = vmatpush1.msra.mxu0 %v275
    %688 = vmatprep.subr.mxu0 %v273
    %689 = vmatpush1.msra.mxu0 %v272
    %690 = vmatprep.subr.mxu0 %v270
    %691 = vmatpush1.msra.mxu0 %v269
    %692 = vmatprep.subr.mxu0 %v267
    %693 = vmatpush1.msra.mxu0 %v266
    %694 = vmatprep.subr.mxu0 %v264
    %695 = vmatpush1.msra.mxu0 %v263
    %696 = vmatprep.subr.mxu0 %v261
    %697 = vmatpush1.msra.mxu0 %v260
    %698 = vmatprep.subr.mxu0 %v258
    %699 = vmatpush1.msra.mxu0 %v257
    %700 = vmatprep.subr.mxu0 %v255
    %701 = vmatpush1.msra.mxu0 %v254
    %702 = vmatprep.subr.mxu0 0.0
    %703 = vmatpush2.msra.mxu0 0.0
    %704 = vmatprep.subr.mxu0 0.0
    %705 = vmatpush2.msra.mxu0 0.0
    %706 = vmatprep.subr.mxu0 0.0
    %707 = vmatpush2.msra.mxu0 0.0
    %708 = vmatprep.subr.mxu0 0.0
    %709 = vmatpush2.msra.mxu0 0.0
    %710 = vmatprep.subr.mxu0 0.0
    %711 = vmatpush2.msra.mxu0 0.0
    %712 = vmatprep.subr.mxu0 0.0
    %713 = vmatpush2.msra.mxu0 0.0
    %714 = vmatprep.subr.mxu0 0.0
    %715 = vmatpush2.msra.mxu0 0.0
    %716 = vmatprep.subr.mxu0 0.0
    %717 = vmatpush2.msra.mxu0 0.0
    %718 = vmatprep.subr.mxu0 0.0
    %719 = vmatpush2.msra.mxu0 0.0
    %720 = vmatprep.subr.mxu0 0.0
    %721 = vmatpush2.msra.mxu0 0.0
    %722 = vmatprep.subr.mxu0 0.0
    %723 = vmatpush2.msra.mxu0 0.0
    %724 = vmatprep.subr.mxu0 0.0
    %725 = vmatpush2.msra.mxu0 0.0
    %726 = vmatprep.subr.mxu0 0.0
    %727 = vmatpush2.msra.mxu0 0.0
    %728 = vmatprep.subr.mxu0 0.0
    %729 = vmatpush2.msra.mxu0 0.0
    %730 = vmatprep.subr.mxu0 0.0
    %731 = vmatpush2.msra.mxu0 0.0
    %732 = vmatprep.subr.mxu0 0.0
    %733 = vmatpush2.msra.mxu0 0.0
    %734 = vmatprep.mubr.f32.mxu0 0.0
    %735 = vmatmul.mubr.f32.gmra.mxu0 %v668
    %v736 = vpop.f32.mrf.mxu0
    %v737 = vadd.f32 %v307, %v736
    %v738 = vpop.f32.mrf.mxu0
    %v739 = vadd.f32 %v311, %v738
    %740 = vdwg.mxu0
    %741 = vmatprep.subr.mxu0 0.0
    %742 = vmatpush1.msra.mxu0 %v301
    %743 = vmatprep.subr.mxu0 0.0
    %744 = vmatpush1.msra.mxu0 %v298
    %745 = vmatprep.subr.mxu0 0.0
    %746 = vmatpush1.msra.mxu0 %v295
    %747 = vmatprep.subr.mxu0 0.0
    %748 = vmatpush1.msra.mxu0 %v292
    %749 = vmatprep.subr.mxu0 0.0
    %750 = vmatpush1.msra.mxu0 %v289
    %751 = vmatprep.subr.mxu0 0.0
    %752 = vmatpush1.msra.mxu0 %v286
    %753 = vmatprep.subr.mxu0 0.0
    %754 = vmatpush1.msra.mxu0 %v283
    %755 = vmatprep.subr.mxu0 0.0
    %756 = vmatpush1.msra.mxu0 %v280
    %757 = vmatprep.subr.mxu0 0.0
    %758 = vmatpush1.msra.mxu0 %v277
    %759 = vmatprep.subr.mxu0 0.0
    %760 = vmatpush1.msra.mxu0 %v274
    %761 = vmatprep.subr.mxu0 0.0
    %762 = vmatpush1.msra.mxu0 %v271
    %763 = vmatprep.subr.mxu0 0.0
    %764 = vmatpush1.msra.mxu0 %v268
    %765 = vmatprep.subr.mxu0 0.0
    %766 = vmatpush1.msra.mxu0 %v265
    %767 = vmatprep.subr.mxu0 0.0
    %768 = vmatpush1.msra.mxu0 %v262
    %769 = vmatprep.subr.mxu0 0.0
    %770 = vmatpush1.msra.mxu0 %v259
    %771 = vmatprep.subr.mxu0 0.0
    %772 = vmatpush1.msra.mxu0 %v256
    %773 = vmatprep.subr.mxu0 0.0
    %774 = vmatpush2.msra.mxu0 0.0
    %775 = vmatprep.subr.mxu0 0.0
    %776 = vmatpush2.msra.mxu0 0.0
    %777 = vmatprep.subr.mxu0 0.0
    %778 = vmatpush2.msra.mxu0 0.0
    %779 = vmatprep.subr.mxu0 0.0
    %780 = vmatpush2.msra.mxu0 0.0
    %781 = vmatprep.subr.mxu0 0.0
    %782 = vmatpush2.msra.mxu0 0.0
    %783 = vmatprep.subr.mxu0 0.0
    %784 = vmatpush2.msra.mxu0 0.0
    %785 = vmatprep.subr.mxu0 0.0
    %786 = vmatpush2.msra.mxu0 0.0
    %787 = vmatprep.subr.mxu0 0.0
    %788 = vmatpush2.msra.mxu0 0.0
    %789 = vmatprep.subr.mxu0 0.0
    %790 = vmatpush2.msra.mxu0 0.0
    %791 = vmatprep.subr.mxu0 0.0
    %792 = vmatpush2.msra.mxu0 0.0
    %793 = vmatprep.subr.mxu0 0.0
    %794 = vmatpush2.msra.mxu0 0.0
    %795 = vmatprep.subr.mxu0 0.0
    %796 = vmatpush2.msra.mxu0 0.0
    %797 = vmatprep.subr.mxu0 0.0
    %798 = vmatpush2.msra.mxu0 0.0
    %799 = vmatprep.subr.mxu0 0.0
    %800 = vmatpush2.msra.mxu0 0.0
    %801 = vmatprep.subr.mxu0 0.0
    %802 = vmatpush2.msra.mxu0 0.0
    %803 = vmatprep.subr.mxu0 0.0
    %804 = vmatpush2.msra.mxu0 0.0
    %805 = vmatprep.mubr.f32.mxu0 0.0
    %806 = vmatmul.mubr.f32.gmra.mxu0 %v668
    %v807 = vpop.f32.mrf.mxu0
    %v808 = vadd.f32 %v315, %v807
    %v809 = vpop.f32.mrf.mxu0
    %810 = vdwg.mxu0
    %v812 = vrot.slane %v737, 4
    %v814 = vadd.f32 %v168, %v812
    %v815 = vxor.u32 %v814, 2147483648
    %v816 = vmul.f32 %v815, 1.442695
    %v817 = vpow.pop %v816
    %v818 = vadd.f32 %v817, 1.0
    %v819 = vrcp.pop %v818
    %v820 = vmul.f32 1.0, %v819
    %v822 = vrot.slane %v739, 4
    %v824 = vadd.f32 %v170, %v822
    %v825 = vxor.u32 %v824, 2147483648
    %v826 = vmul.f32 %v825, 1.442695
    %v827 = vpow.pop %v826
    %v828 = vadd.f32 %v827, 1.0
    %v829 = vrcp.pop %v828
    %v830 = vmul.f32 1.0, %v829
    %v832 = vrot.slane %v808, 4
    %v834 = vmul.f32 %v820, %v832
    %v835 = vadd.f32 %v245, %v834
    %v836 = vtanh.pop %v835
    %v837 = vsub.f32 1.0, %v830
    %v838 = vmul.f32 %v837, %v836
    %v839 = vrot.slane %v666, 6
    %v841 = vmul.f32 %v830, %v839
    %v842 = vadd.f32 %v838, %v841
    %s843 = sadd.s32 %s481, 2
    %p844 = scmp.lt.s32.totalorder %s843, 2
    %s845 = scalar_select %p844, 1, 0
    %v846 = vstv %s845
    %vm847 = vcmp.eq.s32.totalorder %v846, 1
    %v848 = vsel %vm847, %v842, %v839
    %v850 = vrot.slane %v848, 4
    %852 = vmatprep.subr.mxu0 %v300
    %853 = vmatpush1.msra.mxu0 %v299
    %854 = vmatprep.subr.mxu0 %v297
    %855 = vmatpush1.msra.mxu0 %v296
    %856 = vmatprep.subr.mxu0 %v294
    %857 = vmatpush1.msra.mxu0 %v293
    %858 = vmatprep.subr.mxu0 %v291
    %859 = vmatpush1.msra.mxu0 %v290
    %860 = vmatprep.subr.mxu0 %v288
    %861 = vmatpush1.msra.mxu0 %v287
    %862 = vmatprep.subr.mxu0 %v285
    %863 = vmatpush1.msra.mxu0 %v284
    %864 = vmatprep.subr.mxu0 %v282
    %865 = vmatpush1.msra.mxu0 %v281
    %866 = vmatprep.subr.mxu0 %v279
    %867 = vmatpush1.msra.mxu0 %v278
    %868 = vmatprep.subr.mxu0 %v276
    %869 = vmatpush1.msra.mxu0 %v275
    %870 = vmatprep.subr.mxu0 %v273
    %871 = vmatpush1.msra.mxu0 %v272
    %872 = vmatprep.subr.mxu0 %v270
    %873 = vmatpush1.msra.mxu0 %v269
    %874 = vmatprep.subr.mxu0 %v267
    %875 = vmatpush1.msra.mxu0 %v266
    %876 = vmatprep.subr.mxu0 %v264
    %877 = vmatpush1.msra.mxu0 %v263
    %878 = vmatprep.subr.mxu0 %v261
    %879 = vmatpush1.msra.mxu0 %v260
    %880 = vmatprep.subr.mxu0 %v258
    %881 = vmatpush1.msra.mxu0 %v257
    %882 = vmatprep.subr.mxu0 %v255
    %883 = vmatpush1.msra.mxu0 %v254
    %884 = vmatprep.subr.mxu0 0.0
    %885 = vmatpush2.msra.mxu0 0.0
    %886 = vmatprep.subr.mxu0 0.0
    %887 = vmatpush2.msra.mxu0 0.0
    %888 = vmatprep.subr.mxu0 0.0
    %889 = vmatpush2.msra.mxu0 0.0
    %890 = vmatprep.subr.mxu0 0.0
    %891 = vmatpush2.msra.mxu0 0.0
    %892 = vmatprep.subr.mxu0 0.0
    %893 = vmatpush2.msra.mxu0 0.0
    %894 = vmatprep.subr.mxu0 0.0
    %895 = vmatpush2.msra.mxu0 0.0
    %896 = vmatprep.subr.mxu0 0.0
    %897 = vmatpush2.msra.mxu0 0.0
    %898 = vmatprep.subr.mxu0 0.0
    %899 = vmatpush2.msra.mxu0 0.0
    %900 = vmatprep.subr.mxu0 0.0
    %901 = vmatpush2.msra.mxu0 0.0
    %902 = vmatprep.subr.mxu0 0.0
    %903 = vmatpush2.msra.mxu0 0.0
    %904 = vmatprep.subr.mxu0 0.0
    %905 = vmatpush2.msra.mxu0 0.0
    %906 = vmatprep.subr.mxu0 0.0
    %907 = vmatpush2.msra.mxu0 0.0
    %908 = vmatprep.subr.mxu0 0.0
    %909 = vmatpush2.msra.mxu0 0.0
    %910 = vmatprep.subr.mxu0 0.0
    %911 = vmatpush2.msra.mxu0 0.0
    %912 = vmatprep.subr.mxu0 0.0
    %913 = vmatpush2.msra.mxu0 0.0
    %914 = vmatprep.subr.mxu0 0.0
    %915 = vmatpush2.msra.mxu0 0.0
    %916 = vmatprep.mubr.f32.mxu0 0.0
    %917 = vmatmul.mubr.f32.gmra.mxu0 %v850
    %v918 = vpop.f32.mrf.mxu0
    %v919 = vadd.f32 %v307, %v918
    %v920 = vpop.f32.mrf.mxu0
    %v921 = vadd.f32 %v311, %v920
    %922 = vdwg.mxu0
    %923 = vmatprep.subr.mxu0 0.0
    %924 = vmatpush1.msra.mxu0 %v301
    %925 = vmatprep.subr.mxu0 0.0
    %926 = vmatpush1.msra.mxu0 %v298
    %927 = vmatprep.subr.mxu0 0.0
    %928 = vmatpush1.msra.mxu0 %v295
    %929 = vmatprep.subr.mxu0 0.0
    %930 = vmatpush1.msra.mxu0 %v292
    %931 = vmatprep.subr.mxu0 0.0
    %932 = vmatpush1.msra.mxu0 %v289
    %933 = vmatprep.subr.mxu0 0.0
    %934 = vmatpush1.msra.mxu0 %v286
    %935 = vmatprep.subr.mxu0 0.0
    %936 = vmatpush1.msra.mxu0 %v283
    %937 = vmatprep.subr.mxu0 0.0
    %938 = vmatpush1.msra.mxu0 %v280
    %939 = vmatprep.subr.mxu0 0.0
    %940 = vmatpush1.msra.mxu0 %v277
    %941 = vmatprep.subr.mxu0 0.0
    %942 = vmatpush1.msra.mxu0 %v274
    %943 = vmatprep.subr.mxu0 0.0
    %944 = vmatpush1.msra.mxu0 %v271
    %945 = vmatprep.subr.mxu0 0.0
    %946 = vmatpush1.msra.mxu0 %v268
    %947 = vmatprep.subr.mxu0 0.0
    %948 = vmatpush1.msra.mxu0 %v265
    %949 = vmatprep.subr.mxu0 0.0
    %950 = vmatpush1.msra.mxu0 %v262
    %951 = vmatprep.subr.mxu0 0.0
    %952 = vmatpush1.msra.mxu0 %v259
    %953 = vmatprep.subr.mxu0 0.0
    %954 = vmatpush1.msra.mxu0 %v256
    %955 = vmatprep.subr.mxu0 0.0
    %956 = vmatpush2.msra.mxu0 0.0
    %957 = vmatprep.subr.mxu0 0.0
    %958 = vmatpush2.msra.mxu0 0.0
    %959 = vmatprep.subr.mxu0 0.0
    %960 = vmatpush2.msra.mxu0 0.0
    %961 = vmatprep.subr.mxu0 0.0
    %962 = vmatpush2.msra.mxu0 0.0
    %963 = vmatprep.subr.mxu0 0.0
    %964 = vmatpush2.msra.mxu0 0.0
    %965 = vmatprep.subr.mxu0 0.0
    %966 = vmatpush2.msra.mxu0 0.0
    %967 = vmatprep.subr.mxu0 0.0
    %968 = vmatpush2.msra.mxu0 0.0
    %969 = vmatprep.subr.mxu0 0.0
    %970 = vmatpush2.msra.mxu0 0.0
    %971 = vmatprep.subr.mxu0 0.0
    %972 = vmatpush2.msra.mxu0 0.0
    %973 = vmatprep.subr.mxu0 0.0
    %974 = vmatpush2.msra.mxu0 0.0
    %975 = vmatprep.subr.mxu0 0.0
    %976 = vmatpush2.msra.mxu0 0.0
    %977 = vmatprep.subr.mxu0 0.0
    %978 = vmatpush2.msra.mxu0 0.0
    %979 = vmatprep.subr.mxu0 0.0
    %980 = vmatpush2.msra.mxu0 0.0
    %981 = vmatprep.subr.mxu0 0.0
    %982 = vmatpush2.msra.mxu0 0.0
    %983 = vmatprep.subr.mxu0 0.0
    %984 = vmatpush2.msra.mxu0 0.0
    %985 = vmatprep.subr.mxu0 0.0
    %986 = vmatpush2.msra.mxu0 0.0
    %987 = vmatprep.mubr.f32.mxu0 0.0
    %988 = vmatmul.mubr.f32.gmra.mxu0 %v850
    %v989 = vpop.f32.mrf.mxu0
    %v990 = vadd.f32 %v315, %v989
    %v991 = vpop.f32.mrf.mxu0
    %992 = vdwg.mxu0
    %v994 = vrot.slane %v919, 2
    %v996 = vadd.f32 %v168, %v994
    %v997 = vxor.u32 %v996, 2147483648
    %v998 = vmul.f32 %v997, 1.442695
    %v999 = vpow.pop %v998
    %v1000 = vadd.f32 %v999, 1.0
    %v1001 = vrcp.pop %v1000
    %v1002 = vmul.f32 1.0, %v1001
    %v1004 = vrot.slane %v921, 2
    %v1006 = vadd.f32 %v170, %v1004
    %v1007 = vxor.u32 %v1006, 2147483648
    %v1008 = vmul.f32 %v1007, 1.442695
    %v1009 = vpow.pop %v1008
    %v1010 = vadd.f32 %v1009, 1.0
    %v1011 = vrcp.pop %v1010
    %v1012 = vmul.f32 1.0, %v1011
    %v1014 = vrot.slane %v990, 2
    %v1016 = vmul.f32 %v1002, %v1014
    %v1017 = vadd.f32 %v245, %v1016
    %v1018 = vtanh.pop %v1017
    %v1019 = vsub.f32 1.0, %v1012
    %v1020 = vmul.f32 %v1019, %v1018
    %v1021 = vrot.slane %v848, 6
    %v1023 = vmul.f32 %v1012, %v1021
    %v1024 = vadd.f32 %v1020, %v1023
    %s1025 = sadd.s32 %s481, 3
    %p1026 = scmp.lt.s32.totalorder %s1025, 2
    %s1027 = scalar_select %p1026, 1, 0
    %v1028 = vstv %s1027
    %vm1029 = vcmp.eq.s32.totalorder %v1028, 1
    %v1030 = vsel %vm1029, %v1024, %v1021
    %v1032 = vrot.slane %v1030, 6
    %1034 = vmatprep.subr.mxu0 %v300
    %1035 = vmatpush1.msra.mxu0 %v299
    %1036 = vmatprep.subr.mxu0 %v297
    %1037 = vmatpush1.msra.mxu0 %v296
    %1038 = vmatprep.subr.mxu0 %v294
    %1039 = vmatpush1.msra.mxu0 %v293
    %1040 = vmatprep.subr.mxu0 %v291
    %1041 = vmatpush1.msra.mxu0 %v290
    %1042 = vmatprep.subr.mxu0 %v288
    %1043 = vmatpush1.msra.mxu0 %v287
    %1044 = vmatprep.subr.mxu0 %v285
    %1045 = vmatpush1.msra.mxu0 %v284
    %1046 = vmatprep.subr.mxu0 %v282
    %1047 = vmatpush1.msra.mxu0 %v281
    %1048 = vmatprep.subr.mxu0 %v279
    %1049 = vmatpush1.msra.mxu0 %v278
    %1050 = vmatprep.subr.mxu0 %v276
    %1051 = vmatpush1.msra.mxu0 %v275
    %1052 = vmatprep.subr.mxu0 %v273
    %1053 = vmatpush1.msra.mxu0 %v272
    %1054 = vmatprep.subr.mxu0 %v270
    %1055 = vmatpush1.msra.mxu0 %v269
    %1056 = vmatprep.subr.mxu0 %v267
    %1057 = vmatpush1.msra.mxu0 %v266
    %1058 = vmatprep.subr.mxu0 %v264
    %1059 = vmatpush1.msra.mxu0 %v263
    %1060 = vmatprep.subr.mxu0 %v261
    %1061 = vmatpush1.msra.mxu0 %v260
    %1062 = vmatprep.subr.mxu0 %v258
    %1063 = vmatpush1.msra.mxu0 %v257
    %1064 = vmatprep.subr.mxu0 %v255
    %1065 = vmatpush1.msra.mxu0 %v254
    %1066 = vmatprep.subr.mxu0 0.0
    %1067 = vmatpush2.msra.mxu0 0.0
    %1068 = vmatprep.subr.mxu0 0.0
    %1069 = vmatpush2.msra.mxu0 0.0
    %1070 = vmatprep.subr.mxu0 0.0
    %1071 = vmatpush2.msra.mxu0 0.0
    %1072 = vmatprep.subr.mxu0 0.0
    %1073 = vmatpush2.msra.mxu0 0.0
    %1074 = vmatprep.subr.mxu0 0.0
    %1075 = vmatpush2.msra.mxu0 0.0
    %1076 = vmatprep.subr.mxu0 0.0
    %1077 = vmatpush2.msra.mxu0 0.0
    %1078 = vmatprep.subr.mxu0 0.0
    %1079 = vmatpush2.msra.mxu0 0.0
    %1080 = vmatprep.subr.mxu0 0.0
    %1081 = vmatpush2.msra.mxu0 0.0
    %1082 = vmatprep.subr.mxu0 0.0
    %1083 = vmatpush2.msra.mxu0 0.0
    %1084 = vmatprep.subr.mxu0 0.0
    %1085 = vmatpush2.msra.mxu0 0.0
    %1086 = vmatprep.subr.mxu0 0.0
    %1087 = vmatpush2.msra.mxu0 0.0
    %1088 = vmatprep.subr.mxu0 0.0
    %1089 = vmatpush2.msra.mxu0 0.0
    %1090 = vmatprep.subr.mxu0 0.0
    %1091 = vmatpush2.msra.mxu0 0.0
    %1092 = vmatprep.subr.mxu0 0.0
    %1093 = vmatpush2.msra.mxu0 0.0
    %1094 = vmatprep.subr.mxu0 0.0
    %1095 = vmatpush2.msra.mxu0 0.0
    %1096 = vmatprep.subr.mxu0 0.0
    %1097 = vmatpush2.msra.mxu0 0.0
    %1098 = vmatprep.mubr.f32.mxu0 0.0
    %1099 = vmatmul.mubr.f32.gmra.mxu0 %v1032
    %v1100 = vpop.f32.mrf.mxu0
    %v1101 = vadd.f32 %v307, %v1100
    %v1102 = vpop.f32.mrf.mxu0
    %v1103 = vadd.f32 %v311, %v1102
    %1104 = vdwg.mxu0
    %1105 = vmatprep.subr.mxu0 0.0
    %1106 = vmatpush1.msra.mxu0 %v301
    %1107 = vmatprep.subr.mxu0 0.0
    %1108 = vmatpush1.msra.mxu0 %v298
    %1109 = vmatprep.subr.mxu0 0.0
    %1110 = vmatpush1.msra.mxu0 %v295
    %1111 = vmatprep.subr.mxu0 0.0
    %1112 = vmatpush1.msra.mxu0 %v292
    %1113 = vmatprep.subr.mxu0 0.0
    %1114 = vmatpush1.msra.mxu0 %v289
    %1115 = vmatprep.subr.mxu0 0.0
    %1116 = vmatpush1.msra.mxu0 %v286
    %1117 = vmatprep.subr.mxu0 0.0
    %1118 = vmatpush1.msra.mxu0 %v283
    %1119 = vmatprep.subr.mxu0 0.0
    %1120 = vmatpush1.msra.mxu0 %v280
    %1121 = vmatprep.subr.mxu0 0.0
    %1122 = vmatpush1.msra.mxu0 %v277
    %1123 = vmatprep.subr.mxu0 0.0
    %1124 = vmatpush1.msra.mxu0 %v274
    %1125 = vmatprep.subr.mxu0 0.0
    %1126 = vmatpush1.msra.mxu0 %v271
    %1127 = vmatprep.subr.mxu0 0.0
    %1128 = vmatpush1.msra.mxu0 %v268
    %1129 = vmatprep.subr.mxu0 0.0
    %1130 = vmatpush1.msra.mxu0 %v265
    %1131 = vmatprep.subr.mxu0 0.0
    %1132 = vmatpush1.msra.mxu0 %v262
    %1133 = vmatprep.subr.mxu0 0.0
    %1134 = vmatpush1.msra.mxu0 %v259
    %1135 = vmatprep.subr.mxu0 0.0
    %1136 = vmatpush1.msra.mxu0 %v256
    %1137 = vmatprep.subr.mxu0 0.0
    %1138 = vmatpush2.msra.mxu0 0.0
    %1139 = vmatprep.subr.mxu0 0.0
    %1140 = vmatpush2.msra.mxu0 0.0
    %1141 = vmatprep.subr.mxu0 0.0
    %1142 = vmatpush2.msra.mxu0 0.0
    %1143 = vmatprep.subr.mxu0 0.0
    %1144 = vmatpush2.msra.mxu0 0.0
    %1145 = vmatprep.subr.mxu0 0.0
    %1146 = vmatpush2.msra.mxu0 0.0
    %1147 = vmatprep.subr.mxu0 0.0
    %1148 = vmatpush2.msra.mxu0 0.0
    %1149 = vmatprep.subr.mxu0 0.0
    %1150 = vmatpush2.msra.mxu0 0.0
    %1151 = vmatprep.subr.mxu0 0.0
    %1152 = vmatpush2.msra.mxu0 0.0
    %1153 = vmatprep.subr.mxu0 0.0
    %1154 = vmatpush2.msra.mxu0 0.0
    %1155 = vmatprep.subr.mxu0 0.0
    %1156 = vmatpush2.msra.mxu0 0.0
    %1157 = vmatprep.subr.mxu0 0.0
    %1158 = vmatpush2.msra.mxu0 0.0
    %1159 = vmatprep.subr.mxu0 0.0
    %1160 = vmatpush2.msra.mxu0 0.0
    %1161 = vmatprep.subr.mxu0 0.0
    %1162 = vmatpush2.msra.mxu0 0.0
    %1163 = vmatprep.subr.mxu0 0.0
    %1164 = vmatpush2.msra.mxu0 0.0
    %1165 = vmatprep.subr.mxu0 0.0
    %1166 = vmatpush2.msra.mxu0 0.0
    %1167 = vmatprep.subr.mxu0 0.0
    %1168 = vmatpush2.msra.mxu0 0.0
    %1169 = vmatprep.mubr.f32.mxu0 0.0
    %1170 = vmatmul.mubr.f32.gmra.mxu0 %v1032
    %v1171 = vpop.f32.mrf.mxu0
    %v1172 = vadd.f32 %v315, %v1171
    %v1173 = vpop.f32.mrf.mxu0
    %1174 = vdwg.mxu0
    %v1175 = vadd.f32 %v174, %v1101
    %v1176 = vxor.u32 %v1175, 2147483648
    %v1177 = vmul.f32 %v1176, 1.442695
    %v1178 = vpow.pop %v1177
    %v1179 = vadd.f32 %v1178, 1.0
    %v1180 = vrcp.pop %v1179
    %v1181 = vmul.f32 1.0, %v1180
    %v1182 = vadd.f32 %v176, %v1103
    %v1183 = vxor.u32 %v1182, 2147483648
    %v1184 = vmul.f32 %v1183, 1.442695
    %v1185 = vpow.pop %v1184
    %v1186 = vadd.f32 %v1185, 1.0
    %v1187 = vrcp.pop %v1186
    %v1188 = vmul.f32 1.0, %v1187
    %v1189 = vmul.f32 %v1181, %v1172
    %v1190 = vadd.f32 %v250, %v1189
    %v1191 = vtanh.pop %v1190
    %v1192 = vsub.f32 1.0, %v1188
    %v1193 = vmul.f32 %v1192, %v1191
    %v1194 = vmul.f32 %v1188, %v1032
    %v1195 = vadd.f32 %v1193, %v1194
    %s1196 = sadd.s32 %s481, 4
    %p1197 = scmp.lt.s32.totalorder %s1196, 2
    %s1198 = scalar_select %p1197, 1, 0
    %v1199 = vstv %s1198
    %vm1200 = vcmp.eq.s32.totalorder %v1199, 1
    %v1201 = vsel %vm1200, %v1195, %v1032
    %1202 = vmatprep.subr.mxu0 %v300
    %1203 = vmatpush1.msra.mxu0 %v299
    %1204 = vmatprep.subr.mxu0 %v297
    %1205 = vmatpush1.msra.mxu0 %v296
    %1206 = vmatprep.subr.mxu0 %v294
    %1207 = vmatpush1.msra.mxu0 %v293
    %1208 = vmatprep.subr.mxu0 %v291
    %1209 = vmatpush1.msra.mxu0 %v290
    %1210 = vmatprep.subr.mxu0 %v288
    %1211 = vmatpush1.msra.mxu0 %v287
    %1212 = vmatprep.subr.mxu0 %v285
    %1213 = vmatpush1.msra.mxu0 %v284
    %1214 = vmatprep.subr.mxu0 %v282
    %1215 = vmatpush1.msra.mxu0 %v281
    %1216 = vmatprep.subr.mxu0 %v279
    %1217 = vmatpush1.msra.mxu0 %v278
    %1218 = vmatprep.subr.mxu0 %v276
    %1219 = vmatpush1.msra.mxu0 %v275
    %1220 = vmatprep.subr.mxu0 %v273
    %1221 = vmatpush1.msra.mxu0 %v272
    %1222 = vmatprep.subr.mxu0 %v270
    %1223 = vmatpush1.msra.mxu0 %v269
    %1224 = vmatprep.subr.mxu0 %v267
    %1225 = vmatpush1.msra.mxu0 %v266
    %1226 = vmatprep.subr.mxu0 %v264
    %1227 = vmatpush1.msra.mxu0 %v263
    %1228 = vmatprep.subr.mxu0 %v261
    %1229 = vmatpush1.msra.mxu0 %v260
    %1230 = vmatprep.subr.mxu0 %v258
    %1231 = vmatpush1.msra.mxu0 %v257
    %1232 = vmatprep.subr.mxu0 %v255
    %1233 = vmatpush1.msra.mxu0 %v254
    %1234 = vmatprep.subr.mxu0 0.0
    %1235 = vmatpush2.msra.mxu0 0.0
    %1236 = vmatprep.subr.mxu0 0.0
    %1237 = vmatpush2.msra.mxu0 0.0
    %1238 = vmatprep.subr.mxu0 0.0
    %1239 = vmatpush2.msra.mxu0 0.0
    %1240 = vmatprep.subr.mxu0 0.0
    %1241 = vmatpush2.msra.mxu0 0.0
    %1242 = vmatprep.subr.mxu0 0.0
    %1243 = vmatpush2.msra.mxu0 0.0
    %1244 = vmatprep.subr.mxu0 0.0
    %1245 = vmatpush2.msra.mxu0 0.0
    %1246 = vmatprep.subr.mxu0 0.0
    %1247 = vmatpush2.msra.mxu0 0.0
    %1248 = vmatprep.subr.mxu0 0.0
    %1249 = vmatpush2.msra.mxu0 0.0
    %1250 = vmatprep.subr.mxu0 0.0
    %1251 = vmatpush2.msra.mxu0 0.0
    %1252 = vmatprep.subr.mxu0 0.0
    %1253 = vmatpush2.msra.mxu0 0.0
    %1254 = vmatprep.subr.mxu0 0.0
    %1255 = vmatpush2.msra.mxu0 0.0
    %1256 = vmatprep.subr.mxu0 0.0
    %1257 = vmatpush2.msra.mxu0 0.0
    %1258 = vmatprep.subr.mxu0 0.0
    %1259 = vmatpush2.msra.mxu0 0.0
    %1260 = vmatprep.subr.mxu0 0.0
    %1261 = vmatpush2.msra.mxu0 0.0
    %1262 = vmatprep.subr.mxu0 0.0
    %1263 = vmatpush2.msra.mxu0 0.0
    %1264 = vmatprep.subr.mxu0 0.0
    %1265 = vmatpush2.msra.mxu0 0.0
    %1266 = vmatprep.mubr.f32.mxu0 0.0
    %1267 = vmatmul.mubr.f32.gmra.mxu0 %v1201
    %v1268 = vpop.f32.mrf.mxu0
    %v1269 = vadd.f32 %v307, %v1268
    %v1270 = vpop.f32.mrf.mxu0
    %v1271 = vadd.f32 %v311, %v1270
    %1272 = vdwg.mxu0
    %1273 = vmatprep.subr.mxu0 0.0
    %1274 = vmatpush1.msra.mxu0 %v301
    %1275 = vmatprep.subr.mxu0 0.0
    %1276 = vmatpush1.msra.mxu0 %v298
    %1277 = vmatprep.subr.mxu0 0.0
    %1278 = vmatpush1.msra.mxu0 %v295
    %1279 = vmatprep.subr.mxu0 0.0
    %1280 = vmatpush1.msra.mxu0 %v292
    %1281 = vmatprep.subr.mxu0 0.0
    %1282 = vmatpush1.msra.mxu0 %v289
    %1283 = vmatprep.subr.mxu0 0.0
    %1284 = vmatpush1.msra.mxu0 %v286
    %1285 = vmatprep.subr.mxu0 0.0
    %1286 = vmatpush1.msra.mxu0 %v283
    %1287 = vmatprep.subr.mxu0 0.0
    %1288 = vmatpush1.msra.mxu0 %v280
    %1289 = vmatprep.subr.mxu0 0.0
    %1290 = vmatpush1.msra.mxu0 %v277
    %1291 = vmatprep.subr.mxu0 0.0
    %1292 = vmatpush1.msra.mxu0 %v274
    %1293 = vmatprep.subr.mxu0 0.0
    %1294 = vmatpush1.msra.mxu0 %v271
    %1295 = vmatprep.subr.mxu0 0.0
    %1296 = vmatpush1.msra.mxu0 %v268
    %1297 = vmatprep.subr.mxu0 0.0
    %1298 = vmatpush1.msra.mxu0 %v265
    %1299 = vmatprep.subr.mxu0 0.0
    %1300 = vmatpush1.msra.mxu0 %v262
    %1301 = vmatprep.subr.mxu0 0.0
    %1302 = vmatpush1.msra.mxu0 %v259
    %1303 = vmatprep.subr.mxu0 0.0
    %1304 = vmatpush1.msra.mxu0 %v256
    %1305 = vmatprep.subr.mxu0 0.0
    %1306 = vmatpush2.msra.mxu0 0.0
    %1307 = vmatprep.subr.mxu0 0.0
    %1308 = vmatpush2.msra.mxu0 0.0
    %1309 = vmatprep.subr.mxu0 0.0
    %1310 = vmatpush2.msra.mxu0 0.0
    %1311 = vmatprep.subr.mxu0 0.0
    %1312 = vmatpush2.msra.mxu0 0.0
    %1313 = vmatprep.subr.mxu0 0.0
    %1314 = vmatpush2.msra.mxu0 0.0
    %1315 = vmatprep.subr.mxu0 0.0
    %1316 = vmatpush2.msra.mxu0 0.0
    %1317 = vmatprep.subr.mxu0 0.0
    %1318 = vmatpush2.msra.mxu0 0.0
    %1319 = vmatprep.subr.mxu0 0.0
    %1320 = vmatpush2.msra.mxu0 0.0
    %1321 = vmatprep.subr.mxu0 0.0
    %1322 = vmatpush2.msra.mxu0 0.0
    %1323 = vmatprep.subr.mxu0 0.0
    %1324 = vmatpush2.msra.mxu0 0.0
    %1325 = vmatprep.subr.mxu0 0.0
    %1326 = vmatpush2.msra.mxu0 0.0
    %1327 = vmatprep.subr.mxu0 0.0
    %1328 = vmatpush2.msra.mxu0 0.0
    %1329 = vmatprep.subr.mxu0 0.0
    %1330 = vmatpush2.msra.mxu0 0.0
    %1331 = vmatprep.subr.mxu0 0.0
    %1332 = vmatpush2.msra.mxu0 0.0
    %1333 = vmatprep.subr.mxu0 0.0
    %1334 = vmatpush2.msra.mxu0 0.0
    %1335 = vmatprep.subr.mxu0 0.0
    %1336 = vmatpush2.msra.mxu0 0.0
    %1337 = vmatprep.mubr.f32.mxu0 0.0
    %1338 = vmatmul.mubr.f32.gmra.mxu0 %v1201
    %v1339 = vpop.f32.mrf.mxu0
    %v1340 = vadd.f32 %v315, %v1339
    %v1341 = vpop.f32.mrf.mxu0
    %1342 = vdwg.mxu0
    %v1344 = vrot.slane %v1269, 6
    %v1346 = vadd.f32 %v174, %v1344
    %v1347 = vxor.u32 %v1346, 2147483648
    %v1348 = vmul.f32 %v1347, 1.442695
    %v1349 = vpow.pop %v1348
    %v1350 = vadd.f32 %v1349, 1.0
    %v1351 = vrcp.pop %v1350
    %v1352 = vmul.f32 1.0, %v1351
    %v1354 = vrot.slane %v1271, 6
    %v1356 = vadd.f32 %v176, %v1354
    %v1357 = vxor.u32 %v1356, 2147483648
    %v1358 = vmul.f32 %v1357, 1.442695
    %v1359 = vpow.pop %v1358
    %v1360 = vadd.f32 %v1359, 1.0
    %v1361 = vrcp.pop %v1360
    %v1362 = vmul.f32 1.0, %v1361
    %v1364 = vrot.slane %v1340, 6
    %v1366 = vmul.f32 %v1352, %v1364
    %v1367 = vadd.f32 %v250, %v1366
    %v1368 = vtanh.pop %v1367
    %v1369 = vsub.f32 1.0, %v1362
    %v1370 = vmul.f32 %v1369, %v1368
    %v1372 = vrot.slane %v1201, 6
    %v1374 = vmul.f32 %v1362, %v1372
    %v1375 = vadd.f32 %v1370, %v1374
    %s1376 = sadd.s32 %s481, 5
    %p1377 = scmp.lt.s32.totalorder %s1376, 2
    %s1378 = scalar_select %p1377, 1, 0
    %v1379 = vstv %s1378
    %vm1380 = vcmp.eq.s32.totalorder %v1379, 1
    %v1381 = vsel %vm1380, %v1375, %v1372
    %v1383 = vrot.slane %v1381, 2
    %1385 = vmatprep.subr.mxu0 %v300
    %1386 = vmatpush1.msra.mxu0 %v299
    %1387 = vmatprep.subr.mxu0 %v297
    %1388 = vmatpush1.msra.mxu0 %v296
    %1389 = vmatprep.subr.mxu0 %v294
    %1390 = vmatpush1.msra.mxu0 %v293
    %1391 = vmatprep.subr.mxu0 %v291
    %1392 = vmatpush1.msra.mxu0 %v290
    %1393 = vmatprep.subr.mxu0 %v288
    %1394 = vmatpush1.msra.mxu0 %v287
    %1395 = vmatprep.subr.mxu0 %v285
    %1396 = vmatpush1.msra.mxu0 %v284
    %1397 = vmatprep.subr.mxu0 %v282
    %1398 = vmatpush1.msra.mxu0 %v281
    %1399 = vmatprep.subr.mxu0 %v279
    %1400 = vmatpush1.msra.mxu0 %v278
    %1401 = vmatprep.subr.mxu0 %v276
    %1402 = vmatpush1.msra.mxu0 %v275
    %1403 = vmatprep.subr.mxu0 %v273
    %1404 = vmatpush1.msra.mxu0 %v272
    %1405 = vmatprep.subr.mxu0 %v270
    %1406 = vmatpush1.msra.mxu0 %v269
    %1407 = vmatprep.subr.mxu0 %v267
    %1408 = vmatpush1.msra.mxu0 %v266
    %1409 = vmatprep.subr.mxu0 %v264
    %1410 = vmatpush1.msra.mxu0 %v263
    %1411 = vmatprep.subr.mxu0 %v261
    %1412 = vmatpush1.msra.mxu0 %v260
    %1413 = vmatprep.subr.mxu0 %v258
    %1414 = vmatpush1.msra.mxu0 %v257
    %1415 = vmatprep.subr.mxu0 %v255
    %1416 = vmatpush1.msra.mxu0 %v254
    %1417 = vmatprep.subr.mxu0 0.0
    %1418 = vmatpush2.msra.mxu0 0.0
    %1419 = vmatprep.subr.mxu0 0.0
    %1420 = vmatpush2.msra.mxu0 0.0
    %1421 = vmatprep.subr.mxu0 0.0
    %1422 = vmatpush2.msra.mxu0 0.0
    %1423 = vmatprep.subr.mxu0 0.0
    %1424 = vmatpush2.msra.mxu0 0.0
    %1425 = vmatprep.subr.mxu0 0.0
    %1426 = vmatpush2.msra.mxu0 0.0
    %1427 = vmatprep.subr.mxu0 0.0
    %1428 = vmatpush2.msra.mxu0 0.0
    %1429 = vmatprep.subr.mxu0 0.0
    %1430 = vmatpush2.msra.mxu0 0.0
    %1431 = vmatprep.subr.mxu0 0.0
    %1432 = vmatpush2.msra.mxu0 0.0
    %1433 = vmatprep.subr.mxu0 0.0
    %1434 = vmatpush2.msra.mxu0 0.0
    %1435 = vmatprep.subr.mxu0 0.0
    %1436 = vmatpush2.msra.mxu0 0.0
    %1437 = vmatprep.subr.mxu0 0.0
    %1438 = vmatpush2.msra.mxu0 0.0
    %1439 = vmatprep.subr.mxu0 0.0
    %1440 = vmatpush2.msra.mxu0 0.0
    %1441 = vmatprep.subr.mxu0 0.0
    %1442 = vmatpush2.msra.mxu0 0.0
    %1443 = vmatprep.subr.mxu0 0.0
    %1444 = vmatpush2.msra.mxu0 0.0
    %1445 = vmatprep.subr.mxu0 0.0
    %1446 = vmatpush2.msra.mxu0 0.0
    %1447 = vmatprep.subr.mxu0 0.0
    %1448 = vmatpush2.msra.mxu0 0.0
    %1449 = vmatprep.mubr.f32.mxu0 0.0
    %1450 = vmatmul.mubr.f32.gmra.mxu0 %v1383
    %v1451 = vpop.f32.mrf.mxu0
    %v1452 = vadd.f32 %v307, %v1451
    %v1453 = vpop.f32.mrf.mxu0
    %v1454 = vadd.f32 %v311, %v1453
    %1455 = vdwg.mxu0
    %1456 = vmatprep.subr.mxu0 0.0
    %1457 = vmatpush1.msra.mxu0 %v301
    %1458 = vmatprep.subr.mxu0 0.0
    %1459 = vmatpush1.msra.mxu0 %v298
    %1460 = vmatprep.subr.mxu0 0.0
    %1461 = vmatpush1.msra.mxu0 %v295
    %1462 = vmatprep.subr.mxu0 0.0
    %1463 = vmatpush1.msra.mxu0 %v292
    %1464 = vmatprep.subr.mxu0 0.0
    %1465 = vmatpush1.msra.mxu0 %v289
    %1466 = vmatprep.subr.mxu0 0.0
    %1467 = vmatpush1.msra.mxu0 %v286
    %1468 = vmatprep.subr.mxu0 0.0
    %1469 = vmatpush1.msra.mxu0 %v283
    %1470 = vmatprep.subr.mxu0 0.0
    %1471 = vmatpush1.msra.mxu0 %v280
    %1472 = vmatprep.subr.mxu0 0.0
    %1473 = vmatpush1.msra.mxu0 %v277
    %1474 = vmatprep.subr.mxu0 0.0
    %1475 = vmatpush1.msra.mxu0 %v274
    %1476 = vmatprep.subr.mxu0 0.0
    %1477 = vmatpush1.msra.mxu0 %v271
    %1478 = vmatprep.subr.mxu0 0.0
    %1479 = vmatpush1.msra.mxu0 %v268
    %1480 = vmatprep.subr.mxu0 0.0
    %1481 = vmatpush1.msra.mxu0 %v265
    %1482 = vmatprep.subr.mxu0 0.0
    %1483 = vmatpush1.msra.mxu0 %v262
    %1484 = vmatprep.subr.mxu0 0.0
    %1485 = vmatpush1.msra.mxu0 %v259
    %1486 = vmatprep.subr.mxu0 0.0
    %1487 = vmatpush1.msra.mxu0 %v256
    %1488 = vmatprep.subr.mxu0 0.0
    %1489 = vmatpush2.msra.mxu0 0.0
    %1490 = vmatprep.subr.mxu0 0.0
    %1491 = vmatpush2.msra.mxu0 0.0
    %1492 = vmatprep.subr.mxu0 0.0
    %1493 = vmatpush2.msra.mxu0 0.0
    %1494 = vmatprep.subr.mxu0 0.0
    %1495 = vmatpush2.msra.mxu0 0.0
    %1496 = vmatprep.subr.mxu0 0.0
    %1497 = vmatpush2.msra.mxu0 0.0
    %1498 = vmatprep.subr.mxu0 0.0
    %1499 = vmatpush2.msra.mxu0 0.0
    %1500 = vmatprep.subr.mxu0 0.0
    %1501 = vmatpush2.msra.mxu0 0.0
    %1502 = vmatprep.subr.mxu0 0.0
    %1503 = vmatpush2.msra.mxu0 0.0
    %1504 = vmatprep.subr.mxu0 0.0
    %1505 = vmatpush2.msra.mxu0 0.0
    %1506 = vmatprep.subr.mxu0 0.0
    %1507 = vmatpush2.msra.mxu0 0.0
    %1508 = vmatprep.subr.mxu0 0.0
    %1509 = vmatpush2.msra.mxu0 0.0
    %1510 = vmatprep.subr.mxu0 0.0
    %1511 = vmatpush2.msra.mxu0 0.0
    %1512 = vmatprep.subr.mxu0 0.0
    %1513 = vmatpush2.msra.mxu0 0.0
    %1514 = vmatprep.subr.mxu0 0.0
    %1515 = vmatpush2.msra.mxu0 0.0
    %1516 = vmatprep.subr.mxu0 0.0
    %1517 = vmatpush2.msra.mxu0 0.0
    %1518 = vmatprep.subr.mxu0 0.0
    %1519 = vmatpush2.msra.mxu0 0.0
    %1520 = vmatprep.mubr.f32.mxu0 0.0
    %1521 = vmatmul.mubr.f32.gmra.mxu0 %v1383
    %v1522 = vpop.f32.mrf.mxu0
    %v1523 = vadd.f32 %v315, %v1522
    %v1524 = vpop.f32.mrf.mxu0
    %1525 = vdwg.mxu0
    %v1527 = vrot.slane %v1452, 4
    %v1529 = vadd.f32 %v174, %v1527
    %v1530 = vxor.u32 %v1529, 2147483648
    %v1531 = vmul.f32 %v1530, 1.442695
    %v1532 = vpow.pop %v1531
    %v1533 = vadd.f32 %v1532, 1.0
    %v1534 = vrcp.pop %v1533
    %v1535 = vmul.f32 1.0, %v1534
    %v1537 = vrot.slane %v1454, 4
    %v1539 = vadd.f32 %v176, %v1537
    %v1540 = vxor.u32 %v1539, 2147483648
    %v1541 = vmul.f32 %v1540, 1.442695
    %v1542 = vpow.pop %v1541
    %v1543 = vadd.f32 %v1542, 1.0
    %v1544 = vrcp.pop %v1543
    %v1545 = vmul.f32 1.0, %v1544
    %v1547 = vrot.slane %v1523, 4
    %v1549 = vmul.f32 %v1535, %v1547
    %v1550 = vadd.f32 %v250, %v1549
    %v1551 = vtanh.pop %v1550
    %v1552 = vsub.f32 1.0, %v1545
    %v1553 = vmul.f32 %v1552, %v1551
    %v1554 = vrot.slane %v1381, 6
    %v1556 = vmul.f32 %v1545, %v1554
    %v1557 = vadd.f32 %v1553, %v1556
    %s1558 = sadd.s32 %s481, 6
    %p1559 = scmp.lt.s32.totalorder %s1558, 2
    %s1560 = scalar_select %p1559, 1, 0
    %v1561 = vstv %s1560
    %vm1562 = vcmp.eq.s32.totalorder %v1561, 1
    %v1563 = vsel %vm1562, %v1557, %v1554
    %v1565 = vrot.slane %v1563, 4
    %1567 = vmatprep.subr.mxu0 %v300
    %1568 = vmatpush1.msra.mxu0 %v299
    %1569 = vmatprep.subr.mxu0 %v297
    %1570 = vmatpush1.msra.mxu0 %v296
    %1571 = vmatprep.subr.mxu0 %v294
    %1572 = vmatpush1.msra.mxu0 %v293
    %1573 = vmatprep.subr.mxu0 %v291
    %1574 = vmatpush1.msra.mxu0 %v290
    %1575 = vmatprep.subr.mxu0 %v288
    %1576 = vmatpush1.msra.mxu0 %v287
    %1577 = vmatprep.subr.mxu0 %v285
    %1578 = vmatpush1.msra.mxu0 %v284
    %1579 = vmatprep.subr.mxu0 %v282
    %1580 = vmatpush1.msra.mxu0 %v281
    %1581 = vmatprep.subr.mxu0 %v279
    %1582 = vmatpush1.msra.mxu0 %v278
    %1583 = vmatprep.subr.mxu0 %v276
    %1584 = vmatpush1.msra.mxu0 %v275
    %1585 = vmatprep.subr.mxu0 %v273
    %1586 = vmatpush1.msra.mxu0 %v272
    %1587 = vmatprep.subr.mxu0 %v270
    %1588 = vmatpush1.msra.mxu0 %v269
    %1589 = vmatprep.subr.mxu0 %v267
    %1590 = vmatpush1.msra.mxu0 %v266
    %1591 = vmatprep.subr.mxu0 %v264
    %1592 = vmatpush1.msra.mxu0 %v263
    %1593 = vmatprep.subr.mxu0 %v261
    %1594 = vmatpush1.msra.mxu0 %v260
    %1595 = vmatprep.subr.mxu0 %v258
    %1596 = vmatpush1.msra.mxu0 %v257
    %1597 = vmatprep.subr.mxu0 %v255
    %1598 = vmatpush1.msra.mxu0 %v254
    %1599 = vmatprep.subr.mxu0 0.0
    %1600 = vmatpush2.msra.mxu0 0.0
    %1601 = vmatprep.subr.mxu0 0.0
    %1602 = vmatpush2.msra.mxu0 0.0
    %1603 = vmatprep.subr.mxu0 0.0
    %1604 = vmatpush2.msra.mxu0 0.0
    %1605 = vmatprep.subr.mxu0 0.0
    %1606 = vmatpush2.msra.mxu0 0.0
    %1607 = vmatprep.subr.mxu0 0.0
    %1608 = vmatpush2.msra.mxu0 0.0
    %1609 = vmatprep.subr.mxu0 0.0
    %1610 = vmatpush2.msra.mxu0 0.0
    %1611 = vmatprep.subr.mxu0 0.0
    %1612 = vmatpush2.msra.mxu0 0.0
    %1613 = vmatprep.subr.mxu0 0.0
    %1614 = vmatpush2.msra.mxu0 0.0
    %1615 = vmatprep.subr.mxu0 0.0
    %1616 = vmatpush2.msra.mxu0 0.0
    %1617 = vmatprep.subr.mxu0 0.0
    %1618 = vmatpush2.msra.mxu0 0.0
    %1619 = vmatprep.subr.mxu0 0.0
    %1620 = vmatpush2.msra.mxu0 0.0
    %1621 = vmatprep.subr.mxu0 0.0
    %1622 = vmatpush2.msra.mxu0 0.0
    %1623 = vmatprep.subr.mxu0 0.0
    %1624 = vmatpush2.msra.mxu0 0.0
    %1625 = vmatprep.subr.mxu0 0.0
    %1626 = vmatpush2.msra.mxu0 0.0
    %1627 = vmatprep.subr.mxu0 0.0
    %1628 = vmatpush2.msra.mxu0 0.0
    %1629 = vmatprep.subr.mxu0 0.0
    %1630 = vmatpush2.msra.mxu0 0.0
    %1631 = vmatprep.mubr.f32.mxu0 0.0
    %1632 = vmatmul.mubr.f32.gmra.mxu0 %v1565
    %v1633 = vpop.f32.mrf.mxu0
    %v1634 = vadd.f32 %v307, %v1633
    %v1635 = vpop.f32.mrf.mxu0
    %v1636 = vadd.f32 %v311, %v1635
    %1637 = vdwg.mxu0
    %1638 = vmatprep.subr.mxu0 0.0
    %1639 = vmatpush1.msra.mxu0 %v301
    %1640 = vmatprep.subr.mxu0 0.0
    %1641 = vmatpush1.msra.mxu0 %v298
    %1642 = vmatprep.subr.mxu0 0.0
    %1643 = vmatpush1.msra.mxu0 %v295
    %1644 = vmatprep.subr.mxu0 0.0
    %1645 = vmatpush1.msra.mxu0 %v292
    %1646 = vmatprep.subr.mxu0 0.0
    %1647 = vmatpush1.msra.mxu0 %v289
    %1648 = vmatprep.subr.mxu0 0.0
    %1649 = vmatpush1.msra.mxu0 %v286
    %1650 = vmatprep.subr.mxu0 0.0
    %1651 = vmatpush1.msra.mxu0 %v283
    %1652 = vmatprep.subr.mxu0 0.0
    %1653 = vmatpush1.msra.mxu0 %v280
    %1654 = vmatprep.subr.mxu0 0.0
    %1655 = vmatpush1.msra.mxu0 %v277
    %1656 = vmatprep.subr.mxu0 0.0
    %1657 = vmatpush1.msra.mxu0 %v274
    %1658 = vmatprep.subr.mxu0 0.0
    %1659 = vmatpush1.msra.mxu0 %v271
    %1660 = vmatprep.subr.mxu0 0.0
    %1661 = vmatpush1.msra.mxu0 %v268
    %1662 = vmatprep.subr.mxu0 0.0
    %1663 = vmatpush1.msra.mxu0 %v265
    %1664 = vmatprep.subr.mxu0 0.0
    %1665 = vmatpush1.msra.mxu0 %v262
    %1666 = vmatprep.subr.mxu0 0.0
    %1667 = vmatpush1.msra.mxu0 %v259
    %1668 = vmatprep.subr.mxu0 0.0
    %1669 = vmatpush1.msra.mxu0 %v256
    %1670 = vmatprep.subr.mxu0 0.0
    %1671 = vmatpush2.msra.mxu0 0.0
    %1672 = vmatprep.subr.mxu0 0.0
    %1673 = vmatpush2.msra.mxu0 0.0
    %1674 = vmatprep.subr.mxu0 0.0
    %1675 = vmatpush2.msra.mxu0 0.0
    %1676 = vmatprep.subr.mxu0 0.0
    %1677 = vmatpush2.msra.mxu0 0.0
    %1678 = vmatprep.subr.mxu0 0.0
    %1679 = vmatpush2.msra.mxu0 0.0
    %1680 = vmatprep.subr.mxu0 0.0
    %1681 = vmatpush2.msra.mxu0 0.0
    %1682 = vmatprep.subr.mxu0 0.0
    %1683 = vmatpush2.msra.mxu0 0.0
    %1684 = vmatprep.subr.mxu0 0.0
    %1685 = vmatpush2.msra.mxu0 0.0
    %1686 = vmatprep.subr.mxu0 0.0
    %1687 = vmatpush2.msra.mxu0 0.0
    %1688 = vmatprep.subr.mxu0 0.0
    %1689 = vmatpush2.msra.mxu0 0.0
    %1690 = vmatprep.subr.mxu0 0.0
    %1691 = vmatpush2.msra.mxu0 0.0
    %1692 = vmatprep.subr.mxu0 0.0
    %1693 = vmatpush2.msra.mxu0 0.0
    %1694 = vmatprep.subr.mxu0 0.0
    %1695 = vmatpush2.msra.mxu0 0.0
    %1696 = vmatprep.subr.mxu0 0.0
    %1697 = vmatpush2.msra.mxu0 0.0
    %1698 = vmatprep.subr.mxu0 0.0
    %1699 = vmatpush2.msra.mxu0 0.0
    %1700 = vmatprep.subr.mxu0 0.0
    %1701 = vmatpush2.msra.mxu0 0.0
    %1702 = vmatprep.mubr.f32.mxu0 0.0
    %1703 = vmatmul.mubr.f32.gmra.mxu0 %v1565
    %v1704 = vpop.f32.mrf.mxu0
    %v1705 = vadd.f32 %v315, %v1704
    %v1706 = vpop.f32.mrf.mxu0
    %1707 = vdwg.mxu0
    %v1709 = vrot.slane %v1634, 2
    %v1711 = vadd.f32 %v174, %v1709
    %v1712 = vxor.u32 %v1711, 2147483648
    %v1713 = vmul.f32 %v1712, 1.442695
    %v1714 = vpow.pop %v1713
    %v1715 = vadd.f32 %v1714, 1.0
    %v1716 = vrcp.pop %v1715
    %v1717 = vmul.f32 1.0, %v1716
    %v1719 = vrot.slane %v1636, 2
    %v1721 = vadd.f32 %v176, %v1719
    %v1722 = vxor.u32 %v1721, 2147483648
    %v1723 = vmul.f32 %v1722, 1.442695
    %v1724 = vpow.pop %v1723
    %v1725 = vadd.f32 %v1724, 1.0
    %v1726 = vrcp.pop %v1725
    %v1727 = vmul.f32 1.0, %v1726
    %v1729 = vrot.slane %v1705, 2
    %v1731 = vmul.f32 %v1717, %v1729
    %v1732 = vadd.f32 %v250, %v1731
    %v1733 = vtanh.pop %v1732
    %v1734 = vsub.f32 1.0, %v1727
    %v1735 = vmul.f32 %v1734, %v1733
    %v1736 = vrot.slane %v1563, 6
    %v1738 = vmul.f32 %v1727, %v1736
    %v1739 = vadd.f32 %v1735, %v1738
    %s1740 = sadd.s32 %s481, 7
    %p1741 = scmp.lt.s32.totalorder %s1740, 2
    %s1742 = scalar_select %p1741, 1, 0
    %v1743 = vstv %s1742
    %vm1744 = vcmp.eq.s32.totalorder %v1743, 1
    %v1745 = vsel %vm1744, %v1739, %v1736
    %1746 = vst [vmem:[#allocation2 - $0x6] sm:$0xc0] %v1745
    // Predicated region
    $region34: #{reference_encoder_forward.13} parent=1 // pred_check
      %p1747 = pneg %p27
    $region35: #{reference_encoder_forward.13} parent=1 // pred_check_branch
      %1749 = sbr.rel (%p1747) target = $region37
    $region36: #{reference_encoder_forward.13} parent=1 // pred_region
      %v1750 = vld [vmem:[%s5] sm:$0xff]
      %v1751 = vld [vmem:[%s5 + $0x8] sm:$0xff]
      %v1752 = vld [vmem:[%s5 + $0x10] sm:$0xff]
      %v1753 = vld [vmem:[%s5 + $0x18] sm:$0xff]
      %v1754 = vld [vmem:[%s5 + $0x20] sm:$0xff]
      %v1755 = vld [vmem:[%s5 + $0x28] sm:$0xff]
      %v1756 = vld [vmem:[%s5 + $0x30] sm:$0xff]
      %v1757 = vld [vmem:[%s5 + $0x38] sm:$0xff]
      %v1758 = vld [vmem:[%s5 + $0x40] sm:$0xff]
      %v1759 = vld [vmem:[%s5 + $0x48] sm:$0xff]
      %v1760 = vld [vmem:[%s5 + $0x50] sm:$0xff]
      %v1761 = vld [vmem:[%s5 + $0x58] sm:$0xff]
      %v1762 = vld [vmem:[%s5 + $0x60] sm:$0xff]
      %v1763 = vld [vmem:[%s5 + $0x68] sm:$0xff]
      %v1764 = vld [vmem:[%s5 + $0x70] sm:$0xff]
      %v1765 = vld [vmem:[%s5 + $0x78] sm:$0xff]
      %v1766 = vld [vmem:[%s6] sm:$0x1]
      %v1768 = vlaneseq
      %v1769 = vshrl.u32 %v1768, 7
      %v1770 = vsub.s32 0, %v1769
      %v1771 = vrot.slane %v1766, %v1770
      %v1774 = vrot.slane %v1745, 6
      %1776 = vmatprep.subr.mxu0 0.0
      %1777 = vmatpush1.msra.mxu0 %v1765
      %1778 = vmatprep.subr.mxu0 0.0
      %1779 = vmatpush1.msra.mxu0 %v1764
      %1780 = vmatprep.subr.mxu0 0.0
      %1781 = vmatpush1.msra.mxu0 %v1763
      %1782 = vmatprep.subr.mxu0 0.0
      %1783 = vmatpush1.msra.mxu0 %v1762
      %1784 = vmatprep.subr.mxu0 0.0
      %1785 = vmatpush1.msra.mxu0 %v1761
      %1786 = vmatprep.subr.mxu0 0.0
      %1787 = vmatpush1.msra.mxu0 %v1760
      %1788 = vmatprep.subr.mxu0 0.0
      %1789 = vmatpush1.msra.mxu0 %v1759
      %1790 = vmatprep.subr.mxu0 0.0
      %1791 = vmatpush1.msra.mxu0 %v1758
      %1792 = vmatprep.subr.mxu0 0.0
      %1793 = vmatpush1.msra.mxu0 %v1757
      %1794 = vmatprep.subr.mxu0 0.0
      %1795 = vmatpush1.msra.mxu0 %v1756
      %1796 = vmatprep.subr.mxu0 0.0
      %1797 = vmatpush1.msra.mxu0 %v1755
      %1798 = vmatprep.subr.mxu0 0.0
      %1799 = vmatpush1.msra.mxu0 %v1754
      %1800 = vmatprep.subr.mxu0 0.0
      %1801 = vmatpush1.msra.mxu0 %v1753
      %1802 = vmatprep.subr.mxu0 0.0
      %1803 = vmatpush1.msra.mxu0 %v1752
      %1804 = vmatprep.subr.mxu0 0.0
      %1805 = vmatpush1.msra.mxu0 %v1751
      %1806 = vmatprep.subr.mxu0 0.0
      %1807 = vmatpush1.msra.mxu0 %v1750
      %1808 = vmatprep.subr.mxu0 0.0
      %1809 = vmatpush2.msra.mxu0 0.0
      %1810 = vmatprep.subr.mxu0 0.0
      %1811 = vmatpush2.msra.mxu0 0.0
      %1812 = vmatprep.subr.mxu0 0.0
      %1813 = vmatpush2.msra.mxu0 0.0
      %1814 = vmatprep.subr.mxu0 0.0
      %1815 = vmatpush2.msra.mxu0 0.0
      %1816 = vmatprep.subr.mxu0 0.0
      %1817 = vmatpush2.msra.mxu0 0.0
      %1818 = vmatprep.subr.mxu0 0.0
      %1819 = vmatpush2.msra.mxu0 0.0
      %1820 = vmatprep.subr.mxu0 0.0
      %1821 = vmatpush2.msra.mxu0 0.0
      %1822 = vmatprep.subr.mxu0 0.0
      %1823 = vmatpush2.msra.mxu0 0.0
      %1824 = vmatprep.subr.mxu0 0.0
      %1825 = vmatpush2.msra.mxu0 0.0
      %1826 = vmatprep.subr.mxu0 0.0
      %1827 = vmatpush2.msra.mxu0 0.0
      %1828 = vmatprep.subr.mxu0 0.0
      %1829 = vmatpush2.msra.mxu0 0.0
      %1830 = vmatprep.subr.mxu0 0.0
      %1831 = vmatpush2.msra.mxu0 0.0
      %1832 = vmatprep.subr.mxu0 0.0
      %1833 = vmatpush2.msra.mxu0 0.0
      %1834 = vmatprep.subr.mxu0 0.0
      %1835 = vmatpush2.msra.mxu0 0.0
      %1836 = vmatprep.subr.mxu0 0.0
      %1837 = vmatpush2.msra.mxu0 0.0
      %1838 = vmatprep.subr.mxu0 0.0
      %1839 = vmatpush2.msra.mxu0 0.0
      %1840 = vmatprep.mubr.f32.mxu0 0.0
      %1841 = vmatmul.mubr.f32.gmra.mxu0 %v1774
      %v1842 = vpop.f32.mrf.mxu0
      %v1843 = vadd.f32 %v1771, %v1842
      %v1844 = vpop.f32.mrf.mxu0
      %1845 = vdwg.mxu0
      %vm1846 = vcmask 254976
      %1847 = vst.msk [vmem:[#allocation3] sm:$0x3] %vm1846, %v1843
    $region37: #{reference_encoder_forward.13} parent=1 // pred_fallthru
      _
    // Predicated region
    $region38: #{reference_encoder_forward.13} parent=1 // pred_check
      _
    $region39: #{reference_encoder_forward.13} parent=1 // pred_check_branch
      %1849 = sbr.rel (0) target = $region41
    $region40: #{reference_encoder_forward.13} parent=1 // pred_region
      %s1851 = ssub.s32 32, 32
      %1852 = vsyncadd [#allocation4], %s1851
      %s1854 = sshll.u32 [#allocation3], 4
      %s1855 = int_to_ptr.vmem [resolvable:$true] %s1854
      %1857 = dma.vmem_to_hbm [thread:$0]  %s1855, 32, %s7, [#allocation4]
    $region41: #{reference_encoder_forward.13} parent=1 // pred_fallthru
      _
    // Predicated region
    $region42: #{reference_encoder_forward.13} parent=1 // pred_check
      _
    $region43: #{reference_encoder_forward.13} parent=1 // pred_check_branch
      %1859 = sbr.rel (0) target = $region45
    $region44: #{reference_encoder_forward.13} parent=1 // pred_region
      %1860 = dma.done [#allocation4], 32
    $region45: #{reference_encoder_forward.13} parent=1 // pred_fallthru
      _
    %1861 = vsyncpa [#allocation4], 1

</llo_original>
